<compile_context>
chip_gen: v7x
topology: tpu7x:2x2x1
jax: 0.10.0
libtpu: 0.0.40
codegen_flags: <defaults>
</compile_context>

<pallas_src>
import jax
import jax.numpy as jnp
from jax.experimental import pallas as pl
from jax.experimental.pallas import tpu as pltpu

_VMEM_LIMIT_BYTES = 64 * 1024 * 1024   # <= v7x physical VMEM; well under v5e/v6e 128 MiB


# --------------------------------------------------------------------------------------
# Pallas kernels
# --------------------------------------------------------------------------------------
def _acc_init(acc_ref, k_pid):
    @pl.when(k_pid == 0)
    def _():
        acc_ref[...] = jnp.full_like(acc_ref, -jnp.inf)


def _relation_max(relf_ref, feat_fn, wr, br, kt):
    """max_i ReLU(relf_i @ wr + br) * feat_i over the kt neighbours of this K tile."""
    m = None
    for i in range(kt):            # static unroll; kt <= 8, the K reduction lives in the grid
        w = jnp.maximum(
            jnp.dot(relf_ref[i], wr, preferred_element_type=jnp.float32) + br, 0.0)
        prod = w * feat_fn(i)
        m = prod if m is None else jnp.maximum(m, prod)
    return m


def _out_conv(acc, wo_ref, s_ref, t_ref):
    # output 1x1 conv (bf16 MXU, f32 accumulate) + folded BN + ReLU
    y = jnp.dot(acc.astype(jnp.bfloat16), wo_ref[...], preferred_element_type=jnp.float32)
    return jnp.maximum(y * s_ref[...] + t_ref[...], 0.0)


def _rsconv_kernel(relf_ref, hnb_ref, wr_ref, br_ref, wo_ref, s_ref, t_ref,
                   o_ref, acc_ref):
    k_pid = pl.program_id(1)
    _acc_init(acc_ref, k_pid)
    kt = relf_ref.shape[0]
    m = _relation_max(relf_ref, lambda i: hnb_ref[i], wr_ref[...], br_ref[...], kt)
    acc_ref[...] = jnp.maximum(acc_ref[...], m)

    @pl.when(k_pid == pl.num_programs(1) - 1)
    def _():
        o_ref[...] = _out_conv(acc_ref[...], wo_ref, s_ref, t_ref).astype(o_ref.dtype)


def _rsconv_raise_kernel(relf_ref, pg_ref, wx_ref, bx_ref, sx_ref, tx_ref,
                         wr_ref, br_ref, wo_ref, s_ref, t_ref, o_ref, acc_ref):
    # conv1 with xyz_raising fused: raise the gathered neighbour coords (F*3 -> 32)
    # in-VMEM instead of materializing the lane-sparse (B, N, 32) slab in HBM.
    k_pid = pl.program_id(1)
    _acc_init(acc_ref, k_pid)
    kt = relf_ref.shape[0]
    wx, bx = wx_ref[...], bx_ref[...]
    sx, tx = sx_ref[...], tx_ref[...]

    def feat(i):
        h = jnp.dot(pg_ref[i], wx, preferred_element_type=jnp.float32) + bx
        return jnp.maximum(h * sx + tx, 0.0)

    m = _relation_max(relf_ref, feat, wr_ref[...], br_ref[...], kt)
    acc_ref[...] = jnp.maximum(acc_ref[...], m)

    @pl.when(k_pid == pl.num_programs(1) - 1)
    def _():
        o_ref[...] = _out_conv(acc_ref[...], wo_ref, s_ref, t_ref).astype(o_ref.dtype)


def _conv3_cls_kernel(relf_ref, hnb_ref, wr_ref, br_ref, wo_ref, s_ref, t_ref,
                      w1_ref, s1_ref, t1_ref, w2_ref, s2_ref, t2_ref, w3_ref, b3_ref,
                      o_ref, acc_ref):
    # conv3 (M=1) fused with the classifier head: Conv-BN-Drop-Conv-BN-Drop-Conv
    # (Dropout = identity, no ReLU between FCs); the (B, 1024) slab never leaves VMEM.
    k_pid = pl.program_id(0)
    _acc_init(acc_ref, k_pid)
    kt = relf_ref.shape[0]
    m = _relation_max(relf_ref, lambda i: hnb_ref[i], wr_ref[...], br_ref[...], kt)
    acc_ref[...] = jnp.maximum(acc_ref[...], m)

    @pl.when(k_pid == pl.num_programs(0) - 1)
    def _():
        y = _out_conv(acc_ref[...], wo_ref, s_ref, t_ref)                       # (bm, 1024)
        x = jnp.dot(y.astype(jnp.bfloat16), w1_ref[...], preferred_element_type=jnp.float32)
        x = x * s1_ref[...] + t1_ref[...]
        x = jnp.dot(x.astype(jnp.bfloat16), w2_ref[...], preferred_element_type=jnp.float32)
        x = x * s2_ref[...] + t2_ref[...]
        o_ref[...] = (jnp.dot(x.astype(jnp.bfloat16), w3_ref[...],
                              preferred_element_type=jnp.float32)
                      + b3_ref[...]).astype(o_ref.dtype)


# --------------------------------------------------------------------------------------
# Pallas wrappers
# --------------------------------------------------------------------------------------
def _ce(flops, bytes_accessed):
    return pl.CostEstimate(flops=int(flops), transcendentals=0,
                           bytes_accessed=int(bytes_accessed))


def _round8(n):
    return ((n + 7) // 8) * 8


def _pick_row_tile(rows, target=512):
    # rows is already a multiple of 8; pick the largest divisor <= target (mult. of 8)
    if rows <= target:
        return rows
    t = (target // 8) * 8
    while rows % t:
        t -= 8
    return max(t, 8)


def _pick_k_tile(k, target=8):
    t = min(k, target)
    while k % t:
        t -= 1
    return t


def _compiler_params(sem):
    return pltpu.CompilerParams(dimension_semantics=sem,
                                vmem_limit_bytes=_VMEM_LIMIT_BYTES)


def rsconv_call(relf, h_nb, prm):
    """OrientedAnchoredRSConv (conv2 style): relf (K, BM, Drel) bf16, h_nb (K, BM, Cin) f32."""
    wr, br, wo, scale, shift = prm
    K, BM, Dr = relf.shape
    Cin = h_nb.shape[-1]
    Cout = wo.shape[1]
    bm_t = _pick_row_tile(BM)
    k_t = _pick_k_tile(K)
    grid = (BM // bm_t, K // k_t)
    R = K * BM
    flops = 2 * R * Dr * Cin + 3 * R * Cin + 2 * BM * Cin * Cout + 3 * BM * Cout
    byts = (2 * R * Dr + 4 * R * Cin + 2 * Dr * Cin + 2 * Cin * Cout
            + 4 * (Cin + 2 * Cout) + 4 * BM * Cout)
    return pl.pallas_call(
        _rsconv_kernel,
        out_shape=jax.ShapeDtypeStruct((BM, Cout), jnp.float32),
        grid_spec=pltpu.PrefetchScalarGridSpec(
            num_scalar_prefetch=0,
            grid=grid,
            in_specs=[
                pl.BlockSpec((k_t, bm_t, Dr), lambda i, k: (k, i, 0)),
                pl.BlockSpec((k_t, bm_t, Cin), lambda i, k: (k, i, 0)),
                pl.BlockSpec((Dr, Cin), lambda i, k: (0, 0)),
                pl.BlockSpec((1, Cin), lambda i, k: (0, 0)),
                pl.BlockSpec((Cin, Cout), lambda i, k: (0, 0)),
                pl.BlockSpec((1, Cout), lambda i, k: (0, 0)),
                pl.BlockSpec((1, Cout), lambda i, k: (0, 0)),
            ],
            out_specs=pl.BlockSpec((bm_t, Cout), lambda i, k: (i, 0)),
            scratch_shapes=[pltpu.VMEM((bm_t, Cin), jnp.float32)],
        ),
        compiler_params=_compiler_params(("parallel", "arbitrary")),
        cost_estimate=_ce(flops, byts),
    )(relf, h_nb, wr, br, wo, scale, shift)


def rsconv_raise_call(relf, pg_nb, xyz_prm, prm):
    """conv1 with fused xyz_raising: pg_nb (K, BM, F*3) bf16 are the gathered coords."""
    wx, bx, sx, tx = xyz_prm
    wr, br, wo, scale, shift = prm
    K, BM, Dr = relf.shape
    Dpg = pg_nb.shape[-1]
    Cin = wx.shape[1]
    Cout = wo.shape[1]
    bm_t = _pick_row_tile(BM)
    k_t = _pick_k_tile(K)
    grid = (BM // bm_t, K // k_t)
    R = K * BM
    flops = (2 * R * Dpg * Cin + 2 * R * Dr * Cin + 7 * R * Cin
             + 2 * BM * Cin * Cout + 3 * BM * Cout)
    byts = (2 * R * (Dr + Dpg) + 2 * (Dpg * Cin + Dr * Cin + Cin * Cout)
            + 4 * (3 * Cin + 2 * Cout) + 4 * BM * Cout)
    return pl.pallas_call(
        _rsconv_raise_kernel,
        out_shape=jax.ShapeDtypeStruct((BM, Cout), jnp.float32),
        grid_spec=pltpu.PrefetchScalarGridSpec(
            num_scalar_prefetch=0,
            grid=grid,
            in_specs=[
                pl.BlockSpec((k_t, bm_t, Dr), lambda i, k: (k, i, 0)),
                pl.BlockSpec((k_t, bm_t, Dpg), lambda i, k: (k, i, 0)),
                pl.BlockSpec((Dpg, Cin), lambda i, k: (0, 0)),
                pl.BlockSpec((1, Cin), lambda i, k: (0, 0)),
                pl.BlockSpec((1, Cin), lambda i, k: (0, 0)),
                pl.BlockSpec((1, Cin), lambda i, k: (0, 0)),
                pl.BlockSpec((Dr, Cin), lambda i, k: (0, 0)),
                pl.BlockSpec((1, Cin), lambda i, k: (0, 0)),
                pl.BlockSpec((Cin, Cout), lambda i, k: (0, 0)),
                pl.BlockSpec((1, Cout), lambda i, k: (0, 0)),
                pl.BlockSpec((1, Cout), lambda i, k: (0, 0)),
            ],
            out_specs=pl.BlockSpec((bm_t, Cout), lambda i, k: (i, 0)),
            scratch_shapes=[pltpu.VMEM((bm_t, Cin), jnp.float32)],
        ),
        compiler_params=_compiler_params(("parallel", "arbitrary")),
        cost_estimate=_ce(flops, byts),
    )(relf, pg_nb, wx, bx, sx, tx, wr, br, wo, scale, shift)


def conv3_classifier_call(relf, h_nb, conv_prm, cls_prm):
    """conv3 (M=1) fused with the classifier head; grid only over the K reduction."""
    wr, br, wo, s, t = conv_prm
    w1, s1, t1, w2, s2, t2, w3, b3 = cls_prm
    K, BM, Dr = relf.shape
    Cin = h_nb.shape[-1]
    C3 = wo.shape[1]
    H1, H2, NC = w1.shape[1], w2.shape[1], w3.shape[1]
    k_t = _pick_k_tile(K)
    grid = (K // k_t,)
    R = K * BM
    flops = (2 * R * Dr * Cin + 3 * R * Cin + 2 * BM * Cin * C3
             + 2 * BM * (C3 * H1 + H1 * H2 + H2 * NC) + 6 * BM * (C3 + H1 + H2))
    byts = (2 * R * Dr + 4 * R * Cin
            + 2 * (Dr * Cin + Cin * C3 + C3 * H1 + H1 * H2 + H2 * NC)
            + 4 * (Cin + 2 * C3 + 2 * H1 + 2 * H2 + NC) + 4 * BM * NC)

    def cst(shape):
        return pl.BlockSpec(tuple(shape), lambda k: (0, 0))

    return pl.pallas_call(
        _conv3_cls_kernel,
        out_shape=jax.ShapeDtypeStruct((BM, NC), jnp.float32),
        grid_spec=pltpu.PrefetchScalarGridSpec(
            num_scalar_prefetch=0,
            grid=grid,
            in_specs=[
                pl.BlockSpec((k_t, BM, Dr), lambda k: (k, 0, 0)),
                pl.BlockSpec((k_t, BM, Cin), lambda k: (k, 0, 0)),
                cst(wr.shape), cst(br.shape), cst(wo.shape), cst(s.shape), cst(t.shape),
                cst(w1.shape), cst(s1.shape), cst(t1.shape),
                cst(w2.shape), cst(s2.shape), cst(t2.shape),
                cst(w3.shape), cst(b3.shape),
            ],
            out_specs=pl.BlockSpec((BM, NC), lambda k: (0, 0)),
            scratch_shapes=[pltpu.VMEM((BM, Cin), jnp.float32)],
        ),
        compiler_params=_compiler_params(("arbitrary",)),
        cost_estimate=_ce(flops, byts),
    )(relf, h_nb, wr, br, wo, s, t, w1, s1, t1, w2, s2, t2, w3, b3)


# --------------------------------------------------------------------------------------
# Plain-JAX glue: frames, kNN, neighbour-major gather, relative features
# --------------------------------------------------------------------------------------
def make_frames(p_anchor, centroid, num_frames):
    """Deterministic oriented frames per anchor point: (B, M, F, 3, 3), rows = basis."""
    v = p_anchor - centroid
    n = jnp.linalg.norm(v, axis=-1, keepdims=True)
    ez = jnp.array([0.0, 0.0, 1.0], jnp.float32)
    z = jnp.where(n > 1e-6, v / jnp.maximum(n, 1e-6), ez)
    ex = jnp.array([1.0, 0.0, 0.0], jnp.float32)
    ey = jnp.array([0.0, 1.0, 0.0], jnp.float32)
    ref = jnp.where(jnp.abs(z[..., :1]) < 0.9, ex, ey)
    x = jnp.cross(ref, z)
    x = x / (jnp.linalg.norm(x, axis=-1, keepdims=True) + 1e-9)
    y = jnp.cross(z, x)
    frames = []
    for f in range(num_frames):
        ang = 2.0 * jnp.pi * f / num_frames
        xf = jnp.cos(ang) * x + jnp.sin(ang) * y
        yf = -jnp.sin(ang) * x + jnp.cos(ang) * y
        frames.append(jnp.stack([xf, yf, z], axis=-2))        # (B, M, 3, 3)
    return jnp.stack(frames, axis=2)                          # (B, M, F, 3, 3)


def frame_net(p, anchor_sizes, num_frames):
    # TODO(synk): MultiScaleFrameNetwork internals (GNN layers, learned frames) are not in
    # the reference; anchors via strided subsampling + centroid, frames via Gram-Schmidt.
    B, N, _ = p.shape
    centroid = jnp.mean(p, axis=1, keepdims=True)
    p_anchor, R_anchor = [], []
    for M in anchor_sizes:
        assert N >= M, f"anchor size {M} exceeds number of points {N}"
        if M == 1:
            pa = centroid
        else:
            stride = max(N // M, 1)
            pa = p[:, ::stride][:, :M]
        p_anchor.append(pa)
        R_anchor.append(make_frames(pa, centroid, num_frames))
    return p_anchor, R_anchor


def global_to_local(R, c, p):
    """R: (B, N, F, 3, 3), c/p: (B, N, 3) -> (B, N, F*3). local_f = R_f @ (p - c)."""
    B, N = p.shape[:2]
    F = R.shape[2]
    loc = jnp.einsum('bnfij,bnj->bnfi', R, p - c)
    return loc.reshape(B, N, F * 3)


def knn_indices(p_src, p_dst, k):
    # TODO(synk): data-dependent top-k has no clean Pallas equivalent; stays in XLA.
    d2 = (jnp.sum(p_dst ** 2, -1, keepdims=True)
          + jnp.sum(p_src ** 2, -1)[:, None, :]
          - 2.0 * jnp.einsum('bmd,bnd->bmn', p_dst, p_src))
    _, idx = jax.lax.top_k(-d2, k)                            # (B, M, k)
    return idx


def _rsconv_features(p_src, p_dst, R_dst, feat_src, k, bm_pad):
    """Relation features (bf16) + gathered neighbour features, built directly in
    neighbour-major (k, B*M, C) order via flat indices -> no HBM relayout transpose.
    Rows are padded to bm_pad (multiple of 8) so kernel tiles stay sublane-aligned."""
    B, M, _ = p_dst.shape
    N = p_src.shape[1]
    F = R_dst.shape[2]
    C = feat_src.shape[-1]
    BM = B * M
    idx = knn_indices(p_src, p_dst, k)                                    # (B, M, k)
    base = (jnp.arange(B, dtype=jnp.int32) * N)[:, None, None]
    flat = jnp.transpose(idx.astype(jnp.int32) + base, (2, 0, 1)).reshape(k, BM)
    p_nb = jnp.take(p_src.reshape(B * N, 3), flat, axis=0)                # (k, BM, 3)
    f_nb = jnp.take(feat_src.reshape(B * N, C), flat, axis=0)             # (k, BM, C)
    rel = p_nb - p_dst.reshape(1, BM, 3)
    Rf = R_dst.reshape(BM, F, 3, 3)
    local = jnp.einsum('mfij,kmj->kmfi', Rf, rel).reshape(k, BM, F * 3)
    dist = jnp.linalg.norm(rel, axis=-1, keepdims=True)
    relf = jnp.concatenate([local, dist], axis=-1).astype(jnp.bfloat16)   # (k, BM, F*3+1)
    if bm_pad > BM:
        pad = ((0, 0), (0, bm_pad - BM), (0, 0))
        relf = jnp.pad(relf, pad)
        f_nb = jnp.pad(f_nb, pad)
    return relf, f_nb


# --------------------------------------------------------------------------------------
# Parameters (deterministic, synthetic; bf16 weights pre-cast once) and full forward
# --------------------------------------------------------------------------------------
def _bn_fold(key, c):
    g = 1.0 + 0.1 * jax.random.normal(key, (1, c), jnp.float32)
    b = 0.1 * jax.random.normal(jax.random.fold_in(key, 1), (1, c), jnp.float32)
    # running_mean=0, running_var=1, eps=1e-5 (untrained eval-mode BN)
    return g / jnp.sqrt(1.0 + 1e-5), b


def init_params(key, num_frames=2, num_classes=10):
    ks = jax.random.split(key, 16)
    F3 = num_frames * 3
    Drel = F3 + 1

    def wb(k, shape):   # matmul weights pre-cast to bf16 once (no per-forward cast / DMA)
        return (0.1 * jax.random.normal(k, shape, jnp.float32)).astype(jnp.bfloat16)

    def wf(k, shape):
        return 0.1 * jax.random.normal(k, shape, jnp.float32)

    params = {
        'xyz': (wb(ks[0], (F3, 32)), wf(ks[1], (1, 32)), *_bn_fold(ks[2], 32)),
        'conv1': (wb(ks[3], (Drel, 32)), wf(ks[4], (1, 32)),
                  wb(ks[5], (32, 128)), *_bn_fold(ks[6], 128)),
        'conv2': (wb(ks[7], (Drel, 128)), wf(ks[8], (1, 128)),
                  wb(ks[9], (128, 512)), *_bn_fold(ks[10], 512)),
        'conv3': (wb(ks[11], (Drel, 512)), wf(ks[12], (1, 512)),
                  wb(ks[13], (512, 1024)), *_bn_fold(ks[14], 1024)),
    }
    ck = jax.random.split(ks[15], 6)
    params['cls'] = (
        wb(ck[0], (1024, 512)), *_bn_fold(ck[1], 512),
        wb(ck[2], (512, 256)), *_bn_fold(ck[3], 256),
        wb(ck[4], (256, num_classes)), wf(ck[5], (1, num_classes)),
    )
    return params


def oriented_rscnn_forward(p, params, num_frames=2,
                           anchor_sizes=(32, 8, 1), ks=(16, 8, 8)):
    """p: (B, N, 3) -> logits (B, num_classes)."""
    B, N, _ = p.shape
    F = num_frames
    p_anchor, R_anchor = frame_net(p, anchor_sizes, F)
    p0 = p
    p1, p2, p3 = p_anchor
    R1, R2, R3 = R_anchor

    # transform all points into the global anchor's oriented frames
    p_center = jnp.broadcast_to(p3, (B, N, 3))
    R_center = jnp.broadcast_to(R3, (B, N, F, 3, 3))
    p_global = global_to_local(R_center, p_center, p).astype(jnp.bfloat16)   # (B, N, F*3)

    # conv1 with xyz_raising fused in-kernel (gather the raw F*3 coords, raise in VMEM)
    M1 = p1.shape[1]
    BM1 = B * M1
    relf1, pg_nb = _rsconv_features(p0, p1, R1, p_global, ks[0], _round8(BM1))
    h1 = rsconv_raise_call(relf1, pg_nb, params['xyz'], params['conv1'])
    h1 = h1[:BM1].reshape(B, M1, -1)                                         # (B, M1, 128)

    # conv2
    M2 = p2.shape[1]
    BM2 = B * M2
    relf2, h_nb2 = _rsconv_features(p1, p2, R2, h1, ks[1], _round8(BM2))
    h2 = rsconv_call(relf2, h_nb2, params['conv2'])
    h2 = h2[:BM2].reshape(B, M2, -1)                                         # (B, M2, 512)

    # conv3 (M=1) fused with the classifier head in one Pallas kernel
    relf3, h_nb3 = _rsconv_features(p2, p3, R3, h2, ks[2], _round8(B))
    out = conv3_classifier_call(relf3, h_nb3, params['conv3'], params['cls'])
    return out[:B]                                                           # (B, num_classes)


# --------------------------------------------------------------------------------------
if __name__ == "__main__":
    key = jax.random.PRNGKey(0)
    k_pts, k_prm = jax.random.split(key)

    B, N = 2, 64                       # small stand-in for (B, 1024, 3)
    p = jax.random.normal(k_pts, (B, N, 3), jnp.float32)

    params = init_params(k_prm, num_frames=2, num_classes=10)

    fwd = jax.jit(oriented_rscnn_forward)
    logits = fwd(p, params)
    jax.block_until_ready(logits)

    assert logits.shape == (B, 10)
    print("KERNEL_OK")
</pallas_src>

<mosaic_0001>
module attributes {stable_mosaic.version = 11 : i64} {
  func.func @_rsconv_raise_kernel(%arg0: i32, %arg1: i32, %arg2: memref<8x64x7xbf16, #tpu.memory_space<vmem>>, %arg3: memref<8x64x6xbf16, #tpu.memory_space<vmem>>, %arg4: memref<6x32xbf16, #tpu.memory_space<vmem>>, %arg5: memref<1x32xf32, #tpu.memory_space<vmem>>, %arg6: memref<1x32xf32, #tpu.memory_space<vmem>>, %arg7: memref<1x32xf32, #tpu.memory_space<vmem>>, %arg8: memref<7x32xbf16, #tpu.memory_space<vmem>>, %arg9: memref<1x32xf32, #tpu.memory_space<vmem>>, %arg10: memref<32x128xbf16, #tpu.memory_space<vmem>>, %arg11: memref<1x128xf32, #tpu.memory_space<vmem>>, %arg12: memref<1x128xf32, #tpu.memory_space<vmem>>, %arg13: memref<64x128xf32, #tpu.memory_space<vmem>>, %arg14: memref<64x32xf32, #tpu.memory_space<vmem>>) attributes {dimension_semantics = [#tpu.dimension_semantics<parallel>, #tpu.dimension_semantics<arbitrary>], iteration_bounds = array<i64: 1, 2>, scalar_prefetch = 0 : i64, scratch_operands = 1 : i64, tpu.core_type = #tpu.core_type<tc>, window_params = [{transform_indices = @transform_0, window_bounds = array<i64: 8, 64, 7>}, {transform_indices = @transform_1, window_bounds = array<i64: 8, 64, 6>}, {pipeline_mode = #tpu.pipeline_mode<synchronous>, transform_indices = @transform_2, window_bounds = array<i64: 6, 32>}, {pipeline_mode = #tpu.pipeline_mode<synchronous>, transform_indices = @transform_3, window_bounds = array<i64: 1, 32>}, {pipeline_mode = #tpu.pipeline_mode<synchronous>, transform_indices = @transform_4, window_bounds = array<i64: 1, 32>}, {pipeline_mode = #tpu.pipeline_mode<synchronous>, transform_indices = @transform_5, window_bounds = array<i64: 1, 32>}, {pipeline_mode = #tpu.pipeline_mode<synchronous>, transform_indices = @transform_6, window_bounds = array<i64: 7, 32>}, {pipeline_mode = #tpu.pipeline_mode<synchronous>, transform_indices = @transform_7, window_bounds = array<i64: 1, 32>}, {pipeline_mode = #tpu.pipeline_mode<synchronous>, transform_indices = @transform_8, window_bounds = array<i64: 32, 128>}, {pipeline_mode = #tpu.pipeline_mode<synchronous>, transform_indices = @transform_9, window_bounds = array<i64: 1, 128>}, {pipeline_mode = #tpu.pipeline_mode<synchronous>, transform_indices = @transform_10, window_bounds = array<i64: 1, 128>}, {transform_indices = @transform_11, window_bounds = array<i64: 64, 128>}]} {
    %c0_i32 = arith.constant 0 : i32
    %0 = arith.cmpi eq, %arg1, %c0_i32 : i32
    %1 = arith.extui %0 : i1 to i32
    %c0_i32_0 = arith.constant 0 : i32
    %2 = arith.cmpi ne, %1, %c0_i32_0 : i32
    scf.if %2 {
      %cst_89 = arith.constant 0xFF800000 : f32
      %174 = vector.broadcast %cst_89 : f32 to vector<64x32xf32>
      %c0_90 = arith.constant 0 : index
      %c0_91 = arith.constant 0 : index
      %175 = vector.load %arg14[%c0_90, %c0_91] : memref<64x32xf32, #tpu.memory_space<vmem>>, vector<64x32xf32>
      tpu.vector_store %arg14[%c0_90, %c0_91], %174 {strides = array<i32>} : memref<64x32xf32, #tpu.memory_space<vmem>>, vector<64x32xf32>,
    } else {
    }
    %c0 = arith.constant 0 : index
    %c0_1 = arith.constant 0 : index
    %3 = vector.load %arg4[%c0, %c0_1] : memref<6x32xbf16, #tpu.memory_space<vmem>>, vector<6x32xbf16>
    %c0_2 = arith.constant 0 : index
    %c0_3 = arith.constant 0 : index
    %4 = vector.load %arg5[%c0_2, %c0_3] : memref<1x32xf32, #tpu.memory_space<vmem>>, vector<1x32xf32>
    %c0_4 = arith.constant 0 : index
    %c0_5 = arith.constant 0 : index
    %5 = vector.load %arg6[%c0_4, %c0_5] : memref<1x32xf32, #tpu.memory_space<vmem>>, vector<1x32xf32>
    %c0_6 = arith.constant 0 : index
    %c0_7 = arith.constant 0 : index
    %6 = vector.load %arg7[%c0_6, %c0_7] : memref<1x32xf32, #tpu.memory_space<vmem>>, vector<1x32xf32>
    %c0_8 = arith.constant 0 : index
    %c0_9 = arith.constant 0 : index
    %7 = vector.load %arg8[%c0_8, %c0_9] : memref<7x32xbf16, #tpu.memory_space<vmem>>, vector<7x32xbf16>
    %c0_10 = arith.constant 0 : index
    %c0_11 = arith.constant 0 : index
    %8 = vector.load %arg9[%c0_10, %c0_11] : memref<1x32xf32, #tpu.memory_space<vmem>>, vector<1x32xf32>
    %c0_12 = arith.constant 0 : index
    %c0_13 = arith.constant 0 : index
    %c0_14 = arith.constant 0 : index
    %9 = vector.load %arg2[%c0_12, %c0_13, %c0_14] : memref<8x64x7xbf16, #tpu.memory_space<vmem>>, vector<1x64x7xbf16>
    %10 = vector.shape_cast %9 : vector<1x64x7xbf16> to vector<64x7xbf16>
    %cst = arith.constant dense<0.000000e+00> : vector<64x32xf32>
    %11 = tpu.matmul %10, %7, %cst {dimension_numbers = #tpu.dot_dimension_numbers<[1], [0], [0], [1], [0, 0, 1, 1], [], []>} : vector<64x7xbf16>, vector<7x32xbf16>, vector<64x32xf32> -> vector<64x32xf32>
    %12 = vector.broadcast %8 : vector<1x32xf32> to vector<64x32xf32>
    %13 = arith.addf %11, %12 : vector<64x32xf32>
    %cst_15 = arith.constant 0.000000e+00 : f32
    %14 = vector.broadcast %cst_15 : f32 to vector<64x32xf32>
    %15 = arith.maximumf %13, %14 : vector<64x32xf32>
    %c0_16 = arith.constant 0 : index
    %c0_17 = arith.constant 0 : index
    %c0_18 = arith.constant 0 : index
    %16 = vector.load %arg3[%c0_16, %c0_17, %c0_18] : memref<8x64x6xbf16, #tpu.memory_space<vmem>>, vector<1x64x6xbf16>
    %17 = vector.shape_cast %16 : vector<1x64x6xbf16> to vector<64x6xbf16>
    %cst_19 = arith.constant dense<0.000000e+00> : vector<64x32xf32>
    %18 = tpu.matmul %17, %3, %cst_19 {dimension_numbers = #tpu.dot_dimension_numbers<[1], [0], [0], [1], [0, 0, 1, 1], [], []>} : vector<64x6xbf16>, vector<6x32xbf16>, vector<64x32xf32> -> vector<64x32xf32>
    %19 = vector.broadcast %4 : vector<1x32xf32> to vector<64x32xf32>
    %20 = arith.addf %18, %19 : vector<64x32xf32>
    %21 = vector.broadcast %5 : vector<1x32xf32> to vector<64x32xf32>
    %22 = arith.mulf %20, %21 : vector<64x32xf32>
    %23 = vector.broadcast %6 : vector<1x32xf32> to vector<64x32xf32>
    %24 = arith.addf %22, %23 : vector<64x32xf32>
    %cst_20 = arith.constant 0.000000e+00 : f32
    %25 = vector.broadcast %cst_20 : f32 to vector<64x32xf32>
    %26 = arith.maximumf %24, %25 : vector<64x32xf32>
    %27 = arith.mulf %15, %26 : vector<64x32xf32>
    %c1 = arith.constant 1 : index
    %c0_21 = arith.constant 0 : index
    %c0_22 = arith.constant 0 : index
    %28 = vector.load %arg2[%c1, %c0_21, %c0_22] : memref<8x64x7xbf16, #tpu.memory_space<vmem>>, vector<1x64x7xbf16>
    %29 = vector.shape_cast %28 : vector<1x64x7xbf16> to vector<64x7xbf16>
    %cst_23 = arith.constant dense<0.000000e+00> : vector<64x32xf32>
    %30 = tpu.matmul %29, %7, %cst_23 {dimension_numbers = #tpu.dot_dimension_numbers<[1], [0], [0], [1], [0, 0, 1, 1], [], []>} : vector<64x7xbf16>, vector<7x32xbf16>, vector<64x32xf32> -> vector<64x32xf32>
    %31 = vector.broadcast %8 : vector<1x32xf32> to vector<64x32xf32>
    %32 = arith.addf %30, %31 : vector<64x32xf32>
    %cst_24 = arith.constant 0.000000e+00 : f32
    %33 = vector.broadcast %cst_24 : f32 to vector<64x32xf32>
    %34 = arith.maximumf %32, %33 : vector<64x32xf32>
    %c1_25 = arith.constant 1 : index
    %c0_26 = arith.constant 0 : index
    %c0_27 = arith.constant 0 : index
    %35 = vector.load %arg3[%c1_25, %c0_26, %c0_27] : memref<8x64x6xbf16, #tpu.memory_space<vmem>>, vector<1x64x6xbf16>
    %36 = vector.shape_cast %35 : vector<1x64x6xbf16> to vector<64x6xbf16>
    %cst_28 = arith.constant dense<0.000000e+00> : vector<64x32xf32>
    %37 = tpu.matmul %36, %3, %cst_28 {dimension_numbers = #tpu.dot_dimension_numbers<[1], [0], [0], [1], [0, 0, 1, 1], [], []>} : vector<64x6xbf16>, vector<6x32xbf16>, vector<64x32xf32> -> vector<64x32xf32>
    %38 = vector.broadcast %4 : vector<1x32xf32> to vector<64x32xf32>
    %39 = arith.addf %37, %38 : vector<64x32xf32>
    %40 = vector.broadcast %5 : vector<1x32xf32> to vector<64x32xf32>
    %41 = arith.mulf %39, %40 : vector<64x32xf32>
    %42 = vector.broadcast %6 : vector<1x32xf32> to vector<64x32xf32>
    %43 = arith.addf %41, %42 : vector<64x32xf32>
    %cst_29 = arith.constant 0.000000e+00 : f32
    %44 = vector.broadcast %cst_29 : f32 to vector<64x32xf32>
    %45 = arith.maximumf %43, %44 : vector<64x32xf32>
    %46 = arith.mulf %34, %45 : vector<64x32xf32>
    %47 = arith.maximumf %27, %46 : vector<64x32xf32>
    %c2 = arith.constant 2 : index
    %c0_30 = arith.constant 0 : index
    %c0_31 = arith.constant 0 : index
    %48 = vector.load %arg2[%c2, %c0_30, %c0_31] : memref<8x64x7xbf16, #tpu.memory_space<vmem>>, vector<1x64x7xbf16>
    %49 = vector.shape_cast %48 : vector<1x64x7xbf16> to vector<64x7xbf16>
    %cst_32 = arith.constant dense<0.000000e+00> : vector<64x32xf32>
    %50 = tpu.matmul %49, %7, %cst_32 {dimension_numbers = #tpu.dot_dimension_numbers<[1], [0], [0], [1], [0, 0, 1, 1], [], []>} : vector<64x7xbf16>, vector<7x32xbf16>, vector<64x32xf32> -> vector<64x32xf32>
    %51 = vector.broadcast %8 : vector<1x32xf32> to vector<64x32xf32>
    %52 = arith.addf %50, %51 : vector<64x32xf32>
    %cst_33 = arith.constant 0.000000e+00 : f32
    %53 = vector.broadcast %cst_33 : f32 to vector<64x32xf32>
    %54 = arith.maximumf %52, %53 : vector<64x32xf32>
    %c2_34 = arith.constant 2 : index
    %c0_35 = arith.constant 0 : index
    %c0_36 = arith.constant 0 : index
    %55 = vector.load %arg3[%c2_34, %c0_35, %c0_36] : memref<8x64x6xbf16, #tpu.memory_space<vmem>>, vector<1x64x6xbf16>
    %56 = vector.shape_cast %55 : vector<1x64x6xbf16> to vector<64x6xbf16>
    %cst_37 = arith.constant dense<0.000000e+00> : vector<64x32xf32>
    %57 = tpu.matmul %56, %3, %cst_37 {dimension_numbers = #tpu.dot_dimension_numbers<[1], [0], [0], [1], [0, 0, 1, 1], [], []>} : vector<64x6xbf16>, vector<6x32xbf16>, vector<64x32xf32> -> vector<64x32xf32>
    %58 = vector.broadcast %4 : vector<1x32xf32> to vector<64x32xf32>
    %59 = arith.addf %57, %58 : vector<64x32xf32>
    %60 = vector.broadcast %5 : vector<1x32xf32> to vector<64x32xf32>
    %61 = arith.mulf %59, %60 : vector<64x32xf32>
    %62 = vector.broadcast %6 : vector<1x32xf32> to vector<64x32xf32>
    %63 = arith.addf %61, %62 : vector<64x32xf32>
    %cst_38 = arith.constant 0.000000e+00 : f32
    %64 = vector.broadcast %cst_38 : f32 to vector<64x32xf32>
    %65 = arith.maximumf %63, %64 : vector<64x32xf32>
    %66 = arith.mulf %54, %65 : vector<64x32xf32>
    %67 = arith.maximumf %47, %66 : vector<64x32xf32>
    %c3 = arith.constant 3 : index
    %c0_39 = arith.constant 0 : index
    %c0_40 = arith.constant 0 : index
    %68 = vector.load %arg2[%c3, %c0_39, %c0_40] : memref<8x64x7xbf16, #tpu.memory_space<vmem>>, vector<1x64x7xbf16>
    %69 = vector.shape_cast %68 : vector<1x64x7xbf16> to vector<64x7xbf16>
    %cst_41 = arith.constant dense<0.000000e+00> : vector<64x32xf32>
    %70 = tpu.matmul %69, %7, %cst_41 {dimension_numbers = #tpu.dot_dimension_numbers<[1], [0], [0], [1], [0, 0, 1, 1], [], []>} : vector<64x7xbf16>, vector<7x32xbf16>, vector<64x32xf32> -> vector<64x32xf32>
    %71 = vector.broadcast %8 : vector<1x32xf32> to vector<64x32xf32>
    %72 = arith.addf %70, %71 : vector<64x32xf32>
    %cst_42 = arith.constant 0.000000e+00 : f32
    %73 = vector.broadcast %cst_42 : f32 to vector<64x32xf32>
    %74 = arith.maximumf %72, %73 : vector<64x32xf32>
    %c3_43 = arith.constant 3 : index
    %c0_44 = arith.constant 0 : index
    %c0_45 = arith.constant 0 : index
    %75 = vector.load %arg3[%c3_43, %c0_44, %c0_45] : memref<8x64x6xbf16, #tpu.memory_space<vmem>>, vector<1x64x6xbf16>
    %76 = vector.shape_cast %75 : vector<1x64x6xbf16> to vector<64x6xbf16>
    %cst_46 = arith.constant dense<0.000000e+00> : vector<64x32xf32>
    %77 = tpu.matmul %76, %3, %cst_46 {dimension_numbers = #tpu.dot_dimension_numbers<[1], [0], [0], [1], [0, 0, 1, 1], [], []>} : vector<64x6xbf16>, vector<6x32xbf16>, vector<64x32xf32> -> vector<64x32xf32>
    %78 = vector.broadcast %4 : vector<1x32xf32> to vector<64x32xf32>
    %79 = arith.addf %77, %78 : vector<64x32xf32>
    %80 = vector.broadcast %5 : vector<1x32xf32> to vector<64x32xf32>
    %81 = arith.mulf %79, %80 : vector<64x32xf32>
    %82 = vector.broadcast %6 : vector<1x32xf32> to vector<64x32xf32>
    %83 = arith.addf %81, %82 : vector<64x32xf32>
    %cst_47 = arith.constant 0.000000e+00 : f32
    %84 = vector.broadcast %cst_47 : f32 to vector<64x32xf32>
    %85 = arith.maximumf %83, %84 : vector<64x32xf32>
    %86 = arith.mulf %74, %85 : vector<64x32xf32>
    %87 = arith.maximumf %67, %86 : vector<64x32xf32>
    %c4 = arith.constant 4 : index
    %c0_48 = arith.constant 0 : index
    %c0_49 = arith.constant 0 : index
    %88 = vector.load %arg2[%c4, %c0_48, %c0_49] : memref<8x64x7xbf16, #tpu.memory_space<vmem>>, vector<1x64x7xbf16>
    %89 = vector.shape_cast %88 : vector<1x64x7xbf16> to vector<64x7xbf16>
    %cst_50 = arith.constant dense<0.000000e+00> : vector<64x32xf32>
    %90 = tpu.matmul %89, %7, %cst_50 {dimension_numbers = #tpu.dot_dimension_numbers<[1], [0], [0], [1], [0, 0, 1, 1], [], []>} : vector<64x7xbf16>, vector<7x32xbf16>, vector<64x32xf32> -> vector<64x32xf32>
    %91 = vector.broadcast %8 : vector<1x32xf32> to vector<64x32xf32>
    %92 = arith.addf %90, %91 : vector<64x32xf32>
    %cst_51 = arith.constant 0.000000e+00 : f32
    %93 = vector.broadcast %cst_51 : f32 to vector<64x32xf32>
    %94 = arith.maximumf %92, %93 : vector<64x32xf32>
    %c4_52 = arith.constant 4 : index
    %c0_53 = arith.constant 0 : index
    %c0_54 = arith.constant 0 : index
    %95 = vector.load %arg3[%c4_52, %c0_53, %c0_54] : memref<8x64x6xbf16, #tpu.memory_space<vmem>>, vector<1x64x6xbf16>
    %96 = vector.shape_cast %95 : vector<1x64x6xbf16> to vector<64x6xbf16>
    %cst_55 = arith.constant dense<0.000000e+00> : vector<64x32xf32>
    %97 = tpu.matmul %96, %3, %cst_55 {dimension_numbers = #tpu.dot_dimension_numbers<[1], [0], [0], [1], [0, 0, 1, 1], [], []>} : vector<64x6xbf16>, vector<6x32xbf16>, vector<64x32xf32> -> vector<64x32xf32>
    %98 = vector.broadcast %4 : vector<1x32xf32> to vector<64x32xf32>
    %99 = arith.addf %97, %98 : vector<64x32xf32>
    %100 = vector.broadcast %5 : vector<1x32xf32> to vector<64x32xf32>
    %101 = arith.mulf %99, %100 : vector<64x32xf32>
    %102 = vector.broadcast %6 : vector<1x32xf32> to vector<64x32xf32>
    %103 = arith.addf %101, %102 : vector<64x32xf32>
    %cst_56 = arith.constant 0.000000e+00 : f32
    %104 = vector.broadcast %cst_56 : f32 to vector<64x32xf32>
    %105 = arith.maximumf %103, %104 : vector<64x32xf32>
    %106 = arith.mulf %94, %105 : vector<64x32xf32>
    %107 = arith.maximumf %87, %106 : vector<64x32xf32>
    %c5 = arith.constant 5 : index
    %c0_57 = arith.constant 0 : index
    %c0_58 = arith.constant 0 : index
    %108 = vector.load %arg2[%c5, %c0_57, %c0_58] : memref<8x64x7xbf16, #tpu.memory_space<vmem>>, vector<1x64x7xbf16>
    %109 = vector.shape_cast %108 : vector<1x64x7xbf16> to vector<64x7xbf16>
    %cst_59 = arith.constant dense<0.000000e+00> : vector<64x32xf32>
    %110 = tpu.matmul %109, %7, %cst_59 {dimension_numbers = #tpu.dot_dimension_numbers<[1], [0], [0], [1], [0, 0, 1, 1], [], []>} : vector<64x7xbf16>, vector<7x32xbf16>, vector<64x32xf32> -> vector<64x32xf32>
    %111 = vector.broadcast %8 : vector<1x32xf32> to vector<64x32xf32>
    %112 = arith.addf %110, %111 : vector<64x32xf32>
    %cst_60 = arith.constant 0.000000e+00 : f32
    %113 = vector.broadcast %cst_60 : f32 to vector<64x32xf32>
    %114 = arith.maximumf %112, %113 : vector<64x32xf32>
    %c5_61 = arith.constant 5 : index
    %c0_62 = arith.constant 0 : index
    %c0_63 = arith.constant 0 : index
    %115 = vector.load %arg3[%c5_61, %c0_62, %c0_63] : memref<8x64x6xbf16, #tpu.memory_space<vmem>>, vector<1x64x6xbf16>
    %116 = vector.shape_cast %115 : vector<1x64x6xbf16> to vector<64x6xbf16>
    %cst_64 = arith.constant dense<0.000000e+00> : vector<64x32xf32>
    %117 = tpu.matmul %116, %3, %cst_64 {dimension_numbers = #tpu.dot_dimension_numbers<[1], [0], [0], [1], [0, 0, 1, 1], [], []>} : vector<64x6xbf16>, vector<6x32xbf16>, vector<64x32xf32> -> vector<64x32xf32>
    %118 = vector.broadcast %4 : vector<1x32xf32> to vector<64x32xf32>
    %119 = arith.addf %117, %118 : vector<64x32xf32>
    %120 = vector.broadcast %5 : vector<1x32xf32> to vector<64x32xf32>
    %121 = arith.mulf %119, %120 : vector<64x32xf32>
    %122 = vector.broadcast %6 : vector<1x32xf32> to vector<64x32xf32>
    %123 = arith.addf %121, %122 : vector<64x32xf32>
    %cst_65 = arith.constant 0.000000e+00 : f32
    %124 = vector.broadcast %cst_65 : f32 to vector<64x32xf32>
    %125 = arith.maximumf %123, %124 : vector<64x32xf32>
    %126 = arith.mulf %114, %125 : vector<64x32xf32>
    %127 = arith.maximumf %107, %126 : vector<64x32xf32>
    %c6 = arith.constant 6 : index
    %c0_66 = arith.constant 0 : index
    %c0_67 = arith.constant 0 : index
    %128 = vector.load %arg2[%c6, %c0_66, %c0_67] : memref<8x64x7xbf16, #tpu.memory_space<vmem>>, vector<1x64x7xbf16>
    %129 = vector.shape_cast %128 : vector<1x64x7xbf16> to vector<64x7xbf16>
    %cst_68 = arith.constant dense<0.000000e+00> : vector<64x32xf32>
    %130 = tpu.matmul %129, %7, %cst_68 {dimension_numbers = #tpu.dot_dimension_numbers<[1], [0], [0], [1], [0, 0, 1, 1], [], []>} : vector<64x7xbf16>, vector<7x32xbf16>, vector<64x32xf32> -> vector<64x32xf32>
    %131 = vector.broadcast %8 : vector<1x32xf32> to vector<64x32xf32>
    %132 = arith.addf %130, %131 : vector<64x32xf32>
    %cst_69 = arith.constant 0.000000e+00 : f32
    %133 = vector.broadcast %cst_69 : f32 to vector<64x32xf32>
    %134 = arith.maximumf %132, %133 : vector<64x32xf32>
    %c6_70 = arith.constant 6 : index
    %c0_71 = arith.constant 0 : index
    %c0_72 = arith.constant 0 : index
    %135 = vector.load %arg3[%c6_70, %c0_71, %c0_72] : memref<8x64x6xbf16, #tpu.memory_space<vmem>>, vector<1x64x6xbf16>
    %136 = vector.shape_cast %135 : vector<1x64x6xbf16> to vector<64x6xbf16>
    %cst_73 = arith.constant dense<0.000000e+00> : vector<64x32xf32>
    %137 = tpu.matmul %136, %3, %cst_73 {dimension_numbers = #tpu.dot_dimension_numbers<[1], [0], [0], [1], [0, 0, 1, 1], [], []>} : vector<64x6xbf16>, vector<6x32xbf16>, vector<64x32xf32> -> vector<64x32xf32>
    %138 = vector.broadcast %4 : vector<1x32xf32> to vector<64x32xf32>
    %139 = arith.addf %137, %138 : vector<64x32xf32>
    %140 = vector.broadcast %5 : vector<1x32xf32> to vector<64x32xf32>
    %141 = arith.mulf %139, %140 : vector<64x32xf32>
    %142 = vector.broadcast %6 : vector<1x32xf32> to vector<64x32xf32>
    %143 = arith.addf %141, %142 : vector<64x32xf32>
    %cst_74 = arith.constant 0.000000e+00 : f32
    %144 = vector.broadcast %cst_74 : f32 to vector<64x32xf32>
    %145 = arith.maximumf %143, %144 : vector<64x32xf32>
    %146 = arith.mulf %134, %145 : vector<64x32xf32>
    %147 = arith.maximumf %127, %146 : vector<64x32xf32>
    %c7 = arith.constant 7 : index
    %c0_75 = arith.constant 0 : index
    %c0_76 = arith.constant 0 : index
    %148 = vector.load %arg2[%c7, %c0_75, %c0_76] : memref<8x64x7xbf16, #tpu.memory_space<vmem>>, vector<1x64x7xbf16>
    %149 = vector.shape_cast %148 : vector<1x64x7xbf16> to vector<64x7xbf16>
    %cst_77 = arith.constant dense<0.000000e+00> : vector<64x32xf32>
    %150 = tpu.matmul %149, %7, %cst_77 {dimension_numbers = #tpu.dot_dimension_numbers<[1], [0], [0], [1], [0, 0, 1, 1], [], []>} : vector<64x7xbf16>, vector<7x32xbf16>, vector<64x32xf32> -> vector<64x32xf32>
    %151 = vector.broadcast %8 : vector<1x32xf32> to vector<64x32xf32>
    %152 = arith.addf %150, %151 : vector<64x32xf32>
    %cst_78 = arith.constant 0.000000e+00 : f32
    %153 = vector.broadcast %cst_78 : f32 to vector<64x32xf32>
    %154 = arith.maximumf %152, %153 : vector<64x32xf32>
    %c7_79 = arith.constant 7 : index
    %c0_80 = arith.constant 0 : index
    %c0_81 = arith.constant 0 : index
    %155 = vector.load %arg3[%c7_79, %c0_80, %c0_81] : memref<8x64x6xbf16, #tpu.memory_space<vmem>>, vector<1x64x6xbf16>
    %156 = vector.shape_cast %155 : vector<1x64x6xbf16> to vector<64x6xbf16>
    %cst_82 = arith.constant dense<0.000000e+00> : vector<64x32xf32>
    %157 = tpu.matmul %156, %3, %cst_82 {dimension_numbers = #tpu.dot_dimension_numbers<[1], [0], [0], [1], [0, 0, 1, 1], [], []>} : vector<64x6xbf16>, vector<6x32xbf16>, vector<64x32xf32> -> vector<64x32xf32>
    %158 = vector.broadcast %4 : vector<1x32xf32> to vector<64x32xf32>
    %159 = arith.addf %157, %158 : vector<64x32xf32>
    %160 = vector.broadcast %5 : vector<1x32xf32> to vector<64x32xf32>
    %161 = arith.mulf %159, %160 : vector<64x32xf32>
    %162 = vector.broadcast %6 : vector<1x32xf32> to vector<64x32xf32>
    %163 = arith.addf %161, %162 : vector<64x32xf32>
    %cst_83 = arith.constant 0.000000e+00 : f32
    %164 = vector.broadcast %cst_83 : f32 to vector<64x32xf32>
    %165 = arith.maximumf %163, %164 : vector<64x32xf32>
    %166 = arith.mulf %154, %165 : vector<64x32xf32>
    %167 = arith.maximumf %147, %166 : vector<64x32xf32>
    %c0_84 = arith.constant 0 : index
    %c0_85 = arith.constant 0 : index
    %168 = vector.load %arg14[%c0_84, %c0_85] : memref<64x32xf32, #tpu.memory_space<vmem>>, vector<64x32xf32>
    %169 = arith.maximumf %168, %167 : vector<64x32xf32>
    %c0_86 = arith.constant 0 : index
    %c0_87 = arith.constant 0 : index
    %170 = vector.load %arg14[%c0_86, %c0_87] : memref<64x32xf32, #tpu.memory_space<vmem>>, vector<64x32xf32>
    tpu.vector_store %arg14[%c0_86, %c0_87], %169 {strides = array<i32>} : memref<64x32xf32, #tpu.memory_space<vmem>>, vector<64x32xf32>,
    %c1_i32 = arith.constant 1 : i32
    %171 = arith.cmpi eq, %arg1, %c1_i32 : i32
    %172 = arith.extui %171 : i1 to i32
    %c0_i32_88 = arith.constant 0 : i32
    %173 = arith.cmpi ne, %172, %c0_i32_88 : i32
    scf.if %173 {
      %c0_89 = arith.constant 0 : index
      %c0_90 = arith.constant 0 : index
      %174 = vector.load %arg14[%c0_89, %c0_90] : memref<64x32xf32, #tpu.memory_space<vmem>>, vector<64x32xf32>
      %175 = arith.truncf %174 : vector<64x32xf32> to vector<64x32xbf16>
      %c0_91 = arith.constant 0 : index
      %c0_92 = arith.constant 0 : index
      %176 = vector.load %arg10[%c0_91, %c0_92] : memref<32x128xbf16, #tpu.memory_space<vmem>>, vector<32x128xbf16>
      %cst_93 = arith.constant dense<0.000000e+00> : vector<64x128xf32>
      %177 = tpu.matmul %175, %176, %cst_93 {dimension_numbers = #tpu.dot_dimension_numbers<[1], [0], [0], [1], [0, 0, 1, 1], [], []>} : vector<64x32xbf16>, vector<32x128xbf16>, vector<64x128xf32> -> vector<64x128xf32>
      %c0_94 = arith.constant 0 : index
      %c0_95 = arith.constant 0 : index
      %178 = vector.load %arg11[%c0_94, %c0_95] : memref<1x128xf32, #tpu.memory_space<vmem>>, vector<1x128xf32>
      %179 = vector.broadcast %178 : vector<1x128xf32> to vector<64x128xf32>
      %180 = arith.mulf %177, %179 : vector<64x128xf32>
      %c0_96 = arith.constant 0 : index
      %c0_97 = arith.constant 0 : index
      %181 = vector.load %arg12[%c0_96, %c0_97] : memref<1x128xf32, #tpu.memory_space<vmem>>, vector<1x128xf32>
      %182 = vector.broadcast %181 : vector<1x128xf32> to vector<64x128xf32>
      %183 = arith.addf %180, %182 : vector<64x128xf32>
      %cst_98 = arith.constant 0.000000e+00 : f32
      %184 = vector.broadcast %cst_98 : f32 to vector<64x128xf32>
      %185 = arith.maximumf %183, %184 : vector<64x128xf32>
      %c0_99 = arith.constant 0 : index
      %c0_100 = arith.constant 0 : index
      %186 = vector.load %arg13[%c0_99, %c0_100] : memref<64x128xf32, #tpu.memory_space<vmem>>, vector<64x128xf32>
      tpu.vector_store %arg13[%c0_99, %c0_100], %185 {strides = array<i32>} : memref<64x128xf32, #tpu.memory_space<vmem>>, vector<64x128xf32>,
    } else {
    }
    return
  }
  func.func @transform_0(%arg0: i32, %arg1: i32) -> (i32, i32, i32) {
    %c0_i32 = arith.constant 0 : i32
    %c0_i32_0 = arith.constant 0 : i32
    return %arg1, %arg0, %c0_i32 : i32, i32, i32
  }
  func.func @transform_1(%arg0: i32, %arg1: i32) -> (i32, i32, i32) {
    %c0_i32 = arith.constant 0 : i32
    %c0_i32_0 = arith.constant 0 : i32
    return %arg1, %arg0, %c0_i32 : i32, i32, i32
  }
  func.func @transform_2(%arg0: i32, %arg1: i32) -> (i32, i32) {
    %c0_i32 = arith.constant 0 : i32
    %c0_i32_0 = arith.constant 0 : i32
    %c0_i32_1 = arith.constant 0 : i32
    return %c0_i32, %c0_i32_0 : i32, i32
  }
  func.func @transform_3(%arg0: i32, %arg1: i32) -> (i32, i32) {
    %c0_i32 = arith.constant 0 : i32
    %c0_i32_0 = arith.constant 0 : i32
    %c0_i32_1 = arith.constant 0 : i32
    return %c0_i32, %c0_i32_0 : i32, i32
  }
  func.func @transform_4(%arg0: i32, %arg1: i32) -> (i32, i32) {
    %c0_i32 = arith.constant 0 : i32
    %c0_i32_0 = arith.constant 0 : i32
    %c0_i32_1 = arith.constant 0 : i32
    return %c0_i32, %c0_i32_0 : i32, i32
  }
  func.func @transform_5(%arg0: i32, %arg1: i32) -> (i32, i32) {
    %c0_i32 = arith.constant 0 : i32
    %c0_i32_0 = arith.constant 0 : i32
    %c0_i32_1 = arith.constant 0 : i32
    return %c0_i32, %c0_i32_0 : i32, i32
  }
  func.func @transform_6(%arg0: i32, %arg1: i32) -> (i32, i32) {
    %c0_i32 = arith.constant 0 : i32
    %c0_i32_0 = arith.constant 0 : i32
    %c0_i32_1 = arith.constant 0 : i32
    return %c0_i32, %c0_i32_0 : i32, i32
  }
  func.func @transform_7(%arg0: i32, %arg1: i32) -> (i32, i32) {
    %c0_i32 = arith.constant 0 : i32
    %c0_i32_0 = arith.constant 0 : i32
    %c0_i32_1 = arith.constant 0 : i32
    return %c0_i32, %c0_i32_0 : i32, i32
  }
  func.func @transform_8(%arg0: i32, %arg1: i32) -> (i32, i32) {
    %c0_i32 = arith.constant 0 : i32
    %c0_i32_0 = arith.constant 0 : i32
    %c0_i32_1 = arith.constant 0 : i32
    return %c0_i32, %c0_i32_0 : i32, i32
  }
  func.func @transform_9(%arg0: i32, %arg1: i32) -> (i32, i32) {
    %c0_i32 = arith.constant 0 : i32
    %c0_i32_0 = arith.constant 0 : i32
    %c0_i32_1 = arith.constant 0 : i32
    return %c0_i32, %c0_i32_0 : i32, i32
  }
  func.func @transform_10(%arg0: i32, %arg1: i32) -> (i32, i32) {
    %c0_i32 = arith.constant 0 : i32
    %c0_i32_0 = arith.constant 0 : i32
    %c0_i32_1 = arith.constant 0 : i32
    return %c0_i32, %c0_i32_0 : i32, i32
  }
  func.func @transform_11(%arg0: i32, %arg1: i32) -> (i32, i32) {
    %c0_i32 = arith.constant 0 : i32
    %c0_i32_0 = arith.constant 0 : i32
    return %arg0, %c0_i32 : i32, i32
  }
}

module attributes {stable_mosaic.version = 11 : i64} {
  func.func @_rsconv_kernel(%arg0: i32, %arg1: i32, %arg2: memref<8x16x7xbf16, #tpu.memory_space<vmem>>, %arg3: memref<8x16x128xf32, #tpu.memory_space<vmem>>, %arg4: memref<7x128xbf16, #tpu.memory_space<vmem>>, %arg5: memref<1x128xf32, #tpu.memory_space<vmem>>, %arg6: memref<128x512xbf16, #tpu.memory_space<vmem>>, %arg7: memref<1x512xf32, #tpu.memory_space<vmem>>, %arg8: memref<1x512xf32, #tpu.memory_space<vmem>>, %arg9: memref<16x512xf32, #tpu.memory_space<vmem>>, %arg10: memref<16x128xf32, #tpu.memory_space<vmem>>) attributes {dimension_semantics = [#tpu.dimension_semantics<parallel>, #tpu.dimension_semantics<arbitrary>], iteration_bounds = array<i64: 1, 1>, scalar_prefetch = 0 : i64, scratch_operands = 1 : i64, tpu.core_type = #tpu.core_type<tc>, window_params = [{transform_indices = @transform_0, window_bounds = array<i64: 8, 16, 7>}, {transform_indices = @transform_1, window_bounds = array<i64: 8, 16, 128>}, {pipeline_mode = #tpu.pipeline_mode<synchronous>, transform_indices = @transform_2, window_bounds = array<i64: 7, 128>}, {pipeline_mode = #tpu.pipeline_mode<synchronous>, transform_indices = @transform_3, window_bounds = array<i64: 1, 128>}, {pipeline_mode = #tpu.pipeline_mode<synchronous>, transform_indices = @transform_4, window_bounds = array<i64: 128, 512>}, {pipeline_mode = #tpu.pipeline_mode<synchronous>, transform_indices = @transform_5, window_bounds = array<i64: 1, 512>}, {pipeline_mode = #tpu.pipeline_mode<synchronous>, transform_indices = @transform_6, window_bounds = array<i64: 1, 512>}, {transform_indices = @transform_7, window_bounds = array<i64: 16, 512>}]} {
    %c0_i32 = arith.constant 0 : i32
    %0 = arith.cmpi eq, %arg1, %c0_i32 : i32
    %1 = arith.extui %0 : i1 to i32
    %c0_i32_0 = arith.constant 0 : i32
    %2 = arith.cmpi ne, %1, %c0_i32_0 : i32
    scf.if %2 {
      %cst_66 = arith.constant 0xFF800000 : f32
      %98 = vector.broadcast %cst_66 : f32 to vector<16x128xf32>
      %c0_67 = arith.constant 0 : index
      %c0_68 = arith.constant 0 : index
      %99 = vector.load %arg10[%c0_67, %c0_68] : memref<16x128xf32, #tpu.memory_space<vmem>>, vector<16x128xf32>
      tpu.vector_store %arg10[%c0_67, %c0_68], %98 {strides = array<i32>} : memref<16x128xf32, #tpu.memory_space<vmem>>, vector<16x128xf32>,
    } else {
    }
    %c0 = arith.constant 0 : index
    %c0_1 = arith.constant 0 : index
    %3 = vector.load %arg4[%c0, %c0_1] : memref<7x128xbf16, #tpu.memory_space<vmem>>, vector<7x128xbf16>
    %c0_2 = arith.constant 0 : index
    %c0_3 = arith.constant 0 : index
    %4 = vector.load %arg5[%c0_2, %c0_3] : memref<1x128xf32, #tpu.memory_space<vmem>>, vector<1x128xf32>
    %c0_4 = arith.constant 0 : index
    %c0_5 = arith.constant 0 : index
    %c0_6 = arith.constant 0 : index
    %5 = vector.load %arg2[%c0_4, %c0_5, %c0_6] : memref<8x16x7xbf16, #tpu.memory_space<vmem>>, vector<1x16x7xbf16>
    %6 = vector.shape_cast %5 : vector<1x16x7xbf16> to vector<16x7xbf16>
    %cst = arith.constant dense<0.000000e+00> : vector<16x128xf32>
    %7 = tpu.matmul %6, %3, %cst {dimension_numbers = #tpu.dot_dimension_numbers<[1], [0], [0], [1], [0, 0, 1, 1], [], []>} : vector<16x7xbf16>, vector<7x128xbf16>, vector<16x128xf32> -> vector<16x128xf32>
    %8 = vector.broadcast %4 : vector<1x128xf32> to vector<16x128xf32>
    %9 = arith.addf %7, %8 : vector<16x128xf32>
    %cst_7 = arith.constant 0.000000e+00 : f32
    %10 = vector.broadcast %cst_7 : f32 to vector<16x128xf32>
    %11 = arith.maximumf %9, %10 : vector<16x128xf32>
    %c0_8 = arith.constant 0 : index
    %c0_9 = arith.constant 0 : index
    %c0_10 = arith.constant 0 : index
    %12 = vector.load %arg3[%c0_8, %c0_9, %c0_10] : memref<8x16x128xf32, #tpu.memory_space<vmem>>, vector<1x16x128xf32>
    %13 = vector.shape_cast %12 : vector<1x16x128xf32> to vector<16x128xf32>
    %14 = arith.mulf %11, %13 : vector<16x128xf32>
    %c1 = arith.constant 1 : index
    %c0_11 = arith.constant 0 : index
    %c0_12 = arith.constant 0 : index
    %15 = vector.load %arg2[%c1, %c0_11, %c0_12] : memref<8x16x7xbf16, #tpu.memory_space<vmem>>, vector<1x16x7xbf16>
    %16 = vector.shape_cast %15 : vector<1x16x7xbf16> to vector<16x7xbf16>
    %cst_13 = arith.constant dense<0.000000e+00> : vector<16x128xf32>
    %17 = tpu.matmul %16, %3, %cst_13 {dimension_numbers = #tpu.dot_dimension_numbers<[1], [0], [0], [1], [0, 0, 1, 1], [], []>} : vector<16x7xbf16>, vector<7x128xbf16>, vector<16x128xf32> -> vector<16x128xf32>
    %18 = vector.broadcast %4 : vector<1x128xf32> to vector<16x128xf32>
    %19 = arith.addf %17, %18 : vector<16x128xf32>
    %cst_14 = arith.constant 0.000000e+00 : f32
    %20 = vector.broadcast %cst_14 : f32 to vector<16x128xf32>
    %21 = arith.maximumf %19, %20 : vector<16x128xf32>
    %c1_15 = arith.constant 1 : index
    %c0_16 = arith.constant 0 : index
    %c0_17 = arith.constant 0 : index
    %22 = vector.load %arg3[%c1_15, %c0_16, %c0_17] : memref<8x16x128xf32, #tpu.memory_space<vmem>>, vector<1x16x128xf32>
    %23 = vector.shape_cast %22 : vector<1x16x128xf32> to vector<16x128xf32>
    %24 = arith.mulf %21, %23 : vector<16x128xf32>
    %25 = arith.maximumf %14, %24 : vector<16x128xf32>
    %c2 = arith.constant 2 : index
    %c0_18 = arith.constant 0 : index
    %c0_19 = arith.constant 0 : index
    %26 = vector.load %arg2[%c2, %c0_18, %c0_19] : memref<8x16x7xbf16, #tpu.memory_space<vmem>>, vector<1x16x7xbf16>
    %27 = vector.shape_cast %26 : vector<1x16x7xbf16> to vector<16x7xbf16>
    %cst_20 = arith.constant dense<0.000000e+00> : vector<16x128xf32>
    %28 = tpu.matmul %27, %3, %cst_20 {dimension_numbers = #tpu.dot_dimension_numbers<[1], [0], [0], [1], [0, 0, 1, 1], [], []>} : vector<16x7xbf16>, vector<7x128xbf16>, vector<16x128xf32> -> vector<16x128xf32>
    %29 = vector.broadcast %4 : vector<1x128xf32> to vector<16x128xf32>
    %30 = arith.addf %28, %29 : vector<16x128xf32>
    %cst_21 = arith.constant 0.000000e+00 : f32
    %31 = vector.broadcast %cst_21 : f32 to vector<16x128xf32>
    %32 = arith.maximumf %30, %31 : vector<16x128xf32>
    %c2_22 = arith.constant 2 : index
    %c0_23 = arith.constant 0 : index
    %c0_24 = arith.constant 0 : index
    %33 = vector.load %arg3[%c2_22, %c0_23, %c0_24] : memref<8x16x128xf32, #tpu.memory_space<vmem>>, vector<1x16x128xf32>
    %34 = vector.shape_cast %33 : vector<1x16x128xf32> to vector<16x128xf32>
    %35 = arith.mulf %32, %34 : vector<16x128xf32>
    %36 = arith.maximumf %25, %35 : vector<16x128xf32>
    %c3 = arith.constant 3 : index
    %c0_25 = arith.constant 0 : index
    %c0_26 = arith.constant 0 : index
    %37 = vector.load %arg2[%c3, %c0_25, %c0_26] : memref<8x16x7xbf16, #tpu.memory_space<vmem>>, vector<1x16x7xbf16>
    %38 = vector.shape_cast %37 : vector<1x16x7xbf16> to vector<16x7xbf16>
    %cst_27 = arith.constant dense<0.000000e+00> : vector<16x128xf32>
    %39 = tpu.matmul %38, %3, %cst_27 {dimension_numbers = #tpu.dot_dimension_numbers<[1], [0], [0], [1], [0, 0, 1, 1], [], []>} : vector<16x7xbf16>, vector<7x128xbf16>, vector<16x128xf32> -> vector<16x128xf32>
    %40 = vector.broadcast %4 : vector<1x128xf32> to vector<16x128xf32>
    %41 = arith.addf %39, %40 : vector<16x128xf32>
    %cst_28 = arith.constant 0.000000e+00 : f32
    %42 = vector.broadcast %cst_28 : f32 to vector<16x128xf32>
    %43 = arith.maximumf %41, %42 : vector<16x128xf32>
    %c3_29 = arith.constant 3 : index
    %c0_30 = arith.constant 0 : index
    %c0_31 = arith.constant 0 : index
    %44 = vector.load %arg3[%c3_29, %c0_30, %c0_31] : memref<8x16x128xf32, #tpu.memory_space<vmem>>, vector<1x16x128xf32>
    %45 = vector.shape_cast %44 : vector<1x16x128xf32> to vector<16x128xf32>
    %46 = arith.mulf %43, %45 : vector<16x128xf32>
    %47 = arith.maximumf %36, %46 : vector<16x128xf32>
    %c4 = arith.constant 4 : index
    %c0_32 = arith.constant 0 : index
    %c0_33 = arith.constant 0 : index
    %48 = vector.load %arg2[%c4, %c0_32, %c0_33] : memref<8x16x7xbf16, #tpu.memory_space<vmem>>, vector<1x16x7xbf16>
    %49 = vector.shape_cast %48 : vector<1x16x7xbf16> to vector<16x7xbf16>
    %cst_34 = arith.constant dense<0.000000e+00> : vector<16x128xf32>
    %50 = tpu.matmul %49, %3, %cst_34 {dimension_numbers = #tpu.dot_dimension_numbers<[1], [0], [0], [1], [0, 0, 1, 1], [], []>} : vector<16x7xbf16>, vector<7x128xbf16>, vector<16x128xf32> -> vector<16x128xf32>
    %51 = vector.broadcast %4 : vector<1x128xf32> to vector<16x128xf32>
    %52 = arith.addf %50, %51 : vector<16x128xf32>
    %cst_35 = arith.constant 0.000000e+00 : f32
    %53 = vector.broadcast %cst_35 : f32 to vector<16x128xf32>
    %54 = arith.maximumf %52, %53 : vector<16x128xf32>
    %c4_36 = arith.constant 4 : index
    %c0_37 = arith.constant 0 : index
    %c0_38 = arith.constant 0 : index
    %55 = vector.load %arg3[%c4_36, %c0_37, %c0_38] : memref<8x16x128xf32, #tpu.memory_space<vmem>>, vector<1x16x128xf32>
    %56 = vector.shape_cast %55 : vector<1x16x128xf32> to vector<16x128xf32>
    %57 = arith.mulf %54, %56 : vector<16x128xf32>
    %58 = arith.maximumf %47, %57 : vector<16x128xf32>
    %c5 = arith.constant 5 : index
    %c0_39 = arith.constant 0 : index
    %c0_40 = arith.constant 0 : index
    %59 = vector.load %arg2[%c5, %c0_39, %c0_40] : memref<8x16x7xbf16, #tpu.memory_space<vmem>>, vector<1x16x7xbf16>
    %60 = vector.shape_cast %59 : vector<1x16x7xbf16> to vector<16x7xbf16>
    %cst_41 = arith.constant dense<0.000000e+00> : vector<16x128xf32>
    %61 = tpu.matmul %60, %3, %cst_41 {dimension_numbers = #tpu.dot_dimension_numbers<[1], [0], [0], [1], [0, 0, 1, 1], [], []>} : vector<16x7xbf16>, vector<7x128xbf16>, vector<16x128xf32> -> vector<16x128xf32>
    %62 = vector.broadcast %4 : vector<1x128xf32> to vector<16x128xf32>
    %63 = arith.addf %61, %62 : vector<16x128xf32>
    %cst_42 = arith.constant 0.000000e+00 : f32
    %64 = vector.broadcast %cst_42 : f32 to vector<16x128xf32>
    %65 = arith.maximumf %63, %64 : vector<16x128xf32>
    %c5_43 = arith.constant 5 : index
    %c0_44 = arith.constant 0 : index
    %c0_45 = arith.constant 0 : index
    %66 = vector.load %arg3[%c5_43, %c0_44, %c0_45] : memref<8x16x128xf32, #tpu.memory_space<vmem>>, vector<1x16x128xf32>
    %67 = vector.shape_cast %66 : vector<1x16x128xf32> to vector<16x128xf32>
    %68 = arith.mulf %65, %67 : vector<16x128xf32>
    %69 = arith.maximumf %58, %68 : vector<16x128xf32>
    %c6 = arith.constant 6 : index
    %c0_46 = arith.constant 0 : index
    %c0_47 = arith.constant 0 : index
    %70 = vector.load %arg2[%c6, %c0_46, %c0_47] : memref<8x16x7xbf16, #tpu.memory_space<vmem>>, vector<1x16x7xbf16>
    %71 = vector.shape_cast %70 : vector<1x16x7xbf16> to vector<16x7xbf16>
    %cst_48 = arith.constant dense<0.000000e+00> : vector<16x128xf32>
    %72 = tpu.matmul %71, %3, %cst_48 {dimension_numbers = #tpu.dot_dimension_numbers<[1], [0], [0], [1], [0, 0, 1, 1], [], []>} : vector<16x7xbf16>, vector<7x128xbf16>, vector<16x128xf32> -> vector<16x128xf32>
    %73 = vector.broadcast %4 : vector<1x128xf32> to vector<16x128xf32>
    %74 = arith.addf %72, %73 : vector<16x128xf32>
    %cst_49 = arith.constant 0.000000e+00 : f32
    %75 = vector.broadcast %cst_49 : f32 to vector<16x128xf32>
    %76 = arith.maximumf %74, %75 : vector<16x128xf32>
    %c6_50 = arith.constant 6 : index
    %c0_51 = arith.constant 0 : index
    %c0_52 = arith.constant 0 : index
    %77 = vector.load %arg3[%c6_50, %c0_51, %c0_52] : memref<8x16x128xf32, #tpu.memory_space<vmem>>, vector<1x16x128xf32>
    %78 = vector.shape_cast %77 : vector<1x16x128xf32> to vector<16x128xf32>
    %79 = arith.mulf %76, %78 : vector<16x128xf32>
    %80 = arith.maximumf %69, %79 : vector<16x128xf32>
    %c7 = arith.constant 7 : index
    %c0_53 = arith.constant 0 : index
    %c0_54 = arith.constant 0 : index
    %81 = vector.load %arg2[%c7, %c0_53, %c0_54] : memref<8x16x7xbf16, #tpu.memory_space<vmem>>, vector<1x16x7xbf16>
    %82 = vector.shape_cast %81 : vector<1x16x7xbf16> to vector<16x7xbf16>
    %cst_55 = arith.constant dense<0.000000e+00> : vector<16x128xf32>
    %83 = tpu.matmul %82, %3, %cst_55 {dimension_numbers = #tpu.dot_dimension_numbers<[1], [0], [0], [1], [0, 0, 1, 1], [], []>} : vector<16x7xbf16>, vector<7x128xbf16>, vector<16x128xf32> -> vector<16x128xf32>
    %84 = vector.broadcast %4 : vector<1x128xf32> to vector<16x128xf32>
    %85 = arith.addf %83, %84 : vector<16x128xf32>
    %cst_56 = arith.constant 0.000000e+00 : f32
    %86 = vector.broadcast %cst_56 : f32 to vector<16x128xf32>
    %87 = arith.maximumf %85, %86 : vector<16x128xf32>
    %c7_57 = arith.constant 7 : index
    %c0_58 = arith.constant 0 : index
    %c0_59 = arith.constant 0 : index
    %88 = vector.load %arg3[%c7_57, %c0_58, %c0_59] : memref<8x16x128xf32, #tpu.memory_space<vmem>>, vector<1x16x128xf32>
    %89 = vector.shape_cast %88 : vector<1x16x128xf32> to vector<16x128xf32>
    %90 = arith.mulf %87, %89 : vector<16x128xf32>
    %91 = arith.maximumf %80, %90 : vector<16x128xf32>
    %c0_60 = arith.constant 0 : index
    %c0_61 = arith.constant 0 : index
    %92 = vector.load %arg10[%c0_60, %c0_61] : memref<16x128xf32, #tpu.memory_space<vmem>>, vector<16x128xf32>
    %93 = arith.maximumf %92, %91 : vector<16x128xf32>
    %c0_62 = arith.constant 0 : index
    %c0_63 = arith.constant 0 : index
    %94 = vector.load %arg10[%c0_62, %c0_63] : memref<16x128xf32, #tpu.memory_space<vmem>>, vector<16x128xf32>
    tpu.vector_store %arg10[%c0_62, %c0_63], %93 {strides = array<i32>} : memref<16x128xf32, #tpu.memory_space<vmem>>, vector<16x128xf32>,
    %c0_i32_64 = arith.constant 0 : i32
    %95 = arith.cmpi eq, %arg1, %c0_i32_64 : i32
    %96 = arith.extui %95 : i1 to i32
    %c0_i32_65 = arith.constant 0 : i32
    %97 = arith.cmpi ne, %96, %c0_i32_65 : i32
    scf.if %97 {
      %c0_66 = arith.constant 0 : index
      %c0_67 = arith.constant 0 : index
      %98 = vector.load %arg10[%c0_66, %c0_67] : memref<16x128xf32, #tpu.memory_space<vmem>>, vector<16x128xf32>
      %99 = arith.truncf %98 : vector<16x128xf32> to vector<16x128xbf16>
      %c0_68 = arith.constant 0 : index
      %c0_69 = arith.constant 0 : index
      %100 = vector.load %arg6[%c0_68, %c0_69] : memref<128x512xbf16, #tpu.memory_space<vmem>>, vector<128x512xbf16>
      %cst_70 = arith.constant dense<0.000000e+00> : vector<16x512xf32>
      %101 = tpu.matmul %99, %100, %cst_70 {dimension_numbers = #tpu.dot_dimension_numbers<[1], [0], [0], [1], [0, 0, 1, 1], [], []>} : vector<16x128xbf16>, vector<128x512xbf16>, vector<16x512xf32> -> vector<16x512xf32>
      %c0_71 = arith.constant 0 : index
      %c0_72 = arith.constant 0 : index
      %102 = vector.load %arg7[%c0_71, %c0_72] : memref<1x512xf32, #tpu.memory_space<vmem>>, vector<1x512xf32>
      %103 = vector.broadcast %102 : vector<1x512xf32> to vector<16x512xf32>
      %104 = arith.mulf %101, %103 : vector<16x512xf32>
      %c0_73 = arith.constant 0 : index
      %c0_74 = arith.constant 0 : index
      %105 = vector.load %arg8[%c0_73, %c0_74] : memref<1x512xf32, #tpu.memory_space<vmem>>, vector<1x512xf32>
      %106 = vector.broadcast %105 : vector<1x512xf32> to vector<16x512xf32>
      %107 = arith.addf %104, %106 : vector<16x512xf32>
      %cst_75 = arith.constant 0.000000e+00 : f32
      %108 = vector.broadcast %cst_75 : f32 to vector<16x512xf32>
      %109 = arith.maximumf %107, %108 : vector<16x512xf32>
      %c0_76 = arith.constant 0 : index
      %c0_77 = arith.constant 0 : index
      %110 = vector.load %arg9[%c0_76, %c0_77] : memref<16x512xf32, #tpu.memory_space<vmem>>, vector<16x512xf32>
      tpu.vector_store %arg9[%c0_76, %c0_77], %109 {strides = array<i32>} : memref<16x512xf32, #tpu.memory_space<vmem>>, vector<16x512xf32>,
    } else {
    }
    return
  }
  func.func @transform_0(%arg0: i32, %arg1: i32) -> (i32, i32, i32) {
    %c0_i32 = arith.constant 0 : i32
    %c0_i32_0 = arith.constant 0 : i32
    return %arg1, %arg0, %c0_i32 : i32, i32, i32
  }
  func.func @transform_1(%arg0: i32, %arg1: i32) -> (i32, i32, i32) {
    %c0_i32 = arith.constant 0 : i32
    %c0_i32_0 = arith.constant 0 : i32
    return %arg1, %arg0, %c0_i32 : i32, i32, i32
  }
  func.func @transform_2(%arg0: i32, %arg1: i32) -> (i32, i32) {
    %c0_i32 = arith.constant 0 : i32
    %c0_i32_0 = arith.constant 0 : i32
    %c0_i32_1 = arith.constant 0 : i32
    return %c0_i32, %c0_i32_0 : i32, i32
  }
  func.func @transform_3(%arg0: i32, %arg1: i32) -> (i32, i32) {
    %c0_i32 = arith.constant 0 : i32
    %c0_i32_0 = arith.constant 0 : i32
    %c0_i32_1 = arith.constant 0 : i32
    return %c0_i32, %c0_i32_0 : i32, i32
  }
  func.func @transform_4(%arg0: i32, %arg1: i32) -> (i32, i32) {
    %c0_i32 = arith.constant 0 : i32
    %c0_i32_0 = arith.constant 0 : i32
    %c0_i32_1 = arith.constant 0 : i32
    return %c0_i32, %c0_i32_0 : i32, i32
  }
  func.func @transform_5(%arg0: i32, %arg1: i32) -> (i32, i32) {
    %c0_i32 = arith.constant 0 : i32
    %c0_i32_0 = arith.constant 0 : i32
    %c0_i32_1 = arith.constant 0 : i32
    return %c0_i32, %c0_i32_0 : i32, i32
  }
  func.func @transform_6(%arg0: i32, %arg1: i32) -> (i32, i32) {
    %c0_i32 = arith.constant 0 : i32
    %c0_i32_0 = arith.constant 0 : i32
    %c0_i32_1 = arith.constant 0 : i32
    return %c0_i32, %c0_i32_0 : i32, i32
  }
  func.func @transform_7(%arg0: i32, %arg1: i32) -> (i32, i32) {
    %c0_i32 = arith.constant 0 : i32
    %c0_i32_0 = arith.constant 0 : i32
    return %arg0, %c0_i32 : i32, i32
  }
}

module attributes {stable_mosaic.version = 11 : i64} {
  func.func @_conv3_cls_kernel(%arg0: i32, %arg1: memref<8x8x7xbf16, #tpu.memory_space<vmem>>, %arg2: memref<8x8x512xf32, #tpu.memory_space<vmem>>, %arg3: memref<7x512xbf16, #tpu.memory_space<vmem>>, %arg4: memref<1x512xf32, #tpu.memory_space<vmem>>, %arg5: memref<512x1024xbf16, #tpu.memory_space<vmem>>, %arg6: memref<1x1024xf32, #tpu.memory_space<vmem>>, %arg7: memref<1x1024xf32, #tpu.memory_space<vmem>>, %arg8: memref<1024x512xbf16, #tpu.memory_space<vmem>>, %arg9: memref<1x512xf32, #tpu.memory_space<vmem>>, %arg10: memref<1x512xf32, #tpu.memory_space<vmem>>, %arg11: memref<512x256xbf16, #tpu.memory_space<vmem>>, %arg12: memref<1x256xf32, #tpu.memory_space<vmem>>, %arg13: memref<1x256xf32, #tpu.memory_space<vmem>>, %arg14: memref<256x10xbf16, #tpu.memory_space<vmem>>, %arg15: memref<1x10xf32, #tpu.memory_space<vmem>>, %arg16: memref<8x10xf32, #tpu.memory_space<vmem>>, %arg17: memref<8x512xf32, #tpu.memory_space<vmem>>) attributes {dimension_semantics = [#tpu.dimension_semantics<arbitrary>], iteration_bounds = array<i64: 1>, scalar_prefetch = 0 : i64, scratch_operands = 1 : i64, tpu.core_type = #tpu.core_type<tc>, window_params = [{transform_indices = @transform_0, window_bounds = array<i64: 8, 8, 7>}, {transform_indices = @transform_1, window_bounds = array<i64: 8, 8, 512>}, {pipeline_mode = #tpu.pipeline_mode<synchronous>, transform_indices = @transform_2, window_bounds = array<i64: 7, 512>}, {pipeline_mode = #tpu.pipeline_mode<synchronous>, transform_indices = @transform_3, window_bounds = array<i64: 1, 512>}, {pipeline_mode = #tpu.pipeline_mode<synchronous>, transform_indices = @transform_4, window_bounds = array<i64: 512, 1024>}, {pipeline_mode = #tpu.pipeline_mode<synchronous>, transform_indices = @transform_5, window_bounds = array<i64: 1, 1024>}, {pipeline_mode = #tpu.pipeline_mode<synchronous>, transform_indices = @transform_6, window_bounds = array<i64: 1, 1024>}, {pipeline_mode = #tpu.pipeline_mode<synchronous>, transform_indices = @transform_7, window_bounds = array<i64: 1024, 512>}, {pipeline_mode = #tpu.pipeline_mode<synchronous>, transform_indices = @transform_8, window_bounds = array<i64: 1, 512>}, {pipeline_mode = #tpu.pipeline_mode<synchronous>, transform_indices = @transform_9, window_bounds = array<i64: 1, 512>}, {pipeline_mode = #tpu.pipeline_mode<synchronous>, transform_indices = @transform_10, window_bounds = array<i64: 512, 256>}, {pipeline_mode = #tpu.pipeline_mode<synchronous>, transform_indices = @transform_11, window_bounds = array<i64: 1, 256>}, {pipeline_mode = #tpu.pipeline_mode<synchronous>, transform_indices = @transform_12, window_bounds = array<i64: 1, 256>}, {pipeline_mode = #tpu.pipeline_mode<synchronous>, transform_indices = @transform_13, window_bounds = array<i64: 256, 10>}, {pipeline_mode = #tpu.pipeline_mode<synchronous>, transform_indices = @transform_14, window_bounds = array<i64: 1, 10>}, {pipeline_mode = #tpu.pipeline_mode<synchronous>, transform_indices = @transform_15, window_bounds = array<i64: 8, 10>}]} {
    %c0_i32 = arith.constant 0 : i32
    %0 = arith.cmpi eq, %arg0, %c0_i32 : i32
    %1 = arith.extui %0 : i1 to i32
    %c0_i32_0 = arith.constant 0 : i32
    %2 = arith.cmpi ne, %1, %c0_i32_0 : i32
    scf.if %2 {
      %cst_66 = arith.constant 0xFF800000 : f32
      %98 = vector.broadcast %cst_66 : f32 to vector<8x512xf32>
      %c0_67 = arith.constant 0 : index
      %c0_68 = arith.constant 0 : index
      %99 = vector.load %arg17[%c0_67, %c0_68] : memref<8x512xf32, #tpu.memory_space<vmem>>, vector<8x512xf32>
      tpu.vector_store %arg17[%c0_67, %c0_68], %98 {strides = array<i32>} : memref<8x512xf32, #tpu.memory_space<vmem>>, vector<8x512xf32>,
    } else {
    }
    %c0 = arith.constant 0 : index
    %c0_1 = arith.constant 0 : index
    %3 = vector.load %arg3[%c0, %c0_1] : memref<7x512xbf16, #tpu.memory_space<vmem>>, vector<7x512xbf16>
    %c0_2 = arith.constant 0 : index
    %c0_3 = arith.constant 0 : index
    %4 = vector.load %arg4[%c0_2, %c0_3] : memref<1x512xf32, #tpu.memory_space<vmem>>, vector<1x512xf32>
    %c0_4 = arith.constant 0 : index
    %c0_5 = arith.constant 0 : index
    %c0_6 = arith.constant 0 : index
    %5 = vector.load %arg1[%c0_4, %c0_5, %c0_6] : memref<8x8x7xbf16, #tpu.memory_space<vmem>>, vector<1x8x7xbf16>
    %6 = vector.shape_cast %5 : vector<1x8x7xbf16> to vector<8x7xbf16>
    %cst = arith.constant dense<0.000000e+00> : vector<8x512xf32>
    %7 = tpu.matmul %6, %3, %cst {dimension_numbers = #tpu.dot_dimension_numbers<[1], [0], [0], [1], [0, 0, 1, 1], [], []>} : vector<8x7xbf16>, vector<7x512xbf16>, vector<8x512xf32> -> vector<8x512xf32>
    %8 = vector.broadcast %4 : vector<1x512xf32> to vector<8x512xf32>
    %9 = arith.addf %7, %8 : vector<8x512xf32>
    %cst_7 = arith.constant 0.000000e+00 : f32
    %10 = vector.broadcast %cst_7 : f32 to vector<8x512xf32>
    %11 = arith.maximumf %9, %10 : vector<8x512xf32>
    %c0_8 = arith.constant 0 : index
    %c0_9 = arith.constant 0 : index
    %c0_10 = arith.constant 0 : index
    %12 = vector.load %arg2[%c0_8, %c0_9, %c0_10] : memref<8x8x512xf32, #tpu.memory_space<vmem>>, vector<1x8x512xf32>
    %13 = vector.shape_cast %12 : vector<1x8x512xf32> to vector<8x512xf32>
    %14 = arith.mulf %11, %13 : vector<8x512xf32>
    %c1 = arith.constant 1 : index
    %c0_11 = arith.constant 0 : index
    %c0_12 = arith.constant 0 : index
    %15 = vector.load %arg1[%c1, %c0_11, %c0_12] : memref<8x8x7xbf16, #tpu.memory_space<vmem>>, vector<1x8x7xbf16>
    %16 = vector.shape_cast %15 : vector<1x8x7xbf16> to vector<8x7xbf16>
    %cst_13 = arith.constant dense<0.000000e+00> : vector<8x512xf32>
    %17 = tpu.matmul %16, %3, %cst_13 {dimension_numbers = #tpu.dot_dimension_numbers<[1], [0], [0], [1], [0, 0, 1, 1], [], []>} : vector<8x7xbf16>, vector<7x512xbf16>, vector<8x512xf32> -> vector<8x512xf32>
    %18 = vector.broadcast %4 : vector<1x512xf32> to vector<8x512xf32>
    %19 = arith.addf %17, %18 : vector<8x512xf32>
    %cst_14 = arith.constant 0.000000e+00 : f32
    %20 = vector.broadcast %cst_14 : f32 to vector<8x512xf32>
    %21 = arith.maximumf %19, %20 : vector<8x512xf32>
    %c1_15 = arith.constant 1 : index
    %c0_16 = arith.constant 0 : index
    %c0_17 = arith.constant 0 : index
    %22 = vector.load %arg2[%c1_15, %c0_16, %c0_17] : memref<8x8x512xf32, #tpu.memory_space<vmem>>, vector<1x8x512xf32>
    %23 = vector.shape_cast %22 : vector<1x8x512xf32> to vector<8x512xf32>
    %24 = arith.mulf %21, %23 : vector<8x512xf32>
    %25 = arith.maximumf %14, %24 : vector<8x512xf32>
    %c2 = arith.constant 2 : index
    %c0_18 = arith.constant 0 : index
    %c0_19 = arith.constant 0 : index
    %26 = vector.load %arg1[%c2, %c0_18, %c0_19] : memref<8x8x7xbf16, #tpu.memory_space<vmem>>, vector<1x8x7xbf16>
    %27 = vector.shape_cast %26 : vector<1x8x7xbf16> to vector<8x7xbf16>
    %cst_20 = arith.constant dense<0.000000e+00> : vector<8x512xf32>
    %28 = tpu.matmul %27, %3, %cst_20 {dimension_numbers = #tpu.dot_dimension_numbers<[1], [0], [0], [1], [0, 0, 1, 1], [], []>} : vector<8x7xbf16>, vector<7x512xbf16>, vector<8x512xf32> -> vector<8x512xf32>
    %29 = vector.broadcast %4 : vector<1x512xf32> to vector<8x512xf32>
    %30 = arith.addf %28, %29 : vector<8x512xf32>
    %cst_21 = arith.constant 0.000000e+00 : f32
    %31 = vector.broadcast %cst_21 : f32 to vector<8x512xf32>
    %32 = arith.maximumf %30, %31 : vector<8x512xf32>
    %c2_22 = arith.constant 2 : index
    %c0_23 = arith.constant 0 : index
    %c0_24 = arith.constant 0 : index
    %33 = vector.load %arg2[%c2_22, %c0_23, %c0_24] : memref<8x8x512xf32, #tpu.memory_space<vmem>>, vector<1x8x512xf32>
    %34 = vector.shape_cast %33 : vector<1x8x512xf32> to vector<8x512xf32>
    %35 = arith.mulf %32, %34 : vector<8x512xf32>
    %36 = arith.maximumf %25, %35 : vector<8x512xf32>
    %c3 = arith.constant 3 : index
    %c0_25 = arith.constant 0 : index
    %c0_26 = arith.constant 0 : index
    %37 = vector.load %arg1[%c3, %c0_25, %c0_26] : memref<8x8x7xbf16, #tpu.memory_space<vmem>>, vector<1x8x7xbf16>
    %38 = vector.shape_cast %37 : vector<1x8x7xbf16> to vector<8x7xbf16>
    %cst_27 = arith.constant dense<0.000000e+00> : vector<8x512xf32>
    %39 = tpu.matmul %38, %3, %cst_27 {dimension_numbers = #tpu.dot_dimension_numbers<[1], [0], [0], [1], [0, 0, 1, 1], [], []>} : vector<8x7xbf16>, vector<7x512xbf16>, vector<8x512xf32> -> vector<8x512xf32>
    %40 = vector.broadcast %4 : vector<1x512xf32> to vector<8x512xf32>
    %41 = arith.addf %39, %40 : vector<8x512xf32>
    %cst_28 = arith.constant 0.000000e+00 : f32
    %42 = vector.broadcast %cst_28 : f32 to vector<8x512xf32>
    %43 = arith.maximumf %41, %42 : vector<8x512xf32>
    %c3_29 = arith.constant 3 : index
    %c0_30 = arith.constant 0 : index
    %c0_31 = arith.constant 0 : index
    %44 = vector.load %arg2[%c3_29, %c0_30, %c0_31] : memref<8x8x512xf32, #tpu.memory_space<vmem>>, vector<1x8x512xf32>
    %45 = vector.shape_cast %44 : vector<1x8x512xf32> to vector<8x512xf32>
    %46 = arith.mulf %43, %45 : vector<8x512xf32>
    %47 = arith.maximumf %36, %46 : vector<8x512xf32>
    %c4 = arith.constant 4 : index
    %c0_32 = arith.constant 0 : index
    %c0_33 = arith.constant 0 : index
    %48 = vector.load %arg1[%c4, %c0_32, %c0_33] : memref<8x8x7xbf16, #tpu.memory_space<vmem>>, vector<1x8x7xbf16>
    %49 = vector.shape_cast %48 : vector<1x8x7xbf16> to vector<8x7xbf16>
    %cst_34 = arith.constant dense<0.000000e+00> : vector<8x512xf32>
    %50 = tpu.matmul %49, %3, %cst_34 {dimension_numbers = #tpu.dot_dimension_numbers<[1], [0], [0], [1], [0, 0, 1, 1], [], []>} : vector<8x7xbf16>, vector<7x512xbf16>, vector<8x512xf32> -> vector<8x512xf32>
    %51 = vector.broadcast %4 : vector<1x512xf32> to vector<8x512xf32>
    %52 = arith.addf %50, %51 : vector<8x512xf32>
    %cst_35 = arith.constant 0.000000e+00 : f32
    %53 = vector.broadcast %cst_35 : f32 to vector<8x512xf32>
    %54 = arith.maximumf %52, %53 : vector<8x512xf32>
    %c4_36 = arith.constant 4 : index
    %c0_37 = arith.constant 0 : index
    %c0_38 = arith.constant 0 : index
    %55 = vector.load %arg2[%c4_36, %c0_37, %c0_38] : memref<8x8x512xf32, #tpu.memory_space<vmem>>, vector<1x8x512xf32>
    %56 = vector.shape_cast %55 : vector<1x8x512xf32> to vector<8x512xf32>
    %57 = arith.mulf %54, %56 : vector<8x512xf32>
    %58 = arith.maximumf %47, %57 : vector<8x512xf32>
    %c5 = arith.constant 5 : index
    %c0_39 = arith.constant 0 : index
    %c0_40 = arith.constant 0 : index
    %59 = vector.load %arg1[%c5, %c0_39, %c0_40] : memref<8x8x7xbf16, #tpu.memory_space<vmem>>, vector<1x8x7xbf16>
    %60 = vector.shape_cast %59 : vector<1x8x7xbf16> to vector<8x7xbf16>
    %cst_41 = arith.constant dense<0.000000e+00> : vector<8x512xf32>
    %61 = tpu.matmul %60, %3, %cst_41 {dimension_numbers = #tpu.dot_dimension_numbers<[1], [0], [0], [1], [0, 0, 1, 1], [], []>} : vector<8x7xbf16>, vector<7x512xbf16>, vector<8x512xf32> -> vector<8x512xf32>
    %62 = vector.broadcast %4 : vector<1x512xf32> to vector<8x512xf32>
    %63 = arith.addf %61, %62 : vector<8x512xf32>
    %cst_42 = arith.constant 0.000000e+00 : f32
    %64 = vector.broadcast %cst_42 : f32 to vector<8x512xf32>
    %65 = arith.maximumf %63, %64 : vector<8x512xf32>
    %c5_43 = arith.constant 5 : index
    %c0_44 = arith.constant 0 : index
    %c0_45 = arith.constant 0 : index
    %66 = vector.load %arg2[%c5_43, %c0_44, %c0_45] : memref<8x8x512xf32, #tpu.memory_space<vmem>>, vector<1x8x512xf32>
    %67 = vector.shape_cast %66 : vector<1x8x512xf32> to vector<8x512xf32>
    %68 = arith.mulf %65, %67 : vector<8x512xf32>
    %69 = arith.maximumf %58, %68 : vector<8x512xf32>
    %c6 = arith.constant 6 : index
    %c0_46 = arith.constant 0 : index
    %c0_47 = arith.constant 0 : index
    %70 = vector.load %arg1[%c6, %c0_46, %c0_47] : memref<8x8x7xbf16, #tpu.memory_space<vmem>>, vector<1x8x7xbf16>
    %71 = vector.shape_cast %70 : vector<1x8x7xbf16> to vector<8x7xbf16>
    %cst_48 = arith.constant dense<0.000000e+00> : vector<8x512xf32>
    %72 = tpu.matmul %71, %3, %cst_48 {dimension_numbers = #tpu.dot_dimension_numbers<[1], [0], [0], [1], [0, 0, 1, 1], [], []>} : vector<8x7xbf16>, vector<7x512xbf16>, vector<8x512xf32> -> vector<8x512xf32>
    %73 = vector.broadcast %4 : vector<1x512xf32> to vector<8x512xf32>
    %74 = arith.addf %72, %73 : vector<8x512xf32>
    %cst_49 = arith.constant 0.000000e+00 : f32
    %75 = vector.broadcast %cst_49 : f32 to vector<8x512xf32>
    %76 = arith.maximumf %74, %75 : vector<8x512xf32>
    %c6_50 = arith.constant 6 : index
    %c0_51 = arith.constant 0 : index
    %c0_52 = arith.constant 0 : index
    %77 = vector.load %arg2[%c6_50, %c0_51, %c0_52] : memref<8x8x512xf32, #tpu.memory_space<vmem>>, vector<1x8x512xf32>
    %78 = vector.shape_cast %77 : vector<1x8x512xf32> to vector<8x512xf32>
    %79 = arith.mulf %76, %78 : vector<8x512xf32>
    %80 = arith.maximumf %69, %79 : vector<8x512xf32>
    %c7 = arith.constant 7 : index
    %c0_53 = arith.constant 0 : index
    %c0_54 = arith.constant 0 : index
    %81 = vector.load %arg1[%c7, %c0_53, %c0_54] : memref<8x8x7xbf16, #tpu.memory_space<vmem>>, vector<1x8x7xbf16>
    %82 = vector.shape_cast %81 : vector<1x8x7xbf16> to vector<8x7xbf16>
    %cst_55 = arith.constant dense<0.000000e+00> : vector<8x512xf32>
    %83 = tpu.matmul %82, %3, %cst_55 {dimension_numbers = #tpu.dot_dimension_numbers<[1], [0], [0], [1], [0, 0, 1, 1], [], []>} : vector<8x7xbf16>, vector<7x512xbf16>, vector<8x512xf32> -> vector<8x512xf32>
    %84 = vector.broadcast %4 : vector<1x512xf32> to vector<8x512xf32>
    %85 = arith.addf %83, %84 : vector<8x512xf32>
    %cst_56 = arith.constant 0.000000e+00 : f32
    %86 = vector.broadcast %cst_56 : f32 to vector<8x512xf32>
    %87 = arith.maximumf %85, %86 : vector<8x512xf32>
    %c7_57 = arith.constant 7 : index
    %c0_58 = arith.constant 0 : index
    %c0_59 = arith.constant 0 : index
    %88 = vector.load %arg2[%c7_57, %c0_58, %c0_59] : memref<8x8x512xf32, #tpu.memory_space<vmem>>, vector<1x8x512xf32>
    %89 = vector.shape_cast %88 : vector<1x8x512xf32> to vector<8x512xf32>
    %90 = arith.mulf %87, %89 : vector<8x512xf32>
    %91 = arith.maximumf %80, %90 : vector<8x512xf32>
    %c0_60 = arith.constant 0 : index
    %c0_61 = arith.constant 0 : index
    %92 = vector.load %arg17[%c0_60, %c0_61] : memref<8x512xf32, #tpu.memory_space<vmem>>, vector<8x512xf32>
    %93 = arith.maximumf %92, %91 : vector<8x512xf32>
    %c0_62 = arith.constant 0 : index
    %c0_63 = arith.constant 0 : index
    %94 = vector.load %arg17[%c0_62, %c0_63] : memref<8x512xf32, #tpu.memory_space<vmem>>, vector<8x512xf32>
    tpu.vector_store %arg17[%c0_62, %c0_63], %93 {strides = array<i32>} : memref<8x512xf32, #tpu.memory_space<vmem>>, vector<8x512xf32>,
    %c0_i32_64 = arith.constant 0 : i32
    %95 = arith.cmpi eq, %arg0, %c0_i32_64 : i32
    %96 = arith.extui %95 : i1 to i32
    %c0_i32_65 = arith.constant 0 : i32
    %97 = arith.cmpi ne, %96, %c0_i32_65 : i32
    scf.if %97 {
      %c0_66 = arith.constant 0 : index
      %c0_67 = arith.constant 0 : index
      %98 = vector.load %arg17[%c0_66, %c0_67] : memref<8x512xf32, #tpu.memory_space<vmem>>, vector<8x512xf32>
      %99 = arith.truncf %98 : vector<8x512xf32> to vector<8x512xbf16>
      %c0_68 = arith.constant 0 : index
      %c0_69 = arith.constant 0 : index
      %100 = vector.load %arg5[%c0_68, %c0_69] : memref<512x1024xbf16, #tpu.memory_space<vmem>>, vector<512x1024xbf16>
      %cst_70 = arith.constant dense<0.000000e+00> : vector<8x1024xf32>
      %101 = tpu.matmul %99, %100, %cst_70 {dimension_numbers = #tpu.dot_dimension_numbers<[1], [0], [0], [1], [0, 0, 1, 1], [], []>} : vector<8x512xbf16>, vector<512x1024xbf16>, vector<8x1024xf32> -> vector<8x1024xf32>
      %c0_71 = arith.constant 0 : index
      %c0_72 = arith.constant 0 : index
      %102 = vector.load %arg6[%c0_71, %c0_72] : memref<1x1024xf32, #tpu.memory_space<vmem>>, vector<1x1024xf32>
      %103 = vector.broadcast %102 : vector<1x1024xf32> to vector<8x1024xf32>
      %104 = arith.mulf %101, %103 : vector<8x1024xf32>
      %c0_73 = arith.constant 0 : index
      %c0_74 = arith.constant 0 : index
      %105 = vector.load %arg7[%c0_73, %c0_74] : memref<1x1024xf32, #tpu.memory_space<vmem>>, vector<1x1024xf32>
      %106 = vector.broadcast %105 : vector<1x1024xf32> to vector<8x1024xf32>
      %107 = arith.addf %104, %106 : vector<8x1024xf32>
      %cst_75 = arith.constant 0.000000e+00 : f32
      %108 = vector.broadcast %cst_75 : f32 to vector<8x1024xf32>
      %109 = arith.maximumf %107, %108 : vector<8x1024xf32>
      %110 = arith.truncf %109 : vector<8x1024xf32> to vector<8x1024xbf16>
      %c0_76 = arith.constant 0 : index
      %c0_77 = arith.constant 0 : index
      %111 = vector.load %arg8[%c0_76, %c0_77] : memref<1024x512xbf16, #tpu.memory_space<vmem>>, vector<1024x512xbf16>
      %cst_78 = arith.constant dense<0.000000e+00> : vector<8x512xf32>
      %112 = tpu.matmul %110, %111, %cst_78 {dimension_numbers = #tpu.dot_dimension_numbers<[1], [0], [0], [1], [0, 0, 1, 1], [], []>} : vector<8x1024xbf16>, vector<1024x512xbf16>, vector<8x512xf32> -> vector<8x512xf32>
      %c0_79 = arith.constant 0 : index
      %c0_80 = arith.constant 0 : index
      %113 = vector.load %arg9[%c0_79, %c0_80] : memref<1x512xf32, #tpu.memory_space<vmem>>, vector<1x512xf32>
      %114 = vector.broadcast %113 : vector<1x512xf32> to vector<8x512xf32>
      %115 = arith.mulf %112, %114 : vector<8x512xf32>
      %c0_81 = arith.constant 0 : index
      %c0_82 = arith.constant 0 : index
      %116 = vector.load %arg10[%c0_81, %c0_82] : memref<1x512xf32, #tpu.memory_space<vmem>>, vector<1x512xf32>
      %117 = vector.broadcast %116 : vector<1x512xf32> to vector<8x512xf32>
      %118 = arith.addf %115, %117 : vector<8x512xf32>
      %119 = arith.truncf %118 : vector<8x512xf32> to vector<8x512xbf16>
      %c0_83 = arith.constant 0 : index
      %c0_84 = arith.constant 0 : index
      %120 = vector.load %arg11[%c0_83, %c0_84] : memref<512x256xbf16, #tpu.memory_space<vmem>>, vector<512x256xbf16>
      %cst_85 = arith.constant dense<0.000000e+00> : vector<8x256xf32>
      %121 = tpu.matmul %119, %120, %cst_85 {dimension_numbers = #tpu.dot_dimension_numbers<[1], [0], [0], [1], [0, 0, 1, 1], [], []>} : vector<8x512xbf16>, vector<512x256xbf16>, vector<8x256xf32> -> vector<8x256xf32>
      %c0_86 = arith.constant 0 : index
      %c0_87 = arith.constant 0 : index
      %122 = vector.load %arg12[%c0_86, %c0_87] : memref<1x256xf32, #tpu.memory_space<vmem>>, vector<1x256xf32>
      %123 = vector.broadcast %122 : vector<1x256xf32> to vector<8x256xf32>
      %124 = arith.mulf %121, %123 : vector<8x256xf32>
      %c0_88 = arith.constant 0 : index
      %c0_89 = arith.constant 0 : index
      %125 = vector.load %arg13[%c0_88, %c0_89] : memref<1x256xf32, #tpu.memory_space<vmem>>, vector<1x256xf32>
      %126 = vector.broadcast %125 : vector<1x256xf32> to vector<8x256xf32>
      %127 = arith.addf %124, %126 : vector<8x256xf32>
      %128 = arith.truncf %127 : vector<8x256xf32> to vector<8x256xbf16>
      %c0_90 = arith.constant 0 : index
      %c0_91 = arith.constant 0 : index
      %129 = vector.load %arg14[%c0_90, %c0_91] : memref<256x10xbf16, #tpu.memory_space<vmem>>, vector<256x10xbf16>
      %cst_92 = arith.constant dense<0.000000e+00> : vector<8x10xf32>
      %130 = tpu.matmul %128, %129, %cst_92 {dimension_numbers = #tpu.dot_dimension_numbers<[1], [0], [0], [1], [0, 0, 1, 1], [], []>} : vector<8x256xbf16>, vector<256x10xbf16>, vector<8x10xf32> -> vector<8x10xf32>
      %c0_93 = arith.constant 0 : index
      %c0_94 = arith.constant 0 : index
      %131 = vector.load %arg15[%c0_93, %c0_94] : memref<1x10xf32, #tpu.memory_space<vmem>>, vector<1x10xf32>
      %132 = vector.broadcast %131 : vector<1x10xf32> to vector<8x10xf32>
      %133 = arith.addf %130, %132 : vector<8x10xf32>
      %c0_95 = arith.constant 0 : index
      %c0_96 = arith.constant 0 : index
      %134 = vector.load %arg16[%c0_95, %c0_96] : memref<8x10xf32, #tpu.memory_space<vmem>>, vector<8x10xf32>
      tpu.vector_store %arg16[%c0_95, %c0_96], %133 {strides = array<i32>} : memref<8x10xf32, #tpu.memory_space<vmem>>, vector<8x10xf32>,
    } else {
    }
    return
  }
  func.func @transform_0(%arg0: i32) -> (i32, i32, i32) {
    %c0_i32 = arith.constant 0 : i32
    %c0_i32_0 = arith.constant 0 : i32
    %c0_i32_1 = arith.constant 0 : i32
    return %arg0, %c0_i32, %c0_i32_0 : i32, i32, i32
  }
  func.func @transform_1(%arg0: i32) -> (i32, i32, i32) {
    %c0_i32 = arith.constant 0 : i32
    %c0_i32_0 = arith.constant 0 : i32
    %c0_i32_1 = arith.constant 0 : i32
    return %arg0, %c0_i32, %c0_i32_0 : i32, i32, i32
  }
  func.func @transform_2(%arg0: i32) -> (i32, i32) {
    %c0_i32 = arith.constant 0 : i32
    %c0_i32_0 = arith.constant 0 : i32
    %c0_i32_1 = arith.constant 0 : i32
    return %c0_i32, %c0_i32_0 : i32, i32
  }
  func.func @transform_3(%arg0: i32) -> (i32, i32) {
    %c0_i32 = arith.constant 0 : i32
    %c0_i32_0 = arith.constant 0 : i32
    %c0_i32_1 = arith.constant 0 : i32
    return %c0_i32, %c0_i32_0 : i32, i32
  }
  func.func @transform_4(%arg0: i32) -> (i32, i32) {
    %c0_i32 = arith.constant 0 : i32
    %c0_i32_0 = arith.constant 0 : i32
    %c0_i32_1 = arith.constant 0 : i32
    return %c0_i32, %c0_i32_0 : i32, i32
  }
  func.func @transform_5(%arg0: i32) -> (i32, i32) {
    %c0_i32 = arith.constant 0 : i32
    %c0_i32_0 = arith.constant 0 : i32
    %c0_i32_1 = arith.constant 0 : i32
    return %c0_i32, %c0_i32_0 : i32, i32
  }
  func.func @transform_6(%arg0: i32) -> (i32, i32) {
    %c0_i32 = arith.constant 0 : i32
    %c0_i32_0 = arith.constant 0 : i32
    %c0_i32_1 = arith.constant 0 : i32
    return %c0_i32, %c0_i32_0 : i32, i32
  }
  func.func @transform_7(%arg0: i32) -> (i32, i32) {
    %c0_i32 = arith.constant 0 : i32
    %c0_i32_0 = arith.constant 0 : i32
    %c0_i32_1 = arith.constant 0 : i32
    return %c0_i32, %c0_i32_0 : i32, i32
  }
  func.func @transform_8(%arg0: i32) -> (i32, i32) {
    %c0_i32 = arith.constant 0 : i32
    %c0_i32_0 = arith.constant 0 : i32
    %c0_i32_1 = arith.constant 0 : i32
    return %c0_i32, %c0_i32_0 : i32, i32
  }
  func.func @transform_9(%arg0: i32) -> (i32, i32) {
    %c0_i32 = arith.constant 0 : i32
    %c0_i32_0 = arith.constant 0 : i32
    %c0_i32_1 = arith.constant 0 : i32
    return %c0_i32, %c0_i32_0 : i32, i32
  }
  func.func @transform_10(%arg0: i32) -> (i32, i32) {
    %c0_i32 = arith.constant 0 : i32
    %c0_i32_0 = arith.constant 0 : i32
    %c0_i32_1 = arith.constant 0 : i32
    return %c0_i32, %c0_i32_0 : i32, i32
  }
  func.func @transform_11(%arg0: i32) -> (i32, i32) {
    %c0_i32 = arith.constant 0 : i32
    %c0_i32_0 = arith.constant 0 : i32
    %c0_i32_1 = arith.constant 0 : i32
    return %c0_i32, %c0_i32_0 : i32, i32
  }
  func.func @transform_12(%arg0: i32) -> (i32, i32) {
    %c0_i32 = arith.constant 0 : i32
    %c0_i32_0 = arith.constant 0 : i32
    %c0_i32_1 = arith.constant 0 : i32
    return %c0_i32, %c0_i32_0 : i32, i32
  }
  func.func @transform_13(%arg0: i32) -> (i32, i32) {
    %c0_i32 = arith.constant 0 : i32
    %c0_i32_0 = arith.constant 0 : i32
    %c0_i32_1 = arith.constant 0 : i32
    return %c0_i32, %c0_i32_0 : i32, i32
  }
  func.func @transform_14(%arg0: i32) -> (i32, i32) {
    %c0_i32 = arith.constant 0 : i32
    %c0_i32_0 = arith.constant 0 : i32
    %c0_i32_1 = arith.constant 0 : i32
    return %c0_i32, %c0_i32_0 : i32, i32
  }
  func.func @transform_15(%arg0: i32) -> (i32, i32) {
    %c0_i32 = arith.constant 0 : i32
    %c0_i32_0 = arith.constant 0 : i32
    %c0_i32_1 = arith.constant 0 : i32
    return %c0_i32, %c0_i32_0 : i32, i32
  }
}

</mosaic_0001>

<llo_original>
// kernel: oriented_rscnn_forward.4
$region0: #{oriented_rscnn_forward.4}
  #allocation0 [shape = 'u32[]', space=smem, size = 0x4, offset = 0x4, fixed_abs, tag = 'smem constant byte address 0x4 - core index']
  #allocation1 [shape = 'u32[144,128]{1,0:T(1,128)}', space=vmem, size = 0x12000, scoped, tag = 'internal scratch']
  #allocation2 [shape = 'f32[16,128]{1,0:T(8,128)}', space=vmem, size = 0x2000, scoped, tag = 'scratch operand']
  %s0 = inlined_call_operand.hbm [shape: bf16[8,16,7], index: 0, kind: input, shape index: {}]
  %s1 = inlined_call_operand.hbm [shape: f32[8,16,128], index: 1, kind: input, shape index: {}]
  %s2 = inlined_call_operand.hbm [shape: bf16[7,128], index: 2, kind: input, shape index: {}]
  %s3 = inlined_call_operand.hbm [shape: f32[1,128], index: 3, kind: input, shape index: {}]
  %s4 = inlined_call_operand.hbm [shape: bf16[128,512], index: 4, kind: input, shape index: {}]
  %s5 = inlined_call_operand.hbm [shape: f32[1,512], index: 5, kind: input, shape index: {}]
  %s6 = inlined_call_operand.hbm [shape: f32[1,512], index: 6, kind: input, shape index: {}]
  %s7 = inlined_call_operand.hbm [shape: f32[16,512], index: 7, kind: output, shape index: {}]
  %s8 = sld [smem:[#allocation0]]
  $region74: #{oriented_rscnn_forward.4} parent=0
    _
  %s10 = ssub.s32 1, %s8
  %s11 = scalar_select 0, %s10, %s8
  $region1: #{oriented_rscnn_forward.4} parent=0
    #allocation3 [shape = 'u8[32768]{0}', space=vmem, size = 0x8000, scoped, tag = 'input window, operand 0, single buffered']
    #allocation4 [shape = 's32[1]{0}', space=sflag, size = 0x4, scoped, tag = 'scoped memory for oriented_rscnn_forward.4']
    #allocation5 [shape = 's32[1]{0}', space=sflag, size = 0x4, scoped, tag = 'scoped memory for oriented_rscnn_forward.4']
    #allocation6 [shape = 'u8[65536]{0}', space=vmem, size = 0x10000, scoped, tag = 'input window, operand 1, single buffered']
    #allocation7 [shape = 's32[1]{0}', space=sflag, size = 0x4, scoped, tag = 'scoped memory for oriented_rscnn_forward.4']
    #allocation8 [shape = 'u8[2048]{0}', space=vmem, size = 0x800, scoped, tag = 'input window, operand 2, single buffered']
    #allocation9 [shape = 'u8[512]{0}', space=vmem, size = 0x400, scoped, tag = 'input window, operand 3, single buffered']
    #allocation10 [shape = 's32[1]{0}', space=sflag, size = 0x4, scoped, tag = 'scoped memory for oriented_rscnn_forward.4']
    #allocation11 [shape = 'u8[131072]{0}', space=vmem, size = 0x20000, scoped, tag = 'input window, operand 4, single buffered']
    #allocation12 [shape = 'u8[2048]{0}', space=vmem, size = 0x800, scoped, tag = 'input window, operand 5, single buffered']
    #allocation13 [shape = 's32[1]{0}', space=sflag, size = 0x4, scoped, tag = 'scoped memory for oriented_rscnn_forward.4']
    #allocation14 [shape = 'u8[2048]{0}', space=vmem, size = 0x800, scoped, tag = 'input window, operand 6, single buffered']
    #allocation15 [shape = 'u8[32768]{0}', space=vmem, size = 0x8000, scoped, tag = 'output window, operand 0, single buffered']
    %12 = vsyncpa [#allocation4], 0
    %13 = vsyncpa [#allocation7], 0
    %14 = vsyncpa [#allocation10], 0
    %15 = vsyncpa [#allocation13], 0
    %16 = vsyncpa [#allocation5], 0
    // Predicated region
    $region2: #{oriented_rscnn_forward.4} parent=1 // pred_check
      _
    $region3: #{oriented_rscnn_forward.4} parent=1 // pred_check_branch
      %18 = sbr.rel (0) target = $region5
    $region4: #{oriented_rscnn_forward.4} parent=1 // pred_region
      %s20 = ssub.s32 1024, 1024
      %21 = vsyncadd [#allocation4], %s20
      %s22 = sshll.u32 [#allocation3], 4
      %s23 = int_to_ptr.vmem [resolvable:$true] %s22
      %28 = dma.hbm_to_vmem [thread:$0]  %s0, 1024, %s23, [#allocation4], 64, 64, 4
    $region5: #{oriented_rscnn_forward.4} parent=1 // pred_fallthru
      _
    // Predicated region
    $region6: #{oriented_rscnn_forward.4} parent=1 // pred_check
      _
    $region7: #{oriented_rscnn_forward.4} parent=1 // pred_check_branch
      %30 = sbr.rel (0) target = $region9
    $region8: #{oriented_rscnn_forward.4} parent=1 // pred_region
      %s32 = ssub.s32 2048, 2048
      %33 = vsyncadd [#allocation7], %s32
      %s34 = sshll.u32 [#allocation6], 4
      %s35 = int_to_ptr.vmem [resolvable:$true] %s34
      %40 = dma.hbm_to_vmem [thread:$0]  %s1, 2048, %s35, [#allocation7], 128, 128, 8
    $region9: #{oriented_rscnn_forward.4} parent=1 // pred_fallthru
      _
    // Predicated region
    $region10: #{oriented_rscnn_forward.4} parent=1 // pred_check
      _
    $region11: #{oriented_rscnn_forward.4} parent=1 // pred_check_branch
      %42 = sbr.rel (0) target = $region13
    $region12: #{oriented_rscnn_forward.4} parent=1 // pred_region
      %s44 = ssub.s32 64, 64
      %45 = vsyncadd [#allocation7], %s44
      %s47 = sshll.u32 [#allocation8], 4
      %s48 = int_to_ptr.vmem [resolvable:$true] %s47
      %50 = dma.hbm_to_vmem [thread:$0]  %s2, 64, %s48, [#allocation7]
    $region13: #{oriented_rscnn_forward.4} parent=1 // pred_fallthru
      _
    // Predicated region
    $region14: #{oriented_rscnn_forward.4} parent=1 // pred_check
      _
    $region15: #{oriented_rscnn_forward.4} parent=1 // pred_check_branch
      %52 = sbr.rel (0) target = $region17
    $region16: #{oriented_rscnn_forward.4} parent=1 // pred_region
      %s54 = ssub.s32 16, 16
      %55 = vsyncadd [#allocation10], %s54
      %s57 = sshll.u32 [#allocation9], 4
      %s58 = int_to_ptr.vmem [resolvable:$true] %s57
      %60 = dma.hbm_to_vmem [thread:$0]  %s3, 16, %s58, [#allocation10]
    $region17: #{oriented_rscnn_forward.4} parent=1 // pred_fallthru
      _
    // Predicated region
    $region18: #{oriented_rscnn_forward.4} parent=1 // pred_check
      _
    $region19: #{oriented_rscnn_forward.4} parent=1 // pred_check_branch
      %62 = sbr.rel (0) target = $region21
    $region20: #{oriented_rscnn_forward.4} parent=1 // pred_region
      %s64 = ssub.s32 4096, 4096
      %65 = vsyncadd [#allocation10], %s64
      %s66 = sshll.u32 [#allocation11], 4
      %s67 = int_to_ptr.vmem [resolvable:$true] %s66
      %72 = dma.hbm_to_vmem [thread:$0]  %s4, 4096, %s67, [#allocation10], 256, 256, 16
    $region21: #{oriented_rscnn_forward.4} parent=1 // pred_fallthru
      _
    // Predicated region
    $region22: #{oriented_rscnn_forward.4} parent=1 // pred_check
      _
    $region23: #{oriented_rscnn_forward.4} parent=1 // pred_check_branch
      %74 = sbr.rel (0) target = $region25
    $region24: #{oriented_rscnn_forward.4} parent=1 // pred_region
      %s76 = ssub.s32 64, 64
      %77 = vsyncadd [#allocation13], %s76
      %s79 = sshll.u32 [#allocation12], 4
      %s80 = int_to_ptr.vmem [resolvable:$true] %s79
      %82 = dma.hbm_to_vmem [thread:$0]  %s5, 64, %s80, [#allocation13]
    $region25: #{oriented_rscnn_forward.4} parent=1 // pred_fallthru
      _
    // Predicated region
    $region26: #{oriented_rscnn_forward.4} parent=1 // pred_check
      _
    $region27: #{oriented_rscnn_forward.4} parent=1 // pred_check_branch
      %84 = sbr.rel (0) target = $region29
    $region28: #{oriented_rscnn_forward.4} parent=1 // pred_region
      %s86 = ssub.s32 64, 64
      %87 = vsyncadd [#allocation13], %s86
      %s89 = sshll.u32 [#allocation14], 4
      %s90 = int_to_ptr.vmem [resolvable:$true] %s89
      %92 = dma.hbm_to_vmem [thread:$0]  %s6, 64, %s90, [#allocation13]
    $region29: #{oriented_rscnn_forward.4} parent=1 // pred_fallthru
      _
    // Predicated region
    $region30: #{oriented_rscnn_forward.4} parent=1 // pred_check
      _
    $region31: #{oriented_rscnn_forward.4} parent=1 // pred_check_branch
      %94 = sbr.rel (0) target = $region33
    $region32: #{oriented_rscnn_forward.4} parent=1 // pred_region
      %95 = dma.done [#allocation4], 1024
    $region33: #{oriented_rscnn_forward.4} parent=1 // pred_fallthru
      _
    // Predicated region
    $region34: #{oriented_rscnn_forward.4} parent=1 // pred_check
      _
    $region35: #{oriented_rscnn_forward.4} parent=1 // pred_check_branch
      %97 = sbr.rel (0) target = $region37
    $region36: #{oriented_rscnn_forward.4} parent=1 // pred_region
      %98 = dma.done [#allocation7], 2048
    $region37: #{oriented_rscnn_forward.4} parent=1 // pred_fallthru
      _
    // Predicated region
    $region38: #{oriented_rscnn_forward.4} parent=1 // pred_check
      _
    $region39: #{oriented_rscnn_forward.4} parent=1 // pred_check_branch
      %100 = sbr.rel (0) target = $region41
    $region40: #{oriented_rscnn_forward.4} parent=1 // pred_region
      %101 = dma.done [#allocation7], 64
    $region41: #{oriented_rscnn_forward.4} parent=1 // pred_fallthru
      _
    // Predicated region
    $region42: #{oriented_rscnn_forward.4} parent=1 // pred_check
      _
    $region43: #{oriented_rscnn_forward.4} parent=1 // pred_check_branch
      %103 = sbr.rel (0) target = $region45
    $region44: #{oriented_rscnn_forward.4} parent=1 // pred_region
      %104 = dma.done [#allocation10], 16
    $region45: #{oriented_rscnn_forward.4} parent=1 // pred_fallthru
      _
    // Predicated region
    $region46: #{oriented_rscnn_forward.4} parent=1 // pred_check
      _
    $region47: #{oriented_rscnn_forward.4} parent=1 // pred_check_branch
      %106 = sbr.rel (0) target = $region49
    $region48: #{oriented_rscnn_forward.4} parent=1 // pred_region
      %107 = dma.done [#allocation10], 4096
    $region49: #{oriented_rscnn_forward.4} parent=1 // pred_fallthru
      _
    // Predicated region
    $region50: #{oriented_rscnn_forward.4} parent=1 // pred_check
      _
    $region51: #{oriented_rscnn_forward.4} parent=1 // pred_check_branch
      %109 = sbr.rel (0) target = $region53
    $region52: #{oriented_rscnn_forward.4} parent=1 // pred_region
      %110 = dma.done [#allocation13], 64
    $region53: #{oriented_rscnn_forward.4} parent=1 // pred_fallthru
      _
    // Predicated region
    $region54: #{oriented_rscnn_forward.4} parent=1 // pred_check
      _
    $region55: #{oriented_rscnn_forward.4} parent=1 // pred_check_branch
      %112 = sbr.rel (0) target = $region57
    $region56: #{oriented_rscnn_forward.4} parent=1 // pred_region
      %113 = dma.done [#allocation13], 64
    $region57: #{oriented_rscnn_forward.4} parent=1 // pred_fallthru
      _
    %p115 = scmp.eq.s32.totalorder 0, 0
    // Predicated region
    $region58: #{oriented_rscnn_forward.4} parent=1 // pred_check
      %p116 = pneg %p115
    $region59: #{oriented_rscnn_forward.4} parent=1 // pred_check_branch
      %118 = sbr.rel (%p116) target = $region61
    $region60: #{oriented_rscnn_forward.4} parent=1 // pred_region
      %119 = vst [vmem:[#allocation2] sm:$0xff] -inf
      %120 = vst [vmem:[#allocation2 + $0x8] sm:$0xff] -inf
    $region61: #{oriented_rscnn_forward.4} parent=1 // pred_fallthru
      _
    %v121 = vld [vmem:[#allocation8] sm:$0xf]
    %v122 = vld [vmem:[#allocation9] sm:$0x1]
    %v123 = vld [vmem:[#allocation3] sm:$0xf]
    %v124 = vld [vmem:[#allocation3 + $0x4] sm:$0xf]
    %v126 = vlaneseq
    %v127 = vshrl.u32 %v126, 7
    %v128 = vsub.s32 0, %v127
    %v129 = vrot.slane %v122, %v128
    %v133 = vunpack.c.l.b16 %v123
    %v134 = vunpack.c.l.b16 %v124
    %v135 = vpack.c.b16 %v134, %v133
    %vm136 = vcmask 56320
    %v138 = vsel %vm136, %v135, 0
    %vm140 = vcmask 1042432
    %vm141 = vcmask 1043456
    %v142 = vsel %vm140, 4294967295, 65535
    %v143 = vsel %vm141, %v142, 0
    %v145 = vand.u32 %v121, %v143
    %147 = vmatprep.subr.bf16.mxu0 0
    %148 = vmatpush1.bf16.msra.mxu0 %v145
    %149 = vmatprep.subr.bf16.mxu0 0
    %150 = vmatpush1.bf16.msra.mxu0 0
    %151 = vmatprep.subr.bf16.mxu0 0
    %152 = vmatpush1.bf16.msra.mxu0 0
    %153 = vmatprep.subr.bf16.mxu0 0
    %154 = vmatpush1.bf16.msra.mxu0 0
    %155 = vmatprep.subr.bf16.mxu0 0
    %156 = vmatpush1.bf16.msra.mxu0 0
    %157 = vmatprep.subr.bf16.mxu0 0
    %158 = vmatpush1.bf16.msra.mxu0 0
    %159 = vmatprep.subr.bf16.mxu0 0
    %160 = vmatpush1.bf16.msra.mxu0 0
    %161 = vmatprep.subr.bf16.mxu0 0
    %162 = vmatpush1.bf16.msra.mxu0 0
    %163 = vmatprep.subr.bf16.mxu0 0
    %164 = vmatpush1.bf16.msra.mxu0 0
    %165 = vmatprep.subr.bf16.mxu0 0
    %166 = vmatpush1.bf16.msra.mxu0 0
    %167 = vmatprep.subr.bf16.mxu0 0
    %168 = vmatpush1.bf16.msra.mxu0 0
    %169 = vmatprep.subr.bf16.mxu0 0
    %170 = vmatpush1.bf16.msra.mxu0 0
    %171 = vmatprep.subr.bf16.mxu0 0
    %172 = vmatpush1.bf16.msra.mxu0 0
    %173 = vmatprep.subr.bf16.mxu0 0
    %174 = vmatpush1.bf16.msra.mxu0 0
    %175 = vmatprep.subr.bf16.mxu0 0
    %176 = vmatpush1.bf16.msra.mxu0 0
    %177 = vmatprep.subr.bf16.mxu0 0
    %178 = vmatpush1.bf16.msra.mxu0 0
    %179 = vmatprep.mubr.bf16.mxu0 0
    %180 = vmatmul.mubr.bf16.gmra.mrb[0].mxu0 %v138
    %v181 = vpop.f32.mrb[0].mxu0
    %v182 = vadd.f32 %v129, %v181
    %v183 = vpop.f32.mrb[0].mxu0
    %v184 = vpop.f32.mrb[0].mxu0
    %v185 = vadd.f32 %v129, %v184
    %v186 = vpop.f32.mrb[0].mxu0
    %187 = vdwg.mxu0
    %v188 = vmax.f32 %v182, 0.0
    %v189 = vmax.f32 %v185, 0.0
    %v190 = vld [vmem:[#allocation6] sm:$0xff]
    %v191 = vld [vmem:[#allocation6 + $0x8] sm:$0xff]
    %v192 = vmul.f32 %v188, %v190
    %v193 = vmul.f32 %v189, %v191
    %s194 = scalar_lea.vmem [#allocation3], 8
    %v195 = vld [vmem:[%s194] sm:$0xf]
    %v196 = vld [vmem:[%s194 + $0x4] sm:$0xf]
    %v199 = vunpack.c.l.b16 %v195
    %v200 = vunpack.c.l.b16 %v196
    %v201 = vpack.c.b16 %v200, %v199
    %v203 = vsel %vm136, %v201, 0
    %205 = vmatprep.subr.bf16.mxu0 0
    %206 = vmatpush1.bf16.msra.mxu0 %v145
    %207 = vmatprep.subr.bf16.mxu0 0
    %208 = vmatpush1.bf16.msra.mxu0 0
    %209 = vmatprep.subr.bf16.mxu0 0
    %210 = vmatpush1.bf16.msra.mxu0 0
    %211 = vmatprep.subr.bf16.mxu0 0
    %212 = vmatpush1.bf16.msra.mxu0 0
    %213 = vmatprep.subr.bf16.mxu0 0
    %214 = vmatpush1.bf16.msra.mxu0 0
    %215 = vmatprep.subr.bf16.mxu0 0
    %216 = vmatpush1.bf16.msra.mxu0 0
    %217 = vmatprep.subr.bf16.mxu0 0
    %218 = vmatpush1.bf16.msra.mxu0 0
    %219 = vmatprep.subr.bf16.mxu0 0
    %220 = vmatpush1.bf16.msra.mxu0 0
    %221 = vmatprep.subr.bf16.mxu0 0
    %222 = vmatpush1.bf16.msra.mxu0 0
    %223 = vmatprep.subr.bf16.mxu0 0
    %224 = vmatpush1.bf16.msra.mxu0 0
    %225 = vmatprep.subr.bf16.mxu0 0
    %226 = vmatpush1.bf16.msra.mxu0 0
    %227 = vmatprep.subr.bf16.mxu0 0
    %228 = vmatpush1.bf16.msra.mxu0 0
    %229 = vmatprep.subr.bf16.mxu0 0
    %230 = vmatpush1.bf16.msra.mxu0 0
    %231 = vmatprep.subr.bf16.mxu0 0
    %232 = vmatpush1.bf16.msra.mxu0 0
    %233 = vmatprep.subr.bf16.mxu0 0
    %234 = vmatpush1.bf16.msra.mxu0 0
    %235 = vmatprep.subr.bf16.mxu0 0
    %236 = vmatpush1.bf16.msra.mxu0 0
    %237 = vmatprep.mubr.bf16.mxu0 0
    %238 = vmatmul.mubr.bf16.gmra.mrb[0].mxu0 %v203
    %v239 = vpop.f32.mrb[0].mxu0
    %v240 = vadd.f32 %v129, %v239
    %v241 = vpop.f32.mrb[0].mxu0
    %v242 = vpop.f32.mrb[0].mxu0
    %v243 = vadd.f32 %v129, %v242
    %v244 = vpop.f32.mrb[0].mxu0
    %245 = vdwg.mxu0
    %v246 = vmax.f32 %v240, 0.0
    %v247 = vmax.f32 %v243, 0.0
    %s248 = scalar_lea.vmem [#allocation6], 16
    %v249 = vld [vmem:[%s248] sm:$0xff]
    %v250 = vld [vmem:[%s248 + $0x8] sm:$0xff]
    %v251 = vmul.f32 %v246, %v249
    %v252 = vmul.f32 %v247, %v250
    %v253 = vmax.f32 %v192, %v251
    %v254 = vmax.f32 %v193, %v252
    %s255 = scalar_lea.vmem [#allocation3], 16
    %v256 = vld [vmem:[%s255] sm:$0xf]
    %v257 = vld [vmem:[%s255 + $0x4] sm:$0xf]
    %v260 = vunpack.c.l.b16 %v256
    %v261 = vunpack.c.l.b16 %v257
    %v262 = vpack.c.b16 %v261, %v260
    %v264 = vsel %vm136, %v262, 0
    %266 = vmatprep.subr.bf16.mxu0 0
    %267 = vmatpush1.bf16.msra.mxu0 %v145
    %268 = vmatprep.subr.bf16.mxu0 0
    %269 = vmatpush1.bf16.msra.mxu0 0
    %270 = vmatprep.subr.bf16.mxu0 0
    %271 = vmatpush1.bf16.msra.mxu0 0
    %272 = vmatprep.subr.bf16.mxu0 0
    %273 = vmatpush1.bf16.msra.mxu0 0
    %274 = vmatprep.subr.bf16.mxu0 0
    %275 = vmatpush1.bf16.msra.mxu0 0
    %276 = vmatprep.subr.bf16.mxu0 0
    %277 = vmatpush1.bf16.msra.mxu0 0
    %278 = vmatprep.subr.bf16.mxu0 0
    %279 = vmatpush1.bf16.msra.mxu0 0
    %280 = vmatprep.subr.bf16.mxu0 0
    %281 = vmatpush1.bf16.msra.mxu0 0
    %282 = vmatprep.subr.bf16.mxu0 0
    %283 = vmatpush1.bf16.msra.mxu0 0
    %284 = vmatprep.subr.bf16.mxu0 0
    %285 = vmatpush1.bf16.msra.mxu0 0
    %286 = vmatprep.subr.bf16.mxu0 0
    %287 = vmatpush1.bf16.msra.mxu0 0
    %288 = vmatprep.subr.bf16.mxu0 0
    %289 = vmatpush1.bf16.msra.mxu0 0
    %290 = vmatprep.subr.bf16.mxu0 0
    %291 = vmatpush1.bf16.msra.mxu0 0
    %292 = vmatprep.subr.bf16.mxu0 0
    %293 = vmatpush1.bf16.msra.mxu0 0
    %294 = vmatprep.subr.bf16.mxu0 0
    %295 = vmatpush1.bf16.msra.mxu0 0
    %296 = vmatprep.subr.bf16.mxu0 0
    %297 = vmatpush1.bf16.msra.mxu0 0
    %298 = vmatprep.mubr.bf16.mxu0 0
    %299 = vmatmul.mubr.bf16.gmra.mrb[0].mxu0 %v264
    %v300 = vpop.f32.mrb[0].mxu0
    %v301 = vadd.f32 %v129, %v300
    %v302 = vpop.f32.mrb[0].mxu0
    %v303 = vpop.f32.mrb[0].mxu0
    %v304 = vadd.f32 %v129, %v303
    %v305 = vpop.f32.mrb[0].mxu0
    %306 = vdwg.mxu0
    %v307 = vmax.f32 %v301, 0.0
    %v308 = vmax.f32 %v304, 0.0
    %s309 = scalar_lea.vmem [#allocation6], 32
    %v310 = vld [vmem:[%s309] sm:$0xff]
    %v311 = vld [vmem:[%s309 + $0x8] sm:$0xff]
    %v312 = vmul.f32 %v307, %v310
    %v313 = vmul.f32 %v308, %v311
    %v314 = vmax.f32 %v253, %v312
    %v315 = vmax.f32 %v254, %v313
    %s316 = scalar_lea.vmem [#allocation3], 24
    %v317 = vld [vmem:[%s316] sm:$0xf]
    %v318 = vld [vmem:[%s316 + $0x4] sm:$0xf]
    %v321 = vunpack.c.l.b16 %v317
    %v322 = vunpack.c.l.b16 %v318
    %v323 = vpack.c.b16 %v322, %v321
    %v325 = vsel %vm136, %v323, 0
    %327 = vmatprep.subr.bf16.mxu0 0
    %328 = vmatpush1.bf16.msra.mxu0 %v145
    %329 = vmatprep.subr.bf16.mxu0 0
    %330 = vmatpush1.bf16.msra.mxu0 0
    %331 = vmatprep.subr.bf16.mxu0 0
    %332 = vmatpush1.bf16.msra.mxu0 0
    %333 = vmatprep.subr.bf16.mxu0 0
    %334 = vmatpush1.bf16.msra.mxu0 0
    %335 = vmatprep.subr.bf16.mxu0 0
    %336 = vmatpush1.bf16.msra.mxu0 0
    %337 = vmatprep.subr.bf16.mxu0 0
    %338 = vmatpush1.bf16.msra.mxu0 0
    %339 = vmatprep.subr.bf16.mxu0 0
    %340 = vmatpush1.bf16.msra.mxu0 0
    %341 = vmatprep.subr.bf16.mxu0 0
    %342 = vmatpush1.bf16.msra.mxu0 0
    %343 = vmatprep.subr.bf16.mxu0 0
    %344 = vmatpush1.bf16.msra.mxu0 0
    %345 = vmatprep.subr.bf16.mxu0 0
    %346 = vmatpush1.bf16.msra.mxu0 0
    %347 = vmatprep.subr.bf16.mxu0 0
    %348 = vmatpush1.bf16.msra.mxu0 0
    %349 = vmatprep.subr.bf16.mxu0 0
    %350 = vmatpush1.bf16.msra.mxu0 0
    %351 = vmatprep.subr.bf16.mxu0 0
    %352 = vmatpush1.bf16.msra.mxu0 0
    %353 = vmatprep.subr.bf16.mxu0 0
    %354 = vmatpush1.bf16.msra.mxu0 0
    %355 = vmatprep.subr.bf16.mxu0 0
    %356 = vmatpush1.bf16.msra.mxu0 0
    %357 = vmatprep.subr.bf16.mxu0 0
    %358 = vmatpush1.bf16.msra.mxu0 0
    %359 = vmatprep.mubr.bf16.mxu0 0
    %360 = vmatmul.mubr.bf16.gmra.mrb[0].mxu0 %v325
    %v361 = vpop.f32.mrb[0].mxu0
    %v362 = vadd.f32 %v129, %v361
    %v363 = vpop.f32.mrb[0].mxu0
    %v364 = vpop.f32.mrb[0].mxu0
    %v365 = vadd.f32 %v129, %v364
    %v366 = vpop.f32.mrb[0].mxu0
    %367 = vdwg.mxu0
    %v368 = vmax.f32 %v362, 0.0
    %v369 = vmax.f32 %v365, 0.0
    %s370 = scalar_lea.vmem [#allocation6], 48
    %v371 = vld [vmem:[%s370] sm:$0xff]
    %v372 = vld [vmem:[%s370 + $0x8] sm:$0xff]
    %v373 = vmul.f32 %v368, %v371
    %v374 = vmul.f32 %v369, %v372
    %v375 = vmax.f32 %v314, %v373
    %v376 = vmax.f32 %v315, %v374
    %s377 = scalar_lea.vmem [#allocation3], 32
    %v378 = vld [vmem:[%s377] sm:$0xf]
    %v379 = vld [vmem:[%s377 + $0x4] sm:$0xf]
    %v382 = vunpack.c.l.b16 %v378
    %v383 = vunpack.c.l.b16 %v379
    %v384 = vpack.c.b16 %v383, %v382
    %v386 = vsel %vm136, %v384, 0
    %388 = vmatprep.subr.bf16.mxu0 0
    %389 = vmatpush1.bf16.msra.mxu0 %v145
    %390 = vmatprep.subr.bf16.mxu0 0
    %391 = vmatpush1.bf16.msra.mxu0 0
    %392 = vmatprep.subr.bf16.mxu0 0
    %393 = vmatpush1.bf16.msra.mxu0 0
    %394 = vmatprep.subr.bf16.mxu0 0
    %395 = vmatpush1.bf16.msra.mxu0 0
    %396 = vmatprep.subr.bf16.mxu0 0
    %397 = vmatpush1.bf16.msra.mxu0 0
    %398 = vmatprep.subr.bf16.mxu0 0
    %399 = vmatpush1.bf16.msra.mxu0 0
    %400 = vmatprep.subr.bf16.mxu0 0
    %401 = vmatpush1.bf16.msra.mxu0 0
    %402 = vmatprep.subr.bf16.mxu0 0
    %403 = vmatpush1.bf16.msra.mxu0 0
    %404 = vmatprep.subr.bf16.mxu0 0
    %405 = vmatpush1.bf16.msra.mxu0 0
    %406 = vmatprep.subr.bf16.mxu0 0
    %407 = vmatpush1.bf16.msra.mxu0 0
    %408 = vmatprep.subr.bf16.mxu0 0
    %409 = vmatpush1.bf16.msra.mxu0 0
    %410 = vmatprep.subr.bf16.mxu0 0
    %411 = vmatpush1.bf16.msra.mxu0 0
    %412 = vmatprep.subr.bf16.mxu0 0
    %413 = vmatpush1.bf16.msra.mxu0 0
    %414 = vmatprep.subr.bf16.mxu0 0
    %415 = vmatpush1.bf16.msra.mxu0 0
    %416 = vmatprep.subr.bf16.mxu0 0
    %417 = vmatpush1.bf16.msra.mxu0 0
    %418 = vmatprep.subr.bf16.mxu0 0
    %419 = vmatpush1.bf16.msra.mxu0 0
    %420 = vmatprep.mubr.bf16.mxu0 0
    %421 = vmatmul.mubr.bf16.gmra.mrb[0].mxu0 %v386
    %v422 = vpop.f32.mrb[0].mxu0
    %v423 = vadd.f32 %v129, %v422
    %v424 = vpop.f32.mrb[0].mxu0
    %v425 = vpop.f32.mrb[0].mxu0
    %v426 = vadd.f32 %v129, %v425
    %v427 = vpop.f32.mrb[0].mxu0
    %428 = vdwg.mxu0
    %v429 = vmax.f32 %v423, 0.0
    %v430 = vmax.f32 %v426, 0.0
    %s431 = scalar_lea.vmem [#allocation6], 64
    %v432 = vld [vmem:[%s431] sm:$0xff]
    %v433 = vld [vmem:[%s431 + $0x8] sm:$0xff]
    %v434 = vmul.f32 %v429, %v432
    %v435 = vmul.f32 %v430, %v433
    %v436 = vmax.f32 %v375, %v434
    %v437 = vmax.f32 %v376, %v435
    %s438 = scalar_lea.vmem [#allocation3], 40
    %v439 = vld [vmem:[%s438] sm:$0xf]
    %v440 = vld [vmem:[%s438 + $0x4] sm:$0xf]
    %v443 = vunpack.c.l.b16 %v439
    %v444 = vunpack.c.l.b16 %v440
    %v445 = vpack.c.b16 %v444, %v443
    %v447 = vsel %vm136, %v445, 0
    %449 = vmatprep.subr.bf16.mxu0 0
    %450 = vmatpush1.bf16.msra.mxu0 %v145
    %451 = vmatprep.subr.bf16.mxu0 0
    %452 = vmatpush1.bf16.msra.mxu0 0
    %453 = vmatprep.subr.bf16.mxu0 0
    %454 = vmatpush1.bf16.msra.mxu0 0
    %455 = vmatprep.subr.bf16.mxu0 0
    %456 = vmatpush1.bf16.msra.mxu0 0
    %457 = vmatprep.subr.bf16.mxu0 0
    %458 = vmatpush1.bf16.msra.mxu0 0
    %459 = vmatprep.subr.bf16.mxu0 0
    %460 = vmatpush1.bf16.msra.mxu0 0
    %461 = vmatprep.subr.bf16.mxu0 0
    %462 = vmatpush1.bf16.msra.mxu0 0
    %463 = vmatprep.subr.bf16.mxu0 0
    %464 = vmatpush1.bf16.msra.mxu0 0
    %465 = vmatprep.subr.bf16.mxu0 0
    %466 = vmatpush1.bf16.msra.mxu0 0
    %467 = vmatprep.subr.bf16.mxu0 0
    %468 = vmatpush1.bf16.msra.mxu0 0
    %469 = vmatprep.subr.bf16.mxu0 0
    %470 = vmatpush1.bf16.msra.mxu0 0
    %471 = vmatprep.subr.bf16.mxu0 0
    %472 = vmatpush1.bf16.msra.mxu0 0
    %473 = vmatprep.subr.bf16.mxu0 0
    %474 = vmatpush1.bf16.msra.mxu0 0
    %475 = vmatprep.subr.bf16.mxu0 0
    %476 = vmatpush1.bf16.msra.mxu0 0
    %477 = vmatprep.subr.bf16.mxu0 0
    %478 = vmatpush1.bf16.msra.mxu0 0
    %479 = vmatprep.subr.bf16.mxu0 0
    %480 = vmatpush1.bf16.msra.mxu0 0
    %481 = vmatprep.mubr.bf16.mxu0 0
    %482 = vmatmul.mubr.bf16.gmra.mrb[0].mxu0 %v447
    %v483 = vpop.f32.mrb[0].mxu0
    %v484 = vadd.f32 %v129, %v483
    %v485 = vpop.f32.mrb[0].mxu0
    %v486 = vpop.f32.mrb[0].mxu0
    %v487 = vadd.f32 %v129, %v486
    %v488 = vpop.f32.mrb[0].mxu0
    %489 = vdwg.mxu0
    %v490 = vmax.f32 %v484, 0.0
    %v491 = vmax.f32 %v487, 0.0
    %s492 = scalar_lea.vmem [#allocation6], 80
    %v493 = vld [vmem:[%s492] sm:$0xff]
    %v494 = vld [vmem:[%s492 + $0x8] sm:$0xff]
    %v495 = vmul.f32 %v490, %v493
    %v496 = vmul.f32 %v491, %v494
    %v497 = vmax.f32 %v436, %v495
    %v498 = vmax.f32 %v437, %v496
    %s499 = scalar_lea.vmem [#allocation3], 48
    %v500 = vld [vmem:[%s499] sm:$0xf]
    %v501 = vld [vmem:[%s499 + $0x4] sm:$0xf]
    %v504 = vunpack.c.l.b16 %v500
    %v505 = vunpack.c.l.b16 %v501
    %v506 = vpack.c.b16 %v505, %v504
    %v508 = vsel %vm136, %v506, 0
    %510 = vmatprep.subr.bf16.mxu0 0
    %511 = vmatpush1.bf16.msra.mxu0 %v145
    %512 = vmatprep.subr.bf16.mxu0 0
    %513 = vmatpush1.bf16.msra.mxu0 0
    %514 = vmatprep.subr.bf16.mxu0 0
    %515 = vmatpush1.bf16.msra.mxu0 0
    %516 = vmatprep.subr.bf16.mxu0 0
    %517 = vmatpush1.bf16.msra.mxu0 0
    %518 = vmatprep.subr.bf16.mxu0 0
    %519 = vmatpush1.bf16.msra.mxu0 0
    %520 = vmatprep.subr.bf16.mxu0 0
    %521 = vmatpush1.bf16.msra.mxu0 0
    %522 = vmatprep.subr.bf16.mxu0 0
    %523 = vmatpush1.bf16.msra.mxu0 0
    %524 = vmatprep.subr.bf16.mxu0 0
    %525 = vmatpush1.bf16.msra.mxu0 0
    %526 = vmatprep.subr.bf16.mxu0 0
    %527 = vmatpush1.bf16.msra.mxu0 0
    %528 = vmatprep.subr.bf16.mxu0 0
    %529 = vmatpush1.bf16.msra.mxu0 0
    %530 = vmatprep.subr.bf16.mxu0 0
    %531 = vmatpush1.bf16.msra.mxu0 0
    %532 = vmatprep.subr.bf16.mxu0 0
    %533 = vmatpush1.bf16.msra.mxu0 0
    %534 = vmatprep.subr.bf16.mxu0 0
    %535 = vmatpush1.bf16.msra.mxu0 0
    %536 = vmatprep.subr.bf16.mxu0 0
    %537 = vmatpush1.bf16.msra.mxu0 0
    %538 = vmatprep.subr.bf16.mxu0 0
    %539 = vmatpush1.bf16.msra.mxu0 0
    %540 = vmatprep.subr.bf16.mxu0 0
    %541 = vmatpush1.bf16.msra.mxu0 0
    %542 = vmatprep.mubr.bf16.mxu0 0
    %543 = vmatmul.mubr.bf16.gmra.mrb[0].mxu0 %v508
    %v544 = vpop.f32.mrb[0].mxu0
    %v545 = vadd.f32 %v129, %v544
    %v546 = vpop.f32.mrb[0].mxu0
    %v547 = vpop.f32.mrb[0].mxu0
    %v548 = vadd.f32 %v129, %v547
    %v549 = vpop.f32.mrb[0].mxu0
    %550 = vdwg.mxu0
    %v551 = vmax.f32 %v545, 0.0
    %v552 = vmax.f32 %v548, 0.0
    %s553 = scalar_lea.vmem [#allocation6], 96
    %v554 = vld [vmem:[%s553] sm:$0xff]
    %v555 = vld [vmem:[%s553 + $0x8] sm:$0xff]
    %v556 = vmul.f32 %v551, %v554
    %v557 = vmul.f32 %v552, %v555
    %v558 = vmax.f32 %v497, %v556
    %v559 = vmax.f32 %v498, %v557
    %s560 = scalar_lea.vmem [#allocation3], 56
    %v561 = vld [vmem:[%s560] sm:$0xf]
    %v562 = vld [vmem:[%s560 + $0x4] sm:$0xf]
    %v565 = vunpack.c.l.b16 %v561
    %v566 = vunpack.c.l.b16 %v562
    %v567 = vpack.c.b16 %v566, %v565
    %v569 = vsel %vm136, %v567, 0
    %571 = vmatprep.subr.bf16.mxu0 0
    %572 = vmatpush1.bf16.msra.mxu0 %v145
    %573 = vmatprep.subr.bf16.mxu0 0
    %574 = vmatpush1.bf16.msra.mxu0 0
    %575 = vmatprep.subr.bf16.mxu0 0
    %576 = vmatpush1.bf16.msra.mxu0 0
    %577 = vmatprep.subr.bf16.mxu0 0
    %578 = vmatpush1.bf16.msra.mxu0 0
    %579 = vmatprep.subr.bf16.mxu0 0
    %580 = vmatpush1.bf16.msra.mxu0 0
    %581 = vmatprep.subr.bf16.mxu0 0
    %582 = vmatpush1.bf16.msra.mxu0 0
    %583 = vmatprep.subr.bf16.mxu0 0
    %584 = vmatpush1.bf16.msra.mxu0 0
    %585 = vmatprep.subr.bf16.mxu0 0
    %586 = vmatpush1.bf16.msra.mxu0 0
    %587 = vmatprep.subr.bf16.mxu0 0
    %588 = vmatpush1.bf16.msra.mxu0 0
    %589 = vmatprep.subr.bf16.mxu0 0
    %590 = vmatpush1.bf16.msra.mxu0 0
    %591 = vmatprep.subr.bf16.mxu0 0
    %592 = vmatpush1.bf16.msra.mxu0 0
    %593 = vmatprep.subr.bf16.mxu0 0
    %594 = vmatpush1.bf16.msra.mxu0 0
    %595 = vmatprep.subr.bf16.mxu0 0
    %596 = vmatpush1.bf16.msra.mxu0 0
    %597 = vmatprep.subr.bf16.mxu0 0
    %598 = vmatpush1.bf16.msra.mxu0 0
    %599 = vmatprep.subr.bf16.mxu0 0
    %600 = vmatpush1.bf16.msra.mxu0 0
    %601 = vmatprep.subr.bf16.mxu0 0
    %602 = vmatpush1.bf16.msra.mxu0 0
    %603 = vmatprep.mubr.bf16.mxu0 0
    %604 = vmatmul.mubr.bf16.gmra.mrb[0].mxu0 %v569
    %v605 = vpop.f32.mrb[0].mxu0
    %v606 = vadd.f32 %v129, %v605
    %v607 = vpop.f32.mrb[0].mxu0
    %v608 = vpop.f32.mrb[0].mxu0
    %v609 = vadd.f32 %v129, %v608
    %v610 = vpop.f32.mrb[0].mxu0
    %611 = vdwg.mxu0
    %v612 = vmax.f32 %v606, 0.0
    %v613 = vmax.f32 %v609, 0.0
    %s614 = scalar_lea.vmem [#allocation6], 112
    %v615 = vld [vmem:[%s614] sm:$0xff]
    %v616 = vld [vmem:[%s614 + $0x8] sm:$0xff]
    %v617 = vmul.f32 %v612, %v615
    %v618 = vmul.f32 %v613, %v616
    %v619 = vmax.f32 %v558, %v617
    %v620 = vmax.f32 %v559, %v618
    %v621 = vld [vmem:[#allocation2] sm:$0xff]
    %v622 = vld [vmem:[#allocation2 + $0x8] sm:$0xff]
    %v623 = vmax.f32 %v621, %v619
    %v624 = vmax.f32 %v622, %v620
    %625 = vst [vmem:[#allocation2] sm:$0xff] %v623
    %626 = vst [vmem:[#allocation2 + $0x8] sm:$0xff] %v624
    // Predicated region
    $region62: #{oriented_rscnn_forward.4} parent=1 // pred_check
      %p627 = pneg %p115
    $region63: #{oriented_rscnn_forward.4} parent=1 // pred_check_branch
      %629 = sbr.rel (%p627) target = $region65
    $region64: #{oriented_rscnn_forward.4} parent=1 // pred_region
      %v630 = vld [vmem:[#allocation2] sm:$0xff]
      %v631 = vld [vmem:[#allocation2 + $0x8] sm:$0xff]
      %v632 = vpack.c.bf16 %v631, %v630
      %v633 = vld [vmem:[#allocation11] sm:$0xff]
      %v634 = vld [vmem:[#allocation11 + $0x8] sm:$0xff]
      %v635 = vld [vmem:[#allocation11 + $0x10] sm:$0xff]
      %v636 = vld [vmem:[#allocation11 + $0x18] sm:$0xff]
      %v637 = vld [vmem:[#allocation11 + $0x20] sm:$0xff]
      %v638 = vld [vmem:[#allocation11 + $0x28] sm:$0xff]
      %v639 = vld [vmem:[#allocation11 + $0x30] sm:$0xff]
      %v640 = vld [vmem:[#allocation11 + $0x38] sm:$0xff]
      %v641 = vld [vmem:[#allocation11 + $0x40] sm:$0xff]
      %v642 = vld [vmem:[#allocation11 + $0x48] sm:$0xff]
      %v643 = vld [vmem:[#allocation11 + $0x50] sm:$0xff]
      %v644 = vld [vmem:[#allocation11 + $0x58] sm:$0xff]
      %v645 = vld [vmem:[#allocation11 + $0x60] sm:$0xff]
      %v646 = vld [vmem:[#allocation11 + $0x68] sm:$0xff]
      %v647 = vld [vmem:[#allocation11 + $0x70] sm:$0xff]
      %v648 = vld [vmem:[#allocation11 + $0x78] sm:$0xff]
      %v649 = vld [vmem:[#allocation11 + $0x80] sm:$0xff]
      %v650 = vld [vmem:[#allocation11 + $0x88] sm:$0xff]
      %v651 = vld [vmem:[#allocation11 + $0x90] sm:$0xff]
      %v652 = vld [vmem:[#allocation11 + $0x98] sm:$0xff]
      %v653 = vld [vmem:[#allocation11 + $0xa0] sm:$0xff]
      %v654 = vld [vmem:[#allocation11 + $0xa8] sm:$0xff]
      %v655 = vld [vmem:[#allocation11 + $0xb0] sm:$0xff]
      %v656 = vld [vmem:[#allocation11 + $0xb8] sm:$0xff]
      %v657 = vld [vmem:[#allocation11 + $0xc0] sm:$0xff]
      %v658 = vld [vmem:[#allocation11 + $0xc8] sm:$0xff]
      %v659 = vld [vmem:[#allocation11 + $0xd0] sm:$0xff]
      %v660 = vld [vmem:[#allocation11 + $0xd8] sm:$0xff]
      %v661 = vld [vmem:[#allocation11 + $0xe0] sm:$0xff]
      %v662 = vld [vmem:[#allocation11 + $0xe8] sm:$0xff]
      %v663 = vld [vmem:[#allocation11 + $0xf0] sm:$0xff]
      %v664 = vld [vmem:[#allocation11 + $0xf8] sm:$0xff]
      %v697 = vunpack.c.l.b16 %v633
      %v698 = vunpack.c.h.b16 %v633
      %v699 = vunpack.c.l.b16 %v634
      %v700 = vunpack.c.h.b16 %v634
      %v701 = vunpack.c.l.b16 %v635
      %v702 = vunpack.c.h.b16 %v635
      %v703 = vunpack.c.l.b16 %v636
      %v704 = vunpack.c.h.b16 %v636
      %v705 = vunpack.c.l.b16 %v637
      %v706 = vunpack.c.h.b16 %v637
      %v707 = vunpack.c.l.b16 %v638
      %v708 = vunpack.c.h.b16 %v638
      %v709 = vunpack.c.l.b16 %v639
      %v710 = vunpack.c.h.b16 %v639
      %v711 = vunpack.c.l.b16 %v640
      %v712 = vunpack.c.h.b16 %v640
      %v713 = vunpack.c.l.b16 %v641
      %v714 = vunpack.c.h.b16 %v641
      %v715 = vunpack.c.l.b16 %v642
      %v716 = vunpack.c.h.b16 %v642
      %v717 = vunpack.c.l.b16 %v643
      %v718 = vunpack.c.h.b16 %v643
      %v719 = vunpack.c.l.b16 %v644
      %v720 = vunpack.c.h.b16 %v644
      %v721 = vunpack.c.l.b16 %v645
      %v722 = vunpack.c.h.b16 %v645
      %v723 = vunpack.c.l.b16 %v646
      %v724 = vunpack.c.h.b16 %v646
      %v725 = vunpack.c.l.b16 %v647
      %v726 = vunpack.c.h.b16 %v647
      %v727 = vunpack.c.l.b16 %v648
      %v728 = vunpack.c.h.b16 %v648
      %v729 = vunpack.c.l.b16 %v649
      %v730 = vunpack.c.h.b16 %v649
      %v731 = vunpack.c.l.b16 %v650
      %v732 = vunpack.c.h.b16 %v650
      %v733 = vunpack.c.l.b16 %v651
      %v734 = vunpack.c.h.b16 %v651
      %v735 = vunpack.c.l.b16 %v652
      %v736 = vunpack.c.h.b16 %v652
      %v737 = vunpack.c.l.b16 %v653
      %v738 = vunpack.c.h.b16 %v653
      %v739 = vunpack.c.l.b16 %v654
      %v740 = vunpack.c.h.b16 %v654
      %v741 = vunpack.c.l.b16 %v655
      %v742 = vunpack.c.h.b16 %v655
      %v743 = vunpack.c.l.b16 %v656
      %v744 = vunpack.c.h.b16 %v656
      %v745 = vunpack.c.l.b16 %v657
      %v746 = vunpack.c.h.b16 %v657
      %v747 = vunpack.c.l.b16 %v658
      %v748 = vunpack.c.h.b16 %v658
      %v749 = vunpack.c.l.b16 %v659
      %v750 = vunpack.c.h.b16 %v659
      %v751 = vunpack.c.l.b16 %v660
      %v752 = vunpack.c.h.b16 %v660
      %v753 = vunpack.c.l.b16 %v661
      %v754 = vunpack.c.h.b16 %v661
      %v755 = vunpack.c.l.b16 %v662
      %v756 = vunpack.c.h.b16 %v662
      %v757 = vunpack.c.l.b16 %v663
      %v758 = vunpack.c.h.b16 %v663
      %v759 = vunpack.c.l.b16 %v664
      %v760 = vunpack.c.h.b16 %v664
      %v761 = vpack.c.b16 %v701, %v697
      %v762 = vpack.c.b16 %v702, %v698
      %v763 = vpack.c.b16 %v703, %v699
      %v764 = vpack.c.b16 %v704, %v700
      %v765 = vpack.c.b16 %v709, %v705
      %v766 = vpack.c.b16 %v710, %v706
      %v767 = vpack.c.b16 %v711, %v707
      %v768 = vpack.c.b16 %v712, %v708
      %v769 = vpack.c.b16 %v717, %v713
      %v770 = vpack.c.b16 %v718, %v714
      %v771 = vpack.c.b16 %v719, %v715
      %v772 = vpack.c.b16 %v720, %v716
      %v773 = vpack.c.b16 %v725, %v721
      %v774 = vpack.c.b16 %v726, %v722
      %v775 = vpack.c.b16 %v727, %v723
      %v776 = vpack.c.b16 %v728, %v724
      %v777 = vpack.c.b16 %v733, %v729
      %v778 = vpack.c.b16 %v734, %v730
      %v779 = vpack.c.b16 %v735, %v731
      %v780 = vpack.c.b16 %v736, %v732
      %v781 = vpack.c.b16 %v741, %v737
      %v782 = vpack.c.b16 %v742, %v738
      %v783 = vpack.c.b16 %v743, %v739
      %v784 = vpack.c.b16 %v744, %v740
      %v785 = vpack.c.b16 %v749, %v745
      %v786 = vpack.c.b16 %v750, %v746
      %v787 = vpack.c.b16 %v751, %v747
      %v788 = vpack.c.b16 %v752, %v748
      %v789 = vpack.c.b16 %v757, %v753
      %v790 = vpack.c.b16 %v758, %v754
      %v791 = vpack.c.b16 %v759, %v755
      %v792 = vpack.c.b16 %v760, %v756
      %825 = vmatprep.subr.bf16.mxu0 %v762
      %826 = vmatpush1.bf16.msra.mxu0 %v761
      %827 = vmatprep.subr.bf16.mxu0 %v766
      %828 = vmatpush1.bf16.msra.mxu0 %v765
      %829 = vmatprep.subr.bf16.mxu0 %v770
      %830 = vmatpush1.bf16.msra.mxu0 %v769
      %831 = vmatprep.subr.bf16.mxu0 %v774
      %832 = vmatpush1.bf16.msra.mxu0 %v773
      %833 = vmatprep.subr.bf16.mxu0 %v778
      %834 = vmatpush1.bf16.msra.mxu0 %v777
      %835 = vmatprep.subr.bf16.mxu0 %v782
      %836 = vmatpush1.bf16.msra.mxu0 %v781
      %837 = vmatprep.subr.bf16.mxu0 %v786
      %838 = vmatpush1.bf16.msra.mxu0 %v785
      %839 = vmatprep.subr.bf16.mxu0 %v790
      %840 = vmatpush1.bf16.msra.mxu0 %v789
      %841 = vmatprep.subr.bf16.mxu0 0
      %842 = vmatpush1.bf16.msra.mxu0 0
      %843 = vmatprep.subr.bf16.mxu0 0
      %844 = vmatpush1.bf16.msra.mxu0 0
      %845 = vmatprep.subr.bf16.mxu0 0
      %846 = vmatpush1.bf16.msra.mxu0 0
      %847 = vmatprep.subr.bf16.mxu0 0
      %848 = vmatpush1.bf16.msra.mxu0 0
      %849 = vmatprep.subr.bf16.mxu0 0
      %850 = vmatpush1.bf16.msra.mxu0 0
      %851 = vmatprep.subr.bf16.mxu0 0
      %852 = vmatpush1.bf16.msra.mxu0 0
      %853 = vmatprep.subr.bf16.mxu0 0
      %854 = vmatpush1.bf16.msra.mxu0 0
      %855 = vmatprep.subr.bf16.mxu0 0
      %856 = vmatpush1.bf16.msra.mxu0 0
      %857 = vmatprep.mubr.bf16.mxu0 0
      %858 = vmatmul.mubr.bf16.gmra.mrb[0].mxu0 %v632
      %v859 = vpop.f32.mrb[0].mxu0
      %v860 = vadd.f32 0.0, %v859
      %v861 = vpop.f32.mrb[0].mxu0
      %v862 = vadd.f32 0.0, %v861
      %v863 = vpop.f32.mrb[0].mxu0
      %v864 = vadd.f32 0.0, %v863
      %v865 = vpop.f32.mrb[0].mxu0
      %v866 = vadd.f32 0.0, %v865
      %867 = vdwg.mxu0
      %868 = vmatprep.subr.bf16.mxu0 %v764
      %869 = vmatpush1.bf16.msra.mxu0 %v763
      %870 = vmatprep.subr.bf16.mxu0 %v768
      %871 = vmatpush1.bf16.msra.mxu0 %v767
      %872 = vmatprep.subr.bf16.mxu0 %v772
      %873 = vmatpush1.bf16.msra.mxu0 %v771
      %874 = vmatprep.subr.bf16.mxu0 %v776
      %875 = vmatpush1.bf16.msra.mxu0 %v775
      %876 = vmatprep.subr.bf16.mxu0 %v780
      %877 = vmatpush1.bf16.msra.mxu0 %v779
      %878 = vmatprep.subr.bf16.mxu0 %v784
      %879 = vmatpush1.bf16.msra.mxu0 %v783
      %880 = vmatprep.subr.bf16.mxu0 %v788
      %881 = vmatpush1.bf16.msra.mxu0 %v787
      %882 = vmatprep.subr.bf16.mxu0 %v792
      %883 = vmatpush1.bf16.msra.mxu0 %v791
      %884 = vmatprep.subr.bf16.mxu0 0
      %885 = vmatpush1.bf16.msra.mxu0 0
      %886 = vmatprep.subr.bf16.mxu0 0
      %887 = vmatpush1.bf16.msra.mxu0 0
      %888 = vmatprep.subr.bf16.mxu0 0
      %889 = vmatpush1.bf16.msra.mxu0 0
      %890 = vmatprep.subr.bf16.mxu0 0
      %891 = vmatpush1.bf16.msra.mxu0 0
      %892 = vmatprep.subr.bf16.mxu0 0
      %893 = vmatpush1.bf16.msra.mxu0 0
      %894 = vmatprep.subr.bf16.mxu0 0
      %895 = vmatpush1.bf16.msra.mxu0 0
      %896 = vmatprep.subr.bf16.mxu0 0
      %897 = vmatpush1.bf16.msra.mxu0 0
      %898 = vmatprep.subr.bf16.mxu0 0
      %899 = vmatpush1.bf16.msra.mxu0 0
      %900 = vmatprep.mubr.bf16.mxu0 0
      %901 = vmatmul.mubr.bf16.gmra.mrb[0].mxu0 %v632
      %v902 = vpop.f32.mrb[0].mxu0
      %v903 = vadd.f32 0.0, %v902
      %v904 = vpop.f32.mrb[0].mxu0
      %v905 = vadd.f32 0.0, %v904
      %v906 = vpop.f32.mrb[0].mxu0
      %v907 = vadd.f32 0.0, %v906
      %v908 = vpop.f32.mrb[0].mxu0
      %v909 = vadd.f32 0.0, %v908
      %910 = vdwg.mxu0
      %v911 = vld [vmem:[#allocation12] sm:$0xf]
      %v913 = vlaneseq
      %v914 = vshrl.u32 %v913, 7
      %v915 = vsub.s32 0, %v914
      %v916 = vrot.slane %v911, %v915
      %v917 = vlaneseq
      %v918 = vshrl.u32 %v917, 7
      %v919 = vsub.s32 1, %v918
      %v920 = vrot.slane %v911, %v919
      %v921 = vlaneseq
      %v922 = vshrl.u32 %v921, 7
      %v923 = vsub.s32 2, %v922
      %v924 = vrot.slane %v911, %v923
      %v925 = vlaneseq
      %v926 = vshrl.u32 %v925, 7
      %v927 = vsub.s32 3, %v926
      %v928 = vrot.slane %v911, %v927
      %v933 = vmul.f32 %v860, %v916
      %v934 = vmul.f32 %v862, %v920
      %v935 = vmul.f32 %v903, %v924
      %v936 = vmul.f32 %v905, %v928
      %v937 = vmul.f32 %v864, %v916
      %v938 = vmul.f32 %v866, %v920
      %v939 = vmul.f32 %v907, %v924
      %v940 = vmul.f32 %v909, %v928
      %v941 = vld [vmem:[#allocation14] sm:$0xf]
      %v943 = vlaneseq
      %v944 = vshrl.u32 %v943, 7
      %v945 = vsub.s32 0, %v944
      %v946 = vrot.slane %v941, %v945
      %v947 = vlaneseq
      %v948 = vshrl.u32 %v947, 7
      %v949 = vsub.s32 1, %v948
      %v950 = vrot.slane %v941, %v949
      %v951 = vlaneseq
      %v952 = vshrl.u32 %v951, 7
      %v953 = vsub.s32 2, %v952
      %v954 = vrot.slane %v941, %v953
      %v955 = vlaneseq
      %v956 = vshrl.u32 %v955, 7
      %v957 = vsub.s32 3, %v956
      %v958 = vrot.slane %v941, %v957
      %v963 = vadd.f32 %v933, %v946
      %v964 = vadd.f32 %v934, %v950
      %v965 = vadd.f32 %v935, %v954
      %v966 = vadd.f32 %v936, %v958
      %v967 = vadd.f32 %v937, %v946
      %v968 = vadd.f32 %v938, %v950
      %v969 = vadd.f32 %v939, %v954
      %v970 = vadd.f32 %v940, %v958
      %v971 = vmax.f32 %v963, 0.0
      %v972 = vmax.f32 %v964, 0.0
      %v973 = vmax.f32 %v965, 0.0
      %v974 = vmax.f32 %v966, 0.0
      %v975 = vmax.f32 %v967, 0.0
      %v976 = vmax.f32 %v968, 0.0
      %v977 = vmax.f32 %v969, 0.0
      %v978 = vmax.f32 %v970, 0.0
      %979 = vst [vmem:[#allocation15] sm:$0xff] %v971
      %980 = vst [vmem:[#allocation15 + $0x8] sm:$0xff] %v972
      %981 = vst [vmem:[#allocation15 + $0x10] sm:$0xff] %v973
      %982 = vst [vmem:[#allocation15 + $0x18] sm:$0xff] %v974
      %983 = vst [vmem:[#allocation15 + $0x20] sm:$0xff] %v975
      %984 = vst [vmem:[#allocation15 + $0x28] sm:$0xff] %v976
      %985 = vst [vmem:[#allocation15 + $0x30] sm:$0xff] %v977
      %986 = vst [vmem:[#allocation15 + $0x38] sm:$0xff] %v978
    $region65: #{oriented_rscnn_forward.4} parent=1 // pred_fallthru
      _
    // Predicated region
    $region66: #{oriented_rscnn_forward.4} parent=1 // pred_check
      _
    $region67: #{oriented_rscnn_forward.4} parent=1 // pred_check_branch
      %988 = sbr.rel (0) target = $region69
    $region68: #{oriented_rscnn_forward.4} parent=1 // pred_region
      %s990 = ssub.s32 1024, 1024
      %991 = vsyncadd [#allocation5], %s990
      %s992 = sshll.u32 [#allocation15], 4
      %s993 = int_to_ptr.vmem [resolvable:$true] %s992
      %998 = dma.vmem_to_hbm [thread:$0]  %s993, 1024, %s7, [#allocation5], 512, 512, 32
    $region69: #{oriented_rscnn_forward.4} parent=1 // pred_fallthru
      _
    // Predicated region
    $region70: #{oriented_rscnn_forward.4} parent=1 // pred_check
      _
    $region71: #{oriented_rscnn_forward.4} parent=1 // pred_check_branch
      %1000 = sbr.rel (0) target = $region73
    $region72: #{oriented_rscnn_forward.4} parent=1 // pred_region
      %1001 = dma.done [#allocation5], 1024
    $region73: #{oriented_rscnn_forward.4} parent=1 // pred_fallthru
      _
    %1002 = vsyncpa [#allocation4], 1
    %1003 = vsyncpa [#allocation7], 1
    %1004 = vsyncpa [#allocation10], 1
    %1005 = vsyncpa [#allocation13], 1
    %1006 = vsyncpa [#allocation5], 1

// kernel: oriented_rscnn_forward.3
$region0: #{oriented_rscnn_forward.3}
  #allocation0 [shape = 'u32[]', space=smem, size = 0x4, offset = 0x4, fixed_abs, tag = 'smem constant byte address 0x4 - core index']
  #allocation1 [shape = 'u32[144,128]{1,0:T(1,128)}', space=vmem, size = 0x12000, scoped, tag = 'internal scratch']
  #allocation2 [shape = 'f32[64,32]{1,0:T(8,128)}', space=vmem, size = 0x8000, scoped, tag = 'scratch operand']
  %s0 = inlined_call_operand.hbm [shape: bf16[16,64,7], index: 0, kind: input, shape index: {}]
  %s1 = inlined_call_operand.hbm [shape: bf16[16,64,6], index: 1, kind: input, shape index: {}]
  %s2 = inlined_call_operand.hbm [shape: bf16[6,32], index: 2, kind: input, shape index: {}]
  %s3 = inlined_call_operand.hbm [shape: f32[1,32], index: 3, kind: input, shape index: {}]
  %s4 = inlined_call_operand.hbm [shape: f32[1,32], index: 4, kind: input, shape index: {}]
  %s5 = inlined_call_operand.hbm [shape: f32[1,32], index: 5, kind: input, shape index: {}]
  %s6 = inlined_call_operand.hbm [shape: bf16[7,32], index: 6, kind: input, shape index: {}]
  %s7 = inlined_call_operand.hbm [shape: f32[1,32], index: 7, kind: input, shape index: {}]
  %s8 = inlined_call_operand.hbm [shape: bf16[32,128], index: 8, kind: input, shape index: {}]
  %s9 = inlined_call_operand.hbm [shape: f32[1,128], index: 9, kind: input, shape index: {}]
  %s10 = inlined_call_operand.hbm [shape: f32[1,128], index: 10, kind: input, shape index: {}]
  %s11 = inlined_call_operand.hbm [shape: f32[64,128], index: 11, kind: output, shape index: {}]
  %s12 = sld [smem:[#allocation0]]
  $region129: #{oriented_rscnn_forward.3} parent=0
    _
  %s14 = ssub.s32 1, %s12
  %s15 = scalar_select 0, %s14, %s12
  $region1: #{oriented_rscnn_forward.3} parent=0
    #allocation3 [shape = 'u8[262144]{0}', space=vmem, size = 0x40000, scoped, tag = 'input window, operand 0']
    #allocation4 [shape = 's32[2]{0}', space=sflag, size = 0x8, scoped, tag = 'scoped memory for oriented_rscnn_forward.3']
    #allocation5 [shape = 's32[2]{0}', space=sflag, size = 0x8, scoped, tag = 'scoped memory for oriented_rscnn_forward.3']
    #allocation6 [shape = 'u8[262144]{0}', space=vmem, size = 0x40000, scoped, tag = 'input window, operand 1']
    #allocation7 [shape = 's32[2]{0}', space=sflag, size = 0x8, scoped, tag = 'scoped memory for oriented_rscnn_forward.3']
    #allocation8 [shape = 'u8[2048]{0}', space=vmem, size = 0x800, scoped, tag = 'input window, operand 2, single buffered']
    #allocation9 [shape = 'u8[512]{0}', space=vmem, size = 0x400, scoped, tag = 'input window, operand 3, single buffered']
    #allocation10 [shape = 's32[1]{0}', space=sflag, size = 0x4, scoped, tag = 'scoped memory for oriented_rscnn_forward.3']
    #allocation11 [shape = 'u8[512]{0}', space=vmem, size = 0x400, scoped, tag = 'input window, operand 4, single buffered']
    #allocation12 [shape = 'u8[512]{0}', space=vmem, size = 0x400, scoped, tag = 'input window, operand 5, single buffered']
    #allocation13 [shape = 's32[1]{0}', space=sflag, size = 0x4, scoped, tag = 'scoped memory for oriented_rscnn_forward.3']
    #allocation14 [shape = 'u8[2048]{0}', space=vmem, size = 0x800, scoped, tag = 'input window, operand 6, single buffered']
    #allocation15 [shape = 'u8[512]{0}', space=vmem, size = 0x400, scoped, tag = 'input window, operand 7, single buffered']
    #allocation16 [shape = 's32[1]{0}', space=sflag, size = 0x4, scoped, tag = 'scoped memory for oriented_rscnn_forward.3']
    #allocation17 [shape = 'u8[8192]{0}', space=vmem, size = 0x2000, scoped, tag = 'input window, operand 8, single buffered']
    #allocation18 [shape = 'u8[512]{0}', space=vmem, size = 0x400, scoped, tag = 'input window, operand 9, single buffered']
    #allocation19 [shape = 's32[1]{0}', space=sflag, size = 0x4, scoped, tag = 'scoped memory for oriented_rscnn_forward.3']
    #allocation20 [shape = 'u8[512]{0}', space=vmem, size = 0x400, scoped, tag = 'input window, operand 10, single buffered']
    #allocation21 [shape = 'u8[32768]{0}', space=vmem, size = 0x8000, scoped, tag = 'output window, operand 0, single buffered']
    %16 = vsyncpa [#allocation4], 0
    %s17 = scalar_lea.sflag [#allocation4], 1
    %18 = vsyncpa %s17, 0
    %19 = vsyncpa [#allocation7], 0
    %s20 = scalar_lea.sflag [#allocation7], 1
    %21 = vsyncpa %s20, 0
    %22 = vsyncpa [#allocation10], 0
    %23 = vsyncpa [#allocation13], 0
    %24 = vsyncpa [#allocation16], 0
    %25 = vsyncpa [#allocation19], 0
    %26 = vsyncpa [#allocation5], 0
    loop: start=0, step=1, limit=4
    $region2: #{oriented_rscnn_forward.3} parent=1 // loop_pre_header
      _
    $region3: #{oriented_rscnn_forward.3} parent=1 // loop_header
      %s28 = sphi 0, %s32
      %p29 = scmp.ge.s32.totalorder %s28, 4
      %s35 = sphi 0, %s47
      %s36 = sphi 0, %s43
      %s37 = sphi 0, %s35
      %s38 = sphi 0, %s36
      %s39 = sphi 0, %s37
      %s40 = sphi 0, %s38
      %s52 = sphi 0, %s54
      %s55 = sphi 0, %s52
      %s56 = sphi 0, %s55
      %s72 = sphi 0, %s56
      %s80 = sphi 0, %s82
      %s83 = sphi 0, %s80
      %s84 = sphi 0, %s83
      %s100 = sphi 0, %s84
      %s104 = sphi 0, %s104
      %s106 = sphi 0, %s104
      %s107 = sphi 0, %s106
      %s121 = sphi 0, %s107
      %s125 = sphi 0, %s125
      %s127 = sphi 0, %s125
      %s128 = sphi 0, %s127
      %s142 = sphi 0, %s128
      %s146 = sphi 0, %s146
      %s148 = sphi 0, %s146
      %s149 = sphi 0, %s148
      %s163 = sphi 0, %s149
      %s167 = sphi 0, %s167
      %s169 = sphi 0, %s167
      %s170 = sphi 0, %s169
      %s184 = sphi 0, %s170
      %s188 = sphi 0, %s188
      %s190 = sphi 0, %s188
      %s191 = sphi 0, %s190
      %s205 = sphi 0, %s191
      %s209 = sphi 0, %s209
      %s211 = sphi 0, %s209
      %s212 = sphi 0, %s211
      %s226 = sphi 0, %s212
      %s230 = sphi 0, %s230
      %s232 = sphi 0, %s230
      %s233 = sphi 0, %s232
      %s247 = sphi 0, %s233
      %s251 = sphi 0, %s251
      %s253 = sphi 0, %s251
      %s254 = sphi 0, %s253
      %s268 = sphi 0, %s254
      %s272 = sphi 0, %s272
      %s274 = sphi 0, %s272
      %s275 = sphi 0, %s274
      %s289 = sphi 0, %s275
      %s295 = sphi 0, %s297
      %s298 = sphi 0, %s295
      %s299 = sphi 0, %s298
      %s315 = sphi 0, %s299
    $region4: #{oriented_rscnn_forward.3} parent=1 // loop_header_branch
      %31 = sbr.rel (%p29) target = $region8
    $region5: #{oriented_rscnn_forward.3} parent=1 // loop_body
      %s33 = ssub.s32 %s28, 1
      %s34 = ssub.s32 %s28, 2
      %s41 = sadd.s32 1, %s36
      %p42 = scmp.ge.s32.totalorder %s41, 2
      %s43 = scalar_select %p42, 0, %s41
      %s44 = sadd.s32 1, %s35
      %s45 = scalar_select %p42, %s44, %s35
      %p46 = scmp.ge.s32.totalorder %s45, 1
      %s47 = scalar_select %p46, 0, %s45
      %s48 = ssub.s32 %s36, %s43
      %s49 = ssub.s32 %s35, %s47
      %s50 = sor.u32 %s48, %s49
      %p51 = scmp.eq.s32.totalorder %s50, 0
      %s53 = sadd.s32 %s52, 1
      %s54 = scalar_select %p51, %s52, %s53
      %p57 = pneg %p51
      %p58 = scmp.eq.s32.totalorder %s28, 1
      %p59 = por %p57, %p58
      %p60 = scmp.ne.s32.totalorder %s52, %s55
      %p61 = scmp.eq.s32.totalorder %s28, 0
      %p62 = por %p60, %p61
      %p63 = scmp.ne.s32.totalorder %s52, %s55
      %p64 = scmp.eq.s32.totalorder %s33, 1
      %p65 = por %p63, %p64
      %p66 = scmp.ne.s32.totalorder %s55, %s56
      %p67 = scmp.eq.s32.totalorder %s33, 0
      %p68 = por %p66, %p67
      %p69 = scmp.ne.s32.totalorder %s55, %s56
      %p70 = scmp.eq.s32.totalorder %s34, 1
      %p71 = por %p69, %p70
      %p73 = scmp.ne.s32.totalorder %s56, %s72
      %p74 = scmp.eq.s32.totalorder %s34, 0
      %p75 = por %p73, %p74
      %s76 = ssub.s32 %s36, %s43
      %s77 = ssub.s32 %s35, %s47
      %s78 = sor.u32 %s76, %s77
      %p79 = scmp.eq.s32.totalorder %s78, 0
      %s81 = sadd.s32 %s80, 1
      %s82 = scalar_select %p79, %s80, %s81
      %p85 = pneg %p79
      %p86 = scmp.eq.s32.totalorder %s28, 1
      %p87 = por %p85, %p86
      %p88 = scmp.ne.s32.totalorder %s80, %s83
      %p89 = scmp.eq.s32.totalorder %s28, 0
      %p90 = por %p88, %p89
      %p91 = scmp.ne.s32.totalorder %s80, %s83
      %p92 = scmp.eq.s32.totalorder %s33, 1
      %p93 = por %p91, %p92
      %p94 = scmp.ne.s32.totalorder %s83, %s84
      %p95 = scmp.eq.s32.totalorder %s33, 0
      %p96 = por %p94, %p95
      %p97 = scmp.ne.s32.totalorder %s83, %s84
      %p98 = scmp.eq.s32.totalorder %s34, 1
      %p99 = por %p97, %p98
      %p101 = scmp.ne.s32.totalorder %s84, %s100
      %p102 = scmp.eq.s32.totalorder %s34, 0
      %p103 = por %p101, %p102
      %s105 = sadd.s32 %s104, 1
      %p108 = scmp.eq.s32.totalorder %s28, 1
      %p109 = scmp.ne.s32.totalorder %s104, %s106
      %p110 = scmp.eq.s32.totalorder %s28, 0
      %p111 = por %p109, %p110
      %p112 = scmp.ne.s32.totalorder %s104, %s106
      %p113 = scmp.eq.s32.totalorder %s33, 1
      %p114 = por %p112, %p113
      %p115 = scmp.ne.s32.totalorder %s106, %s107
      %p116 = scmp.eq.s32.totalorder %s33, 0
      %p117 = por %p115, %p116
      %p118 = scmp.ne.s32.totalorder %s106, %s107
      %p119 = scmp.eq.s32.totalorder %s34, 1
      %p120 = por %p118, %p119
      %p122 = scmp.ne.s32.totalorder %s107, %s121
      %p123 = scmp.eq.s32.totalorder %s34, 0
      %p124 = por %p122, %p123
      %s126 = sadd.s32 %s125, 1
      %p129 = scmp.eq.s32.totalorder %s28, 1
      %p130 = scmp.ne.s32.totalorder %s125, %s127
      %p131 = scmp.eq.s32.totalorder %s28, 0
      %p132 = por %p130, %p131
      %p133 = scmp.ne.s32.totalorder %s125, %s127
      %p134 = scmp.eq.s32.totalorder %s33, 1
      %p135 = por %p133, %p134
      %p136 = scmp.ne.s32.totalorder %s127, %s128
      %p137 = scmp.eq.s32.totalorder %s33, 0
      %p138 = por %p136, %p137
      %p139 = scmp.ne.s32.totalorder %s127, %s128
      %p140 = scmp.eq.s32.totalorder %s34, 1
      %p141 = por %p139, %p140
      %p143 = scmp.ne.s32.totalorder %s128, %s142
      %p144 = scmp.eq.s32.totalorder %s34, 0
      %p145 = por %p143, %p144
      %s147 = sadd.s32 %s146, 1
      %p150 = scmp.eq.s32.totalorder %s28, 1
      %p151 = scmp.ne.s32.totalorder %s146, %s148
      %p152 = scmp.eq.s32.totalorder %s28, 0
      %p153 = por %p151, %p152
      %p154 = scmp.ne.s32.totalorder %s146, %s148
      %p155 = scmp.eq.s32.totalorder %s33, 1
      %p156 = por %p154, %p155
      %p157 = scmp.ne.s32.totalorder %s148, %s149
      %p158 = scmp.eq.s32.totalorder %s33, 0
      %p159 = por %p157, %p158
      %p160 = scmp.ne.s32.totalorder %s148, %s149
      %p161 = scmp.eq.s32.totalorder %s34, 1
      %p162 = por %p160, %p161
      %p164 = scmp.ne.s32.totalorder %s149, %s163
      %p165 = scmp.eq.s32.totalorder %s34, 0
      %p166 = por %p164, %p165
      %s168 = sadd.s32 %s167, 1
      %p171 = scmp.eq.s32.totalorder %s28, 1
      %p172 = scmp.ne.s32.totalorder %s167, %s169
      %p173 = scmp.eq.s32.totalorder %s28, 0
      %p174 = por %p172, %p173
      %p175 = scmp.ne.s32.totalorder %s167, %s169
      %p176 = scmp.eq.s32.totalorder %s33, 1
      %p177 = por %p175, %p176
      %p178 = scmp.ne.s32.totalorder %s169, %s170
      %p179 = scmp.eq.s32.totalorder %s33, 0
      %p180 = por %p178, %p179
      %p181 = scmp.ne.s32.totalorder %s169, %s170
      %p182 = scmp.eq.s32.totalorder %s34, 1
      %p183 = por %p181, %p182
      %p185 = scmp.ne.s32.totalorder %s170, %s184
      %p186 = scmp.eq.s32.totalorder %s34, 0
      %p187 = por %p185, %p186
      %s189 = sadd.s32 %s188, 1
      %p192 = scmp.eq.s32.totalorder %s28, 1
      %p193 = scmp.ne.s32.totalorder %s188, %s190
      %p194 = scmp.eq.s32.totalorder %s28, 0
      %p195 = por %p193, %p194
      %p196 = scmp.ne.s32.totalorder %s188, %s190
      %p197 = scmp.eq.s32.totalorder %s33, 1
      %p198 = por %p196, %p197
      %p199 = scmp.ne.s32.totalorder %s190, %s191
      %p200 = scmp.eq.s32.totalorder %s33, 0
      %p201 = por %p199, %p200
      %p202 = scmp.ne.s32.totalorder %s190, %s191
      %p203 = scmp.eq.s32.totalorder %s34, 1
      %p204 = por %p202, %p203
      %p206 = scmp.ne.s32.totalorder %s191, %s205
      %p207 = scmp.eq.s32.totalorder %s34, 0
      %p208 = por %p206, %p207
      %s210 = sadd.s32 %s209, 1
      %p213 = scmp.eq.s32.totalorder %s28, 1
      %p214 = scmp.ne.s32.totalorder %s209, %s211
      %p215 = scmp.eq.s32.totalorder %s28, 0
      %p216 = por %p214, %p215
      %p217 = scmp.ne.s32.totalorder %s209, %s211
      %p218 = scmp.eq.s32.totalorder %s33, 1
      %p219 = por %p217, %p218
      %p220 = scmp.ne.s32.totalorder %s211, %s212
      %p221 = scmp.eq.s32.totalorder %s33, 0
      %p222 = por %p220, %p221
      %p223 = scmp.ne.s32.totalorder %s211, %s212
      %p224 = scmp.eq.s32.totalorder %s34, 1
      %p225 = por %p223, %p224
      %p227 = scmp.ne.s32.totalorder %s212, %s226
      %p228 = scmp.eq.s32.totalorder %s34, 0
      %p229 = por %p227, %p228
      %s231 = sadd.s32 %s230, 1
      %p234 = scmp.eq.s32.totalorder %s28, 1
      %p235 = scmp.ne.s32.totalorder %s230, %s232
      %p236 = scmp.eq.s32.totalorder %s28, 0
      %p237 = por %p235, %p236
      %p238 = scmp.ne.s32.totalorder %s230, %s232
      %p239 = scmp.eq.s32.totalorder %s33, 1
      %p240 = por %p238, %p239
      %p241 = scmp.ne.s32.totalorder %s232, %s233
      %p242 = scmp.eq.s32.totalorder %s33, 0
      %p243 = por %p241, %p242
      %p244 = scmp.ne.s32.totalorder %s232, %s233
      %p245 = scmp.eq.s32.totalorder %s34, 1
      %p246 = por %p244, %p245
      %p248 = scmp.ne.s32.totalorder %s233, %s247
      %p249 = scmp.eq.s32.totalorder %s34, 0
      %p250 = por %p248, %p249
      %s252 = sadd.s32 %s251, 1
      %p255 = scmp.eq.s32.totalorder %s28, 1
      %p256 = scmp.ne.s32.totalorder %s251, %s253
      %p257 = scmp.eq.s32.totalorder %s28, 0
      %p258 = por %p256, %p257
      %p259 = scmp.ne.s32.totalorder %s251, %s253
      %p260 = scmp.eq.s32.totalorder %s33, 1
      %p261 = por %p259, %p260
      %p262 = scmp.ne.s32.totalorder %s253, %s254
      %p263 = scmp.eq.s32.totalorder %s33, 0
      %p264 = por %p262, %p263
      %p265 = scmp.ne.s32.totalorder %s253, %s254
      %p266 = scmp.eq.s32.totalorder %s34, 1
      %p267 = por %p265, %p266
      %p269 = scmp.ne.s32.totalorder %s254, %s268
      %p270 = scmp.eq.s32.totalorder %s34, 0
      %p271 = por %p269, %p270
      %s273 = sadd.s32 %s272, 1
      %p276 = scmp.eq.s32.totalorder %s28, 1
      %p277 = scmp.ne.s32.totalorder %s272, %s274
      %p278 = scmp.eq.s32.totalorder %s28, 0
      %p279 = por %p277, %p278
      %p280 = scmp.ne.s32.totalorder %s272, %s274
      %p281 = scmp.eq.s32.totalorder %s33, 1
      %p282 = por %p280, %p281
      %p283 = scmp.ne.s32.totalorder %s274, %s275
      %p284 = scmp.eq.s32.totalorder %s33, 0
      %p285 = por %p283, %p284
      %p286 = scmp.ne.s32.totalorder %s274, %s275
      %p287 = scmp.eq.s32.totalorder %s34, 1
      %p288 = por %p286, %p287
      %p290 = scmp.ne.s32.totalorder %s275, %s289
      %p291 = scmp.eq.s32.totalorder %s34, 0
      %p292 = por %p290, %p291
      %s293 = ssub.s32 %s35, %s47
      %p294 = scmp.eq.s32.totalorder %s293, 0
      %s296 = sadd.s32 %s295, 1
      %s297 = scalar_select %p294, %s295, %s296
      %p300 = pneg %p294
      %p301 = scmp.eq.s32.totalorder %s28, 1
      %p302 = por %p300, %p301
      %p303 = scmp.ne.s32.totalorder %s295, %s298
      %p304 = scmp.eq.s32.totalorder %s28, 0
      %p305 = por %p303, %p304
      %p306 = scmp.ne.s32.totalorder %s295, %s298
      %p307 = scmp.eq.s32.totalorder %s33, 1
      %p308 = por %p306, %p307
      %p309 = scmp.ne.s32.totalorder %s298, %s299
      %p310 = scmp.eq.s32.totalorder %s33, 0
      %p311 = por %p309, %p310
      %p312 = scmp.ne.s32.totalorder %s298, %s299
      %p313 = scmp.eq.s32.totalorder %s34, 1
      %p314 = por %p312, %p313
      %p316 = scmp.ne.s32.totalorder %s299, %s315
      %p317 = scmp.eq.s32.totalorder %s34, 0
      %p318 = por %p316, %p317
      %p319 = scmp.le.s32.totalorder 1, %s28
      %p320 = scmp.lt.s32.totalorder %s28, 3
      %p321 = pnand %p319, %p320
      %p322 = pneg %p321
      // Predicated region
      $region9: #{oriented_rscnn_forward.3} parent=5 // pred_check
        _
      $region10: #{oriented_rscnn_forward.3} parent=5 // pred_check_branch
        %324 = sbr.rel (%p321) target = $region12
      $region11: #{oriented_rscnn_forward.3} parent=5 // pred_region
        %s325 = ssub.s32 %s28, 1
        // Predicated region
        $region13: #{oriented_rscnn_forward.3} parent=11 // pred_check
          %p326 = pneg %p117
        $region14: #{oriented_rscnn_forward.3} parent=11 // pred_check_branch
          %328 = sbr.rel (%p326) target = $region16
        $region15: #{oriented_rscnn_forward.3} parent=11 // pred_region
          %s330 = ssub.s32 64, 64
          %331 = vsyncadd [#allocation7], %s330
          %s333 = sshll.u32 [#allocation8], 4
          %s334 = int_to_ptr.vmem [resolvable:$true] %s333
          %336 = dma.hbm_to_vmem [thread:$0]  %s2, 64, %s334, [#allocation7]
        $region16: #{oriented_rscnn_forward.3} parent=11 // pred_fallthru
          _
        // Predicated region
        $region17: #{oriented_rscnn_forward.3} parent=11 // pred_check
          %p337 = pneg %p138
        $region18: #{oriented_rscnn_forward.3} parent=11 // pred_check_branch
          %339 = sbr.rel (%p337) target = $region20
        $region19: #{oriented_rscnn_forward.3} parent=11 // pred_region
          %s341 = ssub.s32 16, 16
          %342 = vsyncadd [#allocation10], %s341
          %s344 = sshll.u32 [#allocation9], 4
          %s345 = int_to_ptr.vmem [resolvable:$true] %s344
          %347 = dma.hbm_to_vmem [thread:$0]  %s3, 16, %s345, [#allocation10]
        $region20: #{oriented_rscnn_forward.3} parent=11 // pred_fallthru
          _
        // Predicated region
        $region21: #{oriented_rscnn_forward.3} parent=11 // pred_check
          %p348 = pneg %p159
        $region22: #{oriented_rscnn_forward.3} parent=11 // pred_check_branch
          %350 = sbr.rel (%p348) target = $region24
        $region23: #{oriented_rscnn_forward.3} parent=11 // pred_region
          %s352 = ssub.s32 16, 16
          %353 = vsyncadd [#allocation10], %s352
          %s355 = sshll.u32 [#allocation11], 4
          %s356 = int_to_ptr.vmem [resolvable:$true] %s355
          %358 = dma.hbm_to_vmem [thread:$0]  %s4, 16, %s356, [#allocation10]
        $region24: #{oriented_rscnn_forward.3} parent=11 // pred_fallthru
          _
        // Predicated region
        $region25: #{oriented_rscnn_forward.3} parent=11 // pred_check
          %p359 = pneg %p180
        $region26: #{oriented_rscnn_forward.3} parent=11 // pred_check_branch
          %361 = sbr.rel (%p359) target = $region28
        $region27: #{oriented_rscnn_forward.3} parent=11 // pred_region
          %s363 = ssub.s32 16, 16
          %364 = vsyncadd [#allocation13], %s363
          %s366 = sshll.u32 [#allocation12], 4
          %s367 = int_to_ptr.vmem [resolvable:$true] %s366
          %369 = dma.hbm_to_vmem [thread:$0]  %s5, 16, %s367, [#allocation13]
        $region28: #{oriented_rscnn_forward.3} parent=11 // pred_fallthru
          _
        // Predicated region
        $region29: #{oriented_rscnn_forward.3} parent=11 // pred_check
          %p370 = pneg %p201
        $region30: #{oriented_rscnn_forward.3} parent=11 // pred_check_branch
          %372 = sbr.rel (%p370) target = $region32
        $region31: #{oriented_rscnn_forward.3} parent=11 // pred_region
          %s374 = ssub.s32 64, 64
          %375 = vsyncadd [#allocation13], %s374
          %s377 = sshll.u32 [#allocation14], 4
          %s378 = int_to_ptr.vmem [resolvable:$true] %s377
          %380 = dma.hbm_to_vmem [thread:$0]  %s6, 64, %s378, [#allocation13]
        $region32: #{oriented_rscnn_forward.3} parent=11 // pred_fallthru
          _
        // Predicated region
        $region33: #{oriented_rscnn_forward.3} parent=11 // pred_check
          %p381 = pneg %p222
        $region34: #{oriented_rscnn_forward.3} parent=11 // pred_check_branch
          %383 = sbr.rel (%p381) target = $region36
        $region35: #{oriented_rscnn_forward.3} parent=11 // pred_region
          %s385 = ssub.s32 16, 16
          %386 = vsyncadd [#allocation16], %s385
          %s388 = sshll.u32 [#allocation15], 4
          %s389 = int_to_ptr.vmem [resolvable:$true] %s388
          %391 = dma.hbm_to_vmem [thread:$0]  %s7, 16, %s389, [#allocation16]
        $region36: #{oriented_rscnn_forward.3} parent=11 // pred_fallthru
          _
        // Predicated region
        $region37: #{oriented_rscnn_forward.3} parent=11 // pred_check
          %p392 = pneg %p243
        $region38: #{oriented_rscnn_forward.3} parent=11 // pred_check_branch
          %394 = sbr.rel (%p392) target = $region40
        $region39: #{oriented_rscnn_forward.3} parent=11 // pred_region
          %s396 = ssub.s32 256, 256
          %397 = vsyncadd [#allocation16], %s396
          %s398 = sshll.u32 [#allocation17], 4
          %s399 = int_to_ptr.vmem [resolvable:$true] %s398
          %404 = dma.hbm_to_vmem [thread:$0]  %s8, 256, %s399, [#allocation16], 64, 64, 4
        $region40: #{oriented_rscnn_forward.3} parent=11 // pred_fallthru
          _
        // Predicated region
        $region41: #{oriented_rscnn_forward.3} parent=11 // pred_check
          %p405 = pneg %p264
        $region42: #{oriented_rscnn_forward.3} parent=11 // pred_check_branch
          %407 = sbr.rel (%p405) target = $region44
        $region43: #{oriented_rscnn_forward.3} parent=11 // pred_region
          %s409 = ssub.s32 16, 16
          %410 = vsyncadd [#allocation19], %s409
          %s412 = sshll.u32 [#allocation18], 4
          %s413 = int_to_ptr.vmem [resolvable:$true] %s412
          %415 = dma.hbm_to_vmem [thread:$0]  %s9, 16, %s413, [#allocation19]
        $region44: #{oriented_rscnn_forward.3} parent=11 // pred_fallthru
          _
        // Predicated region
        $region45: #{oriented_rscnn_forward.3} parent=11 // pred_check
          %p416 = pneg %p285
        $region46: #{oriented_rscnn_forward.3} parent=11 // pred_check_branch
          %418 = sbr.rel (%p416) target = $region48
        $region47: #{oriented_rscnn_forward.3} parent=11 // pred_region
          %s420 = ssub.s32 16, 16
          %421 = vsyncadd [#allocation19], %s420
          %s423 = sshll.u32 [#allocation20], 4
          %s424 = int_to_ptr.vmem [resolvable:$true] %s423
          %426 = dma.hbm_to_vmem [thread:$0]  %s10, 16, %s424, [#allocation19]
        $region48: #{oriented_rscnn_forward.3} parent=11 // pred_fallthru
          _
      $region12: #{oriented_rscnn_forward.3} parent=5 // pred_fallthru
        _
      %p427 = scmp.lt.s32.totalorder %s28, 2
      // Predicated region
      $region49: #{oriented_rscnn_forward.3} parent=5 // pred_check
        %p428 = pneg %p427
      $region50: #{oriented_rscnn_forward.3} parent=5 // pred_check_branch
        %430 = sbr.rel (%p428) target = $region52
      $region51: #{oriented_rscnn_forward.3} parent=5 // pred_region
        // Predicated region
        $region53: #{oriented_rscnn_forward.3} parent=51 // pred_check
          %p431 = pneg %p62
        $region54: #{oriented_rscnn_forward.3} parent=51 // pred_check_branch
          %433 = sbr.rel (%p431) target = $region56
        $region55: #{oriented_rscnn_forward.3} parent=51 // pred_region
          %s434 = sand.u32 %s52, 1
          %s435 = scalar_lea.sflag [#allocation4], %s434
          %s436 = sand.u32 %s52, 1
          %s437 = smul.addr %s436, 256
          %s438 = scalar_lea.vmem [#allocation3], %s437
          %s439 = smul.u32 8, %s36
          %s440 = smul.u32 8, %s35
          %s442 = ssub.s32 4096, 4096
          %443 = vsyncadd %s435, %s442
          %s444 = smul.addr %s439, 8
          %s445 = sadd.s32 %s440, %s444
          %s446 = smul.addr %s445, 64
          %s447 = scalar_lea.hbm %s0, %s446
          %s448 = sshll.u32 %s438, 4
          %s449 = int_to_ptr.vmem [resolvable:$true] %s448
          %454 = dma.hbm_to_vmem [thread:$0]  %s447, 4096, %s449, %s435, 64, 64, 4
        $region56: #{oriented_rscnn_forward.3} parent=51 // pred_fallthru
          _
        // Predicated region
        $region57: #{oriented_rscnn_forward.3} parent=51 // pred_check
          %p455 = pneg %p90
        $region58: #{oriented_rscnn_forward.3} parent=51 // pred_check_branch
          %457 = sbr.rel (%p455) target = $region60
        $region59: #{oriented_rscnn_forward.3} parent=51 // pred_region
          %s458 = sand.u32 %s28, 1
          %s459 = scalar_lea.sflag [#allocation7], %s458
          %s460 = sand.u32 %s80, 1
          %s461 = smul.addr %s460, 256
          %s462 = scalar_lea.vmem [#allocation6], %s461
          %s463 = smul.u32 8, %s36
          %s464 = smul.u32 8, %s35
          %s466 = ssub.s32 4096, 4096
          %467 = vsyncadd %s459, %s466
          %s468 = smul.addr %s463, 8
          %s469 = sadd.s32 %s464, %s468
          %s470 = smul.addr %s469, 64
          %s471 = scalar_lea.hbm %s1, %s470
          %s472 = sshll.u32 %s462, 4
          %s473 = int_to_ptr.vmem [resolvable:$true] %s472
          %478 = dma.hbm_to_vmem [thread:$0]  %s471, 4096, %s473, %s459, 64, 64, 4
        $region60: #{oriented_rscnn_forward.3} parent=51 // pred_fallthru
          _
      $region52: #{oriented_rscnn_forward.3} parent=5 // pred_fallthru
        _
      %p479 = scmp.le.s32.totalorder 1, %s28
      %p480 = scmp.lt.s32.totalorder %s28, 3
      %p481 = pnand %p479, %p480
      %p482 = pneg %p481
      // Predicated region
      $region61: #{oriented_rscnn_forward.3} parent=5 // pred_check
        _
      $region62: #{oriented_rscnn_forward.3} parent=5 // pred_check_branch
        %484 = sbr.rel (%p481) target = $region64
      $region63: #{oriented_rscnn_forward.3} parent=5 // pred_region
        %s485 = ssub.s32 %s28, 1
        %s486 = sand.u32 %s55, 1
        %s487 = scalar_lea.sflag [#allocation4], %s486
        %s488 = sand.u32 %s55, 1
        %s489 = smul.addr %s488, 256
        %s490 = scalar_lea.vmem [#allocation3], %s489
        // Predicated region
        $region65: #{oriented_rscnn_forward.3} parent=63 // pred_check
          %p491 = pneg %p68
        $region66: #{oriented_rscnn_forward.3} parent=63 // pred_check_branch
          %493 = sbr.rel (%p491) target = $region68
        $region67: #{oriented_rscnn_forward.3} parent=63 // pred_region
          %494 = dma.done %s487, 4096
        $region68: #{oriented_rscnn_forward.3} parent=63 // pred_fallthru
          _
        %s495 = sand.u32 %s33, 1
        %s496 = scalar_lea.sflag [#allocation7], %s495
        %s497 = sand.u32 %s83, 1
        %s498 = smul.addr %s497, 256
        %s499 = scalar_lea.vmem [#allocation6], %s498
        // Predicated region
        $region69: #{oriented_rscnn_forward.3} parent=63 // pred_check
          %p500 = pneg %p96
        $region70: #{oriented_rscnn_forward.3} parent=63 // pred_check_branch
          %502 = sbr.rel (%p500) target = $region72
        $region71: #{oriented_rscnn_forward.3} parent=63 // pred_region
          %503 = dma.done %s496, 4096
        $region72: #{oriented_rscnn_forward.3} parent=63 // pred_fallthru
          _
        // Predicated region
        $region73: #{oriented_rscnn_forward.3} parent=63 // pred_check
          %p504 = pneg %p117
        $region74: #{oriented_rscnn_forward.3} parent=63 // pred_check_branch
          %506 = sbr.rel (%p504) target = $region76
        $region75: #{oriented_rscnn_forward.3} parent=63 // pred_region
          %507 = dma.done [#allocation7], 64
        $region76: #{oriented_rscnn_forward.3} parent=63 // pred_fallthru
          _
        // Predicated region
        $region77: #{oriented_rscnn_forward.3} parent=63 // pred_check
          %p508 = pneg %p138
        $region78: #{oriented_rscnn_forward.3} parent=63 // pred_check_branch
          %510 = sbr.rel (%p508) target = $region80
        $region79: #{oriented_rscnn_forward.3} parent=63 // pred_region
          %511 = dma.done [#allocation10], 16
        $region80: #{oriented_rscnn_forward.3} parent=63 // pred_fallthru
          _
        // Predicated region
        $region81: #{oriented_rscnn_forward.3} parent=63 // pred_check
          %p512 = pneg %p159
        $region82: #{oriented_rscnn_forward.3} parent=63 // pred_check_branch
          %514 = sbr.rel (%p512) target = $region84
        $region83: #{oriented_rscnn_forward.3} parent=63 // pred_region
          %515 = dma.done [#allocation10], 16
        $region84: #{oriented_rscnn_forward.3} parent=63 // pred_fallthru
          _
        // Predicated region
        $region85: #{oriented_rscnn_forward.3} parent=63 // pred_check
          %p516 = pneg %p180
        $region86: #{oriented_rscnn_forward.3} parent=63 // pred_check_branch
          %518 = sbr.rel (%p516) target = $region88
        $region87: #{oriented_rscnn_forward.3} parent=63 // pred_region
          %519 = dma.done [#allocation13], 16
        $region88: #{oriented_rscnn_forward.3} parent=63 // pred_fallthru
          _
        // Predicated region
        $region89: #{oriented_rscnn_forward.3} parent=63 // pred_check
          %p520 = pneg %p201
        $region90: #{oriented_rscnn_forward.3} parent=63 // pred_check_branch
          %522 = sbr.rel (%p520) target = $region92
        $region91: #{oriented_rscnn_forward.3} parent=63 // pred_region
          %523 = dma.done [#allocation13], 64
        $region92: #{oriented_rscnn_forward.3} parent=63 // pred_fallthru
          _
        // Predicated region
        $region93: #{oriented_rscnn_forward.3} parent=63 // pred_check
          %p524 = pneg %p222
        $region94: #{oriented_rscnn_forward.3} parent=63 // pred_check_branch
          %526 = sbr.rel (%p524) target = $region96
        $region95: #{oriented_rscnn_forward.3} parent=63 // pred_region
          %527 = dma.done [#allocation16], 16
        $region96: #{oriented_rscnn_forward.3} parent=63 // pred_fallthru
          _
        // Predicated region
        $region97: #{oriented_rscnn_forward.3} parent=63 // pred_check
          %p528 = pneg %p243
        $region98: #{oriented_rscnn_forward.3} parent=63 // pred_check_branch
          %530 = sbr.rel (%p528) target = $region100
        $region99: #{oriented_rscnn_forward.3} parent=63 // pred_region
          %531 = dma.done [#allocation16], 256
        $region100: #{oriented_rscnn_forward.3} parent=63 // pred_fallthru
          _
        // Predicated region
        $region101: #{oriented_rscnn_forward.3} parent=63 // pred_check
          %p532 = pneg %p264
        $region102: #{oriented_rscnn_forward.3} parent=63 // pred_check_branch
          %534 = sbr.rel (%p532) target = $region104
        $region103: #{oriented_rscnn_forward.3} parent=63 // pred_region
          %535 = dma.done [#allocation19], 16
        $region104: #{oriented_rscnn_forward.3} parent=63 // pred_fallthru
          _
        // Predicated region
        $region105: #{oriented_rscnn_forward.3} parent=63 // pred_check
          %p536 = pneg %p285
        $region106: #{oriented_rscnn_forward.3} parent=63 // pred_check_branch
          %538 = sbr.rel (%p536) target = $region108
        $region107: #{oriented_rscnn_forward.3} parent=63 // pred_region
          %539 = dma.done [#allocation19], 16
        $region108: #{oriented_rscnn_forward.3} parent=63 // pred_fallthru
          _
        %s540 = sand.u32 %s55, 1
        %s541 = scalar_lea.sflag [#allocation4], %s540
        %s542 = sand.u32 %s55, 1
        %s543 = smul.addr %s542, 256
        %s544 = scalar_lea.vmem [#allocation3], %s543
        %p545 = pneg %p68
        %p546 = pneg %p65
        %s547 = sand.u32 %s33, 1
        %s548 = scalar_lea.sflag [#allocation7], %s547
        %s549 = sand.u32 %s83, 1
        %s550 = smul.addr %s549, 256
        %s551 = scalar_lea.vmem [#allocation6], %s550
        %p552 = pneg %p96
        %p553 = pneg %p93
        %p554 = pneg %p117
        %p555 = pneg %p114
        %p556 = pneg %p138
        %p557 = pneg %p135
        %p558 = pneg %p159
        %p559 = pneg %p156
        %p560 = pneg %p180
        %p561 = pneg %p177
        %p562 = pneg %p201
        %p563 = pneg %p198
        %p564 = pneg %p222
        %p565 = pneg %p219
        %p566 = pneg %p243
        %p567 = pneg %p240
        %p568 = pneg %p264
        %p569 = pneg %p261
        %p570 = pneg %p285
        %p571 = pneg %p282
        %p572 = pneg %p311
        %p573 = pneg %p308
        %s574 = smul.u32 8, %s38
        %s575 = smul.u32 8, %s37
        %s576 = smul.u32 8, %s38
        %s577 = smul.u32 8, %s37
        %s578 = smul.u32 8, %s37
        %p580 = scmp.eq.s32.totalorder %s38, 0
        // Predicated region
        $region109: #{oriented_rscnn_forward.3} parent=63 // pred_check
          %p581 = pneg %p580
        $region110: #{oriented_rscnn_forward.3} parent=63 // pred_check_branch
          %583 = sbr.rel (%p581) target = $region112
        $region111: #{oriented_rscnn_forward.3} parent=63 // pred_region
          %vm584 = vcmask 261120
          %585 = vst.msk [vmem:[#allocation2] sm:$0xff] %vm584, -inf
          %586 = vst.msk [vmem:[#allocation2 + $0x8] sm:$0xff] %vm584, -inf
          %587 = vst.msk [vmem:[#allocation2 + $0x10] sm:$0xff] %vm584, -inf
          %588 = vst.msk [vmem:[#allocation2 + $0x18] sm:$0xff] %vm584, -inf
          %589 = vst.msk [vmem:[#allocation2 + $0x20] sm:$0xff] %vm584, -inf
          %590 = vst.msk [vmem:[#allocation2 + $0x28] sm:$0xff] %vm584, -inf
          %591 = vst.msk [vmem:[#allocation2 + $0x30] sm:$0xff] %vm584, -inf
          %592 = vst.msk [vmem:[#allocation2 + $0x38] sm:$0xff] %vm584, -inf
        $region112: #{oriented_rscnn_forward.3} parent=63 // pred_fallthru
          _
        %v593 = vld [vmem:[#allocation8] sm:$0x7]
        %v594 = vld [vmem:[#allocation9] sm:$0x1]
        %v595 = vld [vmem:[#allocation11] sm:$0x1]
        %v596 = vld [vmem:[#allocation12] sm:$0x1]
        %v597 = vld [vmem:[#allocation14] sm:$0xf]
        %v598 = vld [vmem:[#allocation15] sm:$0x1]
        %v599 = vld [vmem:[%s490] sm:$0xf]
        %v600 = vld [vmem:[%s490 + $0x4] sm:$0xf]
        %v601 = vld [vmem:[%s490 + $0x8] sm:$0xf]
        %v602 = vld [vmem:[%s490 + $0xc] sm:$0xf]
        %v603 = vld [vmem:[%s490 + $0x10] sm:$0xf]
        %v604 = vld [vmem:[%s490 + $0x14] sm:$0xf]
        %v605 = vld [vmem:[%s490 + $0x18] sm:$0xf]
        %v606 = vld [vmem:[%s490 + $0x1c] sm:$0xf]
        %v608 = vlaneseq
        %v609 = vshrl.u32 %v608, 7
        %v610 = vsub.s32 0, %v609
        %v611 = vrot.slane %v598, %v610
        %v621 = vunpack.c.l.b16 %v599
        %v622 = vunpack.c.l.b16 %v600
        %v623 = vunpack.c.l.b16 %v601
        %v624 = vunpack.c.l.b16 %v602
        %v625 = vunpack.c.l.b16 %v603
        %v626 = vunpack.c.l.b16 %v604
        %v627 = vunpack.c.l.b16 %v605
        %v628 = vunpack.c.l.b16 %v606
        %v629 = vpack.c.b16 %v622, %v621
        %v630 = vpack.c.b16 %v624, %v623
        %v631 = vpack.c.b16 %v626, %v625
        %v632 = vpack.c.b16 %v628, %v627
        %vm633 = vcmask 56320
        %v635 = vsel %vm633, %v629, 0
        %v638 = vsel %vm633, %v630, 0
        %v641 = vsel %vm633, %v631, 0
        %v644 = vsel %vm633, %v632, 0
        %vm646 = vcmask 1042432
        %vm647 = vcmask 1043456
        %v648 = vsel %vm646, 4294967295, 65535
        %v649 = vsel %vm647, %v648, 0
        %v651 = vand.u32 %v597, %v649
        %653 = vmatprep.subr.bf16.mxu0 0
        %654 = vmatpush1.bf16.msra.mxu0 %v651
        %655 = vmatprep.subr.bf16.mxu0 0
        %656 = vmatpush1.bf16.msra.mxu0 0
        %657 = vmatprep.subr.bf16.mxu0 0
        %658 = vmatpush1.bf16.msra.mxu0 0
        %659 = vmatprep.subr.bf16.mxu0 0
        %660 = vmatpush1.bf16.msra.mxu0 0
        %661 = vmatprep.subr.bf16.mxu0 0
        %662 = vmatpush1.bf16.msra.mxu0 0
        %663 = vmatprep.subr.bf16.mxu0 0
        %664 = vmatpush1.bf16.msra.mxu0 0
        %665 = vmatprep.subr.bf16.mxu0 0
        %666 = vmatpush1.bf16.msra.mxu0 0
        %667 = vmatprep.subr.bf16.mxu0 0
        %668 = vmatpush1.bf16.msra.mxu0 0
        %669 = vmatprep.subr.bf16.mxu0 0
        %670 = vmatpush1.bf16.msra.mxu0 0
        %671 = vmatprep.subr.bf16.mxu0 0
        %672 = vmatpush1.bf16.msra.mxu0 0
        %673 = vmatprep.subr.bf16.mxu0 0
        %674 = vmatpush1.bf16.msra.mxu0 0
        %675 = vmatprep.subr.bf16.mxu0 0
        %676 = vmatpush1.bf16.msra.mxu0 0
        %677 = vmatprep.subr.bf16.mxu0 0
        %678 = vmatpush1.bf16.msra.mxu0 0
        %679 = vmatprep.subr.bf16.mxu0 0
        %680 = vmatpush1.bf16.msra.mxu0 0
        %681 = vmatprep.subr.bf16.mxu0 0
        %682 = vmatpush1.bf16.msra.mxu0 0
        %683 = vmatprep.subr.bf16.mxu0 0
        %684 = vmatpush1.bf16.msra.mxu0 0
        %685 = vmatprep.mubr.bf16.mxu0 0
        %686 = vmatmul.mubr.bf16.gmra.mrb[0].mxu0 %v635
        %v687 = vpop.f32.mrb[0].mxu0
        %v688 = vadd.f32 %v611, %v687
        %v689 = vpop.f32.mrb[0].mxu0
        %v690 = vpop.f32.mrb[0].mxu0
        %v691 = vadd.f32 %v611, %v690
        %v692 = vpop.f32.mrb[0].mxu0
        %693 = vmatprep.mubr.bf16.mxu0 0
        %694 = vmatmul.mubr.bf16.gmra.mrb[0].mxu0 %v638
        %v695 = vpop.f32.mrb[0].mxu0
        %v696 = vadd.f32 %v611, %v695
        %v697 = vpop.f32.mrb[0].mxu0
        %v698 = vpop.f32.mrb[0].mxu0
        %v699 = vadd.f32 %v611, %v698
        %v700 = vpop.f32.mrb[0].mxu0
        %701 = vmatprep.mubr.bf16.mxu0 0
        %702 = vmatmul.mubr.bf16.gmra.mrb[0].mxu0 %v641
        %v703 = vpop.f32.mrb[0].mxu0
        %v704 = vadd.f32 %v611, %v703
        %v705 = vpop.f32.mrb[0].mxu0
        %v706 = vpop.f32.mrb[0].mxu0
        %v707 = vadd.f32 %v611, %v706
        %v708 = vpop.f32.mrb[0].mxu0
        %709 = vmatprep.mubr.bf16.mxu0 0
        %710 = vmatmul.mubr.bf16.gmra.mrb[0].mxu0 %v644
        %v711 = vpop.f32.mrb[0].mxu0
        %v712 = vadd.f32 %v611, %v711
        %v713 = vpop.f32.mrb[0].mxu0
        %v714 = vpop.f32.mrb[0].mxu0
        %v715 = vadd.f32 %v611, %v714
        %v716 = vpop.f32.mrb[0].mxu0
        %717 = vdwg.mxu0
        %v718 = vmax.f32 %v688, 0.0
        %v719 = vmax.f32 %v691, 0.0
        %v720 = vmax.f32 %v696, 0.0
        %v721 = vmax.f32 %v699, 0.0
        %v722 = vmax.f32 %v704, 0.0
        %v723 = vmax.f32 %v707, 0.0
        %v724 = vmax.f32 %v712, 0.0
        %v725 = vmax.f32 %v715, 0.0
        %v726 = vld [vmem:[%s499] sm:$0xf]
        %v727 = vld [vmem:[%s499 + $0x4] sm:$0xf]
        %v728 = vld [vmem:[%s499 + $0x8] sm:$0xf]
        %v729 = vld [vmem:[%s499 + $0xc] sm:$0xf]
        %v730 = vld [vmem:[%s499 + $0x10] sm:$0xf]
        %v731 = vld [vmem:[%s499 + $0x14] sm:$0xf]
        %v732 = vld [vmem:[%s499 + $0x18] sm:$0xf]
        %v733 = vld [vmem:[%s499 + $0x1c] sm:$0xf]
        %v735 = vlaneseq
        %v736 = vshrl.u32 %v735, 7
        %v737 = vsub.s32 0, %v736
        %v738 = vrot.slane %v594, %v737
        %v748 = vunpack.c.l.b16 %v726
        %v749 = vunpack.c.l.b16 %v727
        %v750 = vunpack.c.l.b16 %v728
        %v751 = vunpack.c.l.b16 %v729
        %v752 = vunpack.c.l.b16 %v730
        %v753 = vunpack.c.l.b16 %v731
        %v754 = vunpack.c.l.b16 %v732
        %v755 = vunpack.c.l.b16 %v733
        %v756 = vpack.c.b16 %v749, %v748
        %v757 = vpack.c.b16 %v751, %v750
        %v758 = vpack.c.b16 %v753, %v752
        %v759 = vpack.c.b16 %v755, %v754
        %vm760 = vcmask 48128
        %v762 = vsel %vm760, %v756, 0
        %v765 = vsel %vm760, %v757, 0
        %v768 = vsel %vm760, %v758, 0
        %v771 = vsel %vm760, %v759, 0
        %v774 = vsel %vm646, %v593, 0
        %776 = vmatprep.subr.bf16.mxu0 0
        %777 = vmatpush1.bf16.msra.mxu0 %v774
        %778 = vmatprep.subr.bf16.mxu0 0
        %779 = vmatpush1.bf16.msra.mxu0 0
        %780 = vmatprep.subr.bf16.mxu0 0
        %781 = vmatpush1.bf16.msra.mxu0 0
        %782 = vmatprep.subr.bf16.mxu0 0
        %783 = vmatpush1.bf16.msra.mxu0 0
        %784 = vmatprep.subr.bf16.mxu0 0
        %785 = vmatpush1.bf16.msra.mxu0 0
        %786 = vmatprep.subr.bf16.mxu0 0
        %787 = vmatpush1.bf16.msra.mxu0 0
        %788 = vmatprep.subr.bf16.mxu0 0
        %789 = vmatpush1.bf16.msra.mxu0 0
        %790 = vmatprep.subr.bf16.mxu0 0
        %791 = vmatpush1.bf16.msra.mxu0 0
        %792 = vmatprep.subr.bf16.mxu0 0
        %793 = vmatpush1.bf16.msra.mxu0 0
        %794 = vmatprep.subr.bf16.mxu0 0
        %795 = vmatpush1.bf16.msra.mxu0 0
        %796 = vmatprep.subr.bf16.mxu0 0
        %797 = vmatpush1.bf16.msra.mxu0 0
        %798 = vmatprep.subr.bf16.mxu0 0
        %799 = vmatpush1.bf16.msra.mxu0 0
        %800 = vmatprep.subr.bf16.mxu0 0
        %801 = vmatpush1.bf16.msra.mxu0 0
        %802 = vmatprep.subr.bf16.mxu0 0
        %803 = vmatpush1.bf16.msra.mxu0 0
        %804 = vmatprep.subr.bf16.mxu0 0
        %805 = vmatpush1.bf16.msra.mxu0 0
        %806 = vmatprep.subr.bf16.mxu0 0
        %807 = vmatpush1.bf16.msra.mxu0 0
        %808 = vmatprep.mubr.bf16.mxu0 0
        %809 = vmatmul.mubr.bf16.gmra.mrb[0].mxu0 %v762
        %v810 = vpop.f32.mrb[0].mxu0
        %v811 = vadd.f32 %v738, %v810
        %v812 = vpop.f32.mrb[0].mxu0
        %v813 = vpop.f32.mrb[0].mxu0
        %v814 = vadd.f32 %v738, %v813
        %v815 = vpop.f32.mrb[0].mxu0
        %816 = vmatprep.mubr.bf16.mxu0 0
        %817 = vmatmul.mubr.bf16.gmra.mrb[0].mxu0 %v765
        %v818 = vpop.f32.mrb[0].mxu0
        %v819 = vadd.f32 %v738, %v818
        %v820 = vpop.f32.mrb[0].mxu0
        %v821 = vpop.f32.mrb[0].mxu0
        %v822 = vadd.f32 %v738, %v821
        %v823 = vpop.f32.mrb[0].mxu0
        %824 = vmatprep.mubr.bf16.mxu0 0
        %825 = vmatmul.mubr.bf16.gmra.mrb[0].mxu0 %v768
        %v826 = vpop.f32.mrb[0].mxu0
        %v827 = vadd.f32 %v738, %v826
        %v828 = vpop.f32.mrb[0].mxu0
        %v829 = vpop.f32.mrb[0].mxu0
        %v830 = vadd.f32 %v738, %v829
        %v831 = vpop.f32.mrb[0].mxu0
        %832 = vmatprep.mubr.bf16.mxu0 0
        %833 = vmatmul.mubr.bf16.gmra.mrb[0].mxu0 %v771
        %v834 = vpop.f32.mrb[0].mxu0
        %v835 = vadd.f32 %v738, %v834
        %v836 = vpop.f32.mrb[0].mxu0
        %v837 = vpop.f32.mrb[0].mxu0
        %v838 = vadd.f32 %v738, %v837
        %v839 = vpop.f32.mrb[0].mxu0
        %840 = vdwg.mxu0
        %v842 = vlaneseq
        %v843 = vshrl.u32 %v842, 7
        %v844 = vsub.s32 0, %v843
        %v845 = vrot.slane %v595, %v844
        %v847 = vmul.f32 %v811, %v845
        %v848 = vmul.f32 %v814, %v845
        %v849 = vmul.f32 %v819, %v845
        %v850 = vmul.f32 %v822, %v845
        %v851 = vmul.f32 %v827, %v845
        %v852 = vmul.f32 %v830, %v845
        %v853 = vmul.f32 %v835, %v845
        %v854 = vmul.f32 %v838, %v845
        %v856 = vlaneseq
        %v857 = vshrl.u32 %v856, 7
        %v858 = vsub.s32 0, %v857
        %v859 = vrot.slane %v596, %v858
        %v861 = vadd.f32 %v847, %v859
        %v862 = vadd.f32 %v848, %v859
        %v863 = vadd.f32 %v849, %v859
        %v864 = vadd.f32 %v850, %v859
        %v865 = vadd.f32 %v851, %v859
        %v866 = vadd.f32 %v852, %v859
        %v867 = vadd.f32 %v853, %v859
        %v868 = vadd.f32 %v854, %v859
        %v869 = vmax.f32 %v861, 0.0
        %v870 = vmax.f32 %v862, 0.0
        %v871 = vmax.f32 %v863, 0.0
        %v872 = vmax.f32 %v864, 0.0
        %v873 = vmax.f32 %v865, 0.0
        %v874 = vmax.f32 %v866, 0.0
        %v875 = vmax.f32 %v867, 0.0
        %v876 = vmax.f32 %v868, 0.0
        %v877 = vmul.f32 %v718, %v869
        %v878 = vmul.f32 %v719, %v870
        %v879 = vmul.f32 %v720, %v871
        %v880 = vmul.f32 %v721, %v872
        %v881 = vmul.f32 %v722, %v873
        %v882 = vmul.f32 %v723, %v874
        %v883 = vmul.f32 %v724, %v875
        %v884 = vmul.f32 %v725, %v876
        %s885 = scalar_lea.vmem %s490, 32 [#allocation3]
        %v886 = vld [vmem:[%s885] sm:$0xf]
        %v887 = vld [vmem:[%s885 + $0x4] sm:$0xf]
        %v888 = vld [vmem:[%s885 + $0x8] sm:$0xf]
        %v889 = vld [vmem:[%s885 + $0xc] sm:$0xf]
        %v890 = vld [vmem:[%s885 + $0x10] sm:$0xf]
        %v891 = vld [vmem:[%s885 + $0x14] sm:$0xf]
        %v892 = vld [vmem:[%s885 + $0x18] sm:$0xf]
        %v893 = vld [vmem:[%s885 + $0x1c] sm:$0xf]
        %v902 = vunpack.c.l.b16 %v886
        %v903 = vunpack.c.l.b16 %v887
        %v904 = vunpack.c.l.b16 %v888
        %v905 = vunpack.c.l.b16 %v889
        %v906 = vunpack.c.l.b16 %v890
        %v907 = vunpack.c.l.b16 %v891
        %v908 = vunpack.c.l.b16 %v892
        %v909 = vunpack.c.l.b16 %v893
        %v910 = vpack.c.b16 %v903, %v902
        %v911 = vpack.c.b16 %v905, %v904
        %v912 = vpack.c.b16 %v907, %v906
        %v913 = vpack.c.b16 %v909, %v908
        %v915 = vsel %vm633, %v910, 0
        %v918 = vsel %vm633, %v911, 0
        %v921 = vsel %vm633, %v912, 0
        %v924 = vsel %vm633, %v913, 0
        %926 = vmatprep.subr.bf16.mxu0 0
        %927 = vmatpush1.bf16.msra.mxu0 %v651
        %928 = vmatprep.subr.bf16.mxu0 0
        %929 = vmatpush1.bf16.msra.mxu0 0
        %930 = vmatprep.subr.bf16.mxu0 0
        %931 = vmatpush1.bf16.msra.mxu0 0
        %932 = vmatprep.subr.bf16.mxu0 0
        %933 = vmatpush1.bf16.msra.mxu0 0
        %934 = vmatprep.subr.bf16.mxu0 0
        %935 = vmatpush1.bf16.msra.mxu0 0
        %936 = vmatprep.subr.bf16.mxu0 0
        %937 = vmatpush1.bf16.msra.mxu0 0
        %938 = vmatprep.subr.bf16.mxu0 0
        %939 = vmatpush1.bf16.msra.mxu0 0
        %940 = vmatprep.subr.bf16.mxu0 0
        %941 = vmatpush1.bf16.msra.mxu0 0
        %942 = vmatprep.subr.bf16.mxu0 0
        %943 = vmatpush1.bf16.msra.mxu0 0
        %944 = vmatprep.subr.bf16.mxu0 0
        %945 = vmatpush1.bf16.msra.mxu0 0
        %946 = vmatprep.subr.bf16.mxu0 0
        %947 = vmatpush1.bf16.msra.mxu0 0
        %948 = vmatprep.subr.bf16.mxu0 0
        %949 = vmatpush1.bf16.msra.mxu0 0
        %950 = vmatprep.subr.bf16.mxu0 0
        %951 = vmatpush1.bf16.msra.mxu0 0
        %952 = vmatprep.subr.bf16.mxu0 0
        %953 = vmatpush1.bf16.msra.mxu0 0
        %954 = vmatprep.subr.bf16.mxu0 0
        %955 = vmatpush1.bf16.msra.mxu0 0
        %956 = vmatprep.subr.bf16.mxu0 0
        %957 = vmatpush1.bf16.msra.mxu0 0
        %958 = vmatprep.mubr.bf16.mxu0 0
        %959 = vmatmul.mubr.bf16.gmra.mrb[0].mxu0 %v915
        %v960 = vpop.f32.mrb[0].mxu0
        %v961 = vadd.f32 %v611, %v960
        %v962 = vpop.f32.mrb[0].mxu0
        %v963 = vpop.f32.mrb[0].mxu0
        %v964 = vadd.f32 %v611, %v963
        %v965 = vpop.f32.mrb[0].mxu0
        %966 = vmatprep.mubr.bf16.mxu0 0
        %967 = vmatmul.mubr.bf16.gmra.mrb[0].mxu0 %v918
        %v968 = vpop.f32.mrb[0].mxu0
        %v969 = vadd.f32 %v611, %v968
        %v970 = vpop.f32.mrb[0].mxu0
        %v971 = vpop.f32.mrb[0].mxu0
        %v972 = vadd.f32 %v611, %v971
        %v973 = vpop.f32.mrb[0].mxu0
        %974 = vmatprep.mubr.bf16.mxu0 0
        %975 = vmatmul.mubr.bf16.gmra.mrb[0].mxu0 %v921
        %v976 = vpop.f32.mrb[0].mxu0
        %v977 = vadd.f32 %v611, %v976
        %v978 = vpop.f32.mrb[0].mxu0
        %v979 = vpop.f32.mrb[0].mxu0
        %v980 = vadd.f32 %v611, %v979
        %v981 = vpop.f32.mrb[0].mxu0
        %982 = vmatprep.mubr.bf16.mxu0 0
        %983 = vmatmul.mubr.bf16.gmra.mrb[0].mxu0 %v924
        %v984 = vpop.f32.mrb[0].mxu0
        %v985 = vadd.f32 %v611, %v984
        %v986 = vpop.f32.mrb[0].mxu0
        %v987 = vpop.f32.mrb[0].mxu0
        %v988 = vadd.f32 %v611, %v987
        %v989 = vpop.f32.mrb[0].mxu0
        %990 = vdwg.mxu0
        %v991 = vmax.f32 %v961, 0.0
        %v992 = vmax.f32 %v964, 0.0
        %v993 = vmax.f32 %v969, 0.0
        %v994 = vmax.f32 %v972, 0.0
        %v995 = vmax.f32 %v977, 0.0
        %v996 = vmax.f32 %v980, 0.0
        %v997 = vmax.f32 %v985, 0.0
        %v998 = vmax.f32 %v988, 0.0
        %s999 = scalar_lea.vmem %s499, 32 [#allocation6]
        %v1000 = vld [vmem:[%s999] sm:$0xf]
        %v1001 = vld [vmem:[%s999 + $0x4] sm:$0xf]
        %v1002 = vld [vmem:[%s999 + $0x8] sm:$0xf]
        %v1003 = vld [vmem:[%s999 + $0xc] sm:$0xf]
        %v1004 = vld [vmem:[%s999 + $0x10] sm:$0xf]
        %v1005 = vld [vmem:[%s999 + $0x14] sm:$0xf]
        %v1006 = vld [vmem:[%s999 + $0x18] sm:$0xf]
        %v1007 = vld [vmem:[%s999 + $0x1c] sm:$0xf]
        %v1016 = vunpack.c.l.b16 %v1000
        %v1017 = vunpack.c.l.b16 %v1001
        %v1018 = vunpack.c.l.b16 %v1002
        %v1019 = vunpack.c.l.b16 %v1003
        %v1020 = vunpack.c.l.b16 %v1004
        %v1021 = vunpack.c.l.b16 %v1005
        %v1022 = vunpack.c.l.b16 %v1006
        %v1023 = vunpack.c.l.b16 %v1007
        %v1024 = vpack.c.b16 %v1017, %v1016
        %v1025 = vpack.c.b16 %v1019, %v1018
        %v1026 = vpack.c.b16 %v1021, %v1020
        %v1027 = vpack.c.b16 %v1023, %v1022
        %v1029 = vsel %vm760, %v1024, 0
        %v1032 = vsel %vm760, %v1025, 0
        %v1035 = vsel %vm760, %v1026, 0
        %v1038 = vsel %vm760, %v1027, 0
        %1040 = vmatprep.subr.bf16.mxu0 0
        %1041 = vmatpush1.bf16.msra.mxu0 %v774
        %1042 = vmatprep.subr.bf16.mxu0 0
        %1043 = vmatpush1.bf16.msra.mxu0 0
        %1044 = vmatprep.subr.bf16.mxu0 0
        %1045 = vmatpush1.bf16.msra.mxu0 0
        %1046 = vmatprep.subr.bf16.mxu0 0
        %1047 = vmatpush1.bf16.msra.mxu0 0
        %1048 = vmatprep.subr.bf16.mxu0 0
        %1049 = vmatpush1.bf16.msra.mxu0 0
        %1050 = vmatprep.subr.bf16.mxu0 0
        %1051 = vmatpush1.bf16.msra.mxu0 0
        %1052 = vmatprep.subr.bf16.mxu0 0
        %1053 = vmatpush1.bf16.msra.mxu0 0
        %1054 = vmatprep.subr.bf16.mxu0 0
        %1055 = vmatpush1.bf16.msra.mxu0 0
        %1056 = vmatprep.subr.bf16.mxu0 0
        %1057 = vmatpush1.bf16.msra.mxu0 0
        %1058 = vmatprep.subr.bf16.mxu0 0
        %1059 = vmatpush1.bf16.msra.mxu0 0
        %1060 = vmatprep.subr.bf16.mxu0 0
        %1061 = vmatpush1.bf16.msra.mxu0 0
        %1062 = vmatprep.subr.bf16.mxu0 0
        %1063 = vmatpush1.bf16.msra.mxu0 0
        %1064 = vmatprep.subr.bf16.mxu0 0
        %1065 = vmatpush1.bf16.msra.mxu0 0
        %1066 = vmatprep.subr.bf16.mxu0 0
        %1067 = vmatpush1.bf16.msra.mxu0 0
        %1068 = vmatprep.subr.bf16.mxu0 0
        %1069 = vmatpush1.bf16.msra.mxu0 0
        %1070 = vmatprep.subr.bf16.mxu0 0
        %1071 = vmatpush1.bf16.msra.mxu0 0
        %1072 = vmatprep.mubr.bf16.mxu0 0
        %1073 = vmatmul.mubr.bf16.gmra.mrb[0].mxu0 %v1029
        %v1074 = vpop.f32.mrb[0].mxu0
        %v1075 = vadd.f32 %v738, %v1074
        %v1076 = vpop.f32.mrb[0].mxu0
        %v1077 = vpop.f32.mrb[0].mxu0
        %v1078 = vadd.f32 %v738, %v1077
        %v1079 = vpop.f32.mrb[0].mxu0
        %1080 = vmatprep.mubr.bf16.mxu0 0
        %1081 = vmatmul.mubr.bf16.gmra.mrb[0].mxu0 %v1032
        %v1082 = vpop.f32.mrb[0].mxu0
        %v1083 = vadd.f32 %v738, %v1082
        %v1084 = vpop.f32.mrb[0].mxu0
        %v1085 = vpop.f32.mrb[0].mxu0
        %v1086 = vadd.f32 %v738, %v1085
        %v1087 = vpop.f32.mrb[0].mxu0
        %1088 = vmatprep.mubr.bf16.mxu0 0
        %1089 = vmatmul.mubr.bf16.gmra.mrb[0].mxu0 %v1035
        %v1090 = vpop.f32.mrb[0].mxu0
        %v1091 = vadd.f32 %v738, %v1090
        %v1092 = vpop.f32.mrb[0].mxu0
        %v1093 = vpop.f32.mrb[0].mxu0
        %v1094 = vadd.f32 %v738, %v1093
        %v1095 = vpop.f32.mrb[0].mxu0
        %1096 = vmatprep.mubr.bf16.mxu0 0
        %1097 = vmatmul.mubr.bf16.gmra.mrb[0].mxu0 %v1038
        %v1098 = vpop.f32.mrb[0].mxu0
        %v1099 = vadd.f32 %v738, %v1098
        %v1100 = vpop.f32.mrb[0].mxu0
        %v1101 = vpop.f32.mrb[0].mxu0
        %v1102 = vadd.f32 %v738, %v1101
        %v1103 = vpop.f32.mrb[0].mxu0
        %1104 = vdwg.mxu0
        %v1105 = vmul.f32 %v1075, %v845
        %v1106 = vmul.f32 %v1078, %v845
        %v1107 = vmul.f32 %v1083, %v845
        %v1108 = vmul.f32 %v1086, %v845
        %v1109 = vmul.f32 %v1091, %v845
        %v1110 = vmul.f32 %v1094, %v845
        %v1111 = vmul.f32 %v1099, %v845
        %v1112 = vmul.f32 %v1102, %v845
        %v1113 = vadd.f32 %v1105, %v859
        %v1114 = vadd.f32 %v1106, %v859
        %v1115 = vadd.f32 %v1107, %v859
        %v1116 = vadd.f32 %v1108, %v859
        %v1117 = vadd.f32 %v1109, %v859
        %v1118 = vadd.f32 %v1110, %v859
        %v1119 = vadd.f32 %v1111, %v859
        %v1120 = vadd.f32 %v1112, %v859
        %v1121 = vmax.f32 %v1113, 0.0
        %v1122 = vmax.f32 %v1114, 0.0
        %v1123 = vmax.f32 %v1115, 0.0
        %v1124 = vmax.f32 %v1116, 0.0
        %v1125 = vmax.f32 %v1117, 0.0
        %v1126 = vmax.f32 %v1118, 0.0
        %v1127 = vmax.f32 %v1119, 0.0
        %v1128 = vmax.f32 %v1120, 0.0
        %v1129 = vmul.f32 %v991, %v1121
        %v1130 = vmul.f32 %v992, %v1122
        %v1131 = vmul.f32 %v993, %v1123
        %v1132 = vmul.f32 %v994, %v1124
        %v1133 = vmul.f32 %v995, %v1125
        %v1134 = vmul.f32 %v996, %v1126
        %v1135 = vmul.f32 %v997, %v1127
        %v1136 = vmul.f32 %v998, %v1128
        %v1137 = vmax.f32 %v877, %v1129
        %v1138 = vmax.f32 %v878, %v1130
        %v1139 = vmax.f32 %v879, %v1131
        %v1140 = vmax.f32 %v880, %v1132
        %v1141 = vmax.f32 %v881, %v1133
        %v1142 = vmax.f32 %v882, %v1134
        %v1143 = vmax.f32 %v883, %v1135
        %v1144 = vmax.f32 %v884, %v1136
        %s1145 = scalar_lea.vmem %s490, 64 [#allocation3]
        %v1146 = vld [vmem:[%s1145] sm:$0xf]
        %v1147 = vld [vmem:[%s1145 + $0x4] sm:$0xf]
        %v1148 = vld [vmem:[%s1145 + $0x8] sm:$0xf]
        %v1149 = vld [vmem:[%s1145 + $0xc] sm:$0xf]
        %v1150 = vld [vmem:[%s1145 + $0x10] sm:$0xf]
        %v1151 = vld [vmem:[%s1145 + $0x14] sm:$0xf]
        %v1152 = vld [vmem:[%s1145 + $0x18] sm:$0xf]
        %v1153 = vld [vmem:[%s1145 + $0x1c] sm:$0xf]
        %v1162 = vunpack.c.l.b16 %v1146
        %v1163 = vunpack.c.l.b16 %v1147
        %v1164 = vunpack.c.l.b16 %v1148
        %v1165 = vunpack.c.l.b16 %v1149
        %v1166 = vunpack.c.l.b16 %v1150
        %v1167 = vunpack.c.l.b16 %v1151
        %v1168 = vunpack.c.l.b16 %v1152
        %v1169 = vunpack.c.l.b16 %v1153
        %v1170 = vpack.c.b16 %v1163, %v1162
        %v1171 = vpack.c.b16 %v1165, %v1164
        %v1172 = vpack.c.b16 %v1167, %v1166
        %v1173 = vpack.c.b16 %v1169, %v1168
        %v1175 = vsel %vm633, %v1170, 0
        %v1178 = vsel %vm633, %v1171, 0
        %v1181 = vsel %vm633, %v1172, 0
        %v1184 = vsel %vm633, %v1173, 0
        %1186 = vmatprep.subr.bf16.mxu0 0
        %1187 = vmatpush1.bf16.msra.mxu0 %v651
        %1188 = vmatprep.subr.bf16.mxu0 0
        %1189 = vmatpush1.bf16.msra.mxu0 0
        %1190 = vmatprep.subr.bf16.mxu0 0
        %1191 = vmatpush1.bf16.msra.mxu0 0
        %1192 = vmatprep.subr.bf16.mxu0 0
        %1193 = vmatpush1.bf16.msra.mxu0 0
        %1194 = vmatprep.subr.bf16.mxu0 0
        %1195 = vmatpush1.bf16.msra.mxu0 0
        %1196 = vmatprep.subr.bf16.mxu0 0
        %1197 = vmatpush1.bf16.msra.mxu0 0
        %1198 = vmatprep.subr.bf16.mxu0 0
        %1199 = vmatpush1.bf16.msra.mxu0 0
        %1200 = vmatprep.subr.bf16.mxu0 0
        %1201 = vmatpush1.bf16.msra.mxu0 0
        %1202 = vmatprep.subr.bf16.mxu0 0
        %1203 = vmatpush1.bf16.msra.mxu0 0
        %1204 = vmatprep.subr.bf16.mxu0 0
        %1205 = vmatpush1.bf16.msra.mxu0 0
        %1206 = vmatprep.subr.bf16.mxu0 0
        %1207 = vmatpush1.bf16.msra.mxu0 0
        %1208 = vmatprep.subr.bf16.mxu0 0
        %1209 = vmatpush1.bf16.msra.mxu0 0
        %1210 = vmatprep.subr.bf16.mxu0 0
        %1211 = vmatpush1.bf16.msra.mxu0 0
        %1212 = vmatprep.subr.bf16.mxu0 0
        %1213 = vmatpush1.bf16.msra.mxu0 0
        %1214 = vmatprep.subr.bf16.mxu0 0
        %1215 = vmatpush1.bf16.msra.mxu0 0
        %1216 = vmatprep.subr.bf16.mxu0 0
        %1217 = vmatpush1.bf16.msra.mxu0 0
        %1218 = vmatprep.mubr.bf16.mxu0 0
        %1219 = vmatmul.mubr.bf16.gmra.mrb[0].mxu0 %v1175
        %v1220 = vpop.f32.mrb[0].mxu0
        %v1221 = vadd.f32 %v611, %v1220
        %v1222 = vpop.f32.mrb[0].mxu0
        %v1223 = vpop.f32.mrb[0].mxu0
        %v1224 = vadd.f32 %v611, %v1223
        %v1225 = vpop.f32.mrb[0].mxu0
        %1226 = vmatprep.mubr.bf16.mxu0 0
        %1227 = vmatmul.mubr.bf16.gmra.mrb[0].mxu0 %v1178
        %v1228 = vpop.f32.mrb[0].mxu0
        %v1229 = vadd.f32 %v611, %v1228
        %v1230 = vpop.f32.mrb[0].mxu0
        %v1231 = vpop.f32.mrb[0].mxu0
        %v1232 = vadd.f32 %v611, %v1231
        %v1233 = vpop.f32.mrb[0].mxu0
        %1234 = vmatprep.mubr.bf16.mxu0 0
        %1235 = vmatmul.mubr.bf16.gmra.mrb[0].mxu0 %v1181
        %v1236 = vpop.f32.mrb[0].mxu0
        %v1237 = vadd.f32 %v611, %v1236
        %v1238 = vpop.f32.mrb[0].mxu0
        %v1239 = vpop.f32.mrb[0].mxu0
        %v1240 = vadd.f32 %v611, %v1239
        %v1241 = vpop.f32.mrb[0].mxu0
        %1242 = vmatprep.mubr.bf16.mxu0 0
        %1243 = vmatmul.mubr.bf16.gmra.mrb[0].mxu0 %v1184
        %v1244 = vpop.f32.mrb[0].mxu0
        %v1245 = vadd.f32 %v611, %v1244
        %v1246 = vpop.f32.mrb[0].mxu0
        %v1247 = vpop.f32.mrb[0].mxu0
        %v1248 = vadd.f32 %v611, %v1247
        %v1249 = vpop.f32.mrb[0].mxu0
        %1250 = vdwg.mxu0
        %v1251 = vmax.f32 %v1221, 0.0
        %v1252 = vmax.f32 %v1224, 0.0
        %v1253 = vmax.f32 %v1229, 0.0
        %v1254 = vmax.f32 %v1232, 0.0
        %v1255 = vmax.f32 %v1237, 0.0
        %v1256 = vmax.f32 %v1240, 0.0
        %v1257 = vmax.f32 %v1245, 0.0
        %v1258 = vmax.f32 %v1248, 0.0
        %s1259 = scalar_lea.vmem %s499, 64 [#allocation6]
        %v1260 = vld [vmem:[%s1259] sm:$0xf]
        %v1261 = vld [vmem:[%s1259 + $0x4] sm:$0xf]
        %v1262 = vld [vmem:[%s1259 + $0x8] sm:$0xf]
        %v1263 = vld [vmem:[%s1259 + $0xc] sm:$0xf]
        %v1264 = vld [vmem:[%s1259 + $0x10] sm:$0xf]
        %v1265 = vld [vmem:[%s1259 + $0x14] sm:$0xf]
        %v1266 = vld [vmem:[%s1259 + $0x18] sm:$0xf]
        %v1267 = vld [vmem:[%s1259 + $0x1c] sm:$0xf]
        %v1276 = vunpack.c.l.b16 %v1260
        %v1277 = vunpack.c.l.b16 %v1261
        %v1278 = vunpack.c.l.b16 %v1262
        %v1279 = vunpack.c.l.b16 %v1263
        %v1280 = vunpack.c.l.b16 %v1264
        %v1281 = vunpack.c.l.b16 %v1265
        %v1282 = vunpack.c.l.b16 %v1266
        %v1283 = vunpack.c.l.b16 %v1267
        %v1284 = vpack.c.b16 %v1277, %v1276
        %v1285 = vpack.c.b16 %v1279, %v1278
        %v1286 = vpack.c.b16 %v1281, %v1280
        %v1287 = vpack.c.b16 %v1283, %v1282
        %v1289 = vsel %vm760, %v1284, 0
        %v1292 = vsel %vm760, %v1285, 0
        %v1295 = vsel %vm760, %v1286, 0
        %v1298 = vsel %vm760, %v1287, 0
        %1300 = vmatprep.subr.bf16.mxu0 0
        %1301 = vmatpush1.bf16.msra.mxu0 %v774
        %1302 = vmatprep.subr.bf16.mxu0 0
        %1303 = vmatpush1.bf16.msra.mxu0 0
        %1304 = vmatprep.subr.bf16.mxu0 0
        %1305 = vmatpush1.bf16.msra.mxu0 0
        %1306 = vmatprep.subr.bf16.mxu0 0
        %1307 = vmatpush1.bf16.msra.mxu0 0
        %1308 = vmatprep.subr.bf16.mxu0 0
        %1309 = vmatpush1.bf16.msra.mxu0 0
        %1310 = vmatprep.subr.bf16.mxu0 0
        %1311 = vmatpush1.bf16.msra.mxu0 0
        %1312 = vmatprep.subr.bf16.mxu0 0
        %1313 = vmatpush1.bf16.msra.mxu0 0
        %1314 = vmatprep.subr.bf16.mxu0 0
        %1315 = vmatpush1.bf16.msra.mxu0 0
        %1316 = vmatprep.subr.bf16.mxu0 0
        %1317 = vmatpush1.bf16.msra.mxu0 0
        %1318 = vmatprep.subr.bf16.mxu0 0
        %1319 = vmatpush1.bf16.msra.mxu0 0
        %1320 = vmatprep.subr.bf16.mxu0 0
        %1321 = vmatpush1.bf16.msra.mxu0 0
        %1322 = vmatprep.subr.bf16.mxu0 0
        %1323 = vmatpush1.bf16.msra.mxu0 0
        %1324 = vmatprep.subr.bf16.mxu0 0
        %1325 = vmatpush1.bf16.msra.mxu0 0
        %1326 = vmatprep.subr.bf16.mxu0 0
        %1327 = vmatpush1.bf16.msra.mxu0 0
        %1328 = vmatprep.subr.bf16.mxu0 0
        %1329 = vmatpush1.bf16.msra.mxu0 0
        %1330 = vmatprep.subr.bf16.mxu0 0
        %1331 = vmatpush1.bf16.msra.mxu0 0
        %1332 = vmatprep.mubr.bf16.mxu0 0
        %1333 = vmatmul.mubr.bf16.gmra.mrb[0].mxu0 %v1289
        %v1334 = vpop.f32.mrb[0].mxu0
        %v1335 = vadd.f32 %v738, %v1334
        %v1336 = vpop.f32.mrb[0].mxu0
        %v1337 = vpop.f32.mrb[0].mxu0
        %v1338 = vadd.f32 %v738, %v1337
        %v1339 = vpop.f32.mrb[0].mxu0
        %1340 = vmatprep.mubr.bf16.mxu0 0
        %1341 = vmatmul.mubr.bf16.gmra.mrb[0].mxu0 %v1292
        %v1342 = vpop.f32.mrb[0].mxu0
        %v1343 = vadd.f32 %v738, %v1342
        %v1344 = vpop.f32.mrb[0].mxu0
        %v1345 = vpop.f32.mrb[0].mxu0
        %v1346 = vadd.f32 %v738, %v1345
        %v1347 = vpop.f32.mrb[0].mxu0
        %1348 = vmatprep.mubr.bf16.mxu0 0
        %1349 = vmatmul.mubr.bf16.gmra.mrb[0].mxu0 %v1295
        %v1350 = vpop.f32.mrb[0].mxu0
        %v1351 = vadd.f32 %v738, %v1350
        %v1352 = vpop.f32.mrb[0].mxu0
        %v1353 = vpop.f32.mrb[0].mxu0
        %v1354 = vadd.f32 %v738, %v1353
        %v1355 = vpop.f32.mrb[0].mxu0
        %1356 = vmatprep.mubr.bf16.mxu0 0
        %1357 = vmatmul.mubr.bf16.gmra.mrb[0].mxu0 %v1298
        %v1358 = vpop.f32.mrb[0].mxu0
        %v1359 = vadd.f32 %v738, %v1358
        %v1360 = vpop.f32.mrb[0].mxu0
        %v1361 = vpop.f32.mrb[0].mxu0
        %v1362 = vadd.f32 %v738, %v1361
        %v1363 = vpop.f32.mrb[0].mxu0
        %1364 = vdwg.mxu0
        %v1365 = vmul.f32 %v1335, %v845
        %v1366 = vmul.f32 %v1338, %v845
        %v1367 = vmul.f32 %v1343, %v845
        %v1368 = vmul.f32 %v1346, %v845
        %v1369 = vmul.f32 %v1351, %v845
        %v1370 = vmul.f32 %v1354, %v845
        %v1371 = vmul.f32 %v1359, %v845
        %v1372 = vmul.f32 %v1362, %v845
        %v1373 = vadd.f32 %v1365, %v859
        %v1374 = vadd.f32 %v1366, %v859
        %v1375 = vadd.f32 %v1367, %v859
        %v1376 = vadd.f32 %v1368, %v859
        %v1377 = vadd.f32 %v1369, %v859
        %v1378 = vadd.f32 %v1370, %v859
        %v1379 = vadd.f32 %v1371, %v859
        %v1380 = vadd.f32 %v1372, %v859
        %v1381 = vmax.f32 %v1373, 0.0
        %v1382 = vmax.f32 %v1374, 0.0
        %v1383 = vmax.f32 %v1375, 0.0
        %v1384 = vmax.f32 %v1376, 0.0
        %v1385 = vmax.f32 %v1377, 0.0
        %v1386 = vmax.f32 %v1378, 0.0
        %v1387 = vmax.f32 %v1379, 0.0
        %v1388 = vmax.f32 %v1380, 0.0
        %v1389 = vmul.f32 %v1251, %v1381
        %v1390 = vmul.f32 %v1252, %v1382
        %v1391 = vmul.f32 %v1253, %v1383
        %v1392 = vmul.f32 %v1254, %v1384
        %v1393 = vmul.f32 %v1255, %v1385
        %v1394 = vmul.f32 %v1256, %v1386
        %v1395 = vmul.f32 %v1257, %v1387
        %v1396 = vmul.f32 %v1258, %v1388
        %v1397 = vmax.f32 %v1137, %v1389
        %v1398 = vmax.f32 %v1138, %v1390
        %v1399 = vmax.f32 %v1139, %v1391
        %v1400 = vmax.f32 %v1140, %v1392
        %v1401 = vmax.f32 %v1141, %v1393
        %v1402 = vmax.f32 %v1142, %v1394
        %v1403 = vmax.f32 %v1143, %v1395
        %v1404 = vmax.f32 %v1144, %v1396
        %s1405 = scalar_lea.vmem %s490, 96 [#allocation3]
        %v1406 = vld [vmem:[%s1405] sm:$0xf]
        %v1407 = vld [vmem:[%s1405 + $0x4] sm:$0xf]
        %v1408 = vld [vmem:[%s1405 + $0x8] sm:$0xf]
        %v1409 = vld [vmem:[%s1405 + $0xc] sm:$0xf]
        %v1410 = vld [vmem:[%s1405 + $0x10] sm:$0xf]
        %v1411 = vld [vmem:[%s1405 + $0x14] sm:$0xf]
        %v1412 = vld [vmem:[%s1405 + $0x18] sm:$0xf]
        %v1413 = vld [vmem:[%s1405 + $0x1c] sm:$0xf]
        %v1422 = vunpack.c.l.b16 %v1406
        %v1423 = vunpack.c.l.b16 %v1407
        %v1424 = vunpack.c.l.b16 %v1408
        %v1425 = vunpack.c.l.b16 %v1409
        %v1426 = vunpack.c.l.b16 %v1410
        %v1427 = vunpack.c.l.b16 %v1411
        %v1428 = vunpack.c.l.b16 %v1412
        %v1429 = vunpack.c.l.b16 %v1413
        %v1430 = vpack.c.b16 %v1423, %v1422
        %v1431 = vpack.c.b16 %v1425, %v1424
        %v1432 = vpack.c.b16 %v1427, %v1426
        %v1433 = vpack.c.b16 %v1429, %v1428
        %v1435 = vsel %vm633, %v1430, 0
        %v1438 = vsel %vm633, %v1431, 0
        %v1441 = vsel %vm633, %v1432, 0
        %v1444 = vsel %vm633, %v1433, 0
        %1446 = vmatprep.subr.bf16.mxu0 0
        %1447 = vmatpush1.bf16.msra.mxu0 %v651
        %1448 = vmatprep.subr.bf16.mxu0 0
        %1449 = vmatpush1.bf16.msra.mxu0 0
        %1450 = vmatprep.subr.bf16.mxu0 0
        %1451 = vmatpush1.bf16.msra.mxu0 0
        %1452 = vmatprep.subr.bf16.mxu0 0
        %1453 = vmatpush1.bf16.msra.mxu0 0
        %1454 = vmatprep.subr.bf16.mxu0 0
        %1455 = vmatpush1.bf16.msra.mxu0 0
        %1456 = vmatprep.subr.bf16.mxu0 0
        %1457 = vmatpush1.bf16.msra.mxu0 0
        %1458 = vmatprep.subr.bf16.mxu0 0
        %1459 = vmatpush1.bf16.msra.mxu0 0
        %1460 = vmatprep.subr.bf16.mxu0 0
        %1461 = vmatpush1.bf16.msra.mxu0 0
        %1462 = vmatprep.subr.bf16.mxu0 0
        %1463 = vmatpush1.bf16.msra.mxu0 0
        %1464 = vmatprep.subr.bf16.mxu0 0
        %1465 = vmatpush1.bf16.msra.mxu0 0
        %1466 = vmatprep.subr.bf16.mxu0 0
        %1467 = vmatpush1.bf16.msra.mxu0 0
        %1468 = vmatprep.subr.bf16.mxu0 0
        %1469 = vmatpush1.bf16.msra.mxu0 0
        %1470 = vmatprep.subr.bf16.mxu0 0
        %1471 = vmatpush1.bf16.msra.mxu0 0
        %1472 = vmatprep.subr.bf16.mxu0 0
        %1473 = vmatpush1.bf16.msra.mxu0 0
        %1474 = vmatprep.subr.bf16.mxu0 0
        %1475 = vmatpush1.bf16.msra.mxu0 0
        %1476 = vmatprep.subr.bf16.mxu0 0
        %1477 = vmatpush1.bf16.msra.mxu0 0
        %1478 = vmatprep.mubr.bf16.mxu0 0
        %1479 = vmatmul.mubr.bf16.gmra.mrb[0].mxu0 %v1435
        %v1480 = vpop.f32.mrb[0].mxu0
        %v1481 = vadd.f32 %v611, %v1480
        %v1482 = vpop.f32.mrb[0].mxu0
        %v1483 = vpop.f32.mrb[0].mxu0
        %v1484 = vadd.f32 %v611, %v1483
        %v1485 = vpop.f32.mrb[0].mxu0
        %1486 = vmatprep.mubr.bf16.mxu0 0
        %1487 = vmatmul.mubr.bf16.gmra.mrb[0].mxu0 %v1438
        %v1488 = vpop.f32.mrb[0].mxu0
        %v1489 = vadd.f32 %v611, %v1488
        %v1490 = vpop.f32.mrb[0].mxu0
        %v1491 = vpop.f32.mrb[0].mxu0
        %v1492 = vadd.f32 %v611, %v1491
        %v1493 = vpop.f32.mrb[0].mxu0
        %1494 = vmatprep.mubr.bf16.mxu0 0
        %1495 = vmatmul.mubr.bf16.gmra.mrb[0].mxu0 %v1441
        %v1496 = vpop.f32.mrb[0].mxu0
        %v1497 = vadd.f32 %v611, %v1496
        %v1498 = vpop.f32.mrb[0].mxu0
        %v1499 = vpop.f32.mrb[0].mxu0
        %v1500 = vadd.f32 %v611, %v1499
        %v1501 = vpop.f32.mrb[0].mxu0
        %1502 = vmatprep.mubr.bf16.mxu0 0
        %1503 = vmatmul.mubr.bf16.gmra.mrb[0].mxu0 %v1444
        %v1504 = vpop.f32.mrb[0].mxu0
        %v1505 = vadd.f32 %v611, %v1504
        %v1506 = vpop.f32.mrb[0].mxu0
        %v1507 = vpop.f32.mrb[0].mxu0
        %v1508 = vadd.f32 %v611, %v1507
        %v1509 = vpop.f32.mrb[0].mxu0
        %1510 = vdwg.mxu0
        %v1511 = vmax.f32 %v1481, 0.0
        %v1512 = vmax.f32 %v1484, 0.0
        %v1513 = vmax.f32 %v1489, 0.0
        %v1514 = vmax.f32 %v1492, 0.0
        %v1515 = vmax.f32 %v1497, 0.0
        %v1516 = vmax.f32 %v1500, 0.0
        %v1517 = vmax.f32 %v1505, 0.0
        %v1518 = vmax.f32 %v1508, 0.0
        %s1519 = scalar_lea.vmem %s499, 96 [#allocation6]
        %v1520 = vld [vmem:[%s1519] sm:$0xf]
        %v1521 = vld [vmem:[%s1519 + $0x4] sm:$0xf]
        %v1522 = vld [vmem:[%s1519 + $0x8] sm:$0xf]
        %v1523 = vld [vmem:[%s1519 + $0xc] sm:$0xf]
        %v1524 = vld [vmem:[%s1519 + $0x10] sm:$0xf]
        %v1525 = vld [vmem:[%s1519 + $0x14] sm:$0xf]
        %v1526 = vld [vmem:[%s1519 + $0x18] sm:$0xf]
        %v1527 = vld [vmem:[%s1519 + $0x1c] sm:$0xf]
        %v1536 = vunpack.c.l.b16 %v1520
        %v1537 = vunpack.c.l.b16 %v1521
        %v1538 = vunpack.c.l.b16 %v1522
        %v1539 = vunpack.c.l.b16 %v1523
        %v1540 = vunpack.c.l.b16 %v1524
        %v1541 = vunpack.c.l.b16 %v1525
        %v1542 = vunpack.c.l.b16 %v1526
        %v1543 = vunpack.c.l.b16 %v1527
        %v1544 = vpack.c.b16 %v1537, %v1536
        %v1545 = vpack.c.b16 %v1539, %v1538
        %v1546 = vpack.c.b16 %v1541, %v1540
        %v1547 = vpack.c.b16 %v1543, %v1542
        %v1549 = vsel %vm760, %v1544, 0
        %v1552 = vsel %vm760, %v1545, 0
        %v1555 = vsel %vm760, %v1546, 0
        %v1558 = vsel %vm760, %v1547, 0
        %1560 = vmatprep.subr.bf16.mxu0 0
        %1561 = vmatpush1.bf16.msra.mxu0 %v774
        %1562 = vmatprep.subr.bf16.mxu0 0
        %1563 = vmatpush1.bf16.msra.mxu0 0
        %1564 = vmatprep.subr.bf16.mxu0 0
        %1565 = vmatpush1.bf16.msra.mxu0 0
        %1566 = vmatprep.subr.bf16.mxu0 0
        %1567 = vmatpush1.bf16.msra.mxu0 0
        %1568 = vmatprep.subr.bf16.mxu0 0
        %1569 = vmatpush1.bf16.msra.mxu0 0
        %1570 = vmatprep.subr.bf16.mxu0 0
        %1571 = vmatpush1.bf16.msra.mxu0 0
        %1572 = vmatprep.subr.bf16.mxu0 0
        %1573 = vmatpush1.bf16.msra.mxu0 0
        %1574 = vmatprep.subr.bf16.mxu0 0
        %1575 = vmatpush1.bf16.msra.mxu0 0
        %1576 = vmatprep.subr.bf16.mxu0 0
        %1577 = vmatpush1.bf16.msra.mxu0 0
        %1578 = vmatprep.subr.bf16.mxu0 0
        %1579 = vmatpush1.bf16.msra.mxu0 0
        %1580 = vmatprep.subr.bf16.mxu0 0
        %1581 = vmatpush1.bf16.msra.mxu0 0
        %1582 = vmatprep.subr.bf16.mxu0 0
        %1583 = vmatpush1.bf16.msra.mxu0 0
        %1584 = vmatprep.subr.bf16.mxu0 0
        %1585 = vmatpush1.bf16.msra.mxu0 0
        %1586 = vmatprep.subr.bf16.mxu0 0
        %1587 = vmatpush1.bf16.msra.mxu0 0
        %1588 = vmatprep.subr.bf16.mxu0 0
        %1589 = vmatpush1.bf16.msra.mxu0 0
        %1590 = vmatprep.subr.bf16.mxu0 0
        %1591 = vmatpush1.bf16.msra.mxu0 0
        %1592 = vmatprep.mubr.bf16.mxu0 0
        %1593 = vmatmul.mubr.bf16.gmra.mrb[0].mxu0 %v1549
        %v1594 = vpop.f32.mrb[0].mxu0
        %v1595 = vadd.f32 %v738, %v1594
        %v1596 = vpop.f32.mrb[0].mxu0
        %v1597 = vpop.f32.mrb[0].mxu0
        %v1598 = vadd.f32 %v738, %v1597
        %v1599 = vpop.f32.mrb[0].mxu0
        %1600 = vmatprep.mubr.bf16.mxu0 0
        %1601 = vmatmul.mubr.bf16.gmra.mrb[0].mxu0 %v1552
        %v1602 = vpop.f32.mrb[0].mxu0
        %v1603 = vadd.f32 %v738, %v1602
        %v1604 = vpop.f32.mrb[0].mxu0
        %v1605 = vpop.f32.mrb[0].mxu0
        %v1606 = vadd.f32 %v738, %v1605
        %v1607 = vpop.f32.mrb[0].mxu0
        %1608 = vmatprep.mubr.bf16.mxu0 0
        %1609 = vmatmul.mubr.bf16.gmra.mrb[0].mxu0 %v1555
        %v1610 = vpop.f32.mrb[0].mxu0
        %v1611 = vadd.f32 %v738, %v1610
        %v1612 = vpop.f32.mrb[0].mxu0
        %v1613 = vpop.f32.mrb[0].mxu0
        %v1614 = vadd.f32 %v738, %v1613
        %v1615 = vpop.f32.mrb[0].mxu0
        %1616 = vmatprep.mubr.bf16.mxu0 0
        %1617 = vmatmul.mubr.bf16.gmra.mrb[0].mxu0 %v1558
        %v1618 = vpop.f32.mrb[0].mxu0
        %v1619 = vadd.f32 %v738, %v1618
        %v1620 = vpop.f32.mrb[0].mxu0
        %v1621 = vpop.f32.mrb[0].mxu0
        %v1622 = vadd.f32 %v738, %v1621
        %v1623 = vpop.f32.mrb[0].mxu0
        %1624 = vdwg.mxu0
        %v1625 = vmul.f32 %v1595, %v845
        %v1626 = vmul.f32 %v1598, %v845
        %v1627 = vmul.f32 %v1603, %v845
        %v1628 = vmul.f32 %v1606, %v845
        %v1629 = vmul.f32 %v1611, %v845
        %v1630 = vmul.f32 %v1614, %v845
        %v1631 = vmul.f32 %v1619, %v845
        %v1632 = vmul.f32 %v1622, %v845
        %v1633 = vadd.f32 %v1625, %v859
        %v1634 = vadd.f32 %v1626, %v859
        %v1635 = vadd.f32 %v1627, %v859
        %v1636 = vadd.f32 %v1628, %v859
        %v1637 = vadd.f32 %v1629, %v859
        %v1638 = vadd.f32 %v1630, %v859
        %v1639 = vadd.f32 %v1631, %v859
        %v1640 = vadd.f32 %v1632, %v859
        %v1641 = vmax.f32 %v1633, 0.0
        %v1642 = vmax.f32 %v1634, 0.0
        %v1643 = vmax.f32 %v1635, 0.0
        %v1644 = vmax.f32 %v1636, 0.0
        %v1645 = vmax.f32 %v1637, 0.0
        %v1646 = vmax.f32 %v1638, 0.0
        %v1647 = vmax.f32 %v1639, 0.0
        %v1648 = vmax.f32 %v1640, 0.0
        %v1649 = vmul.f32 %v1511, %v1641
        %v1650 = vmul.f32 %v1512, %v1642
        %v1651 = vmul.f32 %v1513, %v1643
        %v1652 = vmul.f32 %v1514, %v1644
        %v1653 = vmul.f32 %v1515, %v1645
        %v1654 = vmul.f32 %v1516, %v1646
        %v1655 = vmul.f32 %v1517, %v1647
        %v1656 = vmul.f32 %v1518, %v1648
        %v1657 = vmax.f32 %v1397, %v1649
        %v1658 = vmax.f32 %v1398, %v1650
        %v1659 = vmax.f32 %v1399, %v1651
        %v1660 = vmax.f32 %v1400, %v1652
        %v1661 = vmax.f32 %v1401, %v1653
        %v1662 = vmax.f32 %v1402, %v1654
        %v1663 = vmax.f32 %v1403, %v1655
        %v1664 = vmax.f32 %v1404, %v1656
        %s1665 = scalar_lea.vmem %s490, 128 [#allocation3]
        %v1666 = vld [vmem:[%s1665] sm:$0xf]
        %v1667 = vld [vmem:[%s1665 + $0x4] sm:$0xf]
        %v1668 = vld [vmem:[%s1665 + $0x8] sm:$0xf]
        %v1669 = vld [vmem:[%s1665 + $0xc] sm:$0xf]
        %v1670 = vld [vmem:[%s1665 + $0x10] sm:$0xf]
        %v1671 = vld [vmem:[%s1665 + $0x14] sm:$0xf]
        %v1672 = vld [vmem:[%s1665 + $0x18] sm:$0xf]
        %v1673 = vld [vmem:[%s1665 + $0x1c] sm:$0xf]
        %v1682 = vunpack.c.l.b16 %v1666
        %v1683 = vunpack.c.l.b16 %v1667
        %v1684 = vunpack.c.l.b16 %v1668
        %v1685 = vunpack.c.l.b16 %v1669
        %v1686 = vunpack.c.l.b16 %v1670
        %v1687 = vunpack.c.l.b16 %v1671
        %v1688 = vunpack.c.l.b16 %v1672
        %v1689 = vunpack.c.l.b16 %v1673
        %v1690 = vpack.c.b16 %v1683, %v1682
        %v1691 = vpack.c.b16 %v1685, %v1684
        %v1692 = vpack.c.b16 %v1687, %v1686
        %v1693 = vpack.c.b16 %v1689, %v1688
        %v1695 = vsel %vm633, %v1690, 0
        %v1698 = vsel %vm633, %v1691, 0
        %v1701 = vsel %vm633, %v1692, 0
        %v1704 = vsel %vm633, %v1693, 0
        %1706 = vmatprep.subr.bf16.mxu0 0
        %1707 = vmatpush1.bf16.msra.mxu0 %v651
        %1708 = vmatprep.subr.bf16.mxu0 0
        %1709 = vmatpush1.bf16.msra.mxu0 0
        %1710 = vmatprep.subr.bf16.mxu0 0
        %1711 = vmatpush1.bf16.msra.mxu0 0
        %1712 = vmatprep.subr.bf16.mxu0 0
        %1713 = vmatpush1.bf16.msra.mxu0 0
        %1714 = vmatprep.subr.bf16.mxu0 0
        %1715 = vmatpush1.bf16.msra.mxu0 0
        %1716 = vmatprep.subr.bf16.mxu0 0
        %1717 = vmatpush1.bf16.msra.mxu0 0
        %1718 = vmatprep.subr.bf16.mxu0 0
        %1719 = vmatpush1.bf16.msra.mxu0 0
        %1720 = vmatprep.subr.bf16.mxu0 0
        %1721 = vmatpush1.bf16.msra.mxu0 0
        %1722 = vmatprep.subr.bf16.mxu0 0
        %1723 = vmatpush1.bf16.msra.mxu0 0
        %1724 = vmatprep.subr.bf16.mxu0 0
        %1725 = vmatpush1.bf16.msra.mxu0 0
        %1726 = vmatprep.subr.bf16.mxu0 0
        %1727 = vmatpush1.bf16.msra.mxu0 0
        %1728 = vmatprep.subr.bf16.mxu0 0
        %1729 = vmatpush1.bf16.msra.mxu0 0
        %1730 = vmatprep.subr.bf16.mxu0 0
        %1731 = vmatpush1.bf16.msra.mxu0 0
        %1732 = vmatprep.subr.bf16.mxu0 0
        %1733 = vmatpush1.bf16.msra.mxu0 0
        %1734 = vmatprep.subr.bf16.mxu0 0
        %1735 = vmatpush1.bf16.msra.mxu0 0
        %1736 = vmatprep.subr.bf16.mxu0 0
        %1737 = vmatpush1.bf16.msra.mxu0 0
        %1738 = vmatprep.mubr.bf16.mxu0 0
        %1739 = vmatmul.mubr.bf16.gmra.mrb[0].mxu0 %v1695
        %v1740 = vpop.f32.mrb[0].mxu0
        %v1741 = vadd.f32 %v611, %v1740
        %v1742 = vpop.f32.mrb[0].mxu0
        %v1743 = vpop.f32.mrb[0].mxu0
        %v1744 = vadd.f32 %v611, %v1743
        %v1745 = vpop.f32.mrb[0].mxu0
        %1746 = vmatprep.mubr.bf16.mxu0 0
        %1747 = vmatmul.mubr.bf16.gmra.mrb[0].mxu0 %v1698
        %v1748 = vpop.f32.mrb[0].mxu0
        %v1749 = vadd.f32 %v611, %v1748
        %v1750 = vpop.f32.mrb[0].mxu0
        %v1751 = vpop.f32.mrb[0].mxu0
        %v1752 = vadd.f32 %v611, %v1751
        %v1753 = vpop.f32.mrb[0].mxu0
        %1754 = vmatprep.mubr.bf16.mxu0 0
        %1755 = vmatmul.mubr.bf16.gmra.mrb[0].mxu0 %v1701
        %v1756 = vpop.f32.mrb[0].mxu0
        %v1757 = vadd.f32 %v611, %v1756
        %v1758 = vpop.f32.mrb[0].mxu0
        %v1759 = vpop.f32.mrb[0].mxu0
        %v1760 = vadd.f32 %v611, %v1759
        %v1761 = vpop.f32.mrb[0].mxu0
        %1762 = vmatprep.mubr.bf16.mxu0 0
        %1763 = vmatmul.mubr.bf16.gmra.mrb[0].mxu0 %v1704
        %v1764 = vpop.f32.mrb[0].mxu0
        %v1765 = vadd.f32 %v611, %v1764
        %v1766 = vpop.f32.mrb[0].mxu0
        %v1767 = vpop.f32.mrb[0].mxu0
        %v1768 = vadd.f32 %v611, %v1767
        %v1769 = vpop.f32.mrb[0].mxu0
        %1770 = vdwg.mxu0
        %v1771 = vmax.f32 %v1741, 0.0
        %v1772 = vmax.f32 %v1744, 0.0
        %v1773 = vmax.f32 %v1749, 0.0
        %v1774 = vmax.f32 %v1752, 0.0
        %v1775 = vmax.f32 %v1757, 0.0
        %v1776 = vmax.f32 %v1760, 0.0
        %v1777 = vmax.f32 %v1765, 0.0
        %v1778 = vmax.f32 %v1768, 0.0
        %s1779 = scalar_lea.vmem %s499, 128 [#allocation6]
        %v1780 = vld [vmem:[%s1779] sm:$0xf]
        %v1781 = vld [vmem:[%s1779 + $0x4] sm:$0xf]
        %v1782 = vld [vmem:[%s1779 + $0x8] sm:$0xf]
        %v1783 = vld [vmem:[%s1779 + $0xc] sm:$0xf]
        %v1784 = vld [vmem:[%s1779 + $0x10] sm:$0xf]
        %v1785 = vld [vmem:[%s1779 + $0x14] sm:$0xf]
        %v1786 = vld [vmem:[%s1779 + $0x18] sm:$0xf]
        %v1787 = vld [vmem:[%s1779 + $0x1c] sm:$0xf]
        %v1796 = vunpack.c.l.b16 %v1780
        %v1797 = vunpack.c.l.b16 %v1781
        %v1798 = vunpack.c.l.b16 %v1782
        %v1799 = vunpack.c.l.b16 %v1783
        %v1800 = vunpack.c.l.b16 %v1784
        %v1801 = vunpack.c.l.b16 %v1785
        %v1802 = vunpack.c.l.b16 %v1786
        %v1803 = vunpack.c.l.b16 %v1787
        %v1804 = vpack.c.b16 %v1797, %v1796
        %v1805 = vpack.c.b16 %v1799, %v1798
        %v1806 = vpack.c.b16 %v1801, %v1800
        %v1807 = vpack.c.b16 %v1803, %v1802
        %v1809 = vsel %vm760, %v1804, 0
        %v1812 = vsel %vm760, %v1805, 0
        %v1815 = vsel %vm760, %v1806, 0
        %v1818 = vsel %vm760, %v1807, 0
        %1820 = vmatprep.subr.bf16.mxu0 0
        %1821 = vmatpush1.bf16.msra.mxu0 %v774
        %1822 = vmatprep.subr.bf16.mxu0 0
        %1823 = vmatpush1.bf16.msra.mxu0 0
        %1824 = vmatprep.subr.bf16.mxu0 0
        %1825 = vmatpush1.bf16.msra.mxu0 0
        %1826 = vmatprep.subr.bf16.mxu0 0
        %1827 = vmatpush1.bf16.msra.mxu0 0
        %1828 = vmatprep.subr.bf16.mxu0 0
        %1829 = vmatpush1.bf16.msra.mxu0 0
        %1830 = vmatprep.subr.bf16.mxu0 0
        %1831 = vmatpush1.bf16.msra.mxu0 0
        %1832 = vmatprep.subr.bf16.mxu0 0
        %1833 = vmatpush1.bf16.msra.mxu0 0
        %1834 = vmatprep.subr.bf16.mxu0 0
        %1835 = vmatpush1.bf16.msra.mxu0 0
        %1836 = vmatprep.subr.bf16.mxu0 0
        %1837 = vmatpush1.bf16.msra.mxu0 0
        %1838 = vmatprep.subr.bf16.mxu0 0
        %1839 = vmatpush1.bf16.msra.mxu0 0
        %1840 = vmatprep.subr.bf16.mxu0 0
        %1841 = vmatpush1.bf16.msra.mxu0 0
        %1842 = vmatprep.subr.bf16.mxu0 0
        %1843 = vmatpush1.bf16.msra.mxu0 0
        %1844 = vmatprep.subr.bf16.mxu0 0
        %1845 = vmatpush1.bf16.msra.mxu0 0
        %1846 = vmatprep.subr.bf16.mxu0 0
        %1847 = vmatpush1.bf16.msra.mxu0 0
        %1848 = vmatprep.subr.bf16.mxu0 0
        %1849 = vmatpush1.bf16.msra.mxu0 0
        %1850 = vmatprep.subr.bf16.mxu0 0
        %1851 = vmatpush1.bf16.msra.mxu0 0
        %1852 = vmatprep.mubr.bf16.mxu0 0
        %1853 = vmatmul.mubr.bf16.gmra.mrb[0].mxu0 %v1809
        %v1854 = vpop.f32.mrb[0].mxu0
        %v1855 = vadd.f32 %v738, %v1854
        %v1856 = vpop.f32.mrb[0].mxu0
        %v1857 = vpop.f32.mrb[0].mxu0
        %v1858 = vadd.f32 %v738, %v1857
        %v1859 = vpop.f32.mrb[0].mxu0
        %1860 = vmatprep.mubr.bf16.mxu0 0
        %1861 = vmatmul.mubr.bf16.gmra.mrb[0].mxu0 %v1812
        %v1862 = vpop.f32.mrb[0].mxu0
        %v1863 = vadd.f32 %v738, %v1862
        %v1864 = vpop.f32.mrb[0].mxu0
        %v1865 = vpop.f32.mrb[0].mxu0
        %v1866 = vadd.f32 %v738, %v1865
        %v1867 = vpop.f32.mrb[0].mxu0
        %1868 = vmatprep.mubr.bf16.mxu0 0
        %1869 = vmatmul.mubr.bf16.gmra.mrb[0].mxu0 %v1815
        %v1870 = vpop.f32.mrb[0].mxu0
        %v1871 = vadd.f32 %v738, %v1870
        %v1872 = vpop.f32.mrb[0].mxu0
        %v1873 = vpop.f32.mrb[0].mxu0
        %v1874 = vadd.f32 %v738, %v1873
        %v1875 = vpop.f32.mrb[0].mxu0
        %1876 = vmatprep.mubr.bf16.mxu0 0
        %1877 = vmatmul.mubr.bf16.gmra.mrb[0].mxu0 %v1818
        %v1878 = vpop.f32.mrb[0].mxu0
        %v1879 = vadd.f32 %v738, %v1878
        %v1880 = vpop.f32.mrb[0].mxu0
        %v1881 = vpop.f32.mrb[0].mxu0
        %v1882 = vadd.f32 %v738, %v1881
        %v1883 = vpop.f32.mrb[0].mxu0
        %1884 = vdwg.mxu0
        %v1885 = vmul.f32 %v1855, %v845
        %v1886 = vmul.f32 %v1858, %v845
        %v1887 = vmul.f32 %v1863, %v845
        %v1888 = vmul.f32 %v1866, %v845
        %v1889 = vmul.f32 %v1871, %v845
        %v1890 = vmul.f32 %v1874, %v845
        %v1891 = vmul.f32 %v1879, %v845
        %v1892 = vmul.f32 %v1882, %v845
        %v1893 = vadd.f32 %v1885, %v859
        %v1894 = vadd.f32 %v1886, %v859
        %v1895 = vadd.f32 %v1887, %v859
        %v1896 = vadd.f32 %v1888, %v859
        %v1897 = vadd.f32 %v1889, %v859
        %v1898 = vadd.f32 %v1890, %v859
        %v1899 = vadd.f32 %v1891, %v859
        %v1900 = vadd.f32 %v1892, %v859
        %v1901 = vmax.f32 %v1893, 0.0
        %v1902 = vmax.f32 %v1894, 0.0
        %v1903 = vmax.f32 %v1895, 0.0
        %v1904 = vmax.f32 %v1896, 0.0
        %v1905 = vmax.f32 %v1897, 0.0
        %v1906 = vmax.f32 %v1898, 0.0
        %v1907 = vmax.f32 %v1899, 0.0
        %v1908 = vmax.f32 %v1900, 0.0
        %v1909 = vmul.f32 %v1771, %v1901
        %v1910 = vmul.f32 %v1772, %v1902
        %v1911 = vmul.f32 %v1773, %v1903
        %v1912 = vmul.f32 %v1774, %v1904
        %v1913 = vmul.f32 %v1775, %v1905
        %v1914 = vmul.f32 %v1776, %v1906
        %v1915 = vmul.f32 %v1777, %v1907
        %v1916 = vmul.f32 %v1778, %v1908
        %v1917 = vmax.f32 %v1657, %v1909
        %v1918 = vmax.f32 %v1658, %v1910
        %v1919 = vmax.f32 %v1659, %v1911
        %v1920 = vmax.f32 %v1660, %v1912
        %v1921 = vmax.f32 %v1661, %v1913
        %v1922 = vmax.f32 %v1662, %v1914
        %v1923 = vmax.f32 %v1663, %v1915
        %v1924 = vmax.f32 %v1664, %v1916
        %s1925 = scalar_lea.vmem %s490, 160 [#allocation3]
        %v1926 = vld [vmem:[%s1925] sm:$0xf]
        %v1927 = vld [vmem:[%s1925 + $0x4] sm:$0xf]
        %v1928 = vld [vmem:[%s1925 + $0x8] sm:$0xf]
        %v1929 = vld [vmem:[%s1925 + $0xc] sm:$0xf]
        %v1930 = vld [vmem:[%s1925 + $0x10] sm:$0xf]
        %v1931 = vld [vmem:[%s1925 + $0x14] sm:$0xf]
        %v1932 = vld [vmem:[%s1925 + $0x18] sm:$0xf]
        %v1933 = vld [vmem:[%s1925 + $0x1c] sm:$0xf]
        %v1942 = vunpack.c.l.b16 %v1926
        %v1943 = vunpack.c.l.b16 %v1927
        %v1944 = vunpack.c.l.b16 %v1928
        %v1945 = vunpack.c.l.b16 %v1929
        %v1946 = vunpack.c.l.b16 %v1930
        %v1947 = vunpack.c.l.b16 %v1931
        %v1948 = vunpack.c.l.b16 %v1932
        %v1949 = vunpack.c.l.b16 %v1933
        %v1950 = vpack.c.b16 %v1943, %v1942
        %v1951 = vpack.c.b16 %v1945, %v1944
        %v1952 = vpack.c.b16 %v1947, %v1946
        %v1953 = vpack.c.b16 %v1949, %v1948
        %v1955 = vsel %vm633, %v1950, 0
        %v1958 = vsel %vm633, %v1951, 0
        %v1961 = vsel %vm633, %v1952, 0
        %v1964 = vsel %vm633, %v1953, 0
        %1966 = vmatprep.subr.bf16.mxu0 0
        %1967 = vmatpush1.bf16.msra.mxu0 %v651
        %1968 = vmatprep.subr.bf16.mxu0 0
        %1969 = vmatpush1.bf16.msra.mxu0 0
        %1970 = vmatprep.subr.bf16.mxu0 0
        %1971 = vmatpush1.bf16.msra.mxu0 0
        %1972 = vmatprep.subr.bf16.mxu0 0
        %1973 = vmatpush1.bf16.msra.mxu0 0
        %1974 = vmatprep.subr.bf16.mxu0 0
        %1975 = vmatpush1.bf16.msra.mxu0 0
        %1976 = vmatprep.subr.bf16.mxu0 0
        %1977 = vmatpush1.bf16.msra.mxu0 0
        %1978 = vmatprep.subr.bf16.mxu0 0
        %1979 = vmatpush1.bf16.msra.mxu0 0
        %1980 = vmatprep.subr.bf16.mxu0 0
        %1981 = vmatpush1.bf16.msra.mxu0 0
        %1982 = vmatprep.subr.bf16.mxu0 0
        %1983 = vmatpush1.bf16.msra.mxu0 0
        %1984 = vmatprep.subr.bf16.mxu0 0
        %1985 = vmatpush1.bf16.msra.mxu0 0
        %1986 = vmatprep.subr.bf16.mxu0 0
        %1987 = vmatpush1.bf16.msra.mxu0 0
        %1988 = vmatprep.subr.bf16.mxu0 0
        %1989 = vmatpush1.bf16.msra.mxu0 0
        %1990 = vmatprep.subr.bf16.mxu0 0
        %1991 = vmatpush1.bf16.msra.mxu0 0
        %1992 = vmatprep.subr.bf16.mxu0 0
        %1993 = vmatpush1.bf16.msra.mxu0 0
        %1994 = vmatprep.subr.bf16.mxu0 0
        %1995 = vmatpush1.bf16.msra.mxu0 0
        %1996 = vmatprep.subr.bf16.mxu0 0
        %1997 = vmatpush1.bf16.msra.mxu0 0
        %1998 = vmatprep.mubr.bf16.mxu0 0
        %1999 = vmatmul.mubr.bf16.gmra.mrb[0].mxu0 %v1955
        %v2000 = vpop.f32.mrb[0].mxu0
        %v2001 = vadd.f32 %v611, %v2000
        %v2002 = vpop.f32.mrb[0].mxu0
        %v2003 = vpop.f32.mrb[0].mxu0
        %v2004 = vadd.f32 %v611, %v2003
        %v2005 = vpop.f32.mrb[0].mxu0
        %2006 = vmatprep.mubr.bf16.mxu0 0
        %2007 = vmatmul.mubr.bf16.gmra.mrb[0].mxu0 %v1958
        %v2008 = vpop.f32.mrb[0].mxu0
        %v2009 = vadd.f32 %v611, %v2008
        %v2010 = vpop.f32.mrb[0].mxu0
        %v2011 = vpop.f32.mrb[0].mxu0
        %v2012 = vadd.f32 %v611, %v2011
        %v2013 = vpop.f32.mrb[0].mxu0
        %2014 = vmatprep.mubr.bf16.mxu0 0
        %2015 = vmatmul.mubr.bf16.gmra.mrb[0].mxu0 %v1961
        %v2016 = vpop.f32.mrb[0].mxu0
        %v2017 = vadd.f32 %v611, %v2016
        %v2018 = vpop.f32.mrb[0].mxu0
        %v2019 = vpop.f32.mrb[0].mxu0
        %v2020 = vadd.f32 %v611, %v2019
        %v2021 = vpop.f32.mrb[0].mxu0
        %2022 = vmatprep.mubr.bf16.mxu0 0
        %2023 = vmatmul.mubr.bf16.gmra.mrb[0].mxu0 %v1964
        %v2024 = vpop.f32.mrb[0].mxu0
        %v2025 = vadd.f32 %v611, %v2024
        %v2026 = vpop.f32.mrb[0].mxu0
        %v2027 = vpop.f32.mrb[0].mxu0
        %v2028 = vadd.f32 %v611, %v2027
        %v2029 = vpop.f32.mrb[0].mxu0
        %2030 = vdwg.mxu0
        %v2031 = vmax.f32 %v2001, 0.0
        %v2032 = vmax.f32 %v2004, 0.0
        %v2033 = vmax.f32 %v2009, 0.0
        %v2034 = vmax.f32 %v2012, 0.0
        %v2035 = vmax.f32 %v2017, 0.0
        %v2036 = vmax.f32 %v2020, 0.0
        %v2037 = vmax.f32 %v2025, 0.0
        %v2038 = vmax.f32 %v2028, 0.0
        %s2039 = scalar_lea.vmem %s499, 160 [#allocation6]
        %v2040 = vld [vmem:[%s2039] sm:$0xf]
        %v2041 = vld [vmem:[%s2039 + $0x4] sm:$0xf]
        %v2042 = vld [vmem:[%s2039 + $0x8] sm:$0xf]
        %v2043 = vld [vmem:[%s2039 + $0xc] sm:$0xf]
        %v2044 = vld [vmem:[%s2039 + $0x10] sm:$0xf]
        %v2045 = vld [vmem:[%s2039 + $0x14] sm:$0xf]
        %v2046 = vld [vmem:[%s2039 + $0x18] sm:$0xf]
        %v2047 = vld [vmem:[%s2039 + $0x1c] sm:$0xf]
        %v2056 = vunpack.c.l.b16 %v2040
        %v2057 = vunpack.c.l.b16 %v2041
        %v2058 = vunpack.c.l.b16 %v2042
        %v2059 = vunpack.c.l.b16 %v2043
        %v2060 = vunpack.c.l.b16 %v2044
        %v2061 = vunpack.c.l.b16 %v2045
        %v2062 = vunpack.c.l.b16 %v2046
        %v2063 = vunpack.c.l.b16 %v2047
        %v2064 = vpack.c.b16 %v2057, %v2056
        %v2065 = vpack.c.b16 %v2059, %v2058
        %v2066 = vpack.c.b16 %v2061, %v2060
        %v2067 = vpack.c.b16 %v2063, %v2062
        %v2069 = vsel %vm760, %v2064, 0
        %v2072 = vsel %vm760, %v2065, 0
        %v2075 = vsel %vm760, %v2066, 0
        %v2078 = vsel %vm760, %v2067, 0
        %2080 = vmatprep.subr.bf16.mxu0 0
        %2081 = vmatpush1.bf16.msra.mxu0 %v774
        %2082 = vmatprep.subr.bf16.mxu0 0
        %2083 = vmatpush1.bf16.msra.mxu0 0
        %2084 = vmatprep.subr.bf16.mxu0 0
        %2085 = vmatpush1.bf16.msra.mxu0 0
        %2086 = vmatprep.subr.bf16.mxu0 0
        %2087 = vmatpush1.bf16.msra.mxu0 0
        %2088 = vmatprep.subr.bf16.mxu0 0
        %2089 = vmatpush1.bf16.msra.mxu0 0
        %2090 = vmatprep.subr.bf16.mxu0 0
        %2091 = vmatpush1.bf16.msra.mxu0 0
        %2092 = vmatprep.subr.bf16.mxu0 0
        %2093 = vmatpush1.bf16.msra.mxu0 0
        %2094 = vmatprep.subr.bf16.mxu0 0
        %2095 = vmatpush1.bf16.msra.mxu0 0
        %2096 = vmatprep.subr.bf16.mxu0 0
        %2097 = vmatpush1.bf16.msra.mxu0 0
        %2098 = vmatprep.subr.bf16.mxu0 0
        %2099 = vmatpush1.bf16.msra.mxu0 0
        %2100 = vmatprep.subr.bf16.mxu0 0
        %2101 = vmatpush1.bf16.msra.mxu0 0
        %2102 = vmatprep.subr.bf16.mxu0 0
        %2103 = vmatpush1.bf16.msra.mxu0 0
        %2104 = vmatprep.subr.bf16.mxu0 0
        %2105 = vmatpush1.bf16.msra.mxu0 0
        %2106 = vmatprep.subr.bf16.mxu0 0
        %2107 = vmatpush1.bf16.msra.mxu0 0
        %2108 = vmatprep.subr.bf16.mxu0 0
        %2109 = vmatpush1.bf16.msra.mxu0 0
        %2110 = vmatprep.subr.bf16.mxu0 0
        %2111 = vmatpush1.bf16.msra.mxu0 0
        %2112 = vmatprep.mubr.bf16.mxu0 0
        %2113 = vmatmul.mubr.bf16.gmra.mrb[0].mxu0 %v2069
        %v2114 = vpop.f32.mrb[0].mxu0
        %v2115 = vadd.f32 %v738, %v2114
        %v2116 = vpop.f32.mrb[0].mxu0
        %v2117 = vpop.f32.mrb[0].mxu0
        %v2118 = vadd.f32 %v738, %v2117
        %v2119 = vpop.f32.mrb[0].mxu0
        %2120 = vmatprep.mubr.bf16.mxu0 0
        %2121 = vmatmul.mubr.bf16.gmra.mrb[0].mxu0 %v2072
        %v2122 = vpop.f32.mrb[0].mxu0
        %v2123 = vadd.f32 %v738, %v2122
        %v2124 = vpop.f32.mrb[0].mxu0
        %v2125 = vpop.f32.mrb[0].mxu0
        %v2126 = vadd.f32 %v738, %v2125
        %v2127 = vpop.f32.mrb[0].mxu0
        %2128 = vmatprep.mubr.bf16.mxu0 0
        %2129 = vmatmul.mubr.bf16.gmra.mrb[0].mxu0 %v2075
        %v2130 = vpop.f32.mrb[0].mxu0
        %v2131 = vadd.f32 %v738, %v2130
        %v2132 = vpop.f32.mrb[0].mxu0
        %v2133 = vpop.f32.mrb[0].mxu0
        %v2134 = vadd.f32 %v738, %v2133
        %v2135 = vpop.f32.mrb[0].mxu0
        %2136 = vmatprep.mubr.bf16.mxu0 0
        %2137 = vmatmul.mubr.bf16.gmra.mrb[0].mxu0 %v2078
        %v2138 = vpop.f32.mrb[0].mxu0
        %v2139 = vadd.f32 %v738, %v2138
        %v2140 = vpop.f32.mrb[0].mxu0
        %v2141 = vpop.f32.mrb[0].mxu0
        %v2142 = vadd.f32 %v738, %v2141
        %v2143 = vpop.f32.mrb[0].mxu0
        %2144 = vdwg.mxu0
        %v2145 = vmul.f32 %v2115, %v845
        %v2146 = vmul.f32 %v2118, %v845
        %v2147 = vmul.f32 %v2123, %v845
        %v2148 = vmul.f32 %v2126, %v845
        %v2149 = vmul.f32 %v2131, %v845
        %v2150 = vmul.f32 %v2134, %v845
        %v2151 = vmul.f32 %v2139, %v845
        %v2152 = vmul.f32 %v2142, %v845
        %v2153 = vadd.f32 %v2145, %v859
        %v2154 = vadd.f32 %v2146, %v859
        %v2155 = vadd.f32 %v2147, %v859
        %v2156 = vadd.f32 %v2148, %v859
        %v2157 = vadd.f32 %v2149, %v859
        %v2158 = vadd.f32 %v2150, %v859
        %v2159 = vadd.f32 %v2151, %v859
        %v2160 = vadd.f32 %v2152, %v859
        %v2161 = vmax.f32 %v2153, 0.0
        %v2162 = vmax.f32 %v2154, 0.0
        %v2163 = vmax.f32 %v2155, 0.0
        %v2164 = vmax.f32 %v2156, 0.0
        %v2165 = vmax.f32 %v2157, 0.0
        %v2166 = vmax.f32 %v2158, 0.0
        %v2167 = vmax.f32 %v2159, 0.0
        %v2168 = vmax.f32 %v2160, 0.0
        %v2169 = vmul.f32 %v2031, %v2161
        %v2170 = vmul.f32 %v2032, %v2162
        %v2171 = vmul.f32 %v2033, %v2163
        %v2172 = vmul.f32 %v2034, %v2164
        %v2173 = vmul.f32 %v2035, %v2165
        %v2174 = vmul.f32 %v2036, %v2166
        %v2175 = vmul.f32 %v2037, %v2167
        %v2176 = vmul.f32 %v2038, %v2168
        %v2177 = vmax.f32 %v1917, %v2169
        %v2178 = vmax.f32 %v1918, %v2170
        %v2179 = vmax.f32 %v1919, %v2171
        %v2180 = vmax.f32 %v1920, %v2172
        %v2181 = vmax.f32 %v1921, %v2173
        %v2182 = vmax.f32 %v1922, %v2174
        %v2183 = vmax.f32 %v1923, %v2175
        %v2184 = vmax.f32 %v1924, %v2176
        %s2185 = scalar_lea.vmem %s490, 192 [#allocation3]
        %v2186 = vld [vmem:[%s2185] sm:$0xf]
        %v2187 = vld [vmem:[%s2185 + $0x4] sm:$0xf]
        %v2188 = vld [vmem:[%s2185 + $0x8] sm:$0xf]
        %v2189 = vld [vmem:[%s2185 + $0xc] sm:$0xf]
        %v2190 = vld [vmem:[%s2185 + $0x10] sm:$0xf]
        %v2191 = vld [vmem:[%s2185 + $0x14] sm:$0xf]
        %v2192 = vld [vmem:[%s2185 + $0x18] sm:$0xf]
        %v2193 = vld [vmem:[%s2185 + $0x1c] sm:$0xf]
        %v2202 = vunpack.c.l.b16 %v2186
        %v2203 = vunpack.c.l.b16 %v2187
        %v2204 = vunpack.c.l.b16 %v2188
        %v2205 = vunpack.c.l.b16 %v2189
        %v2206 = vunpack.c.l.b16 %v2190
        %v2207 = vunpack.c.l.b16 %v2191
        %v2208 = vunpack.c.l.b16 %v2192
        %v2209 = vunpack.c.l.b16 %v2193
        %v2210 = vpack.c.b16 %v2203, %v2202
        %v2211 = vpack.c.b16 %v2205, %v2204
        %v2212 = vpack.c.b16 %v2207, %v2206
        %v2213 = vpack.c.b16 %v2209, %v2208
        %v2215 = vsel %vm633, %v2210, 0
        %v2218 = vsel %vm633, %v2211, 0
        %v2221 = vsel %vm633, %v2212, 0
        %v2224 = vsel %vm633, %v2213, 0
        %2226 = vmatprep.subr.bf16.mxu0 0
        %2227 = vmatpush1.bf16.msra.mxu0 %v651
        %2228 = vmatprep.subr.bf16.mxu0 0
        %2229 = vmatpush1.bf16.msra.mxu0 0
        %2230 = vmatprep.subr.bf16.mxu0 0
        %2231 = vmatpush1.bf16.msra.mxu0 0
        %2232 = vmatprep.subr.bf16.mxu0 0
        %2233 = vmatpush1.bf16.msra.mxu0 0
        %2234 = vmatprep.subr.bf16.mxu0 0
        %2235 = vmatpush1.bf16.msra.mxu0 0
        %2236 = vmatprep.subr.bf16.mxu0 0
        %2237 = vmatpush1.bf16.msra.mxu0 0
        %2238 = vmatprep.subr.bf16.mxu0 0
        %2239 = vmatpush1.bf16.msra.mxu0 0
        %2240 = vmatprep.subr.bf16.mxu0 0
        %2241 = vmatpush1.bf16.msra.mxu0 0
        %2242 = vmatprep.subr.bf16.mxu0 0
        %2243 = vmatpush1.bf16.msra.mxu0 0
        %2244 = vmatprep.subr.bf16.mxu0 0
        %2245 = vmatpush1.bf16.msra.mxu0 0
        %2246 = vmatprep.subr.bf16.mxu0 0
        %2247 = vmatpush1.bf16.msra.mxu0 0
        %2248 = vmatprep.subr.bf16.mxu0 0
        %2249 = vmatpush1.bf16.msra.mxu0 0
        %2250 = vmatprep.subr.bf16.mxu0 0
        %2251 = vmatpush1.bf16.msra.mxu0 0
        %2252 = vmatprep.subr.bf16.mxu0 0
        %2253 = vmatpush1.bf16.msra.mxu0 0
        %2254 = vmatprep.subr.bf16.mxu0 0
        %2255 = vmatpush1.bf16.msra.mxu0 0
        %2256 = vmatprep.subr.bf16.mxu0 0
        %2257 = vmatpush1.bf16.msra.mxu0 0
        %2258 = vmatprep.mubr.bf16.mxu0 0
        %2259 = vmatmul.mubr.bf16.gmra.mrb[0].mxu0 %v2215
        %v2260 = vpop.f32.mrb[0].mxu0
        %v2261 = vadd.f32 %v611, %v2260
        %v2262 = vpop.f32.mrb[0].mxu0
        %v2263 = vpop.f32.mrb[0].mxu0
        %v2264 = vadd.f32 %v611, %v2263
        %v2265 = vpop.f32.mrb[0].mxu0
        %2266 = vmatprep.mubr.bf16.mxu0 0
        %2267 = vmatmul.mubr.bf16.gmra.mrb[0].mxu0 %v2218
        %v2268 = vpop.f32.mrb[0].mxu0
        %v2269 = vadd.f32 %v611, %v2268
        %v2270 = vpop.f32.mrb[0].mxu0
        %v2271 = vpop.f32.mrb[0].mxu0
        %v2272 = vadd.f32 %v611, %v2271
        %v2273 = vpop.f32.mrb[0].mxu0
        %2274 = vmatprep.mubr.bf16.mxu0 0
        %2275 = vmatmul.mubr.bf16.gmra.mrb[0].mxu0 %v2221
        %v2276 = vpop.f32.mrb[0].mxu0
        %v2277 = vadd.f32 %v611, %v2276
        %v2278 = vpop.f32.mrb[0].mxu0
        %v2279 = vpop.f32.mrb[0].mxu0
        %v2280 = vadd.f32 %v611, %v2279
        %v2281 = vpop.f32.mrb[0].mxu0
        %2282 = vmatprep.mubr.bf16.mxu0 0
        %2283 = vmatmul.mubr.bf16.gmra.mrb[0].mxu0 %v2224
        %v2284 = vpop.f32.mrb[0].mxu0
        %v2285 = vadd.f32 %v611, %v2284
        %v2286 = vpop.f32.mrb[0].mxu0
        %v2287 = vpop.f32.mrb[0].mxu0
        %v2288 = vadd.f32 %v611, %v2287
        %v2289 = vpop.f32.mrb[0].mxu0
        %2290 = vdwg.mxu0
        %v2291 = vmax.f32 %v2261, 0.0
        %v2292 = vmax.f32 %v2264, 0.0
        %v2293 = vmax.f32 %v2269, 0.0
        %v2294 = vmax.f32 %v2272, 0.0
        %v2295 = vmax.f32 %v2277, 0.0
        %v2296 = vmax.f32 %v2280, 0.0
        %v2297 = vmax.f32 %v2285, 0.0
        %v2298 = vmax.f32 %v2288, 0.0
        %s2299 = scalar_lea.vmem %s499, 192 [#allocation6]
        %v2300 = vld [vmem:[%s2299] sm:$0xf]
        %v2301 = vld [vmem:[%s2299 + $0x4] sm:$0xf]
        %v2302 = vld [vmem:[%s2299 + $0x8] sm:$0xf]
        %v2303 = vld [vmem:[%s2299 + $0xc] sm:$0xf]
        %v2304 = vld [vmem:[%s2299 + $0x10] sm:$0xf]
        %v2305 = vld [vmem:[%s2299 + $0x14] sm:$0xf]
        %v2306 = vld [vmem:[%s2299 + $0x18] sm:$0xf]
        %v2307 = vld [vmem:[%s2299 + $0x1c] sm:$0xf]
        %v2316 = vunpack.c.l.b16 %v2300
        %v2317 = vunpack.c.l.b16 %v2301
        %v2318 = vunpack.c.l.b16 %v2302
        %v2319 = vunpack.c.l.b16 %v2303
        %v2320 = vunpack.c.l.b16 %v2304
        %v2321 = vunpack.c.l.b16 %v2305
        %v2322 = vunpack.c.l.b16 %v2306
        %v2323 = vunpack.c.l.b16 %v2307
        %v2324 = vpack.c.b16 %v2317, %v2316
        %v2325 = vpack.c.b16 %v2319, %v2318
        %v2326 = vpack.c.b16 %v2321, %v2320
        %v2327 = vpack.c.b16 %v2323, %v2322
        %v2329 = vsel %vm760, %v2324, 0
        %v2332 = vsel %vm760, %v2325, 0
        %v2335 = vsel %vm760, %v2326, 0
        %v2338 = vsel %vm760, %v2327, 0
        %2340 = vmatprep.subr.bf16.mxu0 0
        %2341 = vmatpush1.bf16.msra.mxu0 %v774
        %2342 = vmatprep.subr.bf16.mxu0 0
        %2343 = vmatpush1.bf16.msra.mxu0 0
        %2344 = vmatprep.subr.bf16.mxu0 0
        %2345 = vmatpush1.bf16.msra.mxu0 0
        %2346 = vmatprep.subr.bf16.mxu0 0
        %2347 = vmatpush1.bf16.msra.mxu0 0
        %2348 = vmatprep.subr.bf16.mxu0 0
        %2349 = vmatpush1.bf16.msra.mxu0 0
        %2350 = vmatprep.subr.bf16.mxu0 0
        %2351 = vmatpush1.bf16.msra.mxu0 0
        %2352 = vmatprep.subr.bf16.mxu0 0
        %2353 = vmatpush1.bf16.msra.mxu0 0
        %2354 = vmatprep.subr.bf16.mxu0 0
        %2355 = vmatpush1.bf16.msra.mxu0 0
        %2356 = vmatprep.subr.bf16.mxu0 0
        %2357 = vmatpush1.bf16.msra.mxu0 0
        %2358 = vmatprep.subr.bf16.mxu0 0
        %2359 = vmatpush1.bf16.msra.mxu0 0
        %2360 = vmatprep.subr.bf16.mxu0 0
        %2361 = vmatpush1.bf16.msra.mxu0 0
        %2362 = vmatprep.subr.bf16.mxu0 0
        %2363 = vmatpush1.bf16.msra.mxu0 0
        %2364 = vmatprep.subr.bf16.mxu0 0
        %2365 = vmatpush1.bf16.msra.mxu0 0
        %2366 = vmatprep.subr.bf16.mxu0 0
        %2367 = vmatpush1.bf16.msra.mxu0 0
        %2368 = vmatprep.subr.bf16.mxu0 0
        %2369 = vmatpush1.bf16.msra.mxu0 0
        %2370 = vmatprep.subr.bf16.mxu0 0
        %2371 = vmatpush1.bf16.msra.mxu0 0
        %2372 = vmatprep.mubr.bf16.mxu0 0
        %2373 = vmatmul.mubr.bf16.gmra.mrb[0].mxu0 %v2329
        %v2374 = vpop.f32.mrb[0].mxu0
        %v2375 = vadd.f32 %v738, %v2374
        %v2376 = vpop.f32.mrb[0].mxu0
        %v2377 = vpop.f32.mrb[0].mxu0
        %v2378 = vadd.f32 %v738, %v2377
        %v2379 = vpop.f32.mrb[0].mxu0
        %2380 = vmatprep.mubr.bf16.mxu0 0
        %2381 = vmatmul.mubr.bf16.gmra.mrb[0].mxu0 %v2332
        %v2382 = vpop.f32.mrb[0].mxu0
        %v2383 = vadd.f32 %v738, %v2382
        %v2384 = vpop.f32.mrb[0].mxu0
        %v2385 = vpop.f32.mrb[0].mxu0
        %v2386 = vadd.f32 %v738, %v2385
        %v2387 = vpop.f32.mrb[0].mxu0
        %2388 = vmatprep.mubr.bf16.mxu0 0
        %2389 = vmatmul.mubr.bf16.gmra.mrb[0].mxu0 %v2335
        %v2390 = vpop.f32.mrb[0].mxu0
        %v2391 = vadd.f32 %v738, %v2390
        %v2392 = vpop.f32.mrb[0].mxu0
        %v2393 = vpop.f32.mrb[0].mxu0
        %v2394 = vadd.f32 %v738, %v2393
        %v2395 = vpop.f32.mrb[0].mxu0
        %2396 = vmatprep.mubr.bf16.mxu0 0
        %2397 = vmatmul.mubr.bf16.gmra.mrb[0].mxu0 %v2338
        %v2398 = vpop.f32.mrb[0].mxu0
        %v2399 = vadd.f32 %v738, %v2398
        %v2400 = vpop.f32.mrb[0].mxu0
        %v2401 = vpop.f32.mrb[0].mxu0
        %v2402 = vadd.f32 %v738, %v2401
        %v2403 = vpop.f32.mrb[0].mxu0
        %2404 = vdwg.mxu0
        %v2405 = vmul.f32 %v2375, %v845
        %v2406 = vmul.f32 %v2378, %v845
        %v2407 = vmul.f32 %v2383, %v845
        %v2408 = vmul.f32 %v2386, %v845
        %v2409 = vmul.f32 %v2391, %v845
        %v2410 = vmul.f32 %v2394, %v845
        %v2411 = vmul.f32 %v2399, %v845
        %v2412 = vmul.f32 %v2402, %v845
        %v2413 = vadd.f32 %v2405, %v859
        %v2414 = vadd.f32 %v2406, %v859
        %v2415 = vadd.f32 %v2407, %v859
        %v2416 = vadd.f32 %v2408, %v859
        %v2417 = vadd.f32 %v2409, %v859
        %v2418 = vadd.f32 %v2410, %v859
        %v2419 = vadd.f32 %v2411, %v859
        %v2420 = vadd.f32 %v2412, %v859
        %v2421 = vmax.f32 %v2413, 0.0
        %v2422 = vmax.f32 %v2414, 0.0
        %v2423 = vmax.f32 %v2415, 0.0
        %v2424 = vmax.f32 %v2416, 0.0
        %v2425 = vmax.f32 %v2417, 0.0
        %v2426 = vmax.f32 %v2418, 0.0
        %v2427 = vmax.f32 %v2419, 0.0
        %v2428 = vmax.f32 %v2420, 0.0
        %v2429 = vmul.f32 %v2291, %v2421
        %v2430 = vmul.f32 %v2292, %v2422
        %v2431 = vmul.f32 %v2293, %v2423
        %v2432 = vmul.f32 %v2294, %v2424
        %v2433 = vmul.f32 %v2295, %v2425
        %v2434 = vmul.f32 %v2296, %v2426
        %v2435 = vmul.f32 %v2297, %v2427
        %v2436 = vmul.f32 %v2298, %v2428
        %v2437 = vmax.f32 %v2177, %v2429
        %v2438 = vmax.f32 %v2178, %v2430
        %v2439 = vmax.f32 %v2179, %v2431
        %v2440 = vmax.f32 %v2180, %v2432
        %v2441 = vmax.f32 %v2181, %v2433
        %v2442 = vmax.f32 %v2182, %v2434
        %v2443 = vmax.f32 %v2183, %v2435
        %v2444 = vmax.f32 %v2184, %v2436
        %s2445 = scalar_lea.vmem %s490, 224 [#allocation3]
        %v2446 = vld [vmem:[%s2445] sm:$0xf]
        %v2447 = vld [vmem:[%s2445 + $0x4] sm:$0xf]
        %v2448 = vld [vmem:[%s2445 + $0x8] sm:$0xf]
        %v2449 = vld [vmem:[%s2445 + $0xc] sm:$0xf]
        %v2450 = vld [vmem:[%s2445 + $0x10] sm:$0xf]
        %v2451 = vld [vmem:[%s2445 + $0x14] sm:$0xf]
        %v2452 = vld [vmem:[%s2445 + $0x18] sm:$0xf]
        %v2453 = vld [vmem:[%s2445 + $0x1c] sm:$0xf]
        %v2462 = vunpack.c.l.b16 %v2446
        %v2463 = vunpack.c.l.b16 %v2447
        %v2464 = vunpack.c.l.b16 %v2448
        %v2465 = vunpack.c.l.b16 %v2449
        %v2466 = vunpack.c.l.b16 %v2450
        %v2467 = vunpack.c.l.b16 %v2451
        %v2468 = vunpack.c.l.b16 %v2452
        %v2469 = vunpack.c.l.b16 %v2453
        %v2470 = vpack.c.b16 %v2463, %v2462
        %v2471 = vpack.c.b16 %v2465, %v2464
        %v2472 = vpack.c.b16 %v2467, %v2466
        %v2473 = vpack.c.b16 %v2469, %v2468
        %v2475 = vsel %vm633, %v2470, 0
        %v2478 = vsel %vm633, %v2471, 0
        %v2481 = vsel %vm633, %v2472, 0
        %v2484 = vsel %vm633, %v2473, 0
        %2486 = vmatprep.subr.bf16.mxu0 0
        %2487 = vmatpush1.bf16.msra.mxu0 %v651
        %2488 = vmatprep.subr.bf16.mxu0 0
        %2489 = vmatpush1.bf16.msra.mxu0 0
        %2490 = vmatprep.subr.bf16.mxu0 0
        %2491 = vmatpush1.bf16.msra.mxu0 0
        %2492 = vmatprep.subr.bf16.mxu0 0
        %2493 = vmatpush1.bf16.msra.mxu0 0
        %2494 = vmatprep.subr.bf16.mxu0 0
        %2495 = vmatpush1.bf16.msra.mxu0 0
        %2496 = vmatprep.subr.bf16.mxu0 0
        %2497 = vmatpush1.bf16.msra.mxu0 0
        %2498 = vmatprep.subr.bf16.mxu0 0
        %2499 = vmatpush1.bf16.msra.mxu0 0
        %2500 = vmatprep.subr.bf16.mxu0 0
        %2501 = vmatpush1.bf16.msra.mxu0 0
        %2502 = vmatprep.subr.bf16.mxu0 0
        %2503 = vmatpush1.bf16.msra.mxu0 0
        %2504 = vmatprep.subr.bf16.mxu0 0
        %2505 = vmatpush1.bf16.msra.mxu0 0
        %2506 = vmatprep.subr.bf16.mxu0 0
        %2507 = vmatpush1.bf16.msra.mxu0 0
        %2508 = vmatprep.subr.bf16.mxu0 0
        %2509 = vmatpush1.bf16.msra.mxu0 0
        %2510 = vmatprep.subr.bf16.mxu0 0
        %2511 = vmatpush1.bf16.msra.mxu0 0
        %2512 = vmatprep.subr.bf16.mxu0 0
        %2513 = vmatpush1.bf16.msra.mxu0 0
        %2514 = vmatprep.subr.bf16.mxu0 0
        %2515 = vmatpush1.bf16.msra.mxu0 0
        %2516 = vmatprep.subr.bf16.mxu0 0
        %2517 = vmatpush1.bf16.msra.mxu0 0
        %2518 = vmatprep.mubr.bf16.mxu0 0
        %2519 = vmatmul.mubr.bf16.gmra.mrb[0].mxu0 %v2475
        %v2520 = vpop.f32.mrb[0].mxu0
        %v2521 = vadd.f32 %v611, %v2520
        %v2522 = vpop.f32.mrb[0].mxu0
        %v2523 = vpop.f32.mrb[0].mxu0
        %v2524 = vadd.f32 %v611, %v2523
        %v2525 = vpop.f32.mrb[0].mxu0
        %2526 = vmatprep.mubr.bf16.mxu0 0
        %2527 = vmatmul.mubr.bf16.gmra.mrb[0].mxu0 %v2478
        %v2528 = vpop.f32.mrb[0].mxu0
        %v2529 = vadd.f32 %v611, %v2528
        %v2530 = vpop.f32.mrb[0].mxu0
        %v2531 = vpop.f32.mrb[0].mxu0
        %v2532 = vadd.f32 %v611, %v2531
        %v2533 = vpop.f32.mrb[0].mxu0
        %2534 = vmatprep.mubr.bf16.mxu0 0
        %2535 = vmatmul.mubr.bf16.gmra.mrb[0].mxu0 %v2481
        %v2536 = vpop.f32.mrb[0].mxu0
        %v2537 = vadd.f32 %v611, %v2536
        %v2538 = vpop.f32.mrb[0].mxu0
        %v2539 = vpop.f32.mrb[0].mxu0
        %v2540 = vadd.f32 %v611, %v2539
        %v2541 = vpop.f32.mrb[0].mxu0
        %2542 = vmatprep.mubr.bf16.mxu0 0
        %2543 = vmatmul.mubr.bf16.gmra.mrb[0].mxu0 %v2484
        %v2544 = vpop.f32.mrb[0].mxu0
        %v2545 = vadd.f32 %v611, %v2544
        %v2546 = vpop.f32.mrb[0].mxu0
        %v2547 = vpop.f32.mrb[0].mxu0
        %v2548 = vadd.f32 %v611, %v2547
        %v2549 = vpop.f32.mrb[0].mxu0
        %2550 = vdwg.mxu0
        %v2551 = vmax.f32 %v2521, 0.0
        %v2552 = vmax.f32 %v2524, 0.0
        %v2553 = vmax.f32 %v2529, 0.0
        %v2554 = vmax.f32 %v2532, 0.0
        %v2555 = vmax.f32 %v2537, 0.0
        %v2556 = vmax.f32 %v2540, 0.0
        %v2557 = vmax.f32 %v2545, 0.0
        %v2558 = vmax.f32 %v2548, 0.0
        %s2559 = scalar_lea.vmem %s499, 224 [#allocation6]
        %v2560 = vld [vmem:[%s2559] sm:$0xf]
        %v2561 = vld [vmem:[%s2559 + $0x4] sm:$0xf]
        %v2562 = vld [vmem:[%s2559 + $0x8] sm:$0xf]
        %v2563 = vld [vmem:[%s2559 + $0xc] sm:$0xf]
        %v2564 = vld [vmem:[%s2559 + $0x10] sm:$0xf]
        %v2565 = vld [vmem:[%s2559 + $0x14] sm:$0xf]
        %v2566 = vld [vmem:[%s2559 + $0x18] sm:$0xf]
        %v2567 = vld [vmem:[%s2559 + $0x1c] sm:$0xf]
        %v2576 = vunpack.c.l.b16 %v2560
        %v2577 = vunpack.c.l.b16 %v2561
        %v2578 = vunpack.c.l.b16 %v2562
        %v2579 = vunpack.c.l.b16 %v2563
        %v2580 = vunpack.c.l.b16 %v2564
        %v2581 = vunpack.c.l.b16 %v2565
        %v2582 = vunpack.c.l.b16 %v2566
        %v2583 = vunpack.c.l.b16 %v2567
        %v2584 = vpack.c.b16 %v2577, %v2576
        %v2585 = vpack.c.b16 %v2579, %v2578
        %v2586 = vpack.c.b16 %v2581, %v2580
        %v2587 = vpack.c.b16 %v2583, %v2582
        %v2589 = vsel %vm760, %v2584, 0
        %v2592 = vsel %vm760, %v2585, 0
        %v2595 = vsel %vm760, %v2586, 0
        %v2598 = vsel %vm760, %v2587, 0
        %2600 = vmatprep.subr.bf16.mxu0 0
        %2601 = vmatpush1.bf16.msra.mxu0 %v774
        %2602 = vmatprep.subr.bf16.mxu0 0
        %2603 = vmatpush1.bf16.msra.mxu0 0
        %2604 = vmatprep.subr.bf16.mxu0 0
        %2605 = vmatpush1.bf16.msra.mxu0 0
        %2606 = vmatprep.subr.bf16.mxu0 0
        %2607 = vmatpush1.bf16.msra.mxu0 0
        %2608 = vmatprep.subr.bf16.mxu0 0
        %2609 = vmatpush1.bf16.msra.mxu0 0
        %2610 = vmatprep.subr.bf16.mxu0 0
        %2611 = vmatpush1.bf16.msra.mxu0 0
        %2612 = vmatprep.subr.bf16.mxu0 0
        %2613 = vmatpush1.bf16.msra.mxu0 0
        %2614 = vmatprep.subr.bf16.mxu0 0
        %2615 = vmatpush1.bf16.msra.mxu0 0
        %2616 = vmatprep.subr.bf16.mxu0 0
        %2617 = vmatpush1.bf16.msra.mxu0 0
        %2618 = vmatprep.subr.bf16.mxu0 0
        %2619 = vmatpush1.bf16.msra.mxu0 0
        %2620 = vmatprep.subr.bf16.mxu0 0
        %2621 = vmatpush1.bf16.msra.mxu0 0
        %2622 = vmatprep.subr.bf16.mxu0 0
        %2623 = vmatpush1.bf16.msra.mxu0 0
        %2624 = vmatprep.subr.bf16.mxu0 0
        %2625 = vmatpush1.bf16.msra.mxu0 0
        %2626 = vmatprep.subr.bf16.mxu0 0
        %2627 = vmatpush1.bf16.msra.mxu0 0
        %2628 = vmatprep.subr.bf16.mxu0 0
        %2629 = vmatpush1.bf16.msra.mxu0 0
        %2630 = vmatprep.subr.bf16.mxu0 0
        %2631 = vmatpush1.bf16.msra.mxu0 0
        %2632 = vmatprep.mubr.bf16.mxu0 0
        %2633 = vmatmul.mubr.bf16.gmra.mrb[0].mxu0 %v2589
        %v2634 = vpop.f32.mrb[0].mxu0
        %v2635 = vadd.f32 %v738, %v2634
        %v2636 = vpop.f32.mrb[0].mxu0
        %v2637 = vpop.f32.mrb[0].mxu0
        %v2638 = vadd.f32 %v738, %v2637
        %v2639 = vpop.f32.mrb[0].mxu0
        %2640 = vmatprep.mubr.bf16.mxu0 0
        %2641 = vmatmul.mubr.bf16.gmra.mrb[0].mxu0 %v2592
        %v2642 = vpop.f32.mrb[0].mxu0
        %v2643 = vadd.f32 %v738, %v2642
        %v2644 = vpop.f32.mrb[0].mxu0
        %v2645 = vpop.f32.mrb[0].mxu0
        %v2646 = vadd.f32 %v738, %v2645
        %v2647 = vpop.f32.mrb[0].mxu0
        %2648 = vmatprep.mubr.bf16.mxu0 0
        %2649 = vmatmul.mubr.bf16.gmra.mrb[0].mxu0 %v2595
        %v2650 = vpop.f32.mrb[0].mxu0
        %v2651 = vadd.f32 %v738, %v2650
        %v2652 = vpop.f32.mrb[0].mxu0
        %v2653 = vpop.f32.mrb[0].mxu0
        %v2654 = vadd.f32 %v738, %v2653
        %v2655 = vpop.f32.mrb[0].mxu0
        %2656 = vmatprep.mubr.bf16.mxu0 0
        %2657 = vmatmul.mubr.bf16.gmra.mrb[0].mxu0 %v2598
        %v2658 = vpop.f32.mrb[0].mxu0
        %v2659 = vadd.f32 %v738, %v2658
        %v2660 = vpop.f32.mrb[0].mxu0
        %v2661 = vpop.f32.mrb[0].mxu0
        %v2662 = vadd.f32 %v738, %v2661
        %v2663 = vpop.f32.mrb[0].mxu0
        %2664 = vdwg.mxu0
        %v2665 = vmul.f32 %v2635, %v845
        %v2666 = vmul.f32 %v2638, %v845
        %v2667 = vmul.f32 %v2643, %v845
        %v2668 = vmul.f32 %v2646, %v845
        %v2669 = vmul.f32 %v2651, %v845
        %v2670 = vmul.f32 %v2654, %v845
        %v2671 = vmul.f32 %v2659, %v845
        %v2672 = vmul.f32 %v2662, %v845
        %v2673 = vadd.f32 %v2665, %v859
        %v2674 = vadd.f32 %v2666, %v859
        %v2675 = vadd.f32 %v2667, %v859
        %v2676 = vadd.f32 %v2668, %v859
        %v2677 = vadd.f32 %v2669, %v859
        %v2678 = vadd.f32 %v2670, %v859
        %v2679 = vadd.f32 %v2671, %v859
        %v2680 = vadd.f32 %v2672, %v859
        %v2681 = vmax.f32 %v2673, 0.0
        %v2682 = vmax.f32 %v2674, 0.0
        %v2683 = vmax.f32 %v2675, 0.0
        %v2684 = vmax.f32 %v2676, 0.0
        %v2685 = vmax.f32 %v2677, 0.0
        %v2686 = vmax.f32 %v2678, 0.0
        %v2687 = vmax.f32 %v2679, 0.0
        %v2688 = vmax.f32 %v2680, 0.0
        %v2689 = vmul.f32 %v2551, %v2681
        %v2690 = vmul.f32 %v2552, %v2682
        %v2691 = vmul.f32 %v2553, %v2683
        %v2692 = vmul.f32 %v2554, %v2684
        %v2693 = vmul.f32 %v2555, %v2685
        %v2694 = vmul.f32 %v2556, %v2686
        %v2695 = vmul.f32 %v2557, %v2687
        %v2696 = vmul.f32 %v2558, %v2688
        %v2697 = vmax.f32 %v2437, %v2689
        %v2698 = vmax.f32 %v2438, %v2690
        %v2699 = vmax.f32 %v2439, %v2691
        %v2700 = vmax.f32 %v2440, %v2692
        %v2701 = vmax.f32 %v2441, %v2693
        %v2702 = vmax.f32 %v2442, %v2694
        %v2703 = vmax.f32 %v2443, %v2695
        %v2704 = vmax.f32 %v2444, %v2696
        %v2705 = vld [vmem:[#allocation2] sm:$0xff]
        %v2706 = vld [vmem:[#allocation2 + $0x8] sm:$0xff]
        %v2707 = vld [vmem:[#allocation2 + $0x10] sm:$0xff]
        %v2708 = vld [vmem:[#allocation2 + $0x18] sm:$0xff]
        %v2709 = vld [vmem:[#allocation2 + $0x20] sm:$0xff]
        %v2710 = vld [vmem:[#allocation2 + $0x28] sm:$0xff]
        %v2711 = vld [vmem:[#allocation2 + $0x30] sm:$0xff]
        %v2712 = vld [vmem:[#allocation2 + $0x38] sm:$0xff]
        %v2713 = vmax.f32 %v2705, %v2697
        %v2714 = vmax.f32 %v2706, %v2698
        %v2715 = vmax.f32 %v2707, %v2699
        %v2716 = vmax.f32 %v2708, %v2700
        %v2717 = vmax.f32 %v2709, %v2701
        %v2718 = vmax.f32 %v2710, %v2702
        %v2719 = vmax.f32 %v2711, %v2703
        %v2720 = vmax.f32 %v2712, %v2704
        %vm2721 = vcmask 261120
        %2722 = vst.msk [vmem:[#allocation2] sm:$0xff] %vm2721, %v2713
        %2723 = vst.msk [vmem:[#allocation2 + $0x8] sm:$0xff] %vm2721, %v2714
        %2724 = vst.msk [vmem:[#allocation2 + $0x10] sm:$0xff] %vm2721, %v2715
        %2725 = vst.msk [vmem:[#allocation2 + $0x18] sm:$0xff] %vm2721, %v2716
        %2726 = vst.msk [vmem:[#allocation2 + $0x20] sm:$0xff] %vm2721, %v2717
        %2727 = vst.msk [vmem:[#allocation2 + $0x28] sm:$0xff] %vm2721, %v2718
        %2728 = vst.msk [vmem:[#allocation2 + $0x30] sm:$0xff] %vm2721, %v2719
        %2729 = vst.msk [vmem:[#allocation2 + $0x38] sm:$0xff] %vm2721, %v2720
        %p2730 = scmp.eq.s32.totalorder %s38, 1
        // Predicated region
        $region113: #{oriented_rscnn_forward.3} parent=63 // pred_check
          %p2731 = pneg %p2730
        $region114: #{oriented_rscnn_forward.3} parent=63 // pred_check_branch
          %2733 = sbr.rel (%p2731) target = $region116
        $region115: #{oriented_rscnn_forward.3} parent=63 // pred_region
          %v2734 = vld [vmem:[#allocation2] sm:$0xff]
          %v2735 = vld [vmem:[#allocation2 + $0x8] sm:$0xff]
          %v2736 = vld [vmem:[#allocation2 + $0x10] sm:$0xff]
          %v2737 = vld [vmem:[#allocation2 + $0x18] sm:$0xff]
          %v2738 = vld [vmem:[#allocation2 + $0x20] sm:$0xff]
          %v2739 = vld [vmem:[#allocation2 + $0x28] sm:$0xff]
          %v2740 = vld [vmem:[#allocation2 + $0x30] sm:$0xff]
          %v2741 = vld [vmem:[#allocation2 + $0x38] sm:$0xff]
          %v2742 = vpack.c.bf16 %v2735, %v2734
          %v2743 = vpack.c.bf16 %v2737, %v2736
          %v2744 = vpack.c.bf16 %v2739, %v2738
          %v2745 = vpack.c.bf16 %v2741, %v2740
          %v2746 = vld [vmem:[#allocation17] sm:$0xf]
          %v2747 = vld [vmem:[#allocation17 + $0x4] sm:$0xf]
          %v2748 = vld [vmem:[#allocation17 + $0x8] sm:$0xf]
          %v2749 = vld [vmem:[#allocation17 + $0xc] sm:$0xf]
          %v2754 = vunpack.c.l.b16 %v2746
          %v2755 = vunpack.c.l.b16 %v2747
          %v2756 = vunpack.c.l.b16 %v2748
          %v2757 = vunpack.c.l.b16 %v2749
          %v2758 = vpack.c.b16 %v2755, %v2754
          %v2759 = vpack.c.b16 %v2757, %v2756
          %v2763 = vsel %vm2721, %v2742, 0
          %v2766 = vsel %vm2721, %v2743, 0
          %v2769 = vsel %vm2721, %v2744, 0
          %v2772 = vsel %vm2721, %v2745, 0
          %2774 = vmatprep.subr.bf16.mxu0 0
          %2775 = vmatpush1.bf16.msra.mxu0 %v2758
          %2776 = vmatprep.subr.bf16.mxu0 0
          %2777 = vmatpush1.bf16.msra.mxu0 %v2759
          %2778 = vmatprep.subr.bf16.mxu0 0
          %2779 = vmatpush1.bf16.msra.mxu0 0
          %2780 = vmatprep.subr.bf16.mxu0 0
          %2781 = vmatpush1.bf16.msra.mxu0 0
          %2782 = vmatprep.subr.bf16.mxu0 0
          %2783 = vmatpush1.bf16.msra.mxu0 0
          %2784 = vmatprep.subr.bf16.mxu0 0
          %2785 = vmatpush1.bf16.msra.mxu0 0
          %2786 = vmatprep.subr.bf16.mxu0 0
          %2787 = vmatpush1.bf16.msra.mxu0 0
          %2788 = vmatprep.subr.bf16.mxu0 0
          %2789 = vmatpush1.bf16.msra.mxu0 0
          %2790 = vmatprep.subr.bf16.mxu0 0
          %2791 = vmatpush1.bf16.msra.mxu0 0
          %2792 = vmatprep.subr.bf16.mxu0 0
          %2793 = vmatpush1.bf16.msra.mxu0 0
          %2794 = vmatprep.subr.bf16.mxu0 0
          %2795 = vmatpush1.bf16.msra.mxu0 0
          %2796 = vmatprep.subr.bf16.mxu0 0
          %2797 = vmatpush1.bf16.msra.mxu0 0
          %2798 = vmatprep.subr.bf16.mxu0 0
          %2799 = vmatpush1.bf16.msra.mxu0 0
          %2800 = vmatprep.subr.bf16.mxu0 0
          %2801 = vmatpush1.bf16.msra.mxu0 0
          %2802 = vmatprep.subr.bf16.mxu0 0
          %2803 = vmatpush1.bf16.msra.mxu0 0
          %2804 = vmatprep.subr.bf16.mxu0 0
          %2805 = vmatpush1.bf16.msra.mxu0 0
          %2806 = vmatprep.mubr.bf16.mxu0 0
          %2807 = vmatmul.mubr.bf16.gmra.mrb[0].mxu0 %v2763
          %v2808 = vpop.f32.mrb[0].mxu0
          %v2809 = vadd.f32 0.0, %v2808
          %v2810 = vpop.f32.mrb[0].mxu0
          %v2811 = vpop.f32.mrb[0].mxu0
          %v2812 = vadd.f32 0.0, %v2811
          %v2813 = vpop.f32.mrb[0].mxu0
          %2814 = vmatprep.mubr.bf16.mxu0 0
          %2815 = vmatmul.mubr.bf16.gmra.mrb[0].mxu0 %v2766
          %v2816 = vpop.f32.mrb[0].mxu0
          %v2817 = vadd.f32 0.0, %v2816
          %v2818 = vpop.f32.mrb[0].mxu0
          %v2819 = vpop.f32.mrb[0].mxu0
          %v2820 = vadd.f32 0.0, %v2819
          %v2821 = vpop.f32.mrb[0].mxu0
          %2822 = vmatprep.mubr.bf16.mxu0 0
          %2823 = vmatmul.mubr.bf16.gmra.mrb[0].mxu0 %v2769
          %v2824 = vpop.f32.mrb[0].mxu0
          %v2825 = vadd.f32 0.0, %v2824
          %v2826 = vpop.f32.mrb[0].mxu0
          %v2827 = vpop.f32.mrb[0].mxu0
          %v2828 = vadd.f32 0.0, %v2827
          %v2829 = vpop.f32.mrb[0].mxu0
          %2830 = vmatprep.mubr.bf16.mxu0 0
          %2831 = vmatmul.mubr.bf16.gmra.mrb[0].mxu0 %v2772
          %v2832 = vpop.f32.mrb[0].mxu0
          %v2833 = vadd.f32 0.0, %v2832
          %v2834 = vpop.f32.mrb[0].mxu0
          %v2835 = vpop.f32.mrb[0].mxu0
          %v2836 = vadd.f32 0.0, %v2835
          %v2837 = vpop.f32.mrb[0].mxu0
          %2838 = vdwg.mxu0
          %v2839 = vld [vmem:[#allocation18] sm:$0x1]
          %v2841 = vlaneseq
          %v2842 = vshrl.u32 %v2841, 7
          %v2843 = vsub.s32 0, %v2842
          %v2844 = vrot.slane %v2839, %v2843
          %v2846 = vmul.f32 %v2809, %v2844
          %v2847 = vmul.f32 %v2812, %v2844
          %v2848 = vmul.f32 %v2817, %v2844
          %v2849 = vmul.f32 %v2820, %v2844
          %v2850 = vmul.f32 %v2825, %v2844
          %v2851 = vmul.f32 %v2828, %v2844
          %v2852 = vmul.f32 %v2833, %v2844
          %v2853 = vmul.f32 %v2836, %v2844
          %v2854 = vld [vmem:[#allocation20] sm:$0x1]
          %v2856 = vlaneseq
          %v2857 = vshrl.u32 %v2856, 7
          %v2858 = vsub.s32 0, %v2857
          %v2859 = vrot.slane %v2854, %v2858
          %v2861 = vadd.f32 %v2846, %v2859
          %v2862 = vadd.f32 %v2847, %v2859
          %v2863 = vadd.f32 %v2848, %v2859
          %v2864 = vadd.f32 %v2849, %v2859
          %v2865 = vadd.f32 %v2850, %v2859
          %v2866 = vadd.f32 %v2851, %v2859
          %v2867 = vadd.f32 %v2852, %v2859
          %v2868 = vadd.f32 %v2853, %v2859
          %v2869 = vmax.f32 %v2861, 0.0
          %v2870 = vmax.f32 %v2862, 0.0
          %v2871 = vmax.f32 %v2863, 0.0
          %v2872 = vmax.f32 %v2864, 0.0
          %v2873 = vmax.f32 %v2865, 0.0
          %v2874 = vmax.f32 %v2866, 0.0
          %v2875 = vmax.f32 %v2867, 0.0
          %v2876 = vmax.f32 %v2868, 0.0
          %2877 = vst [vmem:[#allocation21] sm:$0xff] %v2869
          %2878 = vst [vmem:[#allocation21 + $0x8] sm:$0xff] %v2870
          %2879 = vst [vmem:[#allocation21 + $0x10] sm:$0xff] %v2871
          %2880 = vst [vmem:[#allocation21 + $0x18] sm:$0xff] %v2872
          %2881 = vst [vmem:[#allocation21 + $0x20] sm:$0xff] %v2873
          %2882 = vst [vmem:[#allocation21 + $0x28] sm:$0xff] %v2874
          %2883 = vst [vmem:[#allocation21 + $0x30] sm:$0xff] %v2875
          %2884 = vst [vmem:[#allocation21 + $0x38] sm:$0xff] %v2876
        $region116: #{oriented_rscnn_forward.3} parent=63 // pred_fallthru
          _
        // Predicated region
        $region117: #{oriented_rscnn_forward.3} parent=63 // pred_check
          %p2885 = pneg %p308
        $region118: #{oriented_rscnn_forward.3} parent=63 // pred_check_branch
          %2887 = sbr.rel (%p2885) target = $region120
        $region119: #{oriented_rscnn_forward.3} parent=63 // pred_region
          %s2888 = smul.u32 8, %s37
          %s2890 = ssub.s32 1024, 1024
          %2891 = vsyncadd [#allocation5], %s2890
          %s2892 = smul.addr %s2888, 128
          %s2893 = scalar_lea.hbm %s11, %s2892
          %s2894 = sshll.u32 [#allocation21], 4
          %s2895 = int_to_ptr.vmem [resolvable:$true] %s2894
          %2900 = dma.vmem_to_hbm [thread:$0]  %s2895, 1024, %s2893, [#allocation5], 128, 128, 8
        $region120: #{oriented_rscnn_forward.3} parent=63 // pred_fallthru
          _
        // Predicated region
        $region121: #{oriented_rscnn_forward.3} parent=63 // pred_check
          %p2901 = pneg %p308
        $region122: #{oriented_rscnn_forward.3} parent=63 // pred_check_branch
          %2903 = sbr.rel (%p2901) target = $region124
        $region123: #{oriented_rscnn_forward.3} parent=63 // pred_region
          %2904 = dma.done [#allocation5], 1024
        $region124: #{oriented_rscnn_forward.3} parent=63 // pred_fallthru
          _
      $region64: #{oriented_rscnn_forward.3} parent=5 // pred_fallthru
        _
      %p2905 = scmp.le.s32.totalorder 2, %s28
      // Predicated region
      $region125: #{oriented_rscnn_forward.3} parent=5 // pred_check
        %p2906 = pneg %p2905
      $region126: #{oriented_rscnn_forward.3} parent=5 // pred_check_branch
        %2908 = sbr.rel (%p2906) target = $region128
      $region127: #{oriented_rscnn_forward.3} parent=5 // pred_region
        %s2909 = ssub.s32 %s28, 2
      $region128: #{oriented_rscnn_forward.3} parent=5 // pred_fallthru
        _
    $region6: #{oriented_rscnn_forward.3} parent=1 // loop_footer
      %s32 = sadd.s32 1, %s28
    $region7: #{oriented_rscnn_forward.3} parent=1 // loop_footer_branch
      %27 = sbr.rel target = $region3
    $region8: #{oriented_rscnn_forward.3} parent=1 // loop_exit
      _
    %2910 = vsyncpa [#allocation4], 1
    %s2911 = scalar_lea.sflag [#allocation4], 1
    %2912 = vsyncpa %s2911, 1
    %2913 = vsyncpa [#allocation7], 1
    %s2914 = scalar_lea.sflag [#allocation7], 1
    %2915 = vsyncpa %s2914, 1
    %2916 = vsyncpa [#allocation10], 1
    %2917 = vsyncpa [#allocation13], 1
    %2918 = vsyncpa [#allocation16], 1
    %2919 = vsyncpa [#allocation19], 1
    %2920 = vsyncpa [#allocation5], 1
    %s2921 = scalar_lea.sflag [#allocation5], 1
    %2922 = vsyncpa %s2921, 1

// kernel: oriented_rscnn_forward.5
$region0: #{oriented_rscnn_forward.5}
  #allocation0 [shape = 'u32[]', space=smem, size = 0x4, offset = 0x4, fixed_abs, tag = 'smem constant byte address 0x4 - core index']
  #allocation1 [shape = 'u32[144,128]{1,0:T(1,128)}', space=vmem, size = 0x12000, scoped, tag = 'internal scratch']
  #allocation2 [shape = 'f32[8,512]{1,0:T(8,128)}', space=vmem, size = 0x4000, scoped, tag = 'scratch operand']
  %s0 = inlined_call_operand.hbm [shape: bf16[8,8,7], index: 0, kind: input, shape index: {}]
  %s1 = inlined_call_operand.hbm [shape: f32[8,8,512], index: 1, kind: input, shape index: {}]
  %s2 = inlined_call_operand.hbm [shape: bf16[7,512], index: 2, kind: input, shape index: {}]
  %s3 = inlined_call_operand.hbm [shape: f32[1,512], index: 3, kind: input, shape index: {}]
  %s4 = inlined_call_operand.hbm [shape: bf16[512,1024], index: 4, kind: input, shape index: {}]
  %s5 = inlined_call_operand.hbm [shape: f32[1,1024], index: 5, kind: input, shape index: {}]
  %s6 = inlined_call_operand.hbm [shape: f32[1,1024], index: 6, kind: input, shape index: {}]
  %s7 = inlined_call_operand.hbm [shape: bf16[1024,512], index: 7, kind: input, shape index: {}]
  %s8 = inlined_call_operand.hbm [shape: f32[1,512], index: 8, kind: input, shape index: {}]
  %s9 = inlined_call_operand.hbm [shape: f32[1,512], index: 9, kind: input, shape index: {}]
  %s10 = inlined_call_operand.hbm [shape: bf16[512,256], index: 10, kind: input, shape index: {}]
  %s11 = inlined_call_operand.hbm [shape: f32[1,256], index: 11, kind: input, shape index: {}]
  %s12 = inlined_call_operand.hbm [shape: f32[1,256], index: 12, kind: input, shape index: {}]
  %s13 = inlined_call_operand.hbm [shape: bf16[256,10], index: 13, kind: input, shape index: {}]
  %s14 = inlined_call_operand.hbm [shape: f32[1,10], index: 14, kind: input, shape index: {}]
  %s15 = inlined_call_operand.hbm [shape: f32[8,10], index: 15, kind: output, shape index: {}]
  %s16 = sld [smem:[#allocation0]]
  $region138: #{oriented_rscnn_forward.5} parent=0
    _
  %s18 = ssub.s32 1, %s16
  %s19 = scalar_select 0, %s18, %s16
  $region1: #{oriented_rscnn_forward.5} parent=0
    #allocation3 [shape = 'u8[16384]{0}', space=vmem, size = 0x4000, scoped, tag = 'input window, operand 0, single buffered']
    #allocation4 [shape = 's32[1]{0}', space=sflag, size = 0x4, scoped, tag = 'scoped memory for oriented_rscnn_forward.5']
    #allocation5 [shape = 's32[1]{0}', space=sflag, size = 0x4, scoped, tag = 'scoped memory for oriented_rscnn_forward.5']
    #allocation6 [shape = 'u8[131072]{0}', space=vmem, size = 0x20000, scoped, tag = 'input window, operand 1, single buffered']
    #allocation7 [shape = 's32[1]{0}', space=sflag, size = 0x4, scoped, tag = 'scoped memory for oriented_rscnn_forward.5']
    #allocation8 [shape = 'u8[8192]{0}', space=vmem, size = 0x2000, scoped, tag = 'input window, operand 2, single buffered']
    #allocation9 [shape = 'u8[2048]{0}', space=vmem, size = 0x800, scoped, tag = 'input window, operand 3, single buffered']
    #allocation10 [shape = 's32[1]{0}', space=sflag, size = 0x4, scoped, tag = 'scoped memory for oriented_rscnn_forward.5']
    #allocation11 [shape = 'u8[1048576]{0}', space=vmem, size = 0x100000, scoped, tag = 'input window, operand 4, single buffered']
    #allocation12 [shape = 'u8[4096]{0}', space=vmem, size = 0x1000, scoped, tag = 'input window, operand 5, single buffered']
    #allocation13 [shape = 's32[1]{0}', space=sflag, size = 0x4, scoped, tag = 'scoped memory for oriented_rscnn_forward.5']
    #allocation14 [shape = 'u8[4096]{0}', space=vmem, size = 0x1000, scoped, tag = 'input window, operand 6, single buffered']
    #allocation15 [shape = 'u8[1048576]{0}', space=vmem, size = 0x100000, scoped, tag = 'input window, operand 7, single buffered']
    #allocation16 [shape = 's32[1]{0}', space=sflag, size = 0x4, scoped, tag = 'scoped memory for oriented_rscnn_forward.5']
    #allocation17 [shape = 'u8[2048]{0}', space=vmem, size = 0x800, scoped, tag = 'input window, operand 8, single buffered']
    #allocation18 [shape = 'u8[2048]{0}', space=vmem, size = 0x800, scoped, tag = 'input window, operand 9, single buffered']
    #allocation19 [shape = 's32[1]{0}', space=sflag, size = 0x4, scoped, tag = 'scoped memory for oriented_rscnn_forward.5']
    #allocation20 [shape = 'u8[262144]{0}', space=vmem, size = 0x40000, scoped, tag = 'input window, operand 10, single buffered']
    #allocation21 [shape = 'u8[1024]{0}', space=vmem, size = 0x400, scoped, tag = 'input window, operand 11, single buffered']
    #allocation22 [shape = 's32[1]{0}', space=sflag, size = 0x4, scoped, tag = 'scoped memory for oriented_rscnn_forward.5']
    #allocation23 [shape = 'u8[1024]{0}', space=vmem, size = 0x400, scoped, tag = 'input window, operand 12, single buffered']
    #allocation24 [shape = 'u8[65536]{0}', space=vmem, size = 0x10000, scoped, tag = 'input window, operand 13, single buffered']
    #allocation25 [shape = 's32[1]{0}', space=sflag, size = 0x4, scoped, tag = 'scoped memory for oriented_rscnn_forward.5']
    #allocation26 [shape = 'u8[512]{0}', space=vmem, size = 0x400, scoped, tag = 'input window, operand 14, single buffered']
    #allocation27 [shape = 'u8[4096]{0}', space=vmem, size = 0x1000, scoped, tag = 'output window, operand 0, single buffered']
    %20 = vsyncpa [#allocation4], 0
    %21 = vsyncpa [#allocation7], 0
    %22 = vsyncpa [#allocation10], 0
    %23 = vsyncpa [#allocation13], 0
    %24 = vsyncpa [#allocation16], 0
    %25 = vsyncpa [#allocation19], 0
    %26 = vsyncpa [#allocation22], 0
    %27 = vsyncpa [#allocation25], 0
    %28 = vsyncpa [#allocation5], 0
    // Predicated region
    $region2: #{oriented_rscnn_forward.5} parent=1 // pred_check
      _
    $region3: #{oriented_rscnn_forward.5} parent=1 // pred_check_branch
      %30 = sbr.rel (0) target = $region5
    $region4: #{oriented_rscnn_forward.5} parent=1 // pred_region
      %s32 = ssub.s32 512, 512
      %33 = vsyncadd [#allocation4], %s32
      %s34 = sshll.u32 [#allocation3], 4
      %s35 = int_to_ptr.vmem [resolvable:$true] %s34
      %40 = dma.hbm_to_vmem [thread:$0]  %s0, 512, %s35, [#allocation4], 64, 64, 4
    $region5: #{oriented_rscnn_forward.5} parent=1 // pred_fallthru
      _
    // Predicated region
    $region6: #{oriented_rscnn_forward.5} parent=1 // pred_check
      _
    $region7: #{oriented_rscnn_forward.5} parent=1 // pred_check_branch
      %42 = sbr.rel (0) target = $region9
    $region8: #{oriented_rscnn_forward.5} parent=1 // pred_region
      %s44 = ssub.s32 4096, 4096
      %45 = vsyncadd [#allocation7], %s44
      %s46 = sshll.u32 [#allocation6], 4
      %s47 = int_to_ptr.vmem [resolvable:$true] %s46
      %52 = dma.hbm_to_vmem [thread:$0]  %s1, 4096, %s47, [#allocation7], 512, 512, 32
    $region9: #{oriented_rscnn_forward.5} parent=1 // pred_fallthru
      _
    // Predicated region
    $region10: #{oriented_rscnn_forward.5} parent=1 // pred_check
      _
    $region11: #{oriented_rscnn_forward.5} parent=1 // pred_check_branch
      %54 = sbr.rel (0) target = $region13
    $region12: #{oriented_rscnn_forward.5} parent=1 // pred_region
      %s56 = ssub.s32 256, 256
      %57 = vsyncadd [#allocation7], %s56
      %s59 = sshll.u32 [#allocation8], 4
      %s60 = int_to_ptr.vmem [resolvable:$true] %s59
      %62 = dma.hbm_to_vmem [thread:$0]  %s2, 256, %s60, [#allocation7]
    $region13: #{oriented_rscnn_forward.5} parent=1 // pred_fallthru
      _
    // Predicated region
    $region14: #{oriented_rscnn_forward.5} parent=1 // pred_check
      _
    $region15: #{oriented_rscnn_forward.5} parent=1 // pred_check_branch
      %64 = sbr.rel (0) target = $region17
    $region16: #{oriented_rscnn_forward.5} parent=1 // pred_region
      %s66 = ssub.s32 64, 64
      %67 = vsyncadd [#allocation10], %s66
      %s69 = sshll.u32 [#allocation9], 4
      %s70 = int_to_ptr.vmem [resolvable:$true] %s69
      %72 = dma.hbm_to_vmem [thread:$0]  %s3, 64, %s70, [#allocation10]
    $region17: #{oriented_rscnn_forward.5} parent=1 // pred_fallthru
      _
    // Predicated region
    $region18: #{oriented_rscnn_forward.5} parent=1 // pred_check
      _
    $region19: #{oriented_rscnn_forward.5} parent=1 // pred_check_branch
      %74 = sbr.rel (0) target = $region21
    $region20: #{oriented_rscnn_forward.5} parent=1 // pred_region
      %s76 = ssub.s32 32768, 32768
      %77 = vsyncadd [#allocation10], %s76
      %s78 = sshll.u32 [#allocation11], 4
      %s79 = int_to_ptr.vmem [resolvable:$true] %s78
      %84 = dma.hbm_to_vmem [thread:$0]  %s4, 32768, %s79, [#allocation10], 512, 512, 32
    $region21: #{oriented_rscnn_forward.5} parent=1 // pred_fallthru
      _
    // Predicated region
    $region22: #{oriented_rscnn_forward.5} parent=1 // pred_check
      _
    $region23: #{oriented_rscnn_forward.5} parent=1 // pred_check_branch
      %86 = sbr.rel (0) target = $region25
    $region24: #{oriented_rscnn_forward.5} parent=1 // pred_region
      %s88 = ssub.s32 128, 128
      %89 = vsyncadd [#allocation13], %s88
      %s91 = sshll.u32 [#allocation12], 4
      %s92 = int_to_ptr.vmem [resolvable:$true] %s91
      %94 = dma.hbm_to_vmem [thread:$0]  %s5, 128, %s92, [#allocation13]
    $region25: #{oriented_rscnn_forward.5} parent=1 // pred_fallthru
      _
    // Predicated region
    $region26: #{oriented_rscnn_forward.5} parent=1 // pred_check
      _
    $region27: #{oriented_rscnn_forward.5} parent=1 // pred_check_branch
      %96 = sbr.rel (0) target = $region29
    $region28: #{oriented_rscnn_forward.5} parent=1 // pred_region
      %s98 = ssub.s32 128, 128
      %99 = vsyncadd [#allocation13], %s98
      %s101 = sshll.u32 [#allocation14], 4
      %s102 = int_to_ptr.vmem [resolvable:$true] %s101
      %104 = dma.hbm_to_vmem [thread:$0]  %s6, 128, %s102, [#allocation13]
    $region29: #{oriented_rscnn_forward.5} parent=1 // pred_fallthru
      _
    // Predicated region
    $region30: #{oriented_rscnn_forward.5} parent=1 // pred_check
      _
    $region31: #{oriented_rscnn_forward.5} parent=1 // pred_check_branch
      %106 = sbr.rel (0) target = $region33
    $region32: #{oriented_rscnn_forward.5} parent=1 // pred_region
      %s108 = ssub.s32 32768, 32768
      %109 = vsyncadd [#allocation16], %s108
      %s110 = sshll.u32 [#allocation15], 4
      %s111 = int_to_ptr.vmem [resolvable:$true] %s110
      %116 = dma.hbm_to_vmem [thread:$0]  %s7, 32768, %s111, [#allocation16], 256, 256, 16
    $region33: #{oriented_rscnn_forward.5} parent=1 // pred_fallthru
      _
    // Predicated region
    $region34: #{oriented_rscnn_forward.5} parent=1 // pred_check
      _
    $region35: #{oriented_rscnn_forward.5} parent=1 // pred_check_branch
      %118 = sbr.rel (0) target = $region37
    $region36: #{oriented_rscnn_forward.5} parent=1 // pred_region
      %s120 = ssub.s32 64, 64
      %121 = vsyncadd [#allocation16], %s120
      %s123 = sshll.u32 [#allocation17], 4
      %s124 = int_to_ptr.vmem [resolvable:$true] %s123
      %126 = dma.hbm_to_vmem [thread:$0]  %s8, 64, %s124, [#allocation16]
    $region37: #{oriented_rscnn_forward.5} parent=1 // pred_fallthru
      _
    // Predicated region
    $region38: #{oriented_rscnn_forward.5} parent=1 // pred_check
      _
    $region39: #{oriented_rscnn_forward.5} parent=1 // pred_check_branch
      %128 = sbr.rel (0) target = $region41
    $region40: #{oriented_rscnn_forward.5} parent=1 // pred_region
      %s130 = ssub.s32 64, 64
      %131 = vsyncadd [#allocation19], %s130
      %s133 = sshll.u32 [#allocation18], 4
      %s134 = int_to_ptr.vmem [resolvable:$true] %s133
      %136 = dma.hbm_to_vmem [thread:$0]  %s9, 64, %s134, [#allocation19]
    $region41: #{oriented_rscnn_forward.5} parent=1 // pred_fallthru
      _
    // Predicated region
    $region42: #{oriented_rscnn_forward.5} parent=1 // pred_check
      _
    $region43: #{oriented_rscnn_forward.5} parent=1 // pred_check_branch
      %138 = sbr.rel (0) target = $region45
    $region44: #{oriented_rscnn_forward.5} parent=1 // pred_region
      %s140 = ssub.s32 8192, 8192
      %141 = vsyncadd [#allocation19], %s140
      %s142 = sshll.u32 [#allocation20], 4
      %s143 = int_to_ptr.vmem [resolvable:$true] %s142
      %148 = dma.hbm_to_vmem [thread:$0]  %s10, 8192, %s143, [#allocation19], 128, 128, 8
    $region45: #{oriented_rscnn_forward.5} parent=1 // pred_fallthru
      _
    // Predicated region
    $region46: #{oriented_rscnn_forward.5} parent=1 // pred_check
      _
    $region47: #{oriented_rscnn_forward.5} parent=1 // pred_check_branch
      %150 = sbr.rel (0) target = $region49
    $region48: #{oriented_rscnn_forward.5} parent=1 // pred_region
      %s152 = ssub.s32 32, 32
      %153 = vsyncadd [#allocation22], %s152
      %s155 = sshll.u32 [#allocation21], 4
      %s156 = int_to_ptr.vmem [resolvable:$true] %s155
      %158 = dma.hbm_to_vmem [thread:$0]  %s11, 32, %s156, [#allocation22]
    $region49: #{oriented_rscnn_forward.5} parent=1 // pred_fallthru
      _
    // Predicated region
    $region50: #{oriented_rscnn_forward.5} parent=1 // pred_check
      _
    $region51: #{oriented_rscnn_forward.5} parent=1 // pred_check_branch
      %160 = sbr.rel (0) target = $region53
    $region52: #{oriented_rscnn_forward.5} parent=1 // pred_region
      %s162 = ssub.s32 32, 32
      %163 = vsyncadd [#allocation22], %s162
      %s165 = sshll.u32 [#allocation23], 4
      %s166 = int_to_ptr.vmem [resolvable:$true] %s165
      %168 = dma.hbm_to_vmem [thread:$0]  %s12, 32, %s166, [#allocation22]
    $region53: #{oriented_rscnn_forward.5} parent=1 // pred_fallthru
      _
    // Predicated region
    $region54: #{oriented_rscnn_forward.5} parent=1 // pred_check
      _
    $region55: #{oriented_rscnn_forward.5} parent=1 // pred_check_branch
      %170 = sbr.rel (0) target = $region57
    $region56: #{oriented_rscnn_forward.5} parent=1 // pred_region
      %s172 = ssub.s32 2048, 2048
      %173 = vsyncadd [#allocation25], %s172
      %s174 = sshll.u32 [#allocation24], 4
      %s175 = int_to_ptr.vmem [resolvable:$true] %s174
      %180 = dma.hbm_to_vmem [thread:$0]  %s13, 2048, %s175, [#allocation25], 64, 64, 4
    $region57: #{oriented_rscnn_forward.5} parent=1 // pred_fallthru
      _
    // Predicated region
    $region58: #{oriented_rscnn_forward.5} parent=1 // pred_check
      _
    $region59: #{oriented_rscnn_forward.5} parent=1 // pred_check_branch
      %182 = sbr.rel (0) target = $region61
    $region60: #{oriented_rscnn_forward.5} parent=1 // pred_region
      %s184 = ssub.s32 16, 16
      %185 = vsyncadd [#allocation25], %s184
      %s187 = sshll.u32 [#allocation26], 4
      %s188 = int_to_ptr.vmem [resolvable:$true] %s187
      %190 = dma.hbm_to_vmem [thread:$0]  %s14, 16, %s188, [#allocation25]
    $region61: #{oriented_rscnn_forward.5} parent=1 // pred_fallthru
      _
    // Predicated region
    $region62: #{oriented_rscnn_forward.5} parent=1 // pred_check
      _
    $region63: #{oriented_rscnn_forward.5} parent=1 // pred_check_branch
      %192 = sbr.rel (0) target = $region65
    $region64: #{oriented_rscnn_forward.5} parent=1 // pred_region
      %193 = dma.done [#allocation4], 512
    $region65: #{oriented_rscnn_forward.5} parent=1 // pred_fallthru
      _
    // Predicated region
    $region66: #{oriented_rscnn_forward.5} parent=1 // pred_check
      _
    $region67: #{oriented_rscnn_forward.5} parent=1 // pred_check_branch
      %195 = sbr.rel (0) target = $region69
    $region68: #{oriented_rscnn_forward.5} parent=1 // pred_region
      %196 = dma.done [#allocation7], 4096
    $region69: #{oriented_rscnn_forward.5} parent=1 // pred_fallthru
      _
    // Predicated region
    $region70: #{oriented_rscnn_forward.5} parent=1 // pred_check
      _
    $region71: #{oriented_rscnn_forward.5} parent=1 // pred_check_branch
      %198 = sbr.rel (0) target = $region73
    $region72: #{oriented_rscnn_forward.5} parent=1 // pred_region
      %199 = dma.done [#allocation7], 256
    $region73: #{oriented_rscnn_forward.5} parent=1 // pred_fallthru
      _
    // Predicated region
    $region74: #{oriented_rscnn_forward.5} parent=1 // pred_check
      _
    $region75: #{oriented_rscnn_forward.5} parent=1 // pred_check_branch
      %201 = sbr.rel (0) target = $region77
    $region76: #{oriented_rscnn_forward.5} parent=1 // pred_region
      %202 = dma.done [#allocation10], 64
    $region77: #{oriented_rscnn_forward.5} parent=1 // pred_fallthru
      _
    // Predicated region
    $region78: #{oriented_rscnn_forward.5} parent=1 // pred_check
      _
    $region79: #{oriented_rscnn_forward.5} parent=1 // pred_check_branch
      %204 = sbr.rel (0) target = $region81
    $region80: #{oriented_rscnn_forward.5} parent=1 // pred_region
      %205 = dma.done [#allocation10], 32768
    $region81: #{oriented_rscnn_forward.5} parent=1 // pred_fallthru
      _
    // Predicated region
    $region82: #{oriented_rscnn_forward.5} parent=1 // pred_check
      _
    $region83: #{oriented_rscnn_forward.5} parent=1 // pred_check_branch
      %207 = sbr.rel (0) target = $region85
    $region84: #{oriented_rscnn_forward.5} parent=1 // pred_region
      %208 = dma.done [#allocation13], 128
    $region85: #{oriented_rscnn_forward.5} parent=1 // pred_fallthru
      _
    // Predicated region
    $region86: #{oriented_rscnn_forward.5} parent=1 // pred_check
      _
    $region87: #{oriented_rscnn_forward.5} parent=1 // pred_check_branch
      %210 = sbr.rel (0) target = $region89
    $region88: #{oriented_rscnn_forward.5} parent=1 // pred_region
      %211 = dma.done [#allocation13], 128
    $region89: #{oriented_rscnn_forward.5} parent=1 // pred_fallthru
      _
    // Predicated region
    $region90: #{oriented_rscnn_forward.5} parent=1 // pred_check
      _
    $region91: #{oriented_rscnn_forward.5} parent=1 // pred_check_branch
      %213 = sbr.rel (0) target = $region93
    $region92: #{oriented_rscnn_forward.5} parent=1 // pred_region
      %214 = dma.done [#allocation16], 32768
    $region93: #{oriented_rscnn_forward.5} parent=1 // pred_fallthru
      _
    // Predicated region
    $region94: #{oriented_rscnn_forward.5} parent=1 // pred_check
      _
    $region95: #{oriented_rscnn_forward.5} parent=1 // pred_check_branch
      %216 = sbr.rel (0) target = $region97
    $region96: #{oriented_rscnn_forward.5} parent=1 // pred_region
      %217 = dma.done [#allocation16], 64
    $region97: #{oriented_rscnn_forward.5} parent=1 // pred_fallthru
      _
    // Predicated region
    $region98: #{oriented_rscnn_forward.5} parent=1 // pred_check
      _
    $region99: #{oriented_rscnn_forward.5} parent=1 // pred_check_branch
      %219 = sbr.rel (0) target = $region101
    $region100: #{oriented_rscnn_forward.5} parent=1 // pred_region
      %220 = dma.done [#allocation19], 64
    $region101: #{oriented_rscnn_forward.5} parent=1 // pred_fallthru
      _
    // Predicated region
    $region102: #{oriented_rscnn_forward.5} parent=1 // pred_check
      _
    $region103: #{oriented_rscnn_forward.5} parent=1 // pred_check_branch
      %222 = sbr.rel (0) target = $region105
    $region104: #{oriented_rscnn_forward.5} parent=1 // pred_region
      %223 = dma.done [#allocation19], 8192
    $region105: #{oriented_rscnn_forward.5} parent=1 // pred_fallthru
      _
    // Predicated region
    $region106: #{oriented_rscnn_forward.5} parent=1 // pred_check
      _
    $region107: #{oriented_rscnn_forward.5} parent=1 // pred_check_branch
      %225 = sbr.rel (0) target = $region109
    $region108: #{oriented_rscnn_forward.5} parent=1 // pred_region
      %226 = dma.done [#allocation22], 32
    $region109: #{oriented_rscnn_forward.5} parent=1 // pred_fallthru
      _
    // Predicated region
    $region110: #{oriented_rscnn_forward.5} parent=1 // pred_check
      _
    $region111: #{oriented_rscnn_forward.5} parent=1 // pred_check_branch
      %228 = sbr.rel (0) target = $region113
    $region112: #{oriented_rscnn_forward.5} parent=1 // pred_region
      %229 = dma.done [#allocation22], 32
    $region113: #{oriented_rscnn_forward.5} parent=1 // pred_fallthru
      _
    // Predicated region
    $region114: #{oriented_rscnn_forward.5} parent=1 // pred_check
      _
    $region115: #{oriented_rscnn_forward.5} parent=1 // pred_check_branch
      %231 = sbr.rel (0) target = $region117
    $region116: #{oriented_rscnn_forward.5} parent=1 // pred_region
      %232 = dma.done [#allocation25], 2048
    $region117: #{oriented_rscnn_forward.5} parent=1 // pred_fallthru
      _
    // Predicated region
    $region118: #{oriented_rscnn_forward.5} parent=1 // pred_check
      _
    $region119: #{oriented_rscnn_forward.5} parent=1 // pred_check_branch
      %234 = sbr.rel (0) target = $region121
    $region120: #{oriented_rscnn_forward.5} parent=1 // pred_region
      %235 = dma.done [#allocation25], 16
    $region121: #{oriented_rscnn_forward.5} parent=1 // pred_fallthru
      _
    %p237 = scmp.eq.s32.totalorder 0, 0
    // Predicated region
    $region122: #{oriented_rscnn_forward.5} parent=1 // pred_check
      %p238 = pneg %p237
    $region123: #{oriented_rscnn_forward.5} parent=1 // pred_check_branch
      %240 = sbr.rel (%p238) target = $region125
    $region124: #{oriented_rscnn_forward.5} parent=1 // pred_region
      %241 = vst [vmem:[#allocation2] sm:$0xff] -inf
      %242 = vst [vmem:[#allocation2 + $0x8] sm:$0xff] -inf
      %243 = vst [vmem:[#allocation2 + $0x10] sm:$0xff] -inf
      %244 = vst [vmem:[#allocation2 + $0x18] sm:$0xff] -inf
    $region125: #{oriented_rscnn_forward.5} parent=1 // pred_fallthru
      _
    %v245 = vld [vmem:[#allocation8] sm:$0xff]
    %v246 = vld [vmem:[#allocation8 + $0x8] sm:$0xff]
    %v247 = vld [vmem:[#allocation9] sm:$0xf]
    %v248 = vld [vmem:[#allocation3] sm:$0xf]
    %v250 = vlaneseq
    %v251 = vshrl.u32 %v250, 7
    %v252 = vsub.s32 0, %v251
    %v253 = vrot.slane %v247, %v252
    %v254 = vlaneseq
    %v255 = vshrl.u32 %v254, 7
    %v256 = vsub.s32 1, %v255
    %v257 = vrot.slane %v247, %v256
    %v258 = vlaneseq
    %v259 = vshrl.u32 %v258, 7
    %v260 = vsub.s32 2, %v259
    %v261 = vrot.slane %v247, %v260
    %v262 = vlaneseq
    %v263 = vshrl.u32 %v262, 7
    %v264 = vsub.s32 3, %v263
    %v265 = vrot.slane %v247, %v264
    %v272 = vunpack.c.l.b16 %v245
    %v273 = vunpack.c.h.b16 %v245
    %v274 = vunpack.c.l.b16 %v246
    %v275 = vunpack.c.h.b16 %v246
    %v276 = vpack.c.b16 %v272, %v272
    %v277 = vpack.c.b16 %v273, %v273
    %v278 = vpack.c.b16 %v274, %v274
    %v279 = vpack.c.b16 %v275, %v275
    %vm280 = vcmask 56320
    %v282 = vsel %vm280, %v248, 0
    %vm284 = vcmask 1042432
    %vm285 = vcmask 1043456
    %v286 = vsel %vm284, 4294967295, 65535
    %v287 = vsel %vm285, %v286, 0
    %v289 = vand.u32 %v276, %v287
    %v292 = vand.u32 %v277, %v287
    %v295 = vand.u32 %v278, %v287
    %v298 = vand.u32 %v279, %v287
    %300 = vmatprep.subr.bf16.mxu0 %v292
    %301 = vmatpush1.bf16.msra.mxu0 %v289
    %302 = vmatprep.subr.bf16.mxu0 0
    %303 = vmatpush1.bf16.msra.mxu0 0
    %304 = vmatprep.subr.bf16.mxu0 0
    %305 = vmatpush1.bf16.msra.mxu0 0
    %306 = vmatprep.subr.bf16.mxu0 0
    %307 = vmatpush1.bf16.msra.mxu0 0
    %308 = vmatprep.subr.bf16.mxu0 0
    %309 = vmatpush1.bf16.msra.mxu0 0
    %310 = vmatprep.subr.bf16.mxu0 0
    %311 = vmatpush1.bf16.msra.mxu0 0
    %312 = vmatprep.subr.bf16.mxu0 0
    %313 = vmatpush1.bf16.msra.mxu0 0
    %314 = vmatprep.subr.bf16.mxu0 0
    %315 = vmatpush1.bf16.msra.mxu0 0
    %316 = vmatprep.subr.bf16.mxu0 0
    %317 = vmatpush1.bf16.msra.mxu0 0
    %318 = vmatprep.subr.bf16.mxu0 0
    %319 = vmatpush1.bf16.msra.mxu0 0
    %320 = vmatprep.subr.bf16.mxu0 0
    %321 = vmatpush1.bf16.msra.mxu0 0
    %322 = vmatprep.subr.bf16.mxu0 0
    %323 = vmatpush1.bf16.msra.mxu0 0
    %324 = vmatprep.subr.bf16.mxu0 0
    %325 = vmatpush1.bf16.msra.mxu0 0
    %326 = vmatprep.subr.bf16.mxu0 0
    %327 = vmatpush1.bf16.msra.mxu0 0
    %328 = vmatprep.subr.bf16.mxu0 0
    %329 = vmatpush1.bf16.msra.mxu0 0
    %330 = vmatprep.subr.bf16.mxu0 0
    %331 = vmatpush1.bf16.msra.mxu0 0
    %332 = vmatprep.mubr.bf16.mxu0 0
    %333 = vmatmul.mubr.bf16.gmra.mrb[0].mxu0 %v282
    %v334 = vpop.f32.mrb[0].mxu0
    %v335 = vadd.f32 %v253, %v334
    %v336 = vpop.f32.mrb[0].mxu0
    %v337 = vadd.f32 %v257, %v336
    %v338 = vpop.f32.mrb[0].mxu0
    %v339 = vpop.f32.mrb[0].mxu0
    %340 = vdwg.mxu0
    %341 = vmatprep.subr.bf16.mxu0 %v298
    %342 = vmatpush1.bf16.msra.mxu0 %v295
    %343 = vmatprep.subr.bf16.mxu0 0
    %344 = vmatpush1.bf16.msra.mxu0 0
    %345 = vmatprep.subr.bf16.mxu0 0
    %346 = vmatpush1.bf16.msra.mxu0 0
    %347 = vmatprep.subr.bf16.mxu0 0
    %348 = vmatpush1.bf16.msra.mxu0 0
    %349 = vmatprep.subr.bf16.mxu0 0
    %350 = vmatpush1.bf16.msra.mxu0 0
    %351 = vmatprep.subr.bf16.mxu0 0
    %352 = vmatpush1.bf16.msra.mxu0 0
    %353 = vmatprep.subr.bf16.mxu0 0
    %354 = vmatpush1.bf16.msra.mxu0 0
    %355 = vmatprep.subr.bf16.mxu0 0
    %356 = vmatpush1.bf16.msra.mxu0 0
    %357 = vmatprep.subr.bf16.mxu0 0
    %358 = vmatpush1.bf16.msra.mxu0 0
    %359 = vmatprep.subr.bf16.mxu0 0
    %360 = vmatpush1.bf16.msra.mxu0 0
    %361 = vmatprep.subr.bf16.mxu0 0
    %362 = vmatpush1.bf16.msra.mxu0 0
    %363 = vmatprep.subr.bf16.mxu0 0
    %364 = vmatpush1.bf16.msra.mxu0 0
    %365 = vmatprep.subr.bf16.mxu0 0
    %366 = vmatpush1.bf16.msra.mxu0 0
    %367 = vmatprep.subr.bf16.mxu0 0
    %368 = vmatpush1.bf16.msra.mxu0 0
    %369 = vmatprep.subr.bf16.mxu0 0
    %370 = vmatpush1.bf16.msra.mxu0 0
    %371 = vmatprep.subr.bf16.mxu0 0
    %372 = vmatpush1.bf16.msra.mxu0 0
    %373 = vmatprep.mubr.bf16.mxu0 0
    %374 = vmatmul.mubr.bf16.gmra.mrb[0].mxu0 %v282
    %v375 = vpop.f32.mrb[0].mxu0
    %v376 = vadd.f32 %v261, %v375
    %v377 = vpop.f32.mrb[0].mxu0
    %v378 = vadd.f32 %v265, %v377
    %v379 = vpop.f32.mrb[0].mxu0
    %v380 = vpop.f32.mrb[0].mxu0
    %381 = vdwg.mxu0
    %v382 = vmax.f32 %v335, 0.0
    %v383 = vmax.f32 %v337, 0.0
    %v384 = vmax.f32 %v376, 0.0
    %v385 = vmax.f32 %v378, 0.0
    %v386 = vld [vmem:[#allocation6] sm:$0xff]
    %v387 = vld [vmem:[#allocation6 + $0x8] sm:$0xff]
    %v388 = vld [vmem:[#allocation6 + $0x10] sm:$0xff]
    %v389 = vld [vmem:[#allocation6 + $0x18] sm:$0xff]
    %v390 = vmul.f32 %v382, %v386
    %v391 = vmul.f32 %v383, %v387
    %v392 = vmul.f32 %v384, %v388
    %v393 = vmul.f32 %v385, %v389
    %s394 = scalar_lea.vmem [#allocation3], 4
    %v395 = vld [vmem:[%s394] sm:$0xf]
    %v397 = vsel %vm280, %v395, 0
    %399 = vmatprep.subr.bf16.mxu0 %v292
    %400 = vmatpush1.bf16.msra.mxu0 %v289
    %401 = vmatprep.subr.bf16.mxu0 0
    %402 = vmatpush1.bf16.msra.mxu0 0
    %403 = vmatprep.subr.bf16.mxu0 0
    %404 = vmatpush1.bf16.msra.mxu0 0
    %405 = vmatprep.subr.bf16.mxu0 0
    %406 = vmatpush1.bf16.msra.mxu0 0
    %407 = vmatprep.subr.bf16.mxu0 0
    %408 = vmatpush1.bf16.msra.mxu0 0
    %409 = vmatprep.subr.bf16.mxu0 0
    %410 = vmatpush1.bf16.msra.mxu0 0
    %411 = vmatprep.subr.bf16.mxu0 0
    %412 = vmatpush1.bf16.msra.mxu0 0
    %413 = vmatprep.subr.bf16.mxu0 0
    %414 = vmatpush1.bf16.msra.mxu0 0
    %415 = vmatprep.subr.bf16.mxu0 0
    %416 = vmatpush1.bf16.msra.mxu0 0
    %417 = vmatprep.subr.bf16.mxu0 0
    %418 = vmatpush1.bf16.msra.mxu0 0
    %419 = vmatprep.subr.bf16.mxu0 0
    %420 = vmatpush1.bf16.msra.mxu0 0
    %421 = vmatprep.subr.bf16.mxu0 0
    %422 = vmatpush1.bf16.msra.mxu0 0
    %423 = vmatprep.subr.bf16.mxu0 0
    %424 = vmatpush1.bf16.msra.mxu0 0
    %425 = vmatprep.subr.bf16.mxu0 0
    %426 = vmatpush1.bf16.msra.mxu0 0
    %427 = vmatprep.subr.bf16.mxu0 0
    %428 = vmatpush1.bf16.msra.mxu0 0
    %429 = vmatprep.subr.bf16.mxu0 0
    %430 = vmatpush1.bf16.msra.mxu0 0
    %431 = vmatprep.mubr.bf16.mxu0 0
    %432 = vmatmul.mubr.bf16.gmra.mrb[0].mxu0 %v397
    %v433 = vpop.f32.mrb[0].mxu0
    %v434 = vadd.f32 %v253, %v433
    %v435 = vpop.f32.mrb[0].mxu0
    %v436 = vadd.f32 %v257, %v435
    %v437 = vpop.f32.mrb[0].mxu0
    %v438 = vpop.f32.mrb[0].mxu0
    %439 = vdwg.mxu0
    %440 = vmatprep.subr.bf16.mxu0 %v298
    %441 = vmatpush1.bf16.msra.mxu0 %v295
    %442 = vmatprep.subr.bf16.mxu0 0
    %443 = vmatpush1.bf16.msra.mxu0 0
    %444 = vmatprep.subr.bf16.mxu0 0
    %445 = vmatpush1.bf16.msra.mxu0 0
    %446 = vmatprep.subr.bf16.mxu0 0
    %447 = vmatpush1.bf16.msra.mxu0 0
    %448 = vmatprep.subr.bf16.mxu0 0
    %449 = vmatpush1.bf16.msra.mxu0 0
    %450 = vmatprep.subr.bf16.mxu0 0
    %451 = vmatpush1.bf16.msra.mxu0 0
    %452 = vmatprep.subr.bf16.mxu0 0
    %453 = vmatpush1.bf16.msra.mxu0 0
    %454 = vmatprep.subr.bf16.mxu0 0
    %455 = vmatpush1.bf16.msra.mxu0 0
    %456 = vmatprep.subr.bf16.mxu0 0
    %457 = vmatpush1.bf16.msra.mxu0 0
    %458 = vmatprep.subr.bf16.mxu0 0
    %459 = vmatpush1.bf16.msra.mxu0 0
    %460 = vmatprep.subr.bf16.mxu0 0
    %461 = vmatpush1.bf16.msra.mxu0 0
    %462 = vmatprep.subr.bf16.mxu0 0
    %463 = vmatpush1.bf16.msra.mxu0 0
    %464 = vmatprep.subr.bf16.mxu0 0
    %465 = vmatpush1.bf16.msra.mxu0 0
    %466 = vmatprep.subr.bf16.mxu0 0
    %467 = vmatpush1.bf16.msra.mxu0 0
    %468 = vmatprep.subr.bf16.mxu0 0
    %469 = vmatpush1.bf16.msra.mxu0 0
    %470 = vmatprep.subr.bf16.mxu0 0
    %471 = vmatpush1.bf16.msra.mxu0 0
    %472 = vmatprep.mubr.bf16.mxu0 0
    %473 = vmatmul.mubr.bf16.gmra.mrb[0].mxu0 %v397
    %v474 = vpop.f32.mrb[0].mxu0
    %v475 = vadd.f32 %v261, %v474
    %v476 = vpop.f32.mrb[0].mxu0
    %v477 = vadd.f32 %v265, %v476
    %v478 = vpop.f32.mrb[0].mxu0
    %v479 = vpop.f32.mrb[0].mxu0
    %480 = vdwg.mxu0
    %v481 = vmax.f32 %v434, 0.0
    %v482 = vmax.f32 %v436, 0.0
    %v483 = vmax.f32 %v475, 0.0
    %v484 = vmax.f32 %v477, 0.0
    %s485 = scalar_lea.vmem [#allocation6], 32
    %v486 = vld [vmem:[%s485] sm:$0xff]
    %v487 = vld [vmem:[%s485 + $0x8] sm:$0xff]
    %v488 = vld [vmem:[%s485 + $0x10] sm:$0xff]
    %v489 = vld [vmem:[%s485 + $0x18] sm:$0xff]
    %v490 = vmul.f32 %v481, %v486
    %v491 = vmul.f32 %v482, %v487
    %v492 = vmul.f32 %v483, %v488
    %v493 = vmul.f32 %v484, %v489
    %v494 = vmax.f32 %v390, %v490
    %v495 = vmax.f32 %v391, %v491
    %v496 = vmax.f32 %v392, %v492
    %v497 = vmax.f32 %v393, %v493
    %s498 = scalar_lea.vmem [#allocation3], 8
    %v499 = vld [vmem:[%s498] sm:$0xf]
    %v501 = vsel %vm280, %v499, 0
    %503 = vmatprep.subr.bf16.mxu0 %v292
    %504 = vmatpush1.bf16.msra.mxu0 %v289
    %505 = vmatprep.subr.bf16.mxu0 0
    %506 = vmatpush1.bf16.msra.mxu0 0
    %507 = vmatprep.subr.bf16.mxu0 0
    %508 = vmatpush1.bf16.msra.mxu0 0
    %509 = vmatprep.subr.bf16.mxu0 0
    %510 = vmatpush1.bf16.msra.mxu0 0
    %511 = vmatprep.subr.bf16.mxu0 0
    %512 = vmatpush1.bf16.msra.mxu0 0
    %513 = vmatprep.subr.bf16.mxu0 0
    %514 = vmatpush1.bf16.msra.mxu0 0
    %515 = vmatprep.subr.bf16.mxu0 0
    %516 = vmatpush1.bf16.msra.mxu0 0
    %517 = vmatprep.subr.bf16.mxu0 0
    %518 = vmatpush1.bf16.msra.mxu0 0
    %519 = vmatprep.subr.bf16.mxu0 0
    %520 = vmatpush1.bf16.msra.mxu0 0
    %521 = vmatprep.subr.bf16.mxu0 0
    %522 = vmatpush1.bf16.msra.mxu0 0
    %523 = vmatprep.subr.bf16.mxu0 0
    %524 = vmatpush1.bf16.msra.mxu0 0
    %525 = vmatprep.subr.bf16.mxu0 0
    %526 = vmatpush1.bf16.msra.mxu0 0
    %527 = vmatprep.subr.bf16.mxu0 0
    %528 = vmatpush1.bf16.msra.mxu0 0
    %529 = vmatprep.subr.bf16.mxu0 0
    %530 = vmatpush1.bf16.msra.mxu0 0
    %531 = vmatprep.subr.bf16.mxu0 0
    %532 = vmatpush1.bf16.msra.mxu0 0
    %533 = vmatprep.subr.bf16.mxu0 0
    %534 = vmatpush1.bf16.msra.mxu0 0
    %535 = vmatprep.mubr.bf16.mxu0 0
    %536 = vmatmul.mubr.bf16.gmra.mrb[0].mxu0 %v501
    %v537 = vpop.f32.mrb[0].mxu0
    %v538 = vadd.f32 %v253, %v537
    %v539 = vpop.f32.mrb[0].mxu0
    %v540 = vadd.f32 %v257, %v539
    %v541 = vpop.f32.mrb[0].mxu0
    %v542 = vpop.f32.mrb[0].mxu0
    %543 = vdwg.mxu0
    %544 = vmatprep.subr.bf16.mxu0 %v298
    %545 = vmatpush1.bf16.msra.mxu0 %v295
    %546 = vmatprep.subr.bf16.mxu0 0
    %547 = vmatpush1.bf16.msra.mxu0 0
    %548 = vmatprep.subr.bf16.mxu0 0
    %549 = vmatpush1.bf16.msra.mxu0 0
    %550 = vmatprep.subr.bf16.mxu0 0
    %551 = vmatpush1.bf16.msra.mxu0 0
    %552 = vmatprep.subr.bf16.mxu0 0
    %553 = vmatpush1.bf16.msra.mxu0 0
    %554 = vmatprep.subr.bf16.mxu0 0
    %555 = vmatpush1.bf16.msra.mxu0 0
    %556 = vmatprep.subr.bf16.mxu0 0
    %557 = vmatpush1.bf16.msra.mxu0 0
    %558 = vmatprep.subr.bf16.mxu0 0
    %559 = vmatpush1.bf16.msra.mxu0 0
    %560 = vmatprep.subr.bf16.mxu0 0
    %561 = vmatpush1.bf16.msra.mxu0 0
    %562 = vmatprep.subr.bf16.mxu0 0
    %563 = vmatpush1.bf16.msra.mxu0 0
    %564 = vmatprep.subr.bf16.mxu0 0
    %565 = vmatpush1.bf16.msra.mxu0 0
    %566 = vmatprep.subr.bf16.mxu0 0
    %567 = vmatpush1.bf16.msra.mxu0 0
    %568 = vmatprep.subr.bf16.mxu0 0
    %569 = vmatpush1.bf16.msra.mxu0 0
    %570 = vmatprep.subr.bf16.mxu0 0
    %571 = vmatpush1.bf16.msra.mxu0 0
    %572 = vmatprep.subr.bf16.mxu0 0
    %573 = vmatpush1.bf16.msra.mxu0 0
    %574 = vmatprep.subr.bf16.mxu0 0
    %575 = vmatpush1.bf16.msra.mxu0 0
    %576 = vmatprep.mubr.bf16.mxu0 0
    %577 = vmatmul.mubr.bf16.gmra.mrb[0].mxu0 %v501
    %v578 = vpop.f32.mrb[0].mxu0
    %v579 = vadd.f32 %v261, %v578
    %v580 = vpop.f32.mrb[0].mxu0
    %v581 = vadd.f32 %v265, %v580
    %v582 = vpop.f32.mrb[0].mxu0
    %v583 = vpop.f32.mrb[0].mxu0
    %584 = vdwg.mxu0
    %v585 = vmax.f32 %v538, 0.0
    %v586 = vmax.f32 %v540, 0.0
    %v587 = vmax.f32 %v579, 0.0
    %v588 = vmax.f32 %v581, 0.0
    %s589 = scalar_lea.vmem [#allocation6], 64
    %v590 = vld [vmem:[%s589] sm:$0xff]
    %v591 = vld [vmem:[%s589 + $0x8] sm:$0xff]
    %v592 = vld [vmem:[%s589 + $0x10] sm:$0xff]
    %v593 = vld [vmem:[%s589 + $0x18] sm:$0xff]
    %v594 = vmul.f32 %v585, %v590
    %v595 = vmul.f32 %v586, %v591
    %v596 = vmul.f32 %v587, %v592
    %v597 = vmul.f32 %v588, %v593
    %v598 = vmax.f32 %v494, %v594
    %v599 = vmax.f32 %v495, %v595
    %v600 = vmax.f32 %v496, %v596
    %v601 = vmax.f32 %v497, %v597
    %s602 = scalar_lea.vmem [#allocation3], 12
    %v603 = vld [vmem:[%s602] sm:$0xf]
    %v605 = vsel %vm280, %v603, 0
    %607 = vmatprep.subr.bf16.mxu0 %v292
    %608 = vmatpush1.bf16.msra.mxu0 %v289
    %609 = vmatprep.subr.bf16.mxu0 0
    %610 = vmatpush1.bf16.msra.mxu0 0
    %611 = vmatprep.subr.bf16.mxu0 0
    %612 = vmatpush1.bf16.msra.mxu0 0
    %613 = vmatprep.subr.bf16.mxu0 0
    %614 = vmatpush1.bf16.msra.mxu0 0
    %615 = vmatprep.subr.bf16.mxu0 0
    %616 = vmatpush1.bf16.msra.mxu0 0
    %617 = vmatprep.subr.bf16.mxu0 0
    %618 = vmatpush1.bf16.msra.mxu0 0
    %619 = vmatprep.subr.bf16.mxu0 0
    %620 = vmatpush1.bf16.msra.mxu0 0
    %621 = vmatprep.subr.bf16.mxu0 0
    %622 = vmatpush1.bf16.msra.mxu0 0
    %623 = vmatprep.subr.bf16.mxu0 0
    %624 = vmatpush1.bf16.msra.mxu0 0
    %625 = vmatprep.subr.bf16.mxu0 0
    %626 = vmatpush1.bf16.msra.mxu0 0
    %627 = vmatprep.subr.bf16.mxu0 0
    %628 = vmatpush1.bf16.msra.mxu0 0
    %629 = vmatprep.subr.bf16.mxu0 0
    %630 = vmatpush1.bf16.msra.mxu0 0
    %631 = vmatprep.subr.bf16.mxu0 0
    %632 = vmatpush1.bf16.msra.mxu0 0
    %633 = vmatprep.subr.bf16.mxu0 0
    %634 = vmatpush1.bf16.msra.mxu0 0
    %635 = vmatprep.subr.bf16.mxu0 0
    %636 = vmatpush1.bf16.msra.mxu0 0
    %637 = vmatprep.subr.bf16.mxu0 0
    %638 = vmatpush1.bf16.msra.mxu0 0
    %639 = vmatprep.mubr.bf16.mxu0 0
    %640 = vmatmul.mubr.bf16.gmra.mrb[0].mxu0 %v605
    %v641 = vpop.f32.mrb[0].mxu0
    %v642 = vadd.f32 %v253, %v641
    %v643 = vpop.f32.mrb[0].mxu0
    %v644 = vadd.f32 %v257, %v643
    %v645 = vpop.f32.mrb[0].mxu0
    %v646 = vpop.f32.mrb[0].mxu0
    %647 = vdwg.mxu0
    %648 = vmatprep.subr.bf16.mxu0 %v298
    %649 = vmatpush1.bf16.msra.mxu0 %v295
    %650 = vmatprep.subr.bf16.mxu0 0
    %651 = vmatpush1.bf16.msra.mxu0 0
    %652 = vmatprep.subr.bf16.mxu0 0
    %653 = vmatpush1.bf16.msra.mxu0 0
    %654 = vmatprep.subr.bf16.mxu0 0
    %655 = vmatpush1.bf16.msra.mxu0 0
    %656 = vmatprep.subr.bf16.mxu0 0
    %657 = vmatpush1.bf16.msra.mxu0 0
    %658 = vmatprep.subr.bf16.mxu0 0
    %659 = vmatpush1.bf16.msra.mxu0 0
    %660 = vmatprep.subr.bf16.mxu0 0
    %661 = vmatpush1.bf16.msra.mxu0 0
    %662 = vmatprep.subr.bf16.mxu0 0
    %663 = vmatpush1.bf16.msra.mxu0 0
    %664 = vmatprep.subr.bf16.mxu0 0
    %665 = vmatpush1.bf16.msra.mxu0 0
    %666 = vmatprep.subr.bf16.mxu0 0
    %667 = vmatpush1.bf16.msra.mxu0 0
    %668 = vmatprep.subr.bf16.mxu0 0
    %669 = vmatpush1.bf16.msra.mxu0 0
    %670 = vmatprep.subr.bf16.mxu0 0
    %671 = vmatpush1.bf16.msra.mxu0 0
    %672 = vmatprep.subr.bf16.mxu0 0
    %673 = vmatpush1.bf16.msra.mxu0 0
    %674 = vmatprep.subr.bf16.mxu0 0
    %675 = vmatpush1.bf16.msra.mxu0 0
    %676 = vmatprep.subr.bf16.mxu0 0
    %677 = vmatpush1.bf16.msra.mxu0 0
    %678 = vmatprep.subr.bf16.mxu0 0
    %679 = vmatpush1.bf16.msra.mxu0 0
    %680 = vmatprep.mubr.bf16.mxu0 0
    %681 = vmatmul.mubr.bf16.gmra.mrb[0].mxu0 %v605
    %v682 = vpop.f32.mrb[0].mxu0
    %v683 = vadd.f32 %v261, %v682
    %v684 = vpop.f32.mrb[0].mxu0
    %v685 = vadd.f32 %v265, %v684
    %v686 = vpop.f32.mrb[0].mxu0
    %v687 = vpop.f32.mrb[0].mxu0
    %688 = vdwg.mxu0
    %v689 = vmax.f32 %v642, 0.0
    %v690 = vmax.f32 %v644, 0.0
    %v691 = vmax.f32 %v683, 0.0
    %v692 = vmax.f32 %v685, 0.0
    %s693 = scalar_lea.vmem [#allocation6], 96
    %v694 = vld [vmem:[%s693] sm:$0xff]
    %v695 = vld [vmem:[%s693 + $0x8] sm:$0xff]
    %v696 = vld [vmem:[%s693 + $0x10] sm:$0xff]
    %v697 = vld [vmem:[%s693 + $0x18] sm:$0xff]
    %v698 = vmul.f32 %v689, %v694
    %v699 = vmul.f32 %v690, %v695
    %v700 = vmul.f32 %v691, %v696
    %v701 = vmul.f32 %v692, %v697
    %v702 = vmax.f32 %v598, %v698
    %v703 = vmax.f32 %v599, %v699
    %v704 = vmax.f32 %v600, %v700
    %v705 = vmax.f32 %v601, %v701
    %s706 = scalar_lea.vmem [#allocation3], 16
    %v707 = vld [vmem:[%s706] sm:$0xf]
    %v709 = vsel %vm280, %v707, 0
    %711 = vmatprep.subr.bf16.mxu0 %v292
    %712 = vmatpush1.bf16.msra.mxu0 %v289
    %713 = vmatprep.subr.bf16.mxu0 0
    %714 = vmatpush1.bf16.msra.mxu0 0
    %715 = vmatprep.subr.bf16.mxu0 0
    %716 = vmatpush1.bf16.msra.mxu0 0
    %717 = vmatprep.subr.bf16.mxu0 0
    %718 = vmatpush1.bf16.msra.mxu0 0
    %719 = vmatprep.subr.bf16.mxu0 0
    %720 = vmatpush1.bf16.msra.mxu0 0
    %721 = vmatprep.subr.bf16.mxu0 0
    %722 = vmatpush1.bf16.msra.mxu0 0
    %723 = vmatprep.subr.bf16.mxu0 0
    %724 = vmatpush1.bf16.msra.mxu0 0
    %725 = vmatprep.subr.bf16.mxu0 0
    %726 = vmatpush1.bf16.msra.mxu0 0
    %727 = vmatprep.subr.bf16.mxu0 0
    %728 = vmatpush1.bf16.msra.mxu0 0
    %729 = vmatprep.subr.bf16.mxu0 0
    %730 = vmatpush1.bf16.msra.mxu0 0
    %731 = vmatprep.subr.bf16.mxu0 0
    %732 = vmatpush1.bf16.msra.mxu0 0
    %733 = vmatprep.subr.bf16.mxu0 0
    %734 = vmatpush1.bf16.msra.mxu0 0
    %735 = vmatprep.subr.bf16.mxu0 0
    %736 = vmatpush1.bf16.msra.mxu0 0
    %737 = vmatprep.subr.bf16.mxu0 0
    %738 = vmatpush1.bf16.msra.mxu0 0
    %739 = vmatprep.subr.bf16.mxu0 0
    %740 = vmatpush1.bf16.msra.mxu0 0
    %741 = vmatprep.subr.bf16.mxu0 0
    %742 = vmatpush1.bf16.msra.mxu0 0
    %743 = vmatprep.mubr.bf16.mxu0 0
    %744 = vmatmul.mubr.bf16.gmra.mrb[0].mxu0 %v709
    %v745 = vpop.f32.mrb[0].mxu0
    %v746 = vadd.f32 %v253, %v745
    %v747 = vpop.f32.mrb[0].mxu0
    %v748 = vadd.f32 %v257, %v747
    %v749 = vpop.f32.mrb[0].mxu0
    %v750 = vpop.f32.mrb[0].mxu0
    %751 = vdwg.mxu0
    %752 = vmatprep.subr.bf16.mxu0 %v298
    %753 = vmatpush1.bf16.msra.mxu0 %v295
    %754 = vmatprep.subr.bf16.mxu0 0
    %755 = vmatpush1.bf16.msra.mxu0 0
    %756 = vmatprep.subr.bf16.mxu0 0
    %757 = vmatpush1.bf16.msra.mxu0 0
    %758 = vmatprep.subr.bf16.mxu0 0
    %759 = vmatpush1.bf16.msra.mxu0 0
    %760 = vmatprep.subr.bf16.mxu0 0
    %761 = vmatpush1.bf16.msra.mxu0 0
    %762 = vmatprep.subr.bf16.mxu0 0
    %763 = vmatpush1.bf16.msra.mxu0 0
    %764 = vmatprep.subr.bf16.mxu0 0
    %765 = vmatpush1.bf16.msra.mxu0 0
    %766 = vmatprep.subr.bf16.mxu0 0
    %767 = vmatpush1.bf16.msra.mxu0 0
    %768 = vmatprep.subr.bf16.mxu0 0
    %769 = vmatpush1.bf16.msra.mxu0 0
    %770 = vmatprep.subr.bf16.mxu0 0
    %771 = vmatpush1.bf16.msra.mxu0 0
    %772 = vmatprep.subr.bf16.mxu0 0
    %773 = vmatpush1.bf16.msra.mxu0 0
    %774 = vmatprep.subr.bf16.mxu0 0
    %775 = vmatpush1.bf16.msra.mxu0 0
    %776 = vmatprep.subr.bf16.mxu0 0
    %777 = vmatpush1.bf16.msra.mxu0 0
    %778 = vmatprep.subr.bf16.mxu0 0
    %779 = vmatpush1.bf16.msra.mxu0 0
    %780 = vmatprep.subr.bf16.mxu0 0
    %781 = vmatpush1.bf16.msra.mxu0 0
    %782 = vmatprep.subr.bf16.mxu0 0
    %783 = vmatpush1.bf16.msra.mxu0 0
    %784 = vmatprep.mubr.bf16.mxu0 0
    %785 = vmatmul.mubr.bf16.gmra.mrb[0].mxu0 %v709
    %v786 = vpop.f32.mrb[0].mxu0
    %v787 = vadd.f32 %v261, %v786
    %v788 = vpop.f32.mrb[0].mxu0
    %v789 = vadd.f32 %v265, %v788
    %v790 = vpop.f32.mrb[0].mxu0
    %v791 = vpop.f32.mrb[0].mxu0
    %792 = vdwg.mxu0
    %v793 = vmax.f32 %v746, 0.0
    %v794 = vmax.f32 %v748, 0.0
    %v795 = vmax.f32 %v787, 0.0
    %v796 = vmax.f32 %v789, 0.0
    %s797 = scalar_lea.vmem [#allocation6], 128
    %v798 = vld [vmem:[%s797] sm:$0xff]
    %v799 = vld [vmem:[%s797 + $0x8] sm:$0xff]
    %v800 = vld [vmem:[%s797 + $0x10] sm:$0xff]
    %v801 = vld [vmem:[%s797 + $0x18] sm:$0xff]
    %v802 = vmul.f32 %v793, %v798
    %v803 = vmul.f32 %v794, %v799
    %v804 = vmul.f32 %v795, %v800
    %v805 = vmul.f32 %v796, %v801
    %v806 = vmax.f32 %v702, %v802
    %v807 = vmax.f32 %v703, %v803
    %v808 = vmax.f32 %v704, %v804
    %v809 = vmax.f32 %v705, %v805
    %s810 = scalar_lea.vmem [#allocation3], 20
    %v811 = vld [vmem:[%s810] sm:$0xf]
    %v813 = vsel %vm280, %v811, 0
    %815 = vmatprep.subr.bf16.mxu0 %v292
    %816 = vmatpush1.bf16.msra.mxu0 %v289
    %817 = vmatprep.subr.bf16.mxu0 0
    %818 = vmatpush1.bf16.msra.mxu0 0
    %819 = vmatprep.subr.bf16.mxu0 0
    %820 = vmatpush1.bf16.msra.mxu0 0
    %821 = vmatprep.subr.bf16.mxu0 0
    %822 = vmatpush1.bf16.msra.mxu0 0
    %823 = vmatprep.subr.bf16.mxu0 0
    %824 = vmatpush1.bf16.msra.mxu0 0
    %825 = vmatprep.subr.bf16.mxu0 0
    %826 = vmatpush1.bf16.msra.mxu0 0
    %827 = vmatprep.subr.bf16.mxu0 0
    %828 = vmatpush1.bf16.msra.mxu0 0
    %829 = vmatprep.subr.bf16.mxu0 0
    %830 = vmatpush1.bf16.msra.mxu0 0
    %831 = vmatprep.subr.bf16.mxu0 0
    %832 = vmatpush1.bf16.msra.mxu0 0
    %833 = vmatprep.subr.bf16.mxu0 0
    %834 = vmatpush1.bf16.msra.mxu0 0
    %835 = vmatprep.subr.bf16.mxu0 0
    %836 = vmatpush1.bf16.msra.mxu0 0
    %837 = vmatprep.subr.bf16.mxu0 0
    %838 = vmatpush1.bf16.msra.mxu0 0
    %839 = vmatprep.subr.bf16.mxu0 0
    %840 = vmatpush1.bf16.msra.mxu0 0
    %841 = vmatprep.subr.bf16.mxu0 0
    %842 = vmatpush1.bf16.msra.mxu0 0
    %843 = vmatprep.subr.bf16.mxu0 0
    %844 = vmatpush1.bf16.msra.mxu0 0
    %845 = vmatprep.subr.bf16.mxu0 0
    %846 = vmatpush1.bf16.msra.mxu0 0
    %847 = vmatprep.mubr.bf16.mxu0 0
    %848 = vmatmul.mubr.bf16.gmra.mrb[0].mxu0 %v813
    %v849 = vpop.f32.mrb[0].mxu0
    %v850 = vadd.f32 %v253, %v849
    %v851 = vpop.f32.mrb[0].mxu0
    %v852 = vadd.f32 %v257, %v851
    %v853 = vpop.f32.mrb[0].mxu0
    %v854 = vpop.f32.mrb[0].mxu0
    %855 = vdwg.mxu0
    %856 = vmatprep.subr.bf16.mxu0 %v298
    %857 = vmatpush1.bf16.msra.mxu0 %v295
    %858 = vmatprep.subr.bf16.mxu0 0
    %859 = vmatpush1.bf16.msra.mxu0 0
    %860 = vmatprep.subr.bf16.mxu0 0
    %861 = vmatpush1.bf16.msra.mxu0 0
    %862 = vmatprep.subr.bf16.mxu0 0
    %863 = vmatpush1.bf16.msra.mxu0 0
    %864 = vmatprep.subr.bf16.mxu0 0
    %865 = vmatpush1.bf16.msra.mxu0 0
    %866 = vmatprep.subr.bf16.mxu0 0
    %867 = vmatpush1.bf16.msra.mxu0 0
    %868 = vmatprep.subr.bf16.mxu0 0
    %869 = vmatpush1.bf16.msra.mxu0 0
    %870 = vmatprep.subr.bf16.mxu0 0
    %871 = vmatpush1.bf16.msra.mxu0 0
    %872 = vmatprep.subr.bf16.mxu0 0
    %873 = vmatpush1.bf16.msra.mxu0 0
    %874 = vmatprep.subr.bf16.mxu0 0
    %875 = vmatpush1.bf16.msra.mxu0 0
    %876 = vmatprep.subr.bf16.mxu0 0
    %877 = vmatpush1.bf16.msra.mxu0 0
    %878 = vmatprep.subr.bf16.mxu0 0
    %879 = vmatpush1.bf16.msra.mxu0 0
    %880 = vmatprep.subr.bf16.mxu0 0
    %881 = vmatpush1.bf16.msra.mxu0 0
    %882 = vmatprep.subr.bf16.mxu0 0
    %883 = vmatpush1.bf16.msra.mxu0 0
    %884 = vmatprep.subr.bf16.mxu0 0
    %885 = vmatpush1.bf16.msra.mxu0 0
    %886 = vmatprep.subr.bf16.mxu0 0
    %887 = vmatpush1.bf16.msra.mxu0 0
    %888 = vmatprep.mubr.bf16.mxu0 0
    %889 = vmatmul.mubr.bf16.gmra.mrb[0].mxu0 %v813
    %v890 = vpop.f32.mrb[0].mxu0
    %v891 = vadd.f32 %v261, %v890
    %v892 = vpop.f32.mrb[0].mxu0
    %v893 = vadd.f32 %v265, %v892
    %v894 = vpop.f32.mrb[0].mxu0
    %v895 = vpop.f32.mrb[0].mxu0
    %896 = vdwg.mxu0
    %v897 = vmax.f32 %v850, 0.0
    %v898 = vmax.f32 %v852, 0.0
    %v899 = vmax.f32 %v891, 0.0
    %v900 = vmax.f32 %v893, 0.0
    %s901 = scalar_lea.vmem [#allocation6], 160
    %v902 = vld [vmem:[%s901] sm:$0xff]
    %v903 = vld [vmem:[%s901 + $0x8] sm:$0xff]
    %v904 = vld [vmem:[%s901 + $0x10] sm:$0xff]
    %v905 = vld [vmem:[%s901 + $0x18] sm:$0xff]
    %v906 = vmul.f32 %v897, %v902
    %v907 = vmul.f32 %v898, %v903
    %v908 = vmul.f32 %v899, %v904
    %v909 = vmul.f32 %v900, %v905
    %v910 = vmax.f32 %v806, %v906
    %v911 = vmax.f32 %v807, %v907
    %v912 = vmax.f32 %v808, %v908
    %v913 = vmax.f32 %v809, %v909
    %s914 = scalar_lea.vmem [#allocation3], 24
    %v915 = vld [vmem:[%s914] sm:$0xf]
    %v917 = vsel %vm280, %v915, 0
    %919 = vmatprep.subr.bf16.mxu0 %v292
    %920 = vmatpush1.bf16.msra.mxu0 %v289
    %921 = vmatprep.subr.bf16.mxu0 0
    %922 = vmatpush1.bf16.msra.mxu0 0
    %923 = vmatprep.subr.bf16.mxu0 0
    %924 = vmatpush1.bf16.msra.mxu0 0
    %925 = vmatprep.subr.bf16.mxu0 0
    %926 = vmatpush1.bf16.msra.mxu0 0
    %927 = vmatprep.subr.bf16.mxu0 0
    %928 = vmatpush1.bf16.msra.mxu0 0
    %929 = vmatprep.subr.bf16.mxu0 0
    %930 = vmatpush1.bf16.msra.mxu0 0
    %931 = vmatprep.subr.bf16.mxu0 0
    %932 = vmatpush1.bf16.msra.mxu0 0
    %933 = vmatprep.subr.bf16.mxu0 0
    %934 = vmatpush1.bf16.msra.mxu0 0
    %935 = vmatprep.subr.bf16.mxu0 0
    %936 = vmatpush1.bf16.msra.mxu0 0
    %937 = vmatprep.subr.bf16.mxu0 0
    %938 = vmatpush1.bf16.msra.mxu0 0
    %939 = vmatprep.subr.bf16.mxu0 0
    %940 = vmatpush1.bf16.msra.mxu0 0
    %941 = vmatprep.subr.bf16.mxu0 0
    %942 = vmatpush1.bf16.msra.mxu0 0
    %943 = vmatprep.subr.bf16.mxu0 0
    %944 = vmatpush1.bf16.msra.mxu0 0
    %945 = vmatprep.subr.bf16.mxu0 0
    %946 = vmatpush1.bf16.msra.mxu0 0
    %947 = vmatprep.subr.bf16.mxu0 0
    %948 = vmatpush1.bf16.msra.mxu0 0
    %949 = vmatprep.subr.bf16.mxu0 0
    %950 = vmatpush1.bf16.msra.mxu0 0
    %951 = vmatprep.mubr.bf16.mxu0 0
    %952 = vmatmul.mubr.bf16.gmra.mrb[0].mxu0 %v917
    %v953 = vpop.f32.mrb[0].mxu0
    %v954 = vadd.f32 %v253, %v953
    %v955 = vpop.f32.mrb[0].mxu0
    %v956 = vadd.f32 %v257, %v955
    %v957 = vpop.f32.mrb[0].mxu0
    %v958 = vpop.f32.mrb[0].mxu0
    %959 = vdwg.mxu0
    %960 = vmatprep.subr.bf16.mxu0 %v298
    %961 = vmatpush1.bf16.msra.mxu0 %v295
    %962 = vmatprep.subr.bf16.mxu0 0
    %963 = vmatpush1.bf16.msra.mxu0 0
    %964 = vmatprep.subr.bf16.mxu0 0
    %965 = vmatpush1.bf16.msra.mxu0 0
    %966 = vmatprep.subr.bf16.mxu0 0
    %967 = vmatpush1.bf16.msra.mxu0 0
    %968 = vmatprep.subr.bf16.mxu0 0
    %969 = vmatpush1.bf16.msra.mxu0 0
    %970 = vmatprep.subr.bf16.mxu0 0
    %971 = vmatpush1.bf16.msra.mxu0 0
    %972 = vmatprep.subr.bf16.mxu0 0
    %973 = vmatpush1.bf16.msra.mxu0 0
    %974 = vmatprep.subr.bf16.mxu0 0
    %975 = vmatpush1.bf16.msra.mxu0 0
    %976 = vmatprep.subr.bf16.mxu0 0
    %977 = vmatpush1.bf16.msra.mxu0 0
    %978 = vmatprep.subr.bf16.mxu0 0
    %979 = vmatpush1.bf16.msra.mxu0 0
    %980 = vmatprep.subr.bf16.mxu0 0
    %981 = vmatpush1.bf16.msra.mxu0 0
    %982 = vmatprep.subr.bf16.mxu0 0
    %983 = vmatpush1.bf16.msra.mxu0 0
    %984 = vmatprep.subr.bf16.mxu0 0
    %985 = vmatpush1.bf16.msra.mxu0 0
    %986 = vmatprep.subr.bf16.mxu0 0
    %987 = vmatpush1.bf16.msra.mxu0 0
    %988 = vmatprep.subr.bf16.mxu0 0
    %989 = vmatpush1.bf16.msra.mxu0 0
    %990 = vmatprep.subr.bf16.mxu0 0
    %991 = vmatpush1.bf16.msra.mxu0 0
    %992 = vmatprep.mubr.bf16.mxu0 0
    %993 = vmatmul.mubr.bf16.gmra.mrb[0].mxu0 %v917
    %v994 = vpop.f32.mrb[0].mxu0
    %v995 = vadd.f32 %v261, %v994
    %v996 = vpop.f32.mrb[0].mxu0
    %v997 = vadd.f32 %v265, %v996
    %v998 = vpop.f32.mrb[0].mxu0
    %v999 = vpop.f32.mrb[0].mxu0
    %1000 = vdwg.mxu0
    %v1001 = vmax.f32 %v954, 0.0
    %v1002 = vmax.f32 %v956, 0.0
    %v1003 = vmax.f32 %v995, 0.0
    %v1004 = vmax.f32 %v997, 0.0
    %s1005 = scalar_lea.vmem [#allocation6], 192
    %v1006 = vld [vmem:[%s1005] sm:$0xff]
    %v1007 = vld [vmem:[%s1005 + $0x8] sm:$0xff]
    %v1008 = vld [vmem:[%s1005 + $0x10] sm:$0xff]
    %v1009 = vld [vmem:[%s1005 + $0x18] sm:$0xff]
    %v1010 = vmul.f32 %v1001, %v1006
    %v1011 = vmul.f32 %v1002, %v1007
    %v1012 = vmul.f32 %v1003, %v1008
    %v1013 = vmul.f32 %v1004, %v1009
    %v1014 = vmax.f32 %v910, %v1010
    %v1015 = vmax.f32 %v911, %v1011
    %v1016 = vmax.f32 %v912, %v1012
    %v1017 = vmax.f32 %v913, %v1013
    %s1018 = scalar_lea.vmem [#allocation3], 28
    %v1019 = vld [vmem:[%s1018] sm:$0xf]
    %v1021 = vsel %vm280, %v1019, 0
    %1023 = vmatprep.subr.bf16.mxu0 %v292
    %1024 = vmatpush1.bf16.msra.mxu0 %v289
    %1025 = vmatprep.subr.bf16.mxu0 0
    %1026 = vmatpush1.bf16.msra.mxu0 0
    %1027 = vmatprep.subr.bf16.mxu0 0
    %1028 = vmatpush1.bf16.msra.mxu0 0
    %1029 = vmatprep.subr.bf16.mxu0 0
    %1030 = vmatpush1.bf16.msra.mxu0 0
    %1031 = vmatprep.subr.bf16.mxu0 0
    %1032 = vmatpush1.bf16.msra.mxu0 0
    %1033 = vmatprep.subr.bf16.mxu0 0
    %1034 = vmatpush1.bf16.msra.mxu0 0
    %1035 = vmatprep.subr.bf16.mxu0 0
    %1036 = vmatpush1.bf16.msra.mxu0 0
    %1037 = vmatprep.subr.bf16.mxu0 0
    %1038 = vmatpush1.bf16.msra.mxu0 0
    %1039 = vmatprep.subr.bf16.mxu0 0
    %1040 = vmatpush1.bf16.msra.mxu0 0
    %1041 = vmatprep.subr.bf16.mxu0 0
    %1042 = vmatpush1.bf16.msra.mxu0 0
    %1043 = vmatprep.subr.bf16.mxu0 0
    %1044 = vmatpush1.bf16.msra.mxu0 0
    %1045 = vmatprep.subr.bf16.mxu0 0
    %1046 = vmatpush1.bf16.msra.mxu0 0
    %1047 = vmatprep.subr.bf16.mxu0 0
    %1048 = vmatpush1.bf16.msra.mxu0 0
    %1049 = vmatprep.subr.bf16.mxu0 0
    %1050 = vmatpush1.bf16.msra.mxu0 0
    %1051 = vmatprep.subr.bf16.mxu0 0
    %1052 = vmatpush1.bf16.msra.mxu0 0
    %1053 = vmatprep.subr.bf16.mxu0 0
    %1054 = vmatpush1.bf16.msra.mxu0 0
    %1055 = vmatprep.mubr.bf16.mxu0 0
    %1056 = vmatmul.mubr.bf16.gmra.mrb[0].mxu0 %v1021
    %v1057 = vpop.f32.mrb[0].mxu0
    %v1058 = vadd.f32 %v253, %v1057
    %v1059 = vpop.f32.mrb[0].mxu0
    %v1060 = vadd.f32 %v257, %v1059
    %v1061 = vpop.f32.mrb[0].mxu0
    %v1062 = vpop.f32.mrb[0].mxu0
    %1063 = vdwg.mxu0
    %1064 = vmatprep.subr.bf16.mxu0 %v298
    %1065 = vmatpush1.bf16.msra.mxu0 %v295
    %1066 = vmatprep.subr.bf16.mxu0 0
    %1067 = vmatpush1.bf16.msra.mxu0 0
    %1068 = vmatprep.subr.bf16.mxu0 0
    %1069 = vmatpush1.bf16.msra.mxu0 0
    %1070 = vmatprep.subr.bf16.mxu0 0
    %1071 = vmatpush1.bf16.msra.mxu0 0
    %1072 = vmatprep.subr.bf16.mxu0 0
    %1073 = vmatpush1.bf16.msra.mxu0 0
    %1074 = vmatprep.subr.bf16.mxu0 0
    %1075 = vmatpush1.bf16.msra.mxu0 0
    %1076 = vmatprep.subr.bf16.mxu0 0
    %1077 = vmatpush1.bf16.msra.mxu0 0
    %1078 = vmatprep.subr.bf16.mxu0 0
    %1079 = vmatpush1.bf16.msra.mxu0 0
    %1080 = vmatprep.subr.bf16.mxu0 0
    %1081 = vmatpush1.bf16.msra.mxu0 0
    %1082 = vmatprep.subr.bf16.mxu0 0
    %1083 = vmatpush1.bf16.msra.mxu0 0
    %1084 = vmatprep.subr.bf16.mxu0 0
    %1085 = vmatpush1.bf16.msra.mxu0 0
    %1086 = vmatprep.subr.bf16.mxu0 0
    %1087 = vmatpush1.bf16.msra.mxu0 0
    %1088 = vmatprep.subr.bf16.mxu0 0
    %1089 = vmatpush1.bf16.msra.mxu0 0
    %1090 = vmatprep.subr.bf16.mxu0 0
    %1091 = vmatpush1.bf16.msra.mxu0 0
    %1092 = vmatprep.subr.bf16.mxu0 0
    %1093 = vmatpush1.bf16.msra.mxu0 0
    %1094 = vmatprep.subr.bf16.mxu0 0
    %1095 = vmatpush1.bf16.msra.mxu0 0
    %1096 = vmatprep.mubr.bf16.mxu0 0
    %1097 = vmatmul.mubr.bf16.gmra.mrb[0].mxu0 %v1021
    %v1098 = vpop.f32.mrb[0].mxu0
    %v1099 = vadd.f32 %v261, %v1098
    %v1100 = vpop.f32.mrb[0].mxu0
    %v1101 = vadd.f32 %v265, %v1100
    %v1102 = vpop.f32.mrb[0].mxu0
    %v1103 = vpop.f32.mrb[0].mxu0
    %1104 = vdwg.mxu0
    %v1105 = vmax.f32 %v1058, 0.0
    %v1106 = vmax.f32 %v1060, 0.0
    %v1107 = vmax.f32 %v1099, 0.0
    %v1108 = vmax.f32 %v1101, 0.0
    %s1109 = scalar_lea.vmem [#allocation6], 224
    %v1110 = vld [vmem:[%s1109] sm:$0xff]
    %v1111 = vld [vmem:[%s1109 + $0x8] sm:$0xff]
    %v1112 = vld [vmem:[%s1109 + $0x10] sm:$0xff]
    %v1113 = vld [vmem:[%s1109 + $0x18] sm:$0xff]
    %v1114 = vmul.f32 %v1105, %v1110
    %v1115 = vmul.f32 %v1106, %v1111
    %v1116 = vmul.f32 %v1107, %v1112
    %v1117 = vmul.f32 %v1108, %v1113
    %v1118 = vmax.f32 %v1014, %v1114
    %v1119 = vmax.f32 %v1015, %v1115
    %v1120 = vmax.f32 %v1016, %v1116
    %v1121 = vmax.f32 %v1017, %v1117
    %v1122 = vld [vmem:[#allocation2] sm:$0xff]
    %v1123 = vld [vmem:[#allocation2 + $0x8] sm:$0xff]
    %v1124 = vld [vmem:[#allocation2 + $0x10] sm:$0xff]
    %v1125 = vld [vmem:[#allocation2 + $0x18] sm:$0xff]
    %v1126 = vmax.f32 %v1122, %v1118
    %v1127 = vmax.f32 %v1123, %v1119
    %v1128 = vmax.f32 %v1124, %v1120
    %v1129 = vmax.f32 %v1125, %v1121
    %1130 = vst [vmem:[#allocation2] sm:$0xff] %v1126
    %1131 = vst [vmem:[#allocation2 + $0x8] sm:$0xff] %v1127
    %1132 = vst [vmem:[#allocation2 + $0x10] sm:$0xff] %v1128
    %1133 = vst [vmem:[#allocation2 + $0x18] sm:$0xff] %v1129
    // Predicated region
    $region126: #{oriented_rscnn_forward.5} parent=1 // pred_check
      %p1134 = pneg %p237
    $region127: #{oriented_rscnn_forward.5} parent=1 // pred_check_branch
      %1136 = sbr.rel (%p1134) target = $region129
    $region128: #{oriented_rscnn_forward.5} parent=1 // pred_region
      %v1137 = vld [vmem:[#allocation2] sm:$0xff]
      %v1138 = vld [vmem:[#allocation2 + $0x8] sm:$0xff]
      %v1139 = vld [vmem:[#allocation2 + $0x10] sm:$0xff]
      %v1140 = vld [vmem:[#allocation2 + $0x18] sm:$0xff]
      %v1141 = vpack.c.bf16 %v1137, %v1137
      %v1142 = vpack.c.bf16 %v1138, %v1138
      %v1143 = vpack.c.bf16 %v1139, %v1139
      %v1144 = vpack.c.bf16 %v1140, %v1140
      %v1145 = vld [vmem:[#allocation11] sm:$0xff]
      %v1146 = vld [vmem:[#allocation11 + $0x8] sm:$0xff]
      %v1147 = vld [vmem:[#allocation11 + $0x10] sm:$0xff]
      %v1148 = vld [vmem:[#allocation11 + $0x18] sm:$0xff]
      %v1149 = vld [vmem:[#allocation11 + $0x20] sm:$0xff]
      %v1150 = vld [vmem:[#allocation11 + $0x28] sm:$0xff]
      %v1151 = vld [vmem:[#allocation11 + $0x30] sm:$0xff]
      %v1152 = vld [vmem:[#allocation11 + $0x38] sm:$0xff]
      %v1153 = vld [vmem:[#allocation11 + $0x40] sm:$0xff]
      %v1154 = vld [vmem:[#allocation11 + $0x48] sm:$0xff]
      %v1155 = vld [vmem:[#allocation11 + $0x50] sm:$0xff]
      %v1156 = vld [vmem:[#allocation11 + $0x58] sm:$0xff]
      %v1157 = vld [vmem:[#allocation11 + $0x60] sm:$0xff]
      %v1158 = vld [vmem:[#allocation11 + $0x68] sm:$0xff]
      %v1159 = vld [vmem:[#allocation11 + $0x70] sm:$0xff]
      %v1160 = vld [vmem:[#allocation11 + $0x78] sm:$0xff]
      %v1161 = vld [vmem:[#allocation11 + $0x80] sm:$0xff]
      %v1162 = vld [vmem:[#allocation11 + $0x88] sm:$0xff]
      %v1163 = vld [vmem:[#allocation11 + $0x90] sm:$0xff]
      %v1164 = vld [vmem:[#allocation11 + $0x98] sm:$0xff]
      %v1165 = vld [vmem:[#allocation11 + $0xa0] sm:$0xff]
      %v1166 = vld [vmem:[#allocation11 + $0xa8] sm:$0xff]
      %v1167 = vld [vmem:[#allocation11 + $0xb0] sm:$0xff]
      %v1168 = vld [vmem:[#allocation11 + $0xb8] sm:$0xff]
      %v1169 = vld [vmem:[#allocation11 + $0xc0] sm:$0xff]
      %v1170 = vld [vmem:[#allocation11 + $0xc8] sm:$0xff]
      %v1171 = vld [vmem:[#allocation11 + $0xd0] sm:$0xff]
      %v1172 = vld [vmem:[#allocation11 + $0xd8] sm:$0xff]
      %v1173 = vld [vmem:[#allocation11 + $0xe0] sm:$0xff]
      %v1174 = vld [vmem:[#allocation11 + $0xe8] sm:$0xff]
      %v1175 = vld [vmem:[#allocation11 + $0xf0] sm:$0xff]
      %v1176 = vld [vmem:[#allocation11 + $0xf8] sm:$0xff]
      %v1177 = vld [vmem:[#allocation11 + $0x100] sm:$0xff]
      %v1178 = vld [vmem:[#allocation11 + $0x108] sm:$0xff]
      %v1179 = vld [vmem:[#allocation11 + $0x110] sm:$0xff]
      %v1180 = vld [vmem:[#allocation11 + $0x118] sm:$0xff]
      %v1181 = vld [vmem:[#allocation11 + $0x120] sm:$0xff]
      %v1182 = vld [vmem:[#allocation11 + $0x128] sm:$0xff]
      %v1183 = vld [vmem:[#allocation11 + $0x130] sm:$0xff]
      %v1184 = vld [vmem:[#allocation11 + $0x138] sm:$0xff]
      %v1185 = vld [vmem:[#allocation11 + $0x140] sm:$0xff]
      %v1186 = vld [vmem:[#allocation11 + $0x148] sm:$0xff]
      %v1187 = vld [vmem:[#allocation11 + $0x150] sm:$0xff]
      %v1188 = vld [vmem:[#allocation11 + $0x158] sm:$0xff]
      %v1189 = vld [vmem:[#allocation11 + $0x160] sm:$0xff]
      %v1190 = vld [vmem:[#allocation11 + $0x168] sm:$0xff]
      %v1191 = vld [vmem:[#allocation11 + $0x170] sm:$0xff]
      %v1192 = vld [vmem:[#allocation11 + $0x178] sm:$0xff]
      %v1193 = vld [vmem:[#allocation11 + $0x180] sm:$0xff]
      %v1194 = vld [vmem:[#allocation11 + $0x188] sm:$0xff]
      %v1195 = vld [vmem:[#allocation11 + $0x190] sm:$0xff]
      %v1196 = vld [vmem:[#allocation11 + $0x198] sm:$0xff]
      %v1197 = vld [vmem:[#allocation11 + $0x1a0] sm:$0xff]
      %v1198 = vld [vmem:[#allocation11 + $0x1a8] sm:$0xff]
      %v1199 = vld [vmem:[#allocation11 + $0x1b0] sm:$0xff]
      %v1200 = vld [vmem:[#allocation11 + $0x1b8] sm:$0xff]
      %v1201 = vld [vmem:[#allocation11 + $0x1c0] sm:$0xff]
      %v1202 = vld [vmem:[#allocation11 + $0x1c8] sm:$0xff]
      %v1203 = vld [vmem:[#allocation11 + $0x1d0] sm:$0xff]
      %v1204 = vld [vmem:[#allocation11 + $0x1d8] sm:$0xff]
      %v1205 = vld [vmem:[#allocation11 + $0x1e0] sm:$0xff]
      %v1206 = vld [vmem:[#allocation11 + $0x1e8] sm:$0xff]
      %v1207 = vld [vmem:[#allocation11 + $0x1f0] sm:$0xff]
      %v1208 = vld [vmem:[#allocation11 + $0x1f8] sm:$0xff]
      %v1209 = vld [vmem:[#allocation11 + $0x200] sm:$0xff]
      %v1210 = vld [vmem:[#allocation11 + $0x208] sm:$0xff]
      %v1211 = vld [vmem:[#allocation11 + $0x210] sm:$0xff]
      %v1212 = vld [vmem:[#allocation11 + $0x218] sm:$0xff]
      %v1213 = vld [vmem:[#allocation11 + $0x220] sm:$0xff]
      %v1214 = vld [vmem:[#allocation11 + $0x228] sm:$0xff]
      %v1215 = vld [vmem:[#allocation11 + $0x230] sm:$0xff]
      %v1216 = vld [vmem:[#allocation11 + $0x238] sm:$0xff]
      %v1217 = vld [vmem:[#allocation11 + $0x240] sm:$0xff]
      %v1218 = vld [vmem:[#allocation11 + $0x248] sm:$0xff]
      %v1219 = vld [vmem:[#allocation11 + $0x250] sm:$0xff]
      %v1220 = vld [vmem:[#allocation11 + $0x258] sm:$0xff]
      %v1221 = vld [vmem:[#allocation11 + $0x260] sm:$0xff]
      %v1222 = vld [vmem:[#allocation11 + $0x268] sm:$0xff]
      %v1223 = vld [vmem:[#allocation11 + $0x270] sm:$0xff]
      %v1224 = vld [vmem:[#allocation11 + $0x278] sm:$0xff]
      %v1225 = vld [vmem:[#allocation11 + $0x280] sm:$0xff]
      %v1226 = vld [vmem:[#allocation11 + $0x288] sm:$0xff]
      %v1227 = vld [vmem:[#allocation11 + $0x290] sm:$0xff]
      %v1228 = vld [vmem:[#allocation11 + $0x298] sm:$0xff]
      %v1229 = vld [vmem:[#allocation11 + $0x2a0] sm:$0xff]
      %v1230 = vld [vmem:[#allocation11 + $0x2a8] sm:$0xff]
      %v1231 = vld [vmem:[#allocation11 + $0x2b0] sm:$0xff]
      %v1232 = vld [vmem:[#allocation11 + $0x2b8] sm:$0xff]
      %v1233 = vld [vmem:[#allocation11 + $0x2c0] sm:$0xff]
      %v1234 = vld [vmem:[#allocation11 + $0x2c8] sm:$0xff]
      %v1235 = vld [vmem:[#allocation11 + $0x2d0] sm:$0xff]
      %v1236 = vld [vmem:[#allocation11 + $0x2d8] sm:$0xff]
      %v1237 = vld [vmem:[#allocation11 + $0x2e0] sm:$0xff]
      %v1238 = vld [vmem:[#allocation11 + $0x2e8] sm:$0xff]
      %v1239 = vld [vmem:[#allocation11 + $0x2f0] sm:$0xff]
      %v1240 = vld [vmem:[#allocation11 + $0x2f8] sm:$0xff]
      %v1241 = vld [vmem:[#allocation11 + $0x300] sm:$0xff]
      %v1242 = vld [vmem:[#allocation11 + $0x308] sm:$0xff]
      %v1243 = vld [vmem:[#allocation11 + $0x310] sm:$0xff]
      %v1244 = vld [vmem:[#allocation11 + $0x318] sm:$0xff]
      %v1245 = vld [vmem:[#allocation11 + $0x320] sm:$0xff]
      %v1246 = vld [vmem:[#allocation11 + $0x328] sm:$0xff]
      %v1247 = vld [vmem:[#allocation11 + $0x330] sm:$0xff]
      %v1248 = vld [vmem:[#allocation11 + $0x338] sm:$0xff]
      %v1249 = vld [vmem:[#allocation11 + $0x340] sm:$0xff]
      %v1250 = vld [vmem:[#allocation11 + $0x348] sm:$0xff]
      %v1251 = vld [vmem:[#allocation11 + $0x350] sm:$0xff]
      %v1252 = vld [vmem:[#allocation11 + $0x358] sm:$0xff]
      %v1253 = vld [vmem:[#allocation11 + $0x360] sm:$0xff]
      %v1254 = vld [vmem:[#allocation11 + $0x368] sm:$0xff]
      %v1255 = vld [vmem:[#allocation11 + $0x370] sm:$0xff]
      %v1256 = vld [vmem:[#allocation11 + $0x378] sm:$0xff]
      %v1257 = vld [vmem:[#allocation11 + $0x380] sm:$0xff]
      %v1258 = vld [vmem:[#allocation11 + $0x388] sm:$0xff]
      %v1259 = vld [vmem:[#allocation11 + $0x390] sm:$0xff]
      %v1260 = vld [vmem:[#allocation11 + $0x398] sm:$0xff]
      %v1261 = vld [vmem:[#allocation11 + $0x3a0] sm:$0xff]
      %v1262 = vld [vmem:[#allocation11 + $0x3a8] sm:$0xff]
      %v1263 = vld [vmem:[#allocation11 + $0x3b0] sm:$0xff]
      %v1264 = vld [vmem:[#allocation11 + $0x3b8] sm:$0xff]
      %v1265 = vld [vmem:[#allocation11 + $0x3c0] sm:$0xff]
      %v1266 = vld [vmem:[#allocation11 + $0x3c8] sm:$0xff]
      %v1267 = vld [vmem:[#allocation11 + $0x3d0] sm:$0xff]
      %v1268 = vld [vmem:[#allocation11 + $0x3d8] sm:$0xff]
      %v1269 = vld [vmem:[#allocation11 + $0x3e0] sm:$0xff]
      %v1270 = vld [vmem:[#allocation11 + $0x3e8] sm:$0xff]
      %v1271 = vld [vmem:[#allocation11 + $0x3f0] sm:$0xff]
      %v1272 = vld [vmem:[#allocation11 + $0x3f8] sm:$0xff]
      %v1273 = vld [vmem:[#allocation11 + $0x400] sm:$0xff]
      %v1274 = vld [vmem:[#allocation11 + $0x408] sm:$0xff]
      %v1275 = vld [vmem:[#allocation11 + $0x410] sm:$0xff]
      %v1276 = vld [vmem:[#allocation11 + $0x418] sm:$0xff]
      %v1277 = vld [vmem:[#allocation11 + $0x420] sm:$0xff]
      %v1278 = vld [vmem:[#allocation11 + $0x428] sm:$0xff]
      %v1279 = vld [vmem:[#allocation11 + $0x430] sm:$0xff]
      %v1280 = vld [vmem:[#allocation11 + $0x438] sm:$0xff]
      %v1281 = vld [vmem:[#allocation11 + $0x440] sm:$0xff]
      %v1282 = vld [vmem:[#allocation11 + $0x448] sm:$0xff]
      %v1283 = vld [vmem:[#allocation11 + $0x450] sm:$0xff]
      %v1284 = vld [vmem:[#allocation11 + $0x458] sm:$0xff]
      %v1285 = vld [vmem:[#allocation11 + $0x460] sm:$0xff]
      %v1286 = vld [vmem:[#allocation11 + $0x468] sm:$0xff]
      %v1287 = vld [vmem:[#allocation11 + $0x470] sm:$0xff]
      %v1288 = vld [vmem:[#allocation11 + $0x478] sm:$0xff]
      %v1289 = vld [vmem:[#allocation11 + $0x480] sm:$0xff]
      %v1290 = vld [vmem:[#allocation11 + $0x488] sm:$0xff]
      %v1291 = vld [vmem:[#allocation11 + $0x490] sm:$0xff]
      %v1292 = vld [vmem:[#allocation11 + $0x498] sm:$0xff]
      %v1293 = vld [vmem:[#allocation11 + $0x4a0] sm:$0xff]
      %v1294 = vld [vmem:[#allocation11 + $0x4a8] sm:$0xff]
      %v1295 = vld [vmem:[#allocation11 + $0x4b0] sm:$0xff]
      %v1296 = vld [vmem:[#allocation11 + $0x4b8] sm:$0xff]
      %v1297 = vld [vmem:[#allocation11 + $0x4c0] sm:$0xff]
      %v1298 = vld [vmem:[#allocation11 + $0x4c8] sm:$0xff]
      %v1299 = vld [vmem:[#allocation11 + $0x4d0] sm:$0xff]
      %v1300 = vld [vmem:[#allocation11 + $0x4d8] sm:$0xff]
      %v1301 = vld [vmem:[#allocation11 + $0x4e0] sm:$0xff]
      %v1302 = vld [vmem:[#allocation11 + $0x4e8] sm:$0xff]
      %v1303 = vld [vmem:[#allocation11 + $0x4f0] sm:$0xff]
      %v1304 = vld [vmem:[#allocation11 + $0x4f8] sm:$0xff]
      %v1305 = vld [vmem:[#allocation11 + $0x500] sm:$0xff]
      %v1306 = vld [vmem:[#allocation11 + $0x508] sm:$0xff]
      %v1307 = vld [vmem:[#allocation11 + $0x510] sm:$0xff]
      %v1308 = vld [vmem:[#allocation11 + $0x518] sm:$0xff]
      %v1309 = vld [vmem:[#allocation11 + $0x520] sm:$0xff]
      %v1310 = vld [vmem:[#allocation11 + $0x528] sm:$0xff]
      %v1311 = vld [vmem:[#allocation11 + $0x530] sm:$0xff]
      %v1312 = vld [vmem:[#allocation11 + $0x538] sm:$0xff]
      %v1313 = vld [vmem:[#allocation11 + $0x540] sm:$0xff]
      %v1314 = vld [vmem:[#allocation11 + $0x548] sm:$0xff]
      %v1315 = vld [vmem:[#allocation11 + $0x550] sm:$0xff]
      %v1316 = vld [vmem:[#allocation11 + $0x558] sm:$0xff]
      %v1317 = vld [vmem:[#allocation11 + $0x560] sm:$0xff]
      %v1318 = vld [vmem:[#allocation11 + $0x568] sm:$0xff]
      %v1319 = vld [vmem:[#allocation11 + $0x570] sm:$0xff]
      %v1320 = vld [vmem:[#allocation11 + $0x578] sm:$0xff]
      %v1321 = vld [vmem:[#allocation11 + $0x580] sm:$0xff]
      %v1322 = vld [vmem:[#allocation11 + $0x588] sm:$0xff]
      %v1323 = vld [vmem:[#allocation11 + $0x590] sm:$0xff]
      %v1324 = vld [vmem:[#allocation11 + $0x598] sm:$0xff]
      %v1325 = vld [vmem:[#allocation11 + $0x5a0] sm:$0xff]
      %v1326 = vld [vmem:[#allocation11 + $0x5a8] sm:$0xff]
      %v1327 = vld [vmem:[#allocation11 + $0x5b0] sm:$0xff]
      %v1328 = vld [vmem:[#allocation11 + $0x5b8] sm:$0xff]
      %v1329 = vld [vmem:[#allocation11 + $0x5c0] sm:$0xff]
      %v1330 = vld [vmem:[#allocation11 + $0x5c8] sm:$0xff]
      %v1331 = vld [vmem:[#allocation11 + $0x5d0] sm:$0xff]
      %v1332 = vld [vmem:[#allocation11 + $0x5d8] sm:$0xff]
      %v1333 = vld [vmem:[#allocation11 + $0x5e0] sm:$0xff]
      %v1334 = vld [vmem:[#allocation11 + $0x5e8] sm:$0xff]
      %v1335 = vld [vmem:[#allocation11 + $0x5f0] sm:$0xff]
      %v1336 = vld [vmem:[#allocation11 + $0x5f8] sm:$0xff]
      %v1337 = vld [vmem:[#allocation11 + $0x600] sm:$0xff]
      %v1338 = vld [vmem:[#allocation11 + $0x608] sm:$0xff]
      %v1339 = vld [vmem:[#allocation11 + $0x610] sm:$0xff]
      %v1340 = vld [vmem:[#allocation11 + $0x618] sm:$0xff]
      %v1341 = vld [vmem:[#allocation11 + $0x620] sm:$0xff]
      %v1342 = vld [vmem:[#allocation11 + $0x628] sm:$0xff]
      %v1343 = vld [vmem:[#allocation11 + $0x630] sm:$0xff]
      %v1344 = vld [vmem:[#allocation11 + $0x638] sm:$0xff]
      %v1345 = vld [vmem:[#allocation11 + $0x640] sm:$0xff]
      %v1346 = vld [vmem:[#allocation11 + $0x648] sm:$0xff]
      %v1347 = vld [vmem:[#allocation11 + $0x650] sm:$0xff]
      %v1348 = vld [vmem:[#allocation11 + $0x658] sm:$0xff]
      %v1349 = vld [vmem:[#allocation11 + $0x660] sm:$0xff]
      %v1350 = vld [vmem:[#allocation11 + $0x668] sm:$0xff]
      %v1351 = vld [vmem:[#allocation11 + $0x670] sm:$0xff]
      %v1352 = vld [vmem:[#allocation11 + $0x678] sm:$0xff]
      %v1353 = vld [vmem:[#allocation11 + $0x680] sm:$0xff]
      %v1354 = vld [vmem:[#allocation11 + $0x688] sm:$0xff]
      %v1355 = vld [vmem:[#allocation11 + $0x690] sm:$0xff]
      %v1356 = vld [vmem:[#allocation11 + $0x698] sm:$0xff]
      %v1357 = vld [vmem:[#allocation11 + $0x6a0] sm:$0xff]
      %v1358 = vld [vmem:[#allocation11 + $0x6a8] sm:$0xff]
      %v1359 = vld [vmem:[#allocation11 + $0x6b0] sm:$0xff]
      %v1360 = vld [vmem:[#allocation11 + $0x6b8] sm:$0xff]
      %v1361 = vld [vmem:[#allocation11 + $0x6c0] sm:$0xff]
      %v1362 = vld [vmem:[#allocation11 + $0x6c8] sm:$0xff]
      %v1363 = vld [vmem:[#allocation11 + $0x6d0] sm:$0xff]
      %v1364 = vld [vmem:[#allocation11 + $0x6d8] sm:$0xff]
      %v1365 = vld [vmem:[#allocation11 + $0x6e0] sm:$0xff]
      %v1366 = vld [vmem:[#allocation11 + $0x6e8] sm:$0xff]
      %v1367 = vld [vmem:[#allocation11 + $0x6f0] sm:$0xff]
      %v1368 = vld [vmem:[#allocation11 + $0x6f8] sm:$0xff]
      %v1369 = vld [vmem:[#allocation11 + $0x700] sm:$0xff]
      %v1370 = vld [vmem:[#allocation11 + $0x708] sm:$0xff]
      %v1371 = vld [vmem:[#allocation11 + $0x710] sm:$0xff]
      %v1372 = vld [vmem:[#allocation11 + $0x718] sm:$0xff]
      %v1373 = vld [vmem:[#allocation11 + $0x720] sm:$0xff]
      %v1374 = vld [vmem:[#allocation11 + $0x728] sm:$0xff]
      %v1375 = vld [vmem:[#allocation11 + $0x730] sm:$0xff]
      %v1376 = vld [vmem:[#allocation11 + $0x738] sm:$0xff]
      %v1377 = vld [vmem:[#allocation11 + $0x740] sm:$0xff]
      %v1378 = vld [vmem:[#allocation11 + $0x748] sm:$0xff]
      %v1379 = vld [vmem:[#allocation11 + $0x750] sm:$0xff]
      %v1380 = vld [vmem:[#allocation11 + $0x758] sm:$0xff]
      %v1381 = vld [vmem:[#allocation11 + $0x760] sm:$0xff]
      %v1382 = vld [vmem:[#allocation11 + $0x768] sm:$0xff]
      %v1383 = vld [vmem:[#allocation11 + $0x770] sm:$0xff]
      %v1384 = vld [vmem:[#allocation11 + $0x778] sm:$0xff]
      %v1385 = vld [vmem:[#allocation11 + $0x780] sm:$0xff]
      %v1386 = vld [vmem:[#allocation11 + $0x788] sm:$0xff]
      %v1387 = vld [vmem:[#allocation11 + $0x790] sm:$0xff]
      %v1388 = vld [vmem:[#allocation11 + $0x798] sm:$0xff]
      %v1389 = vld [vmem:[#allocation11 + $0x7a0] sm:$0xff]
      %v1390 = vld [vmem:[#allocation11 + $0x7a8] sm:$0xff]
      %v1391 = vld [vmem:[#allocation11 + $0x7b0] sm:$0xff]
      %v1392 = vld [vmem:[#allocation11 + $0x7b8] sm:$0xff]
      %v1393 = vld [vmem:[#allocation11 + $0x7c0] sm:$0xff]
      %v1394 = vld [vmem:[#allocation11 + $0x7c8] sm:$0xff]
      %v1395 = vld [vmem:[#allocation11 + $0x7d0] sm:$0xff]
      %v1396 = vld [vmem:[#allocation11 + $0x7d8] sm:$0xff]
      %v1397 = vld [vmem:[#allocation11 + $0x7e0] sm:$0xff]
      %v1398 = vld [vmem:[#allocation11 + $0x7e8] sm:$0xff]
      %v1399 = vld [vmem:[#allocation11 + $0x7f0] sm:$0xff]
      %v1400 = vld [vmem:[#allocation11 + $0x7f8] sm:$0xff]
      %v1657 = vunpack.c.l.b16 %v1145
      %v1658 = vunpack.c.h.b16 %v1145
      %v1659 = vunpack.c.l.b16 %v1146
      %v1660 = vunpack.c.h.b16 %v1146
      %v1661 = vunpack.c.l.b16 %v1147
      %v1662 = vunpack.c.h.b16 %v1147
      %v1663 = vunpack.c.l.b16 %v1148
      %v1664 = vunpack.c.h.b16 %v1148
      %v1665 = vunpack.c.l.b16 %v1149
      %v1666 = vunpack.c.h.b16 %v1149
      %v1667 = vunpack.c.l.b16 %v1150
      %v1668 = vunpack.c.h.b16 %v1150
      %v1669 = vunpack.c.l.b16 %v1151
      %v1670 = vunpack.c.h.b16 %v1151
      %v1671 = vunpack.c.l.b16 %v1152
      %v1672 = vunpack.c.h.b16 %v1152
      %v1673 = vunpack.c.l.b16 %v1153
      %v1674 = vunpack.c.h.b16 %v1153
      %v1675 = vunpack.c.l.b16 %v1154
      %v1676 = vunpack.c.h.b16 %v1154
      %v1677 = vunpack.c.l.b16 %v1155
      %v1678 = vunpack.c.h.b16 %v1155
      %v1679 = vunpack.c.l.b16 %v1156
      %v1680 = vunpack.c.h.b16 %v1156
      %v1681 = vunpack.c.l.b16 %v1157
      %v1682 = vunpack.c.h.b16 %v1157
      %v1683 = vunpack.c.l.b16 %v1158
      %v1684 = vunpack.c.h.b16 %v1158
      %v1685 = vunpack.c.l.b16 %v1159
      %v1686 = vunpack.c.h.b16 %v1159
      %v1687 = vunpack.c.l.b16 %v1160
      %v1688 = vunpack.c.h.b16 %v1160
      %v1689 = vunpack.c.l.b16 %v1161
      %v1690 = vunpack.c.h.b16 %v1161
      %v1691 = vunpack.c.l.b16 %v1162
      %v1692 = vunpack.c.h.b16 %v1162
      %v1693 = vunpack.c.l.b16 %v1163
      %v1694 = vunpack.c.h.b16 %v1163
      %v1695 = vunpack.c.l.b16 %v1164
      %v1696 = vunpack.c.h.b16 %v1164
      %v1697 = vunpack.c.l.b16 %v1165
      %v1698 = vunpack.c.h.b16 %v1165
      %v1699 = vunpack.c.l.b16 %v1166
      %v1700 = vunpack.c.h.b16 %v1166
      %v1701 = vunpack.c.l.b16 %v1167
      %v1702 = vunpack.c.h.b16 %v1167
      %v1703 = vunpack.c.l.b16 %v1168
      %v1704 = vunpack.c.h.b16 %v1168
      %v1705 = vunpack.c.l.b16 %v1169
      %v1706 = vunpack.c.h.b16 %v1169
      %v1707 = vunpack.c.l.b16 %v1170
      %v1708 = vunpack.c.h.b16 %v1170
      %v1709 = vunpack.c.l.b16 %v1171
      %v1710 = vunpack.c.h.b16 %v1171
      %v1711 = vunpack.c.l.b16 %v1172
      %v1712 = vunpack.c.h.b16 %v1172
      %v1713 = vunpack.c.l.b16 %v1173
      %v1714 = vunpack.c.h.b16 %v1173
      %v1715 = vunpack.c.l.b16 %v1174
      %v1716 = vunpack.c.h.b16 %v1174
      %v1717 = vunpack.c.l.b16 %v1175
      %v1718 = vunpack.c.h.b16 %v1175
      %v1719 = vunpack.c.l.b16 %v1176
      %v1720 = vunpack.c.h.b16 %v1176
      %v1721 = vunpack.c.l.b16 %v1177
      %v1722 = vunpack.c.h.b16 %v1177
      %v1723 = vunpack.c.l.b16 %v1178
      %v1724 = vunpack.c.h.b16 %v1178
      %v1725 = vunpack.c.l.b16 %v1179
      %v1726 = vunpack.c.h.b16 %v1179
      %v1727 = vunpack.c.l.b16 %v1180
      %v1728 = vunpack.c.h.b16 %v1180
      %v1729 = vunpack.c.l.b16 %v1181
      %v1730 = vunpack.c.h.b16 %v1181
      %v1731 = vunpack.c.l.b16 %v1182
      %v1732 = vunpack.c.h.b16 %v1182
      %v1733 = vunpack.c.l.b16 %v1183
      %v1734 = vunpack.c.h.b16 %v1183
      %v1735 = vunpack.c.l.b16 %v1184
      %v1736 = vunpack.c.h.b16 %v1184
      %v1737 = vunpack.c.l.b16 %v1185
      %v1738 = vunpack.c.h.b16 %v1185
      %v1739 = vunpack.c.l.b16 %v1186
      %v1740 = vunpack.c.h.b16 %v1186
      %v1741 = vunpack.c.l.b16 %v1187
      %v1742 = vunpack.c.h.b16 %v1187
      %v1743 = vunpack.c.l.b16 %v1188
      %v1744 = vunpack.c.h.b16 %v1188
      %v1745 = vunpack.c.l.b16 %v1189
      %v1746 = vunpack.c.h.b16 %v1189
      %v1747 = vunpack.c.l.b16 %v1190
      %v1748 = vunpack.c.h.b16 %v1190
      %v1749 = vunpack.c.l.b16 %v1191
      %v1750 = vunpack.c.h.b16 %v1191
      %v1751 = vunpack.c.l.b16 %v1192
      %v1752 = vunpack.c.h.b16 %v1192
      %v1753 = vunpack.c.l.b16 %v1193
      %v1754 = vunpack.c.h.b16 %v1193
      %v1755 = vunpack.c.l.b16 %v1194
      %v1756 = vunpack.c.h.b16 %v1194
      %v1757 = vunpack.c.l.b16 %v1195
      %v1758 = vunpack.c.h.b16 %v1195
      %v1759 = vunpack.c.l.b16 %v1196
      %v1760 = vunpack.c.h.b16 %v1196
      %v1761 = vunpack.c.l.b16 %v1197
      %v1762 = vunpack.c.h.b16 %v1197
      %v1763 = vunpack.c.l.b16 %v1198
      %v1764 = vunpack.c.h.b16 %v1198
      %v1765 = vunpack.c.l.b16 %v1199
      %v1766 = vunpack.c.h.b16 %v1199
      %v1767 = vunpack.c.l.b16 %v1200
      %v1768 = vunpack.c.h.b16 %v1200
      %v1769 = vunpack.c.l.b16 %v1201
      %v1770 = vunpack.c.h.b16 %v1201
      %v1771 = vunpack.c.l.b16 %v1202
      %v1772 = vunpack.c.h.b16 %v1202
      %v1773 = vunpack.c.l.b16 %v1203
      %v1774 = vunpack.c.h.b16 %v1203
      %v1775 = vunpack.c.l.b16 %v1204
      %v1776 = vunpack.c.h.b16 %v1204
      %v1777 = vunpack.c.l.b16 %v1205
      %v1778 = vunpack.c.h.b16 %v1205
      %v1779 = vunpack.c.l.b16 %v1206
      %v1780 = vunpack.c.h.b16 %v1206
      %v1781 = vunpack.c.l.b16 %v1207
      %v1782 = vunpack.c.h.b16 %v1207
      %v1783 = vunpack.c.l.b16 %v1208
      %v1784 = vunpack.c.h.b16 %v1208
      %v1785 = vunpack.c.l.b16 %v1209
      %v1786 = vunpack.c.h.b16 %v1209
      %v1787 = vunpack.c.l.b16 %v1210
      %v1788 = vunpack.c.h.b16 %v1210
      %v1789 = vunpack.c.l.b16 %v1211
      %v1790 = vunpack.c.h.b16 %v1211
      %v1791 = vunpack.c.l.b16 %v1212
      %v1792 = vunpack.c.h.b16 %v1212
      %v1793 = vunpack.c.l.b16 %v1213
      %v1794 = vunpack.c.h.b16 %v1213
      %v1795 = vunpack.c.l.b16 %v1214
      %v1796 = vunpack.c.h.b16 %v1214
      %v1797 = vunpack.c.l.b16 %v1215
      %v1798 = vunpack.c.h.b16 %v1215
      %v1799 = vunpack.c.l.b16 %v1216
      %v1800 = vunpack.c.h.b16 %v1216
      %v1801 = vunpack.c.l.b16 %v1217
      %v1802 = vunpack.c.h.b16 %v1217
      %v1803 = vunpack.c.l.b16 %v1218
      %v1804 = vunpack.c.h.b16 %v1218
      %v1805 = vunpack.c.l.b16 %v1219
      %v1806 = vunpack.c.h.b16 %v1219
      %v1807 = vunpack.c.l.b16 %v1220
      %v1808 = vunpack.c.h.b16 %v1220
      %v1809 = vunpack.c.l.b16 %v1221
      %v1810 = vunpack.c.h.b16 %v1221
      %v1811 = vunpack.c.l.b16 %v1222
      %v1812 = vunpack.c.h.b16 %v1222
      %v1813 = vunpack.c.l.b16 %v1223
      %v1814 = vunpack.c.h.b16 %v1223
      %v1815 = vunpack.c.l.b16 %v1224
      %v1816 = vunpack.c.h.b16 %v1224
      %v1817 = vunpack.c.l.b16 %v1225
      %v1818 = vunpack.c.h.b16 %v1225
      %v1819 = vunpack.c.l.b16 %v1226
      %v1820 = vunpack.c.h.b16 %v1226
      %v1821 = vunpack.c.l.b16 %v1227
      %v1822 = vunpack.c.h.b16 %v1227
      %v1823 = vunpack.c.l.b16 %v1228
      %v1824 = vunpack.c.h.b16 %v1228
      %v1825 = vunpack.c.l.b16 %v1229
      %v1826 = vunpack.c.h.b16 %v1229
      %v1827 = vunpack.c.l.b16 %v1230
      %v1828 = vunpack.c.h.b16 %v1230
      %v1829 = vunpack.c.l.b16 %v1231
      %v1830 = vunpack.c.h.b16 %v1231
      %v1831 = vunpack.c.l.b16 %v1232
      %v1832 = vunpack.c.h.b16 %v1232
      %v1833 = vunpack.c.l.b16 %v1233
      %v1834 = vunpack.c.h.b16 %v1233
      %v1835 = vunpack.c.l.b16 %v1234
      %v1836 = vunpack.c.h.b16 %v1234
      %v1837 = vunpack.c.l.b16 %v1235
      %v1838 = vunpack.c.h.b16 %v1235
      %v1839 = vunpack.c.l.b16 %v1236
      %v1840 = vunpack.c.h.b16 %v1236
      %v1841 = vunpack.c.l.b16 %v1237
      %v1842 = vunpack.c.h.b16 %v1237
      %v1843 = vunpack.c.l.b16 %v1238
      %v1844 = vunpack.c.h.b16 %v1238
      %v1845 = vunpack.c.l.b16 %v1239
      %v1846 = vunpack.c.h.b16 %v1239
      %v1847 = vunpack.c.l.b16 %v1240
      %v1848 = vunpack.c.h.b16 %v1240
      %v1849 = vunpack.c.l.b16 %v1241
      %v1850 = vunpack.c.h.b16 %v1241
      %v1851 = vunpack.c.l.b16 %v1242
      %v1852 = vunpack.c.h.b16 %v1242
      %v1853 = vunpack.c.l.b16 %v1243
      %v1854 = vunpack.c.h.b16 %v1243
      %v1855 = vunpack.c.l.b16 %v1244
      %v1856 = vunpack.c.h.b16 %v1244
      %v1857 = vunpack.c.l.b16 %v1245
      %v1858 = vunpack.c.h.b16 %v1245
      %v1859 = vunpack.c.l.b16 %v1246
      %v1860 = vunpack.c.h.b16 %v1246
      %v1861 = vunpack.c.l.b16 %v1247
      %v1862 = vunpack.c.h.b16 %v1247
      %v1863 = vunpack.c.l.b16 %v1248
      %v1864 = vunpack.c.h.b16 %v1248
      %v1865 = vunpack.c.l.b16 %v1249
      %v1866 = vunpack.c.h.b16 %v1249
      %v1867 = vunpack.c.l.b16 %v1250
      %v1868 = vunpack.c.h.b16 %v1250
      %v1869 = vunpack.c.l.b16 %v1251
      %v1870 = vunpack.c.h.b16 %v1251
      %v1871 = vunpack.c.l.b16 %v1252
      %v1872 = vunpack.c.h.b16 %v1252
      %v1873 = vunpack.c.l.b16 %v1253
      %v1874 = vunpack.c.h.b16 %v1253
      %v1875 = vunpack.c.l.b16 %v1254
      %v1876 = vunpack.c.h.b16 %v1254
      %v1877 = vunpack.c.l.b16 %v1255
      %v1878 = vunpack.c.h.b16 %v1255
      %v1879 = vunpack.c.l.b16 %v1256
      %v1880 = vunpack.c.h.b16 %v1256
      %v1881 = vunpack.c.l.b16 %v1257
      %v1882 = vunpack.c.h.b16 %v1257
      %v1883 = vunpack.c.l.b16 %v1258
      %v1884 = vunpack.c.h.b16 %v1258
      %v1885 = vunpack.c.l.b16 %v1259
      %v1886 = vunpack.c.h.b16 %v1259
      %v1887 = vunpack.c.l.b16 %v1260
      %v1888 = vunpack.c.h.b16 %v1260
      %v1889 = vunpack.c.l.b16 %v1261
      %v1890 = vunpack.c.h.b16 %v1261
      %v1891 = vunpack.c.l.b16 %v1262
      %v1892 = vunpack.c.h.b16 %v1262
      %v1893 = vunpack.c.l.b16 %v1263
      %v1894 = vunpack.c.h.b16 %v1263
      %v1895 = vunpack.c.l.b16 %v1264
      %v1896 = vunpack.c.h.b16 %v1264
      %v1897 = vunpack.c.l.b16 %v1265
      %v1898 = vunpack.c.h.b16 %v1265
      %v1899 = vunpack.c.l.b16 %v1266
      %v1900 = vunpack.c.h.b16 %v1266
      %v1901 = vunpack.c.l.b16 %v1267
      %v1902 = vunpack.c.h.b16 %v1267
      %v1903 = vunpack.c.l.b16 %v1268
      %v1904 = vunpack.c.h.b16 %v1268
      %v1905 = vunpack.c.l.b16 %v1269
      %v1906 = vunpack.c.h.b16 %v1269
      %v1907 = vunpack.c.l.b16 %v1270
      %v1908 = vunpack.c.h.b16 %v1270
      %v1909 = vunpack.c.l.b16 %v1271
      %v1910 = vunpack.c.h.b16 %v1271
      %v1911 = vunpack.c.l.b16 %v1272
      %v1912 = vunpack.c.h.b16 %v1272
      %v1913 = vunpack.c.l.b16 %v1273
      %v1914 = vunpack.c.h.b16 %v1273
      %v1915 = vunpack.c.l.b16 %v1274
      %v1916 = vunpack.c.h.b16 %v1274
      %v1917 = vunpack.c.l.b16 %v1275
      %v1918 = vunpack.c.h.b16 %v1275
      %v1919 = vunpack.c.l.b16 %v1276
      %v1920 = vunpack.c.h.b16 %v1276
      %v1921 = vunpack.c.l.b16 %v1277
      %v1922 = vunpack.c.h.b16 %v1277
      %v1923 = vunpack.c.l.b16 %v1278
      %v1924 = vunpack.c.h.b16 %v1278
      %v1925 = vunpack.c.l.b16 %v1279
      %v1926 = vunpack.c.h.b16 %v1279
      %v1927 = vunpack.c.l.b16 %v1280
      %v1928 = vunpack.c.h.b16 %v1280
      %v1929 = vunpack.c.l.b16 %v1281
      %v1930 = vunpack.c.h.b16 %v1281
      %v1931 = vunpack.c.l.b16 %v1282
      %v1932 = vunpack.c.h.b16 %v1282
      %v1933 = vunpack.c.l.b16 %v1283
      %v1934 = vunpack.c.h.b16 %v1283
      %v1935 = vunpack.c.l.b16 %v1284
      %v1936 = vunpack.c.h.b16 %v1284
      %v1937 = vunpack.c.l.b16 %v1285
      %v1938 = vunpack.c.h.b16 %v1285
      %v1939 = vunpack.c.l.b16 %v1286
      %v1940 = vunpack.c.h.b16 %v1286
      %v1941 = vunpack.c.l.b16 %v1287
      %v1942 = vunpack.c.h.b16 %v1287
      %v1943 = vunpack.c.l.b16 %v1288
      %v1944 = vunpack.c.h.b16 %v1288
      %v1945 = vunpack.c.l.b16 %v1289
      %v1946 = vunpack.c.h.b16 %v1289
      %v1947 = vunpack.c.l.b16 %v1290
      %v1948 = vunpack.c.h.b16 %v1290
      %v1949 = vunpack.c.l.b16 %v1291
      %v1950 = vunpack.c.h.b16 %v1291
      %v1951 = vunpack.c.l.b16 %v1292
      %v1952 = vunpack.c.h.b16 %v1292
      %v1953 = vunpack.c.l.b16 %v1293
      %v1954 = vunpack.c.h.b16 %v1293
      %v1955 = vunpack.c.l.b16 %v1294
      %v1956 = vunpack.c.h.b16 %v1294
      %v1957 = vunpack.c.l.b16 %v1295
      %v1958 = vunpack.c.h.b16 %v1295
      %v1959 = vunpack.c.l.b16 %v1296
      %v1960 = vunpack.c.h.b16 %v1296
      %v1961 = vunpack.c.l.b16 %v1297
      %v1962 = vunpack.c.h.b16 %v1297
      %v1963 = vunpack.c.l.b16 %v1298
      %v1964 = vunpack.c.h.b16 %v1298
      %v1965 = vunpack.c.l.b16 %v1299
      %v1966 = vunpack.c.h.b16 %v1299
      %v1967 = vunpack.c.l.b16 %v1300
      %v1968 = vunpack.c.h.b16 %v1300
      %v1969 = vunpack.c.l.b16 %v1301
      %v1970 = vunpack.c.h.b16 %v1301
      %v1971 = vunpack.c.l.b16 %v1302
      %v1972 = vunpack.c.h.b16 %v1302
      %v1973 = vunpack.c.l.b16 %v1303
      %v1974 = vunpack.c.h.b16 %v1303
      %v1975 = vunpack.c.l.b16 %v1304
      %v1976 = vunpack.c.h.b16 %v1304
      %v1977 = vunpack.c.l.b16 %v1305
      %v1978 = vunpack.c.h.b16 %v1305
      %v1979 = vunpack.c.l.b16 %v1306
      %v1980 = vunpack.c.h.b16 %v1306
      %v1981 = vunpack.c.l.b16 %v1307
      %v1982 = vunpack.c.h.b16 %v1307
      %v1983 = vunpack.c.l.b16 %v1308
      %v1984 = vunpack.c.h.b16 %v1308
      %v1985 = vunpack.c.l.b16 %v1309
      %v1986 = vunpack.c.h.b16 %v1309
      %v1987 = vunpack.c.l.b16 %v1310
      %v1988 = vunpack.c.h.b16 %v1310
      %v1989 = vunpack.c.l.b16 %v1311
      %v1990 = vunpack.c.h.b16 %v1311
      %v1991 = vunpack.c.l.b16 %v1312
      %v1992 = vunpack.c.h.b16 %v1312
      %v1993 = vunpack.c.l.b16 %v1313
      %v1994 = vunpack.c.h.b16 %v1313
      %v1995 = vunpack.c.l.b16 %v1314
      %v1996 = vunpack.c.h.b16 %v1314
      %v1997 = vunpack.c.l.b16 %v1315
      %v1998 = vunpack.c.h.b16 %v1315
      %v1999 = vunpack.c.l.b16 %v1316
      %v2000 = vunpack.c.h.b16 %v1316
      %v2001 = vunpack.c.l.b16 %v1317
      %v2002 = vunpack.c.h.b16 %v1317
      %v2003 = vunpack.c.l.b16 %v1318
      %v2004 = vunpack.c.h.b16 %v1318
      %v2005 = vunpack.c.l.b16 %v1319
      %v2006 = vunpack.c.h.b16 %v1319
      %v2007 = vunpack.c.l.b16 %v1320
      %v2008 = vunpack.c.h.b16 %v1320
      %v2009 = vunpack.c.l.b16 %v1321
      %v2010 = vunpack.c.h.b16 %v1321
      %v2011 = vunpack.c.l.b16 %v1322
      %v2012 = vunpack.c.h.b16 %v1322
      %v2013 = vunpack.c.l.b16 %v1323
      %v2014 = vunpack.c.h.b16 %v1323
      %v2015 = vunpack.c.l.b16 %v1324
      %v2016 = vunpack.c.h.b16 %v1324
      %v2017 = vunpack.c.l.b16 %v1325
      %v2018 = vunpack.c.h.b16 %v1325
      %v2019 = vunpack.c.l.b16 %v1326
      %v2020 = vunpack.c.h.b16 %v1326
      %v2021 = vunpack.c.l.b16 %v1327
      %v2022 = vunpack.c.h.b16 %v1327
      %v2023 = vunpack.c.l.b16 %v1328
      %v2024 = vunpack.c.h.b16 %v1328
      %v2025 = vunpack.c.l.b16 %v1329
      %v2026 = vunpack.c.h.b16 %v1329
      %v2027 = vunpack.c.l.b16 %v1330
      %v2028 = vunpack.c.h.b16 %v1330
      %v2029 = vunpack.c.l.b16 %v1331
      %v2030 = vunpack.c.h.b16 %v1331
      %v2031 = vunpack.c.l.b16 %v1332
      %v2032 = vunpack.c.h.b16 %v1332
      %v2033 = vunpack.c.l.b16 %v1333
      %v2034 = vunpack.c.h.b16 %v1333
      %v2035 = vunpack.c.l.b16 %v1334
      %v2036 = vunpack.c.h.b16 %v1334
      %v2037 = vunpack.c.l.b16 %v1335
      %v2038 = vunpack.c.h.b16 %v1335
      %v2039 = vunpack.c.l.b16 %v1336
      %v2040 = vunpack.c.h.b16 %v1336
      %v2041 = vunpack.c.l.b16 %v1337
      %v2042 = vunpack.c.h.b16 %v1337
      %v2043 = vunpack.c.l.b16 %v1338
      %v2044 = vunpack.c.h.b16 %v1338
      %v2045 = vunpack.c.l.b16 %v1339
      %v2046 = vunpack.c.h.b16 %v1339
      %v2047 = vunpack.c.l.b16 %v1340
      %v2048 = vunpack.c.h.b16 %v1340
      %v2049 = vunpack.c.l.b16 %v1341
      %v2050 = vunpack.c.h.b16 %v1341
      %v2051 = vunpack.c.l.b16 %v1342
      %v2052 = vunpack.c.h.b16 %v1342
      %v2053 = vunpack.c.l.b16 %v1343
      %v2054 = vunpack.c.h.b16 %v1343
      %v2055 = vunpack.c.l.b16 %v1344
      %v2056 = vunpack.c.h.b16 %v1344
      %v2057 = vunpack.c.l.b16 %v1345
      %v2058 = vunpack.c.h.b16 %v1345
      %v2059 = vunpack.c.l.b16 %v1346
      %v2060 = vunpack.c.h.b16 %v1346
      %v2061 = vunpack.c.l.b16 %v1347
      %v2062 = vunpack.c.h.b16 %v1347
      %v2063 = vunpack.c.l.b16 %v1348
      %v2064 = vunpack.c.h.b16 %v1348
      %v2065 = vunpack.c.l.b16 %v1349
      %v2066 = vunpack.c.h.b16 %v1349
      %v2067 = vunpack.c.l.b16 %v1350
      %v2068 = vunpack.c.h.b16 %v1350
      %v2069 = vunpack.c.l.b16 %v1351
      %v2070 = vunpack.c.h.b16 %v1351
      %v2071 = vunpack.c.l.b16 %v1352
      %v2072 = vunpack.c.h.b16 %v1352
      %v2073 = vunpack.c.l.b16 %v1353
      %v2074 = vunpack.c.h.b16 %v1353
      %v2075 = vunpack.c.l.b16 %v1354
      %v2076 = vunpack.c.h.b16 %v1354
      %v2077 = vunpack.c.l.b16 %v1355
      %v2078 = vunpack.c.h.b16 %v1355
      %v2079 = vunpack.c.l.b16 %v1356
      %v2080 = vunpack.c.h.b16 %v1356
      %v2081 = vunpack.c.l.b16 %v1357
      %v2082 = vunpack.c.h.b16 %v1357
      %v2083 = vunpack.c.l.b16 %v1358
      %v2084 = vunpack.c.h.b16 %v1358
      %v2085 = vunpack.c.l.b16 %v1359
      %v2086 = vunpack.c.h.b16 %v1359
      %v2087 = vunpack.c.l.b16 %v1360
      %v2088 = vunpack.c.h.b16 %v1360
      %v2089 = vunpack.c.l.b16 %v1361
      %v2090 = vunpack.c.h.b16 %v1361
      %v2091 = vunpack.c.l.b16 %v1362
      %v2092 = vunpack.c.h.b16 %v1362
      %v2093 = vunpack.c.l.b16 %v1363
      %v2094 = vunpack.c.h.b16 %v1363
      %v2095 = vunpack.c.l.b16 %v1364
      %v2096 = vunpack.c.h.b16 %v1364
      %v2097 = vunpack.c.l.b16 %v1365
      %v2098 = vunpack.c.h.b16 %v1365
      %v2099 = vunpack.c.l.b16 %v1366
      %v2100 = vunpack.c.h.b16 %v1366
      %v2101 = vunpack.c.l.b16 %v1367
      %v2102 = vunpack.c.h.b16 %v1367
      %v2103 = vunpack.c.l.b16 %v1368
      %v2104 = vunpack.c.h.b16 %v1368
      %v2105 = vunpack.c.l.b16 %v1369
      %v2106 = vunpack.c.h.b16 %v1369
      %v2107 = vunpack.c.l.b16 %v1370
      %v2108 = vunpack.c.h.b16 %v1370
      %v2109 = vunpack.c.l.b16 %v1371
      %v2110 = vunpack.c.h.b16 %v1371
      %v2111 = vunpack.c.l.b16 %v1372
      %v2112 = vunpack.c.h.b16 %v1372
      %v2113 = vunpack.c.l.b16 %v1373
      %v2114 = vunpack.c.h.b16 %v1373
      %v2115 = vunpack.c.l.b16 %v1374
      %v2116 = vunpack.c.h.b16 %v1374
      %v2117 = vunpack.c.l.b16 %v1375
      %v2118 = vunpack.c.h.b16 %v1375
      %v2119 = vunpack.c.l.b16 %v1376
      %v2120 = vunpack.c.h.b16 %v1376
      %v2121 = vunpack.c.l.b16 %v1377
      %v2122 = vunpack.c.h.b16 %v1377
      %v2123 = vunpack.c.l.b16 %v1378
      %v2124 = vunpack.c.h.b16 %v1378
      %v2125 = vunpack.c.l.b16 %v1379
      %v2126 = vunpack.c.h.b16 %v1379
      %v2127 = vunpack.c.l.b16 %v1380
      %v2128 = vunpack.c.h.b16 %v1380
      %v2129 = vunpack.c.l.b16 %v1381
      %v2130 = vunpack.c.h.b16 %v1381
      %v2131 = vunpack.c.l.b16 %v1382
      %v2132 = vunpack.c.h.b16 %v1382
      %v2133 = vunpack.c.l.b16 %v1383
      %v2134 = vunpack.c.h.b16 %v1383
      %v2135 = vunpack.c.l.b16 %v1384
      %v2136 = vunpack.c.h.b16 %v1384
      %v2137 = vunpack.c.l.b16 %v1385
      %v2138 = vunpack.c.h.b16 %v1385
      %v2139 = vunpack.c.l.b16 %v1386
      %v2140 = vunpack.c.h.b16 %v1386
      %v2141 = vunpack.c.l.b16 %v1387
      %v2142 = vunpack.c.h.b16 %v1387
      %v2143 = vunpack.c.l.b16 %v1388
      %v2144 = vunpack.c.h.b16 %v1388
      %v2145 = vunpack.c.l.b16 %v1389
      %v2146 = vunpack.c.h.b16 %v1389
      %v2147 = vunpack.c.l.b16 %v1390
      %v2148 = vunpack.c.h.b16 %v1390
      %v2149 = vunpack.c.l.b16 %v1391
      %v2150 = vunpack.c.h.b16 %v1391
      %v2151 = vunpack.c.l.b16 %v1392
      %v2152 = vunpack.c.h.b16 %v1392
      %v2153 = vunpack.c.l.b16 %v1393
      %v2154 = vunpack.c.h.b16 %v1393
      %v2155 = vunpack.c.l.b16 %v1394
      %v2156 = vunpack.c.h.b16 %v1394
      %v2157 = vunpack.c.l.b16 %v1395
      %v2158 = vunpack.c.h.b16 %v1395
      %v2159 = vunpack.c.l.b16 %v1396
      %v2160 = vunpack.c.h.b16 %v1396
      %v2161 = vunpack.c.l.b16 %v1397
      %v2162 = vunpack.c.h.b16 %v1397
      %v2163 = vunpack.c.l.b16 %v1398
      %v2164 = vunpack.c.h.b16 %v1398
      %v2165 = vunpack.c.l.b16 %v1399
      %v2166 = vunpack.c.h.b16 %v1399
      %v2167 = vunpack.c.l.b16 %v1400
      %v2168 = vunpack.c.h.b16 %v1400
      %v2169 = vpack.c.b16 %v1665, %v1657
      %v2170 = vpack.c.b16 %v1666, %v1658
      %v2171 = vpack.c.b16 %v1667, %v1659
      %v2172 = vpack.c.b16 %v1668, %v1660
      %v2173 = vpack.c.b16 %v1669, %v1661
      %v2174 = vpack.c.b16 %v1670, %v1662
      %v2175 = vpack.c.b16 %v1671, %v1663
      %v2176 = vpack.c.b16 %v1672, %v1664
      %v2177 = vpack.c.b16 %v1681, %v1673
      %v2178 = vpack.c.b16 %v1682, %v1674
      %v2179 = vpack.c.b16 %v1683, %v1675
      %v2180 = vpack.c.b16 %v1684, %v1676
      %v2181 = vpack.c.b16 %v1685, %v1677
      %v2182 = vpack.c.b16 %v1686, %v1678
      %v2183 = vpack.c.b16 %v1687, %v1679
      %v2184 = vpack.c.b16 %v1688, %v1680
      %v2185 = vpack.c.b16 %v1697, %v1689
      %v2186 = vpack.c.b16 %v1698, %v1690
      %v2187 = vpack.c.b16 %v1699, %v1691
      %v2188 = vpack.c.b16 %v1700, %v1692
      %v2189 = vpack.c.b16 %v1701, %v1693
      %v2190 = vpack.c.b16 %v1702, %v1694
      %v2191 = vpack.c.b16 %v1703, %v1695
      %v2192 = vpack.c.b16 %v1704, %v1696
      %v2193 = vpack.c.b16 %v1713, %v1705
      %v2194 = vpack.c.b16 %v1714, %v1706
      %v2195 = vpack.c.b16 %v1715, %v1707
      %v2196 = vpack.c.b16 %v1716, %v1708
      %v2197 = vpack.c.b16 %v1717, %v1709
      %v2198 = vpack.c.b16 %v1718, %v1710
      %v2199 = vpack.c.b16 %v1719, %v1711
      %v2200 = vpack.c.b16 %v1720, %v1712
      %v2201 = vpack.c.b16 %v1729, %v1721
      %v2202 = vpack.c.b16 %v1730, %v1722
      %v2203 = vpack.c.b16 %v1731, %v1723
      %v2204 = vpack.c.b16 %v1732, %v1724
      %v2205 = vpack.c.b16 %v1733, %v1725
      %v2206 = vpack.c.b16 %v1734, %v1726
      %v2207 = vpack.c.b16 %v1735, %v1727
      %v2208 = vpack.c.b16 %v1736, %v1728
      %v2209 = vpack.c.b16 %v1745, %v1737
      %v2210 = vpack.c.b16 %v1746, %v1738
      %v2211 = vpack.c.b16 %v1747, %v1739
      %v2212 = vpack.c.b16 %v1748, %v1740
      %v2213 = vpack.c.b16 %v1749, %v1741
      %v2214 = vpack.c.b16 %v1750, %v1742
      %v2215 = vpack.c.b16 %v1751, %v1743
      %v2216 = vpack.c.b16 %v1752, %v1744
      %v2217 = vpack.c.b16 %v1761, %v1753
      %v2218 = vpack.c.b16 %v1762, %v1754
      %v2219 = vpack.c.b16 %v1763, %v1755
      %v2220 = vpack.c.b16 %v1764, %v1756
      %v2221 = vpack.c.b16 %v1765, %v1757
      %v2222 = vpack.c.b16 %v1766, %v1758
      %v2223 = vpack.c.b16 %v1767, %v1759
      %v2224 = vpack.c.b16 %v1768, %v1760
      %v2225 = vpack.c.b16 %v1777, %v1769
      %v2226 = vpack.c.b16 %v1778, %v1770
      %v2227 = vpack.c.b16 %v1779, %v1771
      %v2228 = vpack.c.b16 %v1780, %v1772
      %v2229 = vpack.c.b16 %v1781, %v1773
      %v2230 = vpack.c.b16 %v1782, %v1774
      %v2231 = vpack.c.b16 %v1783, %v1775
      %v2232 = vpack.c.b16 %v1784, %v1776
      %v2233 = vpack.c.b16 %v1793, %v1785
      %v2234 = vpack.c.b16 %v1794, %v1786
      %v2235 = vpack.c.b16 %v1795, %v1787
      %v2236 = vpack.c.b16 %v1796, %v1788
      %v2237 = vpack.c.b16 %v1797, %v1789
      %v2238 = vpack.c.b16 %v1798, %v1790
      %v2239 = vpack.c.b16 %v1799, %v1791
      %v2240 = vpack.c.b16 %v1800, %v1792
      %v2241 = vpack.c.b16 %v1809, %v1801
      %v2242 = vpack.c.b16 %v1810, %v1802
      %v2243 = vpack.c.b16 %v1811, %v1803
      %v2244 = vpack.c.b16 %v1812, %v1804
      %v2245 = vpack.c.b16 %v1813, %v1805
      %v2246 = vpack.c.b16 %v1814, %v1806
      %v2247 = vpack.c.b16 %v1815, %v1807
      %v2248 = vpack.c.b16 %v1816, %v1808
      %v2249 = vpack.c.b16 %v1825, %v1817
      %v2250 = vpack.c.b16 %v1826, %v1818
      %v2251 = vpack.c.b16 %v1827, %v1819
      %v2252 = vpack.c.b16 %v1828, %v1820
      %v2253 = vpack.c.b16 %v1829, %v1821
      %v2254 = vpack.c.b16 %v1830, %v1822
      %v2255 = vpack.c.b16 %v1831, %v1823
      %v2256 = vpack.c.b16 %v1832, %v1824
      %v2257 = vpack.c.b16 %v1841, %v1833
      %v2258 = vpack.c.b16 %v1842, %v1834
      %v2259 = vpack.c.b16 %v1843, %v1835
      %v2260 = vpack.c.b16 %v1844, %v1836
      %v2261 = vpack.c.b16 %v1845, %v1837
      %v2262 = vpack.c.b16 %v1846, %v1838
      %v2263 = vpack.c.b16 %v1847, %v1839
      %v2264 = vpack.c.b16 %v1848, %v1840
      %v2265 = vpack.c.b16 %v1857, %v1849
      %v2266 = vpack.c.b16 %v1858, %v1850
      %v2267 = vpack.c.b16 %v1859, %v1851
      %v2268 = vpack.c.b16 %v1860, %v1852
      %v2269 = vpack.c.b16 %v1861, %v1853
      %v2270 = vpack.c.b16 %v1862, %v1854
      %v2271 = vpack.c.b16 %v1863, %v1855
      %v2272 = vpack.c.b16 %v1864, %v1856
      %v2273 = vpack.c.b16 %v1873, %v1865
      %v2274 = vpack.c.b16 %v1874, %v1866
      %v2275 = vpack.c.b16 %v1875, %v1867
      %v2276 = vpack.c.b16 %v1876, %v1868
      %v2277 = vpack.c.b16 %v1877, %v1869
      %v2278 = vpack.c.b16 %v1878, %v1870
      %v2279 = vpack.c.b16 %v1879, %v1871
      %v2280 = vpack.c.b16 %v1880, %v1872
      %v2281 = vpack.c.b16 %v1889, %v1881
      %v2282 = vpack.c.b16 %v1890, %v1882
      %v2283 = vpack.c.b16 %v1891, %v1883
      %v2284 = vpack.c.b16 %v1892, %v1884
      %v2285 = vpack.c.b16 %v1893, %v1885
      %v2286 = vpack.c.b16 %v1894, %v1886
      %v2287 = vpack.c.b16 %v1895, %v1887
      %v2288 = vpack.c.b16 %v1896, %v1888
      %v2289 = vpack.c.b16 %v1905, %v1897
      %v2290 = vpack.c.b16 %v1906, %v1898
      %v2291 = vpack.c.b16 %v1907, %v1899
      %v2292 = vpack.c.b16 %v1908, %v1900
      %v2293 = vpack.c.b16 %v1909, %v1901
      %v2294 = vpack.c.b16 %v1910, %v1902
      %v2295 = vpack.c.b16 %v1911, %v1903
      %v2296 = vpack.c.b16 %v1912, %v1904
      %v2297 = vpack.c.b16 %v1921, %v1913
      %v2298 = vpack.c.b16 %v1922, %v1914
      %v2299 = vpack.c.b16 %v1923, %v1915
      %v2300 = vpack.c.b16 %v1924, %v1916
      %v2301 = vpack.c.b16 %v1925, %v1917
      %v2302 = vpack.c.b16 %v1926, %v1918
      %v2303 = vpack.c.b16 %v1927, %v1919
      %v2304 = vpack.c.b16 %v1928, %v1920
      %v2305 = vpack.c.b16 %v1937, %v1929
      %v2306 = vpack.c.b16 %v1938, %v1930
      %v2307 = vpack.c.b16 %v1939, %v1931
      %v2308 = vpack.c.b16 %v1940, %v1932
      %v2309 = vpack.c.b16 %v1941, %v1933
      %v2310 = vpack.c.b16 %v1942, %v1934
      %v2311 = vpack.c.b16 %v1943, %v1935
      %v2312 = vpack.c.b16 %v1944, %v1936
      %v2313 = vpack.c.b16 %v1953, %v1945
      %v2314 = vpack.c.b16 %v1954, %v1946
      %v2315 = vpack.c.b16 %v1955, %v1947
      %v2316 = vpack.c.b16 %v1956, %v1948
      %v2317 = vpack.c.b16 %v1957, %v1949
      %v2318 = vpack.c.b16 %v1958, %v1950
      %v2319 = vpack.c.b16 %v1959, %v1951
      %v2320 = vpack.c.b16 %v1960, %v1952
      %v2321 = vpack.c.b16 %v1969, %v1961
      %v2322 = vpack.c.b16 %v1970, %v1962
      %v2323 = vpack.c.b16 %v1971, %v1963
      %v2324 = vpack.c.b16 %v1972, %v1964
      %v2325 = vpack.c.b16 %v1973, %v1965
      %v2326 = vpack.c.b16 %v1974, %v1966
      %v2327 = vpack.c.b16 %v1975, %v1967
      %v2328 = vpack.c.b16 %v1976, %v1968
      %v2329 = vpack.c.b16 %v1985, %v1977
      %v2330 = vpack.c.b16 %v1986, %v1978
      %v2331 = vpack.c.b16 %v1987, %v1979
      %v2332 = vpack.c.b16 %v1988, %v1980
      %v2333 = vpack.c.b16 %v1989, %v1981
      %v2334 = vpack.c.b16 %v1990, %v1982
      %v2335 = vpack.c.b16 %v1991, %v1983
      %v2336 = vpack.c.b16 %v1992, %v1984
      %v2337 = vpack.c.b16 %v2001, %v1993
      %v2338 = vpack.c.b16 %v2002, %v1994
      %v2339 = vpack.c.b16 %v2003, %v1995
      %v2340 = vpack.c.b16 %v2004, %v1996
      %v2341 = vpack.c.b16 %v2005, %v1997
      %v2342 = vpack.c.b16 %v2006, %v1998
      %v2343 = vpack.c.b16 %v2007, %v1999
      %v2344 = vpack.c.b16 %v2008, %v2000
      %v2345 = vpack.c.b16 %v2017, %v2009
      %v2346 = vpack.c.b16 %v2018, %v2010
      %v2347 = vpack.c.b16 %v2019, %v2011
      %v2348 = vpack.c.b16 %v2020, %v2012
      %v2349 = vpack.c.b16 %v2021, %v2013
      %v2350 = vpack.c.b16 %v2022, %v2014
      %v2351 = vpack.c.b16 %v2023, %v2015
      %v2352 = vpack.c.b16 %v2024, %v2016
      %v2353 = vpack.c.b16 %v2033, %v2025
      %v2354 = vpack.c.b16 %v2034, %v2026
      %v2355 = vpack.c.b16 %v2035, %v2027
      %v2356 = vpack.c.b16 %v2036, %v2028
      %v2357 = vpack.c.b16 %v2037, %v2029
      %v2358 = vpack.c.b16 %v2038, %v2030
      %v2359 = vpack.c.b16 %v2039, %v2031
      %v2360 = vpack.c.b16 %v2040, %v2032
      %v2361 = vpack.c.b16 %v2049, %v2041
      %v2362 = vpack.c.b16 %v2050, %v2042
      %v2363 = vpack.c.b16 %v2051, %v2043
      %v2364 = vpack.c.b16 %v2052, %v2044
      %v2365 = vpack.c.b16 %v2053, %v2045
      %v2366 = vpack.c.b16 %v2054, %v2046
      %v2367 = vpack.c.b16 %v2055, %v2047
      %v2368 = vpack.c.b16 %v2056, %v2048
      %v2369 = vpack.c.b16 %v2065, %v2057
      %v2370 = vpack.c.b16 %v2066, %v2058
      %v2371 = vpack.c.b16 %v2067, %v2059
      %v2372 = vpack.c.b16 %v2068, %v2060
      %v2373 = vpack.c.b16 %v2069, %v2061
      %v2374 = vpack.c.b16 %v2070, %v2062
      %v2375 = vpack.c.b16 %v2071, %v2063
      %v2376 = vpack.c.b16 %v2072, %v2064
      %v2377 = vpack.c.b16 %v2081, %v2073
      %v2378 = vpack.c.b16 %v2082, %v2074
      %v2379 = vpack.c.b16 %v2083, %v2075
      %v2380 = vpack.c.b16 %v2084, %v2076
      %v2381 = vpack.c.b16 %v2085, %v2077
      %v2382 = vpack.c.b16 %v2086, %v2078
      %v2383 = vpack.c.b16 %v2087, %v2079
      %v2384 = vpack.c.b16 %v2088, %v2080
      %v2385 = vpack.c.b16 %v2097, %v2089
      %v2386 = vpack.c.b16 %v2098, %v2090
      %v2387 = vpack.c.b16 %v2099, %v2091
      %v2388 = vpack.c.b16 %v2100, %v2092
      %v2389 = vpack.c.b16 %v2101, %v2093
      %v2390 = vpack.c.b16 %v2102, %v2094
      %v2391 = vpack.c.b16 %v2103, %v2095
      %v2392 = vpack.c.b16 %v2104, %v2096
      %v2393 = vpack.c.b16 %v2113, %v2105
      %v2394 = vpack.c.b16 %v2114, %v2106
      %v2395 = vpack.c.b16 %v2115, %v2107
      %v2396 = vpack.c.b16 %v2116, %v2108
      %v2397 = vpack.c.b16 %v2117, %v2109
      %v2398 = vpack.c.b16 %v2118, %v2110
      %v2399 = vpack.c.b16 %v2119, %v2111
      %v2400 = vpack.c.b16 %v2120, %v2112
      %v2401 = vpack.c.b16 %v2129, %v2121
      %v2402 = vpack.c.b16 %v2130, %v2122
      %v2403 = vpack.c.b16 %v2131, %v2123
      %v2404 = vpack.c.b16 %v2132, %v2124
      %v2405 = vpack.c.b16 %v2133, %v2125
      %v2406 = vpack.c.b16 %v2134, %v2126
      %v2407 = vpack.c.b16 %v2135, %v2127
      %v2408 = vpack.c.b16 %v2136, %v2128
      %v2409 = vpack.c.b16 %v2145, %v2137
      %v2410 = vpack.c.b16 %v2146, %v2138
      %v2411 = vpack.c.b16 %v2147, %v2139
      %v2412 = vpack.c.b16 %v2148, %v2140
      %v2413 = vpack.c.b16 %v2149, %v2141
      %v2414 = vpack.c.b16 %v2150, %v2142
      %v2415 = vpack.c.b16 %v2151, %v2143
      %v2416 = vpack.c.b16 %v2152, %v2144
      %v2417 = vpack.c.b16 %v2161, %v2153
      %v2418 = vpack.c.b16 %v2162, %v2154
      %v2419 = vpack.c.b16 %v2163, %v2155
      %v2420 = vpack.c.b16 %v2164, %v2156
      %v2421 = vpack.c.b16 %v2165, %v2157
      %v2422 = vpack.c.b16 %v2166, %v2158
      %v2423 = vpack.c.b16 %v2167, %v2159
      %v2424 = vpack.c.b16 %v2168, %v2160
      %2681 = vmatprep.subr.bf16.mxu0 %v2170
      %2682 = vmatpush1.bf16.msra.mxu0 %v2169
      %2683 = vmatprep.subr.bf16.mxu0 %v2178
      %2684 = vmatpush1.bf16.msra.mxu0 %v2177
      %2685 = vmatprep.subr.bf16.mxu0 %v2186
      %2686 = vmatpush1.bf16.msra.mxu0 %v2185
      %2687 = vmatprep.subr.bf16.mxu0 %v2194
      %2688 = vmatpush1.bf16.msra.mxu0 %v2193
      %2689 = vmatprep.subr.bf16.mxu0 %v2202
      %2690 = vmatpush1.bf16.msra.mxu0 %v2201
      %2691 = vmatprep.subr.bf16.mxu0 %v2210
      %2692 = vmatpush1.bf16.msra.mxu0 %v2209
      %2693 = vmatprep.subr.bf16.mxu0 %v2218
      %2694 = vmatpush1.bf16.msra.mxu0 %v2217
      %2695 = vmatprep.subr.bf16.mxu0 %v2226
      %2696 = vmatpush1.bf16.msra.mxu0 %v2225
      %2697 = vmatprep.subr.bf16.mxu0 %v2234
      %2698 = vmatpush1.bf16.msra.mxu0 %v2233
      %2699 = vmatprep.subr.bf16.mxu0 %v2242
      %2700 = vmatpush1.bf16.msra.mxu0 %v2241
      %2701 = vmatprep.subr.bf16.mxu0 %v2250
      %2702 = vmatpush1.bf16.msra.mxu0 %v2249
      %2703 = vmatprep.subr.bf16.mxu0 %v2258
      %2704 = vmatpush1.bf16.msra.mxu0 %v2257
      %2705 = vmatprep.subr.bf16.mxu0 %v2266
      %2706 = vmatpush1.bf16.msra.mxu0 %v2265
      %2707 = vmatprep.subr.bf16.mxu0 %v2274
      %2708 = vmatpush1.bf16.msra.mxu0 %v2273
      %2709 = vmatprep.subr.bf16.mxu0 %v2282
      %2710 = vmatpush1.bf16.msra.mxu0 %v2281
      %2711 = vmatprep.subr.bf16.mxu0 %v2290
      %2712 = vmatpush1.bf16.msra.mxu0 %v2289
      %2713 = vmatprep.mubr.bf16.mxu0 %v1142
      %2714 = vmatmul.mubr.bf16.gmra.mrb[0].mxu0 %v1141
      %v2715 = vpop.f32.mrb[0].mxu0
      %v2716 = vadd.f32 0.0, %v2715
      %v2717 = vpop.f32.mrb[0].mxu0
      %v2718 = vadd.f32 0.0, %v2717
      %v2719 = vpop.f32.mrb[0].mxu0
      %v2720 = vpop.f32.mrb[0].mxu0
      %2721 = vdwg.mxu0
      %2722 = vmatprep.subr.bf16.mxu0 %v2298
      %2723 = vmatpush1.bf16.msra.mxu0 %v2297
      %2724 = vmatprep.subr.bf16.mxu0 %v2306
      %2725 = vmatpush1.bf16.msra.mxu0 %v2305
      %2726 = vmatprep.subr.bf16.mxu0 %v2314
      %2727 = vmatpush1.bf16.msra.mxu0 %v2313
      %2728 = vmatprep.subr.bf16.mxu0 %v2322
      %2729 = vmatpush1.bf16.msra.mxu0 %v2321
      %2730 = vmatprep.subr.bf16.mxu0 %v2330
      %2731 = vmatpush1.bf16.msra.mxu0 %v2329
      %2732 = vmatprep.subr.bf16.mxu0 %v2338
      %2733 = vmatpush1.bf16.msra.mxu0 %v2337
      %2734 = vmatprep.subr.bf16.mxu0 %v2346
      %2735 = vmatpush1.bf16.msra.mxu0 %v2345
      %2736 = vmatprep.subr.bf16.mxu0 %v2354
      %2737 = vmatpush1.bf16.msra.mxu0 %v2353
      %2738 = vmatprep.subr.bf16.mxu0 %v2362
      %2739 = vmatpush1.bf16.msra.mxu0 %v2361
      %2740 = vmatprep.subr.bf16.mxu0 %v2370
      %2741 = vmatpush1.bf16.msra.mxu0 %v2369
      %2742 = vmatprep.subr.bf16.mxu0 %v2378
      %2743 = vmatpush1.bf16.msra.mxu0 %v2377
      %2744 = vmatprep.subr.bf16.mxu0 %v2386
      %2745 = vmatpush1.bf16.msra.mxu0 %v2385
      %2746 = vmatprep.subr.bf16.mxu0 %v2394
      %2747 = vmatpush1.bf16.msra.mxu0 %v2393
      %2748 = vmatprep.subr.bf16.mxu0 %v2402
      %2749 = vmatpush1.bf16.msra.mxu0 %v2401
      %2750 = vmatprep.subr.bf16.mxu0 %v2410
      %2751 = vmatpush1.bf16.msra.mxu0 %v2409
      %2752 = vmatprep.subr.bf16.mxu0 %v2418
      %2753 = vmatpush1.bf16.msra.mxu0 %v2417
      %2754 = vmatprep.mubr.bf16.mxu0 %v1144
      %2755 = vmatmul.mubr.bf16.gmra.mrb[0].mxu0 %v1143
      %v2756 = vpop.f32.mrb[0].mxu0
      %v2757 = vadd.f32 %v2716, %v2756
      %v2758 = vpop.f32.mrb[0].mxu0
      %v2759 = vadd.f32 %v2718, %v2758
      %v2760 = vpop.f32.mrb[0].mxu0
      %v2761 = vpop.f32.mrb[0].mxu0
      %2762 = vdwg.mxu0
      %2763 = vmatprep.subr.bf16.mxu0 %v2172
      %2764 = vmatpush1.bf16.msra.mxu0 %v2171
      %2765 = vmatprep.subr.bf16.mxu0 %v2180
      %2766 = vmatpush1.bf16.msra.mxu0 %v2179
      %2767 = vmatprep.subr.bf16.mxu0 %v2188
      %2768 = vmatpush1.bf16.msra.mxu0 %v2187
      %2769 = vmatprep.subr.bf16.mxu0 %v2196
      %2770 = vmatpush1.bf16.msra.mxu0 %v2195
      %2771 = vmatprep.subr.bf16.mxu0 %v2204
      %2772 = vmatpush1.bf16.msra.mxu0 %v2203
      %2773 = vmatprep.subr.bf16.mxu0 %v2212
      %2774 = vmatpush1.bf16.msra.mxu0 %v2211
      %2775 = vmatprep.subr.bf16.mxu0 %v2220
      %2776 = vmatpush1.bf16.msra.mxu0 %v2219
      %2777 = vmatprep.subr.bf16.mxu0 %v2228
      %2778 = vmatpush1.bf16.msra.mxu0 %v2227
      %2779 = vmatprep.subr.bf16.mxu0 %v2236
      %2780 = vmatpush1.bf16.msra.mxu0 %v2235
      %2781 = vmatprep.subr.bf16.mxu0 %v2244
      %2782 = vmatpush1.bf16.msra.mxu0 %v2243
      %2783 = vmatprep.subr.bf16.mxu0 %v2252
      %2784 = vmatpush1.bf16.msra.mxu0 %v2251
      %2785 = vmatprep.subr.bf16.mxu0 %v2260
      %2786 = vmatpush1.bf16.msra.mxu0 %v2259
      %2787 = vmatprep.subr.bf16.mxu0 %v2268
      %2788 = vmatpush1.bf16.msra.mxu0 %v2267
      %2789 = vmatprep.subr.bf16.mxu0 %v2276
      %2790 = vmatpush1.bf16.msra.mxu0 %v2275
      %2791 = vmatprep.subr.bf16.mxu0 %v2284
      %2792 = vmatpush1.bf16.msra.mxu0 %v2283
      %2793 = vmatprep.subr.bf16.mxu0 %v2292
      %2794 = vmatpush1.bf16.msra.mxu0 %v2291
      %2795 = vmatprep.mubr.bf16.mxu0 %v1142
      %2796 = vmatmul.mubr.bf16.gmra.mrb[0].mxu0 %v1141
      %v2797 = vpop.f32.mrb[0].mxu0
      %v2798 = vadd.f32 0.0, %v2797
      %v2799 = vpop.f32.mrb[0].mxu0
      %v2800 = vadd.f32 0.0, %v2799
      %v2801 = vpop.f32.mrb[0].mxu0
      %v2802 = vpop.f32.mrb[0].mxu0
      %2803 = vdwg.mxu0
      %2804 = vmatprep.subr.bf16.mxu0 %v2300
      %2805 = vmatpush1.bf16.msra.mxu0 %v2299
      %2806 = vmatprep.subr.bf16.mxu0 %v2308
      %2807 = vmatpush1.bf16.msra.mxu0 %v2307
      %2808 = vmatprep.subr.bf16.mxu0 %v2316
      %2809 = vmatpush1.bf16.msra.mxu0 %v2315
      %2810 = vmatprep.subr.bf16.mxu0 %v2324
      %2811 = vmatpush1.bf16.msra.mxu0 %v2323
      %2812 = vmatprep.subr.bf16.mxu0 %v2332
      %2813 = vmatpush1.bf16.msra.mxu0 %v2331
      %2814 = vmatprep.subr.bf16.mxu0 %v2340
      %2815 = vmatpush1.bf16.msra.mxu0 %v2339
      %2816 = vmatprep.subr.bf16.mxu0 %v2348
      %2817 = vmatpush1.bf16.msra.mxu0 %v2347
      %2818 = vmatprep.subr.bf16.mxu0 %v2356
      %2819 = vmatpush1.bf16.msra.mxu0 %v2355
      %2820 = vmatprep.subr.bf16.mxu0 %v2364
      %2821 = vmatpush1.bf16.msra.mxu0 %v2363
      %2822 = vmatprep.subr.bf16.mxu0 %v2372
      %2823 = vmatpush1.bf16.msra.mxu0 %v2371
      %2824 = vmatprep.subr.bf16.mxu0 %v2380
      %2825 = vmatpush1.bf16.msra.mxu0 %v2379
      %2826 = vmatprep.subr.bf16.mxu0 %v2388
      %2827 = vmatpush1.bf16.msra.mxu0 %v2387
      %2828 = vmatprep.subr.bf16.mxu0 %v2396
      %2829 = vmatpush1.bf16.msra.mxu0 %v2395
      %2830 = vmatprep.subr.bf16.mxu0 %v2404
      %2831 = vmatpush1.bf16.msra.mxu0 %v2403
      %2832 = vmatprep.subr.bf16.mxu0 %v2412
      %2833 = vmatpush1.bf16.msra.mxu0 %v2411
      %2834 = vmatprep.subr.bf16.mxu0 %v2420
      %2835 = vmatpush1.bf16.msra.mxu0 %v2419
      %2836 = vmatprep.mubr.bf16.mxu0 %v1144
      %2837 = vmatmul.mubr.bf16.gmra.mrb[0].mxu0 %v1143
      %v2838 = vpop.f32.mrb[0].mxu0
      %v2839 = vadd.f32 %v2798, %v2838
      %v2840 = vpop.f32.mrb[0].mxu0
      %v2841 = vadd.f32 %v2800, %v2840
      %v2842 = vpop.f32.mrb[0].mxu0
      %v2843 = vpop.f32.mrb[0].mxu0
      %2844 = vdwg.mxu0
      %2845 = vmatprep.subr.bf16.mxu0 %v2174
      %2846 = vmatpush1.bf16.msra.mxu0 %v2173
      %2847 = vmatprep.subr.bf16.mxu0 %v2182
      %2848 = vmatpush1.bf16.msra.mxu0 %v2181
      %2849 = vmatprep.subr.bf16.mxu0 %v2190
      %2850 = vmatpush1.bf16.msra.mxu0 %v2189
      %2851 = vmatprep.subr.bf16.mxu0 %v2198
      %2852 = vmatpush1.bf16.msra.mxu0 %v2197
      %2853 = vmatprep.subr.bf16.mxu0 %v2206
      %2854 = vmatpush1.bf16.msra.mxu0 %v2205
      %2855 = vmatprep.subr.bf16.mxu0 %v2214
      %2856 = vmatpush1.bf16.msra.mxu0 %v2213
      %2857 = vmatprep.subr.bf16.mxu0 %v2222
      %2858 = vmatpush1.bf16.msra.mxu0 %v2221
      %2859 = vmatprep.subr.bf16.mxu0 %v2230
      %2860 = vmatpush1.bf16.msra.mxu0 %v2229
      %2861 = vmatprep.subr.bf16.mxu0 %v2238
      %2862 = vmatpush1.bf16.msra.mxu0 %v2237
      %2863 = vmatprep.subr.bf16.mxu0 %v2246
      %2864 = vmatpush1.bf16.msra.mxu0 %v2245
      %2865 = vmatprep.subr.bf16.mxu0 %v2254
      %2866 = vmatpush1.bf16.msra.mxu0 %v2253
      %2867 = vmatprep.subr.bf16.mxu0 %v2262
      %2868 = vmatpush1.bf16.msra.mxu0 %v2261
      %2869 = vmatprep.subr.bf16.mxu0 %v2270
      %2870 = vmatpush1.bf16.msra.mxu0 %v2269
      %2871 = vmatprep.subr.bf16.mxu0 %v2278
      %2872 = vmatpush1.bf16.msra.mxu0 %v2277
      %2873 = vmatprep.subr.bf16.mxu0 %v2286
      %2874 = vmatpush1.bf16.msra.mxu0 %v2285
      %2875 = vmatprep.subr.bf16.mxu0 %v2294
      %2876 = vmatpush1.bf16.msra.mxu0 %v2293
      %2877 = vmatprep.mubr.bf16.mxu0 %v1142
      %2878 = vmatmul.mubr.bf16.gmra.mrb[0].mxu0 %v1141
      %v2879 = vpop.f32.mrb[0].mxu0
      %v2880 = vadd.f32 0.0, %v2879
      %v2881 = vpop.f32.mrb[0].mxu0
      %v2882 = vadd.f32 0.0, %v2881
      %v2883 = vpop.f32.mrb[0].mxu0
      %v2884 = vpop.f32.mrb[0].mxu0
      %2885 = vdwg.mxu0
      %2886 = vmatprep.subr.bf16.mxu0 %v2302
      %2887 = vmatpush1.bf16.msra.mxu0 %v2301
      %2888 = vmatprep.subr.bf16.mxu0 %v2310
      %2889 = vmatpush1.bf16.msra.mxu0 %v2309
      %2890 = vmatprep.subr.bf16.mxu0 %v2318
      %2891 = vmatpush1.bf16.msra.mxu0 %v2317
      %2892 = vmatprep.subr.bf16.mxu0 %v2326
      %2893 = vmatpush1.bf16.msra.mxu0 %v2325
      %2894 = vmatprep.subr.bf16.mxu0 %v2334
      %2895 = vmatpush1.bf16.msra.mxu0 %v2333
      %2896 = vmatprep.subr.bf16.mxu0 %v2342
      %2897 = vmatpush1.bf16.msra.mxu0 %v2341
      %2898 = vmatprep.subr.bf16.mxu0 %v2350
      %2899 = vmatpush1.bf16.msra.mxu0 %v2349
      %2900 = vmatprep.subr.bf16.mxu0 %v2358
      %2901 = vmatpush1.bf16.msra.mxu0 %v2357
      %2902 = vmatprep.subr.bf16.mxu0 %v2366
      %2903 = vmatpush1.bf16.msra.mxu0 %v2365
      %2904 = vmatprep.subr.bf16.mxu0 %v2374
      %2905 = vmatpush1.bf16.msra.mxu0 %v2373
      %2906 = vmatprep.subr.bf16.mxu0 %v2382
      %2907 = vmatpush1.bf16.msra.mxu0 %v2381
      %2908 = vmatprep.subr.bf16.mxu0 %v2390
      %2909 = vmatpush1.bf16.msra.mxu0 %v2389
      %2910 = vmatprep.subr.bf16.mxu0 %v2398
      %2911 = vmatpush1.bf16.msra.mxu0 %v2397
      %2912 = vmatprep.subr.bf16.mxu0 %v2406
      %2913 = vmatpush1.bf16.msra.mxu0 %v2405
      %2914 = vmatprep.subr.bf16.mxu0 %v2414
      %2915 = vmatpush1.bf16.msra.mxu0 %v2413
      %2916 = vmatprep.subr.bf16.mxu0 %v2422
      %2917 = vmatpush1.bf16.msra.mxu0 %v2421
      %2918 = vmatprep.mubr.bf16.mxu0 %v1144
      %2919 = vmatmul.mubr.bf16.gmra.mrb[0].mxu0 %v1143
      %v2920 = vpop.f32.mrb[0].mxu0
      %v2921 = vadd.f32 %v2880, %v2920
      %v2922 = vpop.f32.mrb[0].mxu0
      %v2923 = vadd.f32 %v2882, %v2922
      %v2924 = vpop.f32.mrb[0].mxu0
      %v2925 = vpop.f32.mrb[0].mxu0
      %2926 = vdwg.mxu0
      %2927 = vmatprep.subr.bf16.mxu0 %v2176
      %2928 = vmatpush1.bf16.msra.mxu0 %v2175
      %2929 = vmatprep.subr.bf16.mxu0 %v2184
      %2930 = vmatpush1.bf16.msra.mxu0 %v2183
      %2931 = vmatprep.subr.bf16.mxu0 %v2192
      %2932 = vmatpush1.bf16.msra.mxu0 %v2191
      %2933 = vmatprep.subr.bf16.mxu0 %v2200
      %2934 = vmatpush1.bf16.msra.mxu0 %v2199
      %2935 = vmatprep.subr.bf16.mxu0 %v2208
      %2936 = vmatpush1.bf16.msra.mxu0 %v2207
      %2937 = vmatprep.subr.bf16.mxu0 %v2216
      %2938 = vmatpush1.bf16.msra.mxu0 %v2215
      %2939 = vmatprep.subr.bf16.mxu0 %v2224
      %2940 = vmatpush1.bf16.msra.mxu0 %v2223
      %2941 = vmatprep.subr.bf16.mxu0 %v2232
      %2942 = vmatpush1.bf16.msra.mxu0 %v2231
      %2943 = vmatprep.subr.bf16.mxu0 %v2240
      %2944 = vmatpush1.bf16.msra.mxu0 %v2239
      %2945 = vmatprep.subr.bf16.mxu0 %v2248
      %2946 = vmatpush1.bf16.msra.mxu0 %v2247
      %2947 = vmatprep.subr.bf16.mxu0 %v2256
      %2948 = vmatpush1.bf16.msra.mxu0 %v2255
      %2949 = vmatprep.subr.bf16.mxu0 %v2264
      %2950 = vmatpush1.bf16.msra.mxu0 %v2263
      %2951 = vmatprep.subr.bf16.mxu0 %v2272
      %2952 = vmatpush1.bf16.msra.mxu0 %v2271
      %2953 = vmatprep.subr.bf16.mxu0 %v2280
      %2954 = vmatpush1.bf16.msra.mxu0 %v2279
      %2955 = vmatprep.subr.bf16.mxu0 %v2288
      %2956 = vmatpush1.bf16.msra.mxu0 %v2287
      %2957 = vmatprep.subr.bf16.mxu0 %v2296
      %2958 = vmatpush1.bf16.msra.mxu0 %v2295
      %2959 = vmatprep.mubr.bf16.mxu0 %v1142
      %2960 = vmatmul.mubr.bf16.gmra.mrb[0].mxu0 %v1141
      %v2961 = vpop.f32.mrb[0].mxu0
      %v2962 = vadd.f32 0.0, %v2961
      %v2963 = vpop.f32.mrb[0].mxu0
      %v2964 = vadd.f32 0.0, %v2963
      %v2965 = vpop.f32.mrb[0].mxu0
      %v2966 = vpop.f32.mrb[0].mxu0
      %2967 = vdwg.mxu0
      %2968 = vmatprep.subr.bf16.mxu0 %v2304
      %2969 = vmatpush1.bf16.msra.mxu0 %v2303
      %2970 = vmatprep.subr.bf16.mxu0 %v2312
      %2971 = vmatpush1.bf16.msra.mxu0 %v2311
      %2972 = vmatprep.subr.bf16.mxu0 %v2320
      %2973 = vmatpush1.bf16.msra.mxu0 %v2319
      %2974 = vmatprep.subr.bf16.mxu0 %v2328
      %2975 = vmatpush1.bf16.msra.mxu0 %v2327
      %2976 = vmatprep.subr.bf16.mxu0 %v2336
      %2977 = vmatpush1.bf16.msra.mxu0 %v2335
      %2978 = vmatprep.subr.bf16.mxu0 %v2344
      %2979 = vmatpush1.bf16.msra.mxu0 %v2343
      %2980 = vmatprep.subr.bf16.mxu0 %v2352
      %2981 = vmatpush1.bf16.msra.mxu0 %v2351
      %2982 = vmatprep.subr.bf16.mxu0 %v2360
      %2983 = vmatpush1.bf16.msra.mxu0 %v2359
      %2984 = vmatprep.subr.bf16.mxu0 %v2368
      %2985 = vmatpush1.bf16.msra.mxu0 %v2367
      %2986 = vmatprep.subr.bf16.mxu0 %v2376
      %2987 = vmatpush1.bf16.msra.mxu0 %v2375
      %2988 = vmatprep.subr.bf16.mxu0 %v2384
      %2989 = vmatpush1.bf16.msra.mxu0 %v2383
      %2990 = vmatprep.subr.bf16.mxu0 %v2392
      %2991 = vmatpush1.bf16.msra.mxu0 %v2391
      %2992 = vmatprep.subr.bf16.mxu0 %v2400
      %2993 = vmatpush1.bf16.msra.mxu0 %v2399
      %2994 = vmatprep.subr.bf16.mxu0 %v2408
      %2995 = vmatpush1.bf16.msra.mxu0 %v2407
      %2996 = vmatprep.subr.bf16.mxu0 %v2416
      %2997 = vmatpush1.bf16.msra.mxu0 %v2415
      %2998 = vmatprep.subr.bf16.mxu0 %v2424
      %2999 = vmatpush1.bf16.msra.mxu0 %v2423
      %3000 = vmatprep.mubr.bf16.mxu0 %v1144
      %3001 = vmatmul.mubr.bf16.gmra.mrb[0].mxu0 %v1143
      %v3002 = vpop.f32.mrb[0].mxu0
      %v3003 = vadd.f32 %v2962, %v3002
      %v3004 = vpop.f32.mrb[0].mxu0
      %v3005 = vadd.f32 %v2964, %v3004
      %v3006 = vpop.f32.mrb[0].mxu0
      %v3007 = vpop.f32.mrb[0].mxu0
      %3008 = vdwg.mxu0
      %v3009 = vld [vmem:[#allocation12] sm:$0xff]
      %v3011 = vlaneseq
      %v3012 = vshrl.u32 %v3011, 7
      %v3013 = vsub.s32 0, %v3012
      %v3014 = vrot.slane %v3009, %v3013
      %v3015 = vlaneseq
      %v3016 = vshrl.u32 %v3015, 7
      %v3017 = vsub.s32 1, %v3016
      %v3018 = vrot.slane %v3009, %v3017
      %v3019 = vlaneseq
      %v3020 = vshrl.u32 %v3019, 7
      %v3021 = vsub.s32 2, %v3020
      %v3022 = vrot.slane %v3009, %v3021
      %v3023 = vlaneseq
      %v3024 = vshrl.u32 %v3023, 7
      %v3025 = vsub.s32 3, %v3024
      %v3026 = vrot.slane %v3009, %v3025
      %v3027 = vlaneseq
      %v3028 = vshrl.u32 %v3027, 7
      %v3029 = vsub.s32 4, %v3028
      %v3030 = vrot.slane %v3009, %v3029
      %v3031 = vlaneseq
      %v3032 = vshrl.u32 %v3031, 7
      %v3033 = vsub.s32 5, %v3032
      %v3034 = vrot.slane %v3009, %v3033
      %v3035 = vlaneseq
      %v3036 = vshrl.u32 %v3035, 7
      %v3037 = vsub.s32 6, %v3036
      %v3038 = vrot.slane %v3009, %v3037
      %v3039 = vlaneseq
      %v3040 = vshrl.u32 %v3039, 7
      %v3041 = vsub.s32 7, %v3040
      %v3042 = vrot.slane %v3009, %v3041
      %v3051 = vmul.f32 %v2757, %v3014
      %v3052 = vmul.f32 %v2759, %v3018
      %v3053 = vmul.f32 %v2839, %v3022
      %v3054 = vmul.f32 %v2841, %v3026
      %v3055 = vmul.f32 %v2921, %v3030
      %v3056 = vmul.f32 %v2923, %v3034
      %v3057 = vmul.f32 %v3003, %v3038
      %v3058 = vmul.f32 %v3005, %v3042
      %v3059 = vld [vmem:[#allocation14] sm:$0xff]
      %v3061 = vlaneseq
      %v3062 = vshrl.u32 %v3061, 7
      %v3063 = vsub.s32 0, %v3062
      %v3064 = vrot.slane %v3059, %v3063
      %v3065 = vlaneseq
      %v3066 = vshrl.u32 %v3065, 7
      %v3067 = vsub.s32 1, %v3066
      %v3068 = vrot.slane %v3059, %v3067
      %v3069 = vlaneseq
      %v3070 = vshrl.u32 %v3069, 7
      %v3071 = vsub.s32 2, %v3070
      %v3072 = vrot.slane %v3059, %v3071
      %v3073 = vlaneseq
      %v3074 = vshrl.u32 %v3073, 7
      %v3075 = vsub.s32 3, %v3074
      %v3076 = vrot.slane %v3059, %v3075
      %v3077 = vlaneseq
      %v3078 = vshrl.u32 %v3077, 7
      %v3079 = vsub.s32 4, %v3078
      %v3080 = vrot.slane %v3059, %v3079
      %v3081 = vlaneseq
      %v3082 = vshrl.u32 %v3081, 7
      %v3083 = vsub.s32 5, %v3082
      %v3084 = vrot.slane %v3059, %v3083
      %v3085 = vlaneseq
      %v3086 = vshrl.u32 %v3085, 7
      %v3087 = vsub.s32 6, %v3086
      %v3088 = vrot.slane %v3059, %v3087
      %v3089 = vlaneseq
      %v3090 = vshrl.u32 %v3089, 7
      %v3091 = vsub.s32 7, %v3090
      %v3092 = vrot.slane %v3059, %v3091
      %v3101 = vadd.f32 %v3051, %v3064
      %v3102 = vadd.f32 %v3052, %v3068
      %v3103 = vadd.f32 %v3053, %v3072
      %v3104 = vadd.f32 %v3054, %v3076
      %v3105 = vadd.f32 %v3055, %v3080
      %v3106 = vadd.f32 %v3056, %v3084
      %v3107 = vadd.f32 %v3057, %v3088
      %v3108 = vadd.f32 %v3058, %v3092
      %v3109 = vmax.f32 %v3101, 0.0
      %v3110 = vmax.f32 %v3102, 0.0
      %v3111 = vmax.f32 %v3103, 0.0
      %v3112 = vmax.f32 %v3104, 0.0
      %v3113 = vmax.f32 %v3105, 0.0
      %v3114 = vmax.f32 %v3106, 0.0
      %v3115 = vmax.f32 %v3107, 0.0
      %v3116 = vmax.f32 %v3108, 0.0
      %v3117 = vpack.c.bf16 %v3109, %v3109
      %v3118 = vpack.c.bf16 %v3110, %v3110
      %v3119 = vpack.c.bf16 %v3111, %v3111
      %v3120 = vpack.c.bf16 %v3112, %v3112
      %v3121 = vpack.c.bf16 %v3113, %v3113
      %v3122 = vpack.c.bf16 %v3114, %v3114
      %v3123 = vpack.c.bf16 %v3115, %v3115
      %v3124 = vpack.c.bf16 %v3116, %v3116
      %v3125 = vld [vmem:[#allocation15] sm:$0xff]
      %v3126 = vld [vmem:[#allocation15 + $0x8] sm:$0xff]
      %v3127 = vld [vmem:[#allocation15 + $0x10] sm:$0xff]
      %v3128 = vld [vmem:[#allocation15 + $0x18] sm:$0xff]
      %v3129 = vld [vmem:[#allocation15 + $0x20] sm:$0xff]
      %v3130 = vld [vmem:[#allocation15 + $0x28] sm:$0xff]
      %v3131 = vld [vmem:[#allocation15 + $0x30] sm:$0xff]
      %v3132 = vld [vmem:[#allocation15 + $0x38] sm:$0xff]
      %v3133 = vld [vmem:[#allocation15 + $0x40] sm:$0xff]
      %v3134 = vld [vmem:[#allocation15 + $0x48] sm:$0xff]
      %v3135 = vld [vmem:[#allocation15 + $0x50] sm:$0xff]
      %v3136 = vld [vmem:[#allocation15 + $0x58] sm:$0xff]
      %v3137 = vld [vmem:[#allocation15 + $0x60] sm:$0xff]
      %v3138 = vld [vmem:[#allocation15 + $0x68] sm:$0xff]
      %v3139 = vld [vmem:[#allocation15 + $0x70] sm:$0xff]
      %v3140 = vld [vmem:[#allocation15 + $0x78] sm:$0xff]
      %v3141 = vld [vmem:[#allocation15 + $0x80] sm:$0xff]
      %v3142 = vld [vmem:[#allocation15 + $0x88] sm:$0xff]
      %v3143 = vld [vmem:[#allocation15 + $0x90] sm:$0xff]
      %v3144 = vld [vmem:[#allocation15 + $0x98] sm:$0xff]
      %v3145 = vld [vmem:[#allocation15 + $0xa0] sm:$0xff]
      %v3146 = vld [vmem:[#allocation15 + $0xa8] sm:$0xff]
      %v3147 = vld [vmem:[#allocation15 + $0xb0] sm:$0xff]
      %v3148 = vld [vmem:[#allocation15 + $0xb8] sm:$0xff]
      %v3149 = vld [vmem:[#allocation15 + $0xc0] sm:$0xff]
      %v3150 = vld [vmem:[#allocation15 + $0xc8] sm:$0xff]
      %v3151 = vld [vmem:[#allocation15 + $0xd0] sm:$0xff]
      %v3152 = vld [vmem:[#allocation15 + $0xd8] sm:$0xff]
      %v3153 = vld [vmem:[#allocation15 + $0xe0] sm:$0xff]
      %v3154 = vld [vmem:[#allocation15 + $0xe8] sm:$0xff]
      %v3155 = vld [vmem:[#allocation15 + $0xf0] sm:$0xff]
      %v3156 = vld [vmem:[#allocation15 + $0xf8] sm:$0xff]
      %v3157 = vld [vmem:[#allocation15 + $0x100] sm:$0xff]
      %v3158 = vld [vmem:[#allocation15 + $0x108] sm:$0xff]
      %v3159 = vld [vmem:[#allocation15 + $0x110] sm:$0xff]
      %v3160 = vld [vmem:[#allocation15 + $0x118] sm:$0xff]
      %v3161 = vld [vmem:[#allocation15 + $0x120] sm:$0xff]
      %v3162 = vld [vmem:[#allocation15 + $0x128] sm:$0xff]
      %v3163 = vld [vmem:[#allocation15 + $0x130] sm:$0xff]
      %v3164 = vld [vmem:[#allocation15 + $0x138] sm:$0xff]
      %v3165 = vld [vmem:[#allocation15 + $0x140] sm:$0xff]
      %v3166 = vld [vmem:[#allocation15 + $0x148] sm:$0xff]
      %v3167 = vld [vmem:[#allocation15 + $0x150] sm:$0xff]
      %v3168 = vld [vmem:[#allocation15 + $0x158] sm:$0xff]
      %v3169 = vld [vmem:[#allocation15 + $0x160] sm:$0xff]
      %v3170 = vld [vmem:[#allocation15 + $0x168] sm:$0xff]
      %v3171 = vld [vmem:[#allocation15 + $0x170] sm:$0xff]
      %v3172 = vld [vmem:[#allocation15 + $0x178] sm:$0xff]
      %v3173 = vld [vmem:[#allocation15 + $0x180] sm:$0xff]
      %v3174 = vld [vmem:[#allocation15 + $0x188] sm:$0xff]
      %v3175 = vld [vmem:[#allocation15 + $0x190] sm:$0xff]
      %v3176 = vld [vmem:[#allocation15 + $0x198] sm:$0xff]
      %v3177 = vld [vmem:[#allocation15 + $0x1a0] sm:$0xff]
      %v3178 = vld [vmem:[#allocation15 + $0x1a8] sm:$0xff]
      %v3179 = vld [vmem:[#allocation15 + $0x1b0] sm:$0xff]
      %v3180 = vld [vmem:[#allocation15 + $0x1b8] sm:$0xff]
      %v3181 = vld [vmem:[#allocation15 + $0x1c0] sm:$0xff]
      %v3182 = vld [vmem:[#allocation15 + $0x1c8] sm:$0xff]
      %v3183 = vld [vmem:[#allocation15 + $0x1d0] sm:$0xff]
      %v3184 = vld [vmem:[#allocation15 + $0x1d8] sm:$0xff]
      %v3185 = vld [vmem:[#allocation15 + $0x1e0] sm:$0xff]
      %v3186 = vld [vmem:[#allocation15 + $0x1e8] sm:$0xff]
      %v3187 = vld [vmem:[#allocation15 + $0x1f0] sm:$0xff]
      %v3188 = vld [vmem:[#allocation15 + $0x1f8] sm:$0xff]
      %v3189 = vld [vmem:[#allocation15 + $0x200] sm:$0xff]
      %v3190 = vld [vmem:[#allocation15 + $0x208] sm:$0xff]
      %v3191 = vld [vmem:[#allocation15 + $0x210] sm:$0xff]
      %v3192 = vld [vmem:[#allocation15 + $0x218] sm:$0xff]
      %v3193 = vld [vmem:[#allocation15 + $0x220] sm:$0xff]
      %v3194 = vld [vmem:[#allocation15 + $0x228] sm:$0xff]
      %v3195 = vld [vmem:[#allocation15 + $0x230] sm:$0xff]
      %v3196 = vld [vmem:[#allocation15 + $0x238] sm:$0xff]
      %v3197 = vld [vmem:[#allocation15 + $0x240] sm:$0xff]
      %v3198 = vld [vmem:[#allocation15 + $0x248] sm:$0xff]
      %v3199 = vld [vmem:[#allocation15 + $0x250] sm:$0xff]
      %v3200 = vld [vmem:[#allocation15 + $0x258] sm:$0xff]
      %v3201 = vld [vmem:[#allocation15 + $0x260] sm:$0xff]
      %v3202 = vld [vmem:[#allocation15 + $0x268] sm:$0xff]
      %v3203 = vld [vmem:[#allocation15 + $0x270] sm:$0xff]
      %v3204 = vld [vmem:[#allocation15 + $0x278] sm:$0xff]
      %v3205 = vld [vmem:[#allocation15 + $0x280] sm:$0xff]
      %v3206 = vld [vmem:[#allocation15 + $0x288] sm:$0xff]
      %v3207 = vld [vmem:[#allocation15 + $0x290] sm:$0xff]
      %v3208 = vld [vmem:[#allocation15 + $0x298] sm:$0xff]
      %v3209 = vld [vmem:[#allocation15 + $0x2a0] sm:$0xff]
      %v3210 = vld [vmem:[#allocation15 + $0x2a8] sm:$0xff]
      %v3211 = vld [vmem:[#allocation15 + $0x2b0] sm:$0xff]
      %v3212 = vld [vmem:[#allocation15 + $0x2b8] sm:$0xff]
      %v3213 = vld [vmem:[#allocation15 + $0x2c0] sm:$0xff]
      %v3214 = vld [vmem:[#allocation15 + $0x2c8] sm:$0xff]
      %v3215 = vld [vmem:[#allocation15 + $0x2d0] sm:$0xff]
      %v3216 = vld [vmem:[#allocation15 + $0x2d8] sm:$0xff]
      %v3217 = vld [vmem:[#allocation15 + $0x2e0] sm:$0xff]
      %v3218 = vld [vmem:[#allocation15 + $0x2e8] sm:$0xff]
      %v3219 = vld [vmem:[#allocation15 + $0x2f0] sm:$0xff]
      %v3220 = vld [vmem:[#allocation15 + $0x2f8] sm:$0xff]
      %v3221 = vld [vmem:[#allocation15 + $0x300] sm:$0xff]
      %v3222 = vld [vmem:[#allocation15 + $0x308] sm:$0xff]
      %v3223 = vld [vmem:[#allocation15 + $0x310] sm:$0xff]
      %v3224 = vld [vmem:[#allocation15 + $0x318] sm:$0xff]
      %v3225 = vld [vmem:[#allocation15 + $0x320] sm:$0xff]
      %v3226 = vld [vmem:[#allocation15 + $0x328] sm:$0xff]
      %v3227 = vld [vmem:[#allocation15 + $0x330] sm:$0xff]
      %v3228 = vld [vmem:[#allocation15 + $0x338] sm:$0xff]
      %v3229 = vld [vmem:[#allocation15 + $0x340] sm:$0xff]
      %v3230 = vld [vmem:[#allocation15 + $0x348] sm:$0xff]
      %v3231 = vld [vmem:[#allocation15 + $0x350] sm:$0xff]
      %v3232 = vld [vmem:[#allocation15 + $0x358] sm:$0xff]
      %v3233 = vld [vmem:[#allocation15 + $0x360] sm:$0xff]
      %v3234 = vld [vmem:[#allocation15 + $0x368] sm:$0xff]
      %v3235 = vld [vmem:[#allocation15 + $0x370] sm:$0xff]
      %v3236 = vld [vmem:[#allocation15 + $0x378] sm:$0xff]
      %v3237 = vld [vmem:[#allocation15 + $0x380] sm:$0xff]
      %v3238 = vld [vmem:[#allocation15 + $0x388] sm:$0xff]
      %v3239 = vld [vmem:[#allocation15 + $0x390] sm:$0xff]
      %v3240 = vld [vmem:[#allocation15 + $0x398] sm:$0xff]
      %v3241 = vld [vmem:[#allocation15 + $0x3a0] sm:$0xff]
      %v3242 = vld [vmem:[#allocation15 + $0x3a8] sm:$0xff]
      %v3243 = vld [vmem:[#allocation15 + $0x3b0] sm:$0xff]
      %v3244 = vld [vmem:[#allocation15 + $0x3b8] sm:$0xff]
      %v3245 = vld [vmem:[#allocation15 + $0x3c0] sm:$0xff]
      %v3246 = vld [vmem:[#allocation15 + $0x3c8] sm:$0xff]
      %v3247 = vld [vmem:[#allocation15 + $0x3d0] sm:$0xff]
      %v3248 = vld [vmem:[#allocation15 + $0x3d8] sm:$0xff]
      %v3249 = vld [vmem:[#allocation15 + $0x3e0] sm:$0xff]
      %v3250 = vld [vmem:[#allocation15 + $0x3e8] sm:$0xff]
      %v3251 = vld [vmem:[#allocation15 + $0x3f0] sm:$0xff]
      %v3252 = vld [vmem:[#allocation15 + $0x3f8] sm:$0xff]
      %v3253 = vld [vmem:[#allocation15 + $0x400] sm:$0xff]
      %v3254 = vld [vmem:[#allocation15 + $0x408] sm:$0xff]
      %v3255 = vld [vmem:[#allocation15 + $0x410] sm:$0xff]
      %v3256 = vld [vmem:[#allocation15 + $0x418] sm:$0xff]
      %v3257 = vld [vmem:[#allocation15 + $0x420] sm:$0xff]
      %v3258 = vld [vmem:[#allocation15 + $0x428] sm:$0xff]
      %v3259 = vld [vmem:[#allocation15 + $0x430] sm:$0xff]
      %v3260 = vld [vmem:[#allocation15 + $0x438] sm:$0xff]
      %v3261 = vld [vmem:[#allocation15 + $0x440] sm:$0xff]
      %v3262 = vld [vmem:[#allocation15 + $0x448] sm:$0xff]
      %v3263 = vld [vmem:[#allocation15 + $0x450] sm:$0xff]
      %v3264 = vld [vmem:[#allocation15 + $0x458] sm:$0xff]
      %v3265 = vld [vmem:[#allocation15 + $0x460] sm:$0xff]
      %v3266 = vld [vmem:[#allocation15 + $0x468] sm:$0xff]
      %v3267 = vld [vmem:[#allocation15 + $0x470] sm:$0xff]
      %v3268 = vld [vmem:[#allocation15 + $0x478] sm:$0xff]
      %v3269 = vld [vmem:[#allocation15 + $0x480] sm:$0xff]
      %v3270 = vld [vmem:[#allocation15 + $0x488] sm:$0xff]
      %v3271 = vld [vmem:[#allocation15 + $0x490] sm:$0xff]
      %v3272 = vld [vmem:[#allocation15 + $0x498] sm:$0xff]
      %v3273 = vld [vmem:[#allocation15 + $0x4a0] sm:$0xff]
      %v3274 = vld [vmem:[#allocation15 + $0x4a8] sm:$0xff]
      %v3275 = vld [vmem:[#allocation15 + $0x4b0] sm:$0xff]
      %v3276 = vld [vmem:[#allocation15 + $0x4b8] sm:$0xff]
      %v3277 = vld [vmem:[#allocation15 + $0x4c0] sm:$0xff]
      %v3278 = vld [vmem:[#allocation15 + $0x4c8] sm:$0xff]
      %v3279 = vld [vmem:[#allocation15 + $0x4d0] sm:$0xff]
      %v3280 = vld [vmem:[#allocation15 + $0x4d8] sm:$0xff]
      %v3281 = vld [vmem:[#allocation15 + $0x4e0] sm:$0xff]
      %v3282 = vld [vmem:[#allocation15 + $0x4e8] sm:$0xff]
      %v3283 = vld [vmem:[#allocation15 + $0x4f0] sm:$0xff]
      %v3284 = vld [vmem:[#allocation15 + $0x4f8] sm:$0xff]
      %v3285 = vld [vmem:[#allocation15 + $0x500] sm:$0xff]
      %v3286 = vld [vmem:[#allocation15 + $0x508] sm:$0xff]
      %v3287 = vld [vmem:[#allocation15 + $0x510] sm:$0xff]
      %v3288 = vld [vmem:[#allocation15 + $0x518] sm:$0xff]
      %v3289 = vld [vmem:[#allocation15 + $0x520] sm:$0xff]
      %v3290 = vld [vmem:[#allocation15 + $0x528] sm:$0xff]
      %v3291 = vld [vmem:[#allocation15 + $0x530] sm:$0xff]
      %v3292 = vld [vmem:[#allocation15 + $0x538] sm:$0xff]
      %v3293 = vld [vmem:[#allocation15 + $0x540] sm:$0xff]
      %v3294 = vld [vmem:[#allocation15 + $0x548] sm:$0xff]
      %v3295 = vld [vmem:[#allocation15 + $0x550] sm:$0xff]
      %v3296 = vld [vmem:[#allocation15 + $0x558] sm:$0xff]
      %v3297 = vld [vmem:[#allocation15 + $0x560] sm:$0xff]
      %v3298 = vld [vmem:[#allocation15 + $0x568] sm:$0xff]
      %v3299 = vld [vmem:[#allocation15 + $0x570] sm:$0xff]
      %v3300 = vld [vmem:[#allocation15 + $0x578] sm:$0xff]
      %v3301 = vld [vmem:[#allocation15 + $0x580] sm:$0xff]
      %v3302 = vld [vmem:[#allocation15 + $0x588] sm:$0xff]
      %v3303 = vld [vmem:[#allocation15 + $0x590] sm:$0xff]
      %v3304 = vld [vmem:[#allocation15 + $0x598] sm:$0xff]
      %v3305 = vld [vmem:[#allocation15 + $0x5a0] sm:$0xff]
      %v3306 = vld [vmem:[#allocation15 + $0x5a8] sm:$0xff]
      %v3307 = vld [vmem:[#allocation15 + $0x5b0] sm:$0xff]
      %v3308 = vld [vmem:[#allocation15 + $0x5b8] sm:$0xff]
      %v3309 = vld [vmem:[#allocation15 + $0x5c0] sm:$0xff]
      %v3310 = vld [vmem:[#allocation15 + $0x5c8] sm:$0xff]
      %v3311 = vld [vmem:[#allocation15 + $0x5d0] sm:$0xff]
      %v3312 = vld [vmem:[#allocation15 + $0x5d8] sm:$0xff]
      %v3313 = vld [vmem:[#allocation15 + $0x5e0] sm:$0xff]
      %v3314 = vld [vmem:[#allocation15 + $0x5e8] sm:$0xff]
      %v3315 = vld [vmem:[#allocation15 + $0x5f0] sm:$0xff]
      %v3316 = vld [vmem:[#allocation15 + $0x5f8] sm:$0xff]
      %v3317 = vld [vmem:[#allocation15 + $0x600] sm:$0xff]
      %v3318 = vld [vmem:[#allocation15 + $0x608] sm:$0xff]
      %v3319 = vld [vmem:[#allocation15 + $0x610] sm:$0xff]
      %v3320 = vld [vmem:[#allocation15 + $0x618] sm:$0xff]
      %v3321 = vld [vmem:[#allocation15 + $0x620] sm:$0xff]
      %v3322 = vld [vmem:[#allocation15 + $0x628] sm:$0xff]
      %v3323 = vld [vmem:[#allocation15 + $0x630] sm:$0xff]
      %v3324 = vld [vmem:[#allocation15 + $0x638] sm:$0xff]
      %v3325 = vld [vmem:[#allocation15 + $0x640] sm:$0xff]
      %v3326 = vld [vmem:[#allocation15 + $0x648] sm:$0xff]
      %v3327 = vld [vmem:[#allocation15 + $0x650] sm:$0xff]
      %v3328 = vld [vmem:[#allocation15 + $0x658] sm:$0xff]
      %v3329 = vld [vmem:[#allocation15 + $0x660] sm:$0xff]
      %v3330 = vld [vmem:[#allocation15 + $0x668] sm:$0xff]
      %v3331 = vld [vmem:[#allocation15 + $0x670] sm:$0xff]
      %v3332 = vld [vmem:[#allocation15 + $0x678] sm:$0xff]
      %v3333 = vld [vmem:[#allocation15 + $0x680] sm:$0xff]
      %v3334 = vld [vmem:[#allocation15 + $0x688] sm:$0xff]
      %v3335 = vld [vmem:[#allocation15 + $0x690] sm:$0xff]
      %v3336 = vld [vmem:[#allocation15 + $0x698] sm:$0xff]
      %v3337 = vld [vmem:[#allocation15 + $0x6a0] sm:$0xff]
      %v3338 = vld [vmem:[#allocation15 + $0x6a8] sm:$0xff]
      %v3339 = vld [vmem:[#allocation15 + $0x6b0] sm:$0xff]
      %v3340 = vld [vmem:[#allocation15 + $0x6b8] sm:$0xff]
      %v3341 = vld [vmem:[#allocation15 + $0x6c0] sm:$0xff]
      %v3342 = vld [vmem:[#allocation15 + $0x6c8] sm:$0xff]
      %v3343 = vld [vmem:[#allocation15 + $0x6d0] sm:$0xff]
      %v3344 = vld [vmem:[#allocation15 + $0x6d8] sm:$0xff]
      %v3345 = vld [vmem:[#allocation15 + $0x6e0] sm:$0xff]
      %v3346 = vld [vmem:[#allocation15 + $0x6e8] sm:$0xff]
      %v3347 = vld [vmem:[#allocation15 + $0x6f0] sm:$0xff]
      %v3348 = vld [vmem:[#allocation15 + $0x6f8] sm:$0xff]
      %v3349 = vld [vmem:[#allocation15 + $0x700] sm:$0xff]
      %v3350 = vld [vmem:[#allocation15 + $0x708] sm:$0xff]
      %v3351 = vld [vmem:[#allocation15 + $0x710] sm:$0xff]
      %v3352 = vld [vmem:[#allocation15 + $0x718] sm:$0xff]
      %v3353 = vld [vmem:[#allocation15 + $0x720] sm:$0xff]
      %v3354 = vld [vmem:[#allocation15 + $0x728] sm:$0xff]
      %v3355 = vld [vmem:[#allocation15 + $0x730] sm:$0xff]
      %v3356 = vld [vmem:[#allocation15 + $0x738] sm:$0xff]
      %v3357 = vld [vmem:[#allocation15 + $0x740] sm:$0xff]
      %v3358 = vld [vmem:[#allocation15 + $0x748] sm:$0xff]
      %v3359 = vld [vmem:[#allocation15 + $0x750] sm:$0xff]
      %v3360 = vld [vmem:[#allocation15 + $0x758] sm:$0xff]
      %v3361 = vld [vmem:[#allocation15 + $0x760] sm:$0xff]
      %v3362 = vld [vmem:[#allocation15 + $0x768] sm:$0xff]
      %v3363 = vld [vmem:[#allocation15 + $0x770] sm:$0xff]
      %v3364 = vld [vmem:[#allocation15 + $0x778] sm:$0xff]
      %v3365 = vld [vmem:[#allocation15 + $0x780] sm:$0xff]
      %v3366 = vld [vmem:[#allocation15 + $0x788] sm:$0xff]
      %v3367 = vld [vmem:[#allocation15 + $0x790] sm:$0xff]
      %v3368 = vld [vmem:[#allocation15 + $0x798] sm:$0xff]
      %v3369 = vld [vmem:[#allocation15 + $0x7a0] sm:$0xff]
      %v3370 = vld [vmem:[#allocation15 + $0x7a8] sm:$0xff]
      %v3371 = vld [vmem:[#allocation15 + $0x7b0] sm:$0xff]
      %v3372 = vld [vmem:[#allocation15 + $0x7b8] sm:$0xff]
      %v3373 = vld [vmem:[#allocation15 + $0x7c0] sm:$0xff]
      %v3374 = vld [vmem:[#allocation15 + $0x7c8] sm:$0xff]
      %v3375 = vld [vmem:[#allocation15 + $0x7d0] sm:$0xff]
      %v3376 = vld [vmem:[#allocation15 + $0x7d8] sm:$0xff]
      %v3377 = vld [vmem:[#allocation15 + $0x7e0] sm:$0xff]
      %v3378 = vld [vmem:[#allocation15 + $0x7e8] sm:$0xff]
      %v3379 = vld [vmem:[#allocation15 + $0x7f0] sm:$0xff]
      %v3380 = vld [vmem:[#allocation15 + $0x7f8] sm:$0xff]
      %v3637 = vunpack.c.l.b16 %v3125
      %v3638 = vunpack.c.h.b16 %v3125
      %v3639 = vunpack.c.l.b16 %v3126
      %v3640 = vunpack.c.h.b16 %v3126
      %v3641 = vunpack.c.l.b16 %v3127
      %v3642 = vunpack.c.h.b16 %v3127
      %v3643 = vunpack.c.l.b16 %v3128
      %v3644 = vunpack.c.h.b16 %v3128
      %v3645 = vunpack.c.l.b16 %v3129
      %v3646 = vunpack.c.h.b16 %v3129
      %v3647 = vunpack.c.l.b16 %v3130
      %v3648 = vunpack.c.h.b16 %v3130
      %v3649 = vunpack.c.l.b16 %v3131
      %v3650 = vunpack.c.h.b16 %v3131
      %v3651 = vunpack.c.l.b16 %v3132
      %v3652 = vunpack.c.h.b16 %v3132
      %v3653 = vunpack.c.l.b16 %v3133
      %v3654 = vunpack.c.h.b16 %v3133
      %v3655 = vunpack.c.l.b16 %v3134
      %v3656 = vunpack.c.h.b16 %v3134
      %v3657 = vunpack.c.l.b16 %v3135
      %v3658 = vunpack.c.h.b16 %v3135
      %v3659 = vunpack.c.l.b16 %v3136
      %v3660 = vunpack.c.h.b16 %v3136
      %v3661 = vunpack.c.l.b16 %v3137
      %v3662 = vunpack.c.h.b16 %v3137
      %v3663 = vunpack.c.l.b16 %v3138
      %v3664 = vunpack.c.h.b16 %v3138
      %v3665 = vunpack.c.l.b16 %v3139
      %v3666 = vunpack.c.h.b16 %v3139
      %v3667 = vunpack.c.l.b16 %v3140
      %v3668 = vunpack.c.h.b16 %v3140
      %v3669 = vunpack.c.l.b16 %v3141
      %v3670 = vunpack.c.h.b16 %v3141
      %v3671 = vunpack.c.l.b16 %v3142
      %v3672 = vunpack.c.h.b16 %v3142
      %v3673 = vunpack.c.l.b16 %v3143
      %v3674 = vunpack.c.h.b16 %v3143
      %v3675 = vunpack.c.l.b16 %v3144
      %v3676 = vunpack.c.h.b16 %v3144
      %v3677 = vunpack.c.l.b16 %v3145
      %v3678 = vunpack.c.h.b16 %v3145
      %v3679 = vunpack.c.l.b16 %v3146
      %v3680 = vunpack.c.h.b16 %v3146
      %v3681 = vunpack.c.l.b16 %v3147
      %v3682 = vunpack.c.h.b16 %v3147
      %v3683 = vunpack.c.l.b16 %v3148
      %v3684 = vunpack.c.h.b16 %v3148
      %v3685 = vunpack.c.l.b16 %v3149
      %v3686 = vunpack.c.h.b16 %v3149
      %v3687 = vunpack.c.l.b16 %v3150
      %v3688 = vunpack.c.h.b16 %v3150
      %v3689 = vunpack.c.l.b16 %v3151
      %v3690 = vunpack.c.h.b16 %v3151
      %v3691 = vunpack.c.l.b16 %v3152
      %v3692 = vunpack.c.h.b16 %v3152
      %v3693 = vunpack.c.l.b16 %v3153
      %v3694 = vunpack.c.h.b16 %v3153
      %v3695 = vunpack.c.l.b16 %v3154
      %v3696 = vunpack.c.h.b16 %v3154
      %v3697 = vunpack.c.l.b16 %v3155
      %v3698 = vunpack.c.h.b16 %v3155
      %v3699 = vunpack.c.l.b16 %v3156
      %v3700 = vunpack.c.h.b16 %v3156
      %v3701 = vunpack.c.l.b16 %v3157
      %v3702 = vunpack.c.h.b16 %v3157
      %v3703 = vunpack.c.l.b16 %v3158
      %v3704 = vunpack.c.h.b16 %v3158
      %v3705 = vunpack.c.l.b16 %v3159
      %v3706 = vunpack.c.h.b16 %v3159
      %v3707 = vunpack.c.l.b16 %v3160
      %v3708 = vunpack.c.h.b16 %v3160
      %v3709 = vunpack.c.l.b16 %v3161
      %v3710 = vunpack.c.h.b16 %v3161
      %v3711 = vunpack.c.l.b16 %v3162
      %v3712 = vunpack.c.h.b16 %v3162
      %v3713 = vunpack.c.l.b16 %v3163
      %v3714 = vunpack.c.h.b16 %v3163
      %v3715 = vunpack.c.l.b16 %v3164
      %v3716 = vunpack.c.h.b16 %v3164
      %v3717 = vunpack.c.l.b16 %v3165
      %v3718 = vunpack.c.h.b16 %v3165
      %v3719 = vunpack.c.l.b16 %v3166
      %v3720 = vunpack.c.h.b16 %v3166
      %v3721 = vunpack.c.l.b16 %v3167
      %v3722 = vunpack.c.h.b16 %v3167
      %v3723 = vunpack.c.l.b16 %v3168
      %v3724 = vunpack.c.h.b16 %v3168
      %v3725 = vunpack.c.l.b16 %v3169
      %v3726 = vunpack.c.h.b16 %v3169
      %v3727 = vunpack.c.l.b16 %v3170
      %v3728 = vunpack.c.h.b16 %v3170
      %v3729 = vunpack.c.l.b16 %v3171
      %v3730 = vunpack.c.h.b16 %v3171
      %v3731 = vunpack.c.l.b16 %v3172
      %v3732 = vunpack.c.h.b16 %v3172
      %v3733 = vunpack.c.l.b16 %v3173
      %v3734 = vunpack.c.h.b16 %v3173
      %v3735 = vunpack.c.l.b16 %v3174
      %v3736 = vunpack.c.h.b16 %v3174
      %v3737 = vunpack.c.l.b16 %v3175
      %v3738 = vunpack.c.h.b16 %v3175
      %v3739 = vunpack.c.l.b16 %v3176
      %v3740 = vunpack.c.h.b16 %v3176
      %v3741 = vunpack.c.l.b16 %v3177
      %v3742 = vunpack.c.h.b16 %v3177
      %v3743 = vunpack.c.l.b16 %v3178
      %v3744 = vunpack.c.h.b16 %v3178
      %v3745 = vunpack.c.l.b16 %v3179
      %v3746 = vunpack.c.h.b16 %v3179
      %v3747 = vunpack.c.l.b16 %v3180
      %v3748 = vunpack.c.h.b16 %v3180
      %v3749 = vunpack.c.l.b16 %v3181
      %v3750 = vunpack.c.h.b16 %v3181
      %v3751 = vunpack.c.l.b16 %v3182
      %v3752 = vunpack.c.h.b16 %v3182
      %v3753 = vunpack.c.l.b16 %v3183
      %v3754 = vunpack.c.h.b16 %v3183
      %v3755 = vunpack.c.l.b16 %v3184
      %v3756 = vunpack.c.h.b16 %v3184
      %v3757 = vunpack.c.l.b16 %v3185
      %v3758 = vunpack.c.h.b16 %v3185
      %v3759 = vunpack.c.l.b16 %v3186
      %v3760 = vunpack.c.h.b16 %v3186
      %v3761 = vunpack.c.l.b16 %v3187
      %v3762 = vunpack.c.h.b16 %v3187
      %v3763 = vunpack.c.l.b16 %v3188
      %v3764 = vunpack.c.h.b16 %v3188
      %v3765 = vunpack.c.l.b16 %v3189
      %v3766 = vunpack.c.h.b16 %v3189
      %v3767 = vunpack.c.l.b16 %v3190
      %v3768 = vunpack.c.h.b16 %v3190
      %v3769 = vunpack.c.l.b16 %v3191
      %v3770 = vunpack.c.h.b16 %v3191
      %v3771 = vunpack.c.l.b16 %v3192
      %v3772 = vunpack.c.h.b16 %v3192
      %v3773 = vunpack.c.l.b16 %v3193
      %v3774 = vunpack.c.h.b16 %v3193
      %v3775 = vunpack.c.l.b16 %v3194
      %v3776 = vunpack.c.h.b16 %v3194
      %v3777 = vunpack.c.l.b16 %v3195
      %v3778 = vunpack.c.h.b16 %v3195
      %v3779 = vunpack.c.l.b16 %v3196
      %v3780 = vunpack.c.h.b16 %v3196
      %v3781 = vunpack.c.l.b16 %v3197
      %v3782 = vunpack.c.h.b16 %v3197
      %v3783 = vunpack.c.l.b16 %v3198
      %v3784 = vunpack.c.h.b16 %v3198
      %v3785 = vunpack.c.l.b16 %v3199
      %v3786 = vunpack.c.h.b16 %v3199
      %v3787 = vunpack.c.l.b16 %v3200
      %v3788 = vunpack.c.h.b16 %v3200
      %v3789 = vunpack.c.l.b16 %v3201
      %v3790 = vunpack.c.h.b16 %v3201
      %v3791 = vunpack.c.l.b16 %v3202
      %v3792 = vunpack.c.h.b16 %v3202
      %v3793 = vunpack.c.l.b16 %v3203
      %v3794 = vunpack.c.h.b16 %v3203
      %v3795 = vunpack.c.l.b16 %v3204
      %v3796 = vunpack.c.h.b16 %v3204
      %v3797 = vunpack.c.l.b16 %v3205
      %v3798 = vunpack.c.h.b16 %v3205
      %v3799 = vunpack.c.l.b16 %v3206
      %v3800 = vunpack.c.h.b16 %v3206
      %v3801 = vunpack.c.l.b16 %v3207
      %v3802 = vunpack.c.h.b16 %v3207
      %v3803 = vunpack.c.l.b16 %v3208
      %v3804 = vunpack.c.h.b16 %v3208
      %v3805 = vunpack.c.l.b16 %v3209
      %v3806 = vunpack.c.h.b16 %v3209
      %v3807 = vunpack.c.l.b16 %v3210
      %v3808 = vunpack.c.h.b16 %v3210
      %v3809 = vunpack.c.l.b16 %v3211
      %v3810 = vunpack.c.h.b16 %v3211
      %v3811 = vunpack.c.l.b16 %v3212
      %v3812 = vunpack.c.h.b16 %v3212
      %v3813 = vunpack.c.l.b16 %v3213
      %v3814 = vunpack.c.h.b16 %v3213
      %v3815 = vunpack.c.l.b16 %v3214
      %v3816 = vunpack.c.h.b16 %v3214
      %v3817 = vunpack.c.l.b16 %v3215
      %v3818 = vunpack.c.h.b16 %v3215
      %v3819 = vunpack.c.l.b16 %v3216
      %v3820 = vunpack.c.h.b16 %v3216
      %v3821 = vunpack.c.l.b16 %v3217
      %v3822 = vunpack.c.h.b16 %v3217
      %v3823 = vunpack.c.l.b16 %v3218
      %v3824 = vunpack.c.h.b16 %v3218
      %v3825 = vunpack.c.l.b16 %v3219
      %v3826 = vunpack.c.h.b16 %v3219
      %v3827 = vunpack.c.l.b16 %v3220
      %v3828 = vunpack.c.h.b16 %v3220
      %v3829 = vunpack.c.l.b16 %v3221
      %v3830 = vunpack.c.h.b16 %v3221
      %v3831 = vunpack.c.l.b16 %v3222
      %v3832 = vunpack.c.h.b16 %v3222
      %v3833 = vunpack.c.l.b16 %v3223
      %v3834 = vunpack.c.h.b16 %v3223
      %v3835 = vunpack.c.l.b16 %v3224
      %v3836 = vunpack.c.h.b16 %v3224
      %v3837 = vunpack.c.l.b16 %v3225
      %v3838 = vunpack.c.h.b16 %v3225
      %v3839 = vunpack.c.l.b16 %v3226
      %v3840 = vunpack.c.h.b16 %v3226
      %v3841 = vunpack.c.l.b16 %v3227
      %v3842 = vunpack.c.h.b16 %v3227
      %v3843 = vunpack.c.l.b16 %v3228
      %v3844 = vunpack.c.h.b16 %v3228
      %v3845 = vunpack.c.l.b16 %v3229
      %v3846 = vunpack.c.h.b16 %v3229
      %v3847 = vunpack.c.l.b16 %v3230
      %v3848 = vunpack.c.h.b16 %v3230
      %v3849 = vunpack.c.l.b16 %v3231
      %v3850 = vunpack.c.h.b16 %v3231
      %v3851 = vunpack.c.l.b16 %v3232
      %v3852 = vunpack.c.h.b16 %v3232
      %v3853 = vunpack.c.l.b16 %v3233
      %v3854 = vunpack.c.h.b16 %v3233
      %v3855 = vunpack.c.l.b16 %v3234
      %v3856 = vunpack.c.h.b16 %v3234
      %v3857 = vunpack.c.l.b16 %v3235
      %v3858 = vunpack.c.h.b16 %v3235
      %v3859 = vunpack.c.l.b16 %v3236
      %v3860 = vunpack.c.h.b16 %v3236
      %v3861 = vunpack.c.l.b16 %v3237
      %v3862 = vunpack.c.h.b16 %v3237
      %v3863 = vunpack.c.l.b16 %v3238
      %v3864 = vunpack.c.h.b16 %v3238
      %v3865 = vunpack.c.l.b16 %v3239
      %v3866 = vunpack.c.h.b16 %v3239
      %v3867 = vunpack.c.l.b16 %v3240
      %v3868 = vunpack.c.h.b16 %v3240
      %v3869 = vunpack.c.l.b16 %v3241
      %v3870 = vunpack.c.h.b16 %v3241
      %v3871 = vunpack.c.l.b16 %v3242
      %v3872 = vunpack.c.h.b16 %v3242
      %v3873 = vunpack.c.l.b16 %v3243
      %v3874 = vunpack.c.h.b16 %v3243
      %v3875 = vunpack.c.l.b16 %v3244
      %v3876 = vunpack.c.h.b16 %v3244
      %v3877 = vunpack.c.l.b16 %v3245
      %v3878 = vunpack.c.h.b16 %v3245
      %v3879 = vunpack.c.l.b16 %v3246
      %v3880 = vunpack.c.h.b16 %v3246
      %v3881 = vunpack.c.l.b16 %v3247
      %v3882 = vunpack.c.h.b16 %v3247
      %v3883 = vunpack.c.l.b16 %v3248
      %v3884 = vunpack.c.h.b16 %v3248
      %v3885 = vunpack.c.l.b16 %v3249
      %v3886 = vunpack.c.h.b16 %v3249
      %v3887 = vunpack.c.l.b16 %v3250
      %v3888 = vunpack.c.h.b16 %v3250
      %v3889 = vunpack.c.l.b16 %v3251
      %v3890 = vunpack.c.h.b16 %v3251
      %v3891 = vunpack.c.l.b16 %v3252
      %v3892 = vunpack.c.h.b16 %v3252
      %v3893 = vunpack.c.l.b16 %v3253
      %v3894 = vunpack.c.h.b16 %v3253
      %v3895 = vunpack.c.l.b16 %v3254
      %v3896 = vunpack.c.h.b16 %v3254
      %v3897 = vunpack.c.l.b16 %v3255
      %v3898 = vunpack.c.h.b16 %v3255
      %v3899 = vunpack.c.l.b16 %v3256
      %v3900 = vunpack.c.h.b16 %v3256
      %v3901 = vunpack.c.l.b16 %v3257
      %v3902 = vunpack.c.h.b16 %v3257
      %v3903 = vunpack.c.l.b16 %v3258
      %v3904 = vunpack.c.h.b16 %v3258
      %v3905 = vunpack.c.l.b16 %v3259
      %v3906 = vunpack.c.h.b16 %v3259
      %v3907 = vunpack.c.l.b16 %v3260
      %v3908 = vunpack.c.h.b16 %v3260
      %v3909 = vunpack.c.l.b16 %v3261
      %v3910 = vunpack.c.h.b16 %v3261
      %v3911 = vunpack.c.l.b16 %v3262
      %v3912 = vunpack.c.h.b16 %v3262
      %v3913 = vunpack.c.l.b16 %v3263
      %v3914 = vunpack.c.h.b16 %v3263
      %v3915 = vunpack.c.l.b16 %v3264
      %v3916 = vunpack.c.h.b16 %v3264
      %v3917 = vunpack.c.l.b16 %v3265
      %v3918 = vunpack.c.h.b16 %v3265
      %v3919 = vunpack.c.l.b16 %v3266
      %v3920 = vunpack.c.h.b16 %v3266
      %v3921 = vunpack.c.l.b16 %v3267
      %v3922 = vunpack.c.h.b16 %v3267
      %v3923 = vunpack.c.l.b16 %v3268
      %v3924 = vunpack.c.h.b16 %v3268
      %v3925 = vunpack.c.l.b16 %v3269
      %v3926 = vunpack.c.h.b16 %v3269
      %v3927 = vunpack.c.l.b16 %v3270
      %v3928 = vunpack.c.h.b16 %v3270
      %v3929 = vunpack.c.l.b16 %v3271
      %v3930 = vunpack.c.h.b16 %v3271
      %v3931 = vunpack.c.l.b16 %v3272
      %v3932 = vunpack.c.h.b16 %v3272
      %v3933 = vunpack.c.l.b16 %v3273
      %v3934 = vunpack.c.h.b16 %v3273
      %v3935 = vunpack.c.l.b16 %v3274
      %v3936 = vunpack.c.h.b16 %v3274
      %v3937 = vunpack.c.l.b16 %v3275
      %v3938 = vunpack.c.h.b16 %v3275
      %v3939 = vunpack.c.l.b16 %v3276
      %v3940 = vunpack.c.h.b16 %v3276
      %v3941 = vunpack.c.l.b16 %v3277
      %v3942 = vunpack.c.h.b16 %v3277
      %v3943 = vunpack.c.l.b16 %v3278
      %v3944 = vunpack.c.h.b16 %v3278
      %v3945 = vunpack.c.l.b16 %v3279
      %v3946 = vunpack.c.h.b16 %v3279
      %v3947 = vunpack.c.l.b16 %v3280
      %v3948 = vunpack.c.h.b16 %v3280
      %v3949 = vunpack.c.l.b16 %v3281
      %v3950 = vunpack.c.h.b16 %v3281
      %v3951 = vunpack.c.l.b16 %v3282
      %v3952 = vunpack.c.h.b16 %v3282
      %v3953 = vunpack.c.l.b16 %v3283
      %v3954 = vunpack.c.h.b16 %v3283
      %v3955 = vunpack.c.l.b16 %v3284
      %v3956 = vunpack.c.h.b16 %v3284
      %v3957 = vunpack.c.l.b16 %v3285
      %v3958 = vunpack.c.h.b16 %v3285
      %v3959 = vunpack.c.l.b16 %v3286
      %v3960 = vunpack.c.h.b16 %v3286
      %v3961 = vunpack.c.l.b16 %v3287
      %v3962 = vunpack.c.h.b16 %v3287
      %v3963 = vunpack.c.l.b16 %v3288
      %v3964 = vunpack.c.h.b16 %v3288
      %v3965 = vunpack.c.l.b16 %v3289
      %v3966 = vunpack.c.h.b16 %v3289
      %v3967 = vunpack.c.l.b16 %v3290
      %v3968 = vunpack.c.h.b16 %v3290
      %v3969 = vunpack.c.l.b16 %v3291
      %v3970 = vunpack.c.h.b16 %v3291
      %v3971 = vunpack.c.l.b16 %v3292
      %v3972 = vunpack.c.h.b16 %v3292
      %v3973 = vunpack.c.l.b16 %v3293
      %v3974 = vunpack.c.h.b16 %v3293
      %v3975 = vunpack.c.l.b16 %v3294
      %v3976 = vunpack.c.h.b16 %v3294
      %v3977 = vunpack.c.l.b16 %v3295
      %v3978 = vunpack.c.h.b16 %v3295
      %v3979 = vunpack.c.l.b16 %v3296
      %v3980 = vunpack.c.h.b16 %v3296
      %v3981 = vunpack.c.l.b16 %v3297
      %v3982 = vunpack.c.h.b16 %v3297
      %v3983 = vunpack.c.l.b16 %v3298
      %v3984 = vunpack.c.h.b16 %v3298
      %v3985 = vunpack.c.l.b16 %v3299
      %v3986 = vunpack.c.h.b16 %v3299
      %v3987 = vunpack.c.l.b16 %v3300
      %v3988 = vunpack.c.h.b16 %v3300
      %v3989 = vunpack.c.l.b16 %v3301
      %v3990 = vunpack.c.h.b16 %v3301
      %v3991 = vunpack.c.l.b16 %v3302
      %v3992 = vunpack.c.h.b16 %v3302
      %v3993 = vunpack.c.l.b16 %v3303
      %v3994 = vunpack.c.h.b16 %v3303
      %v3995 = vunpack.c.l.b16 %v3304
      %v3996 = vunpack.c.h.b16 %v3304
      %v3997 = vunpack.c.l.b16 %v3305
      %v3998 = vunpack.c.h.b16 %v3305
      %v3999 = vunpack.c.l.b16 %v3306
      %v4000 = vunpack.c.h.b16 %v3306
      %v4001 = vunpack.c.l.b16 %v3307
      %v4002 = vunpack.c.h.b16 %v3307
      %v4003 = vunpack.c.l.b16 %v3308
      %v4004 = vunpack.c.h.b16 %v3308
      %v4005 = vunpack.c.l.b16 %v3309
      %v4006 = vunpack.c.h.b16 %v3309
      %v4007 = vunpack.c.l.b16 %v3310
      %v4008 = vunpack.c.h.b16 %v3310
      %v4009 = vunpack.c.l.b16 %v3311
      %v4010 = vunpack.c.h.b16 %v3311
      %v4011 = vunpack.c.l.b16 %v3312
      %v4012 = vunpack.c.h.b16 %v3312
      %v4013 = vunpack.c.l.b16 %v3313
      %v4014 = vunpack.c.h.b16 %v3313
      %v4015 = vunpack.c.l.b16 %v3314
      %v4016 = vunpack.c.h.b16 %v3314
      %v4017 = vunpack.c.l.b16 %v3315
      %v4018 = vunpack.c.h.b16 %v3315
      %v4019 = vunpack.c.l.b16 %v3316
      %v4020 = vunpack.c.h.b16 %v3316
      %v4021 = vunpack.c.l.b16 %v3317
      %v4022 = vunpack.c.h.b16 %v3317
      %v4023 = vunpack.c.l.b16 %v3318
      %v4024 = vunpack.c.h.b16 %v3318
      %v4025 = vunpack.c.l.b16 %v3319
      %v4026 = vunpack.c.h.b16 %v3319
      %v4027 = vunpack.c.l.b16 %v3320
      %v4028 = vunpack.c.h.b16 %v3320
      %v4029 = vunpack.c.l.b16 %v3321
      %v4030 = vunpack.c.h.b16 %v3321
      %v4031 = vunpack.c.l.b16 %v3322
      %v4032 = vunpack.c.h.b16 %v3322
      %v4033 = vunpack.c.l.b16 %v3323
      %v4034 = vunpack.c.h.b16 %v3323
      %v4035 = vunpack.c.l.b16 %v3324
      %v4036 = vunpack.c.h.b16 %v3324
      %v4037 = vunpack.c.l.b16 %v3325
      %v4038 = vunpack.c.h.b16 %v3325
      %v4039 = vunpack.c.l.b16 %v3326
      %v4040 = vunpack.c.h.b16 %v3326
      %v4041 = vunpack.c.l.b16 %v3327
      %v4042 = vunpack.c.h.b16 %v3327
      %v4043 = vunpack.c.l.b16 %v3328
      %v4044 = vunpack.c.h.b16 %v3328
      %v4045 = vunpack.c.l.b16 %v3329
      %v4046 = vunpack.c.h.b16 %v3329
      %v4047 = vunpack.c.l.b16 %v3330
      %v4048 = vunpack.c.h.b16 %v3330
      %v4049 = vunpack.c.l.b16 %v3331
      %v4050 = vunpack.c.h.b16 %v3331
      %v4051 = vunpack.c.l.b16 %v3332
      %v4052 = vunpack.c.h.b16 %v3332
      %v4053 = vunpack.c.l.b16 %v3333
      %v4054 = vunpack.c.h.b16 %v3333
      %v4055 = vunpack.c.l.b16 %v3334
      %v4056 = vunpack.c.h.b16 %v3334
      %v4057 = vunpack.c.l.b16 %v3335
      %v4058 = vunpack.c.h.b16 %v3335
      %v4059 = vunpack.c.l.b16 %v3336
      %v4060 = vunpack.c.h.b16 %v3336
      %v4061 = vunpack.c.l.b16 %v3337
      %v4062 = vunpack.c.h.b16 %v3337
      %v4063 = vunpack.c.l.b16 %v3338
      %v4064 = vunpack.c.h.b16 %v3338
      %v4065 = vunpack.c.l.b16 %v3339
      %v4066 = vunpack.c.h.b16 %v3339
      %v4067 = vunpack.c.l.b16 %v3340
      %v4068 = vunpack.c.h.b16 %v3340
      %v4069 = vunpack.c.l.b16 %v3341
      %v4070 = vunpack.c.h.b16 %v3341
      %v4071 = vunpack.c.l.b16 %v3342
      %v4072 = vunpack.c.h.b16 %v3342
      %v4073 = vunpack.c.l.b16 %v3343
      %v4074 = vunpack.c.h.b16 %v3343
      %v4075 = vunpack.c.l.b16 %v3344
      %v4076 = vunpack.c.h.b16 %v3344
      %v4077 = vunpack.c.l.b16 %v3345
      %v4078 = vunpack.c.h.b16 %v3345
      %v4079 = vunpack.c.l.b16 %v3346
      %v4080 = vunpack.c.h.b16 %v3346
      %v4081 = vunpack.c.l.b16 %v3347
      %v4082 = vunpack.c.h.b16 %v3347
      %v4083 = vunpack.c.l.b16 %v3348
      %v4084 = vunpack.c.h.b16 %v3348
      %v4085 = vunpack.c.l.b16 %v3349
      %v4086 = vunpack.c.h.b16 %v3349
      %v4087 = vunpack.c.l.b16 %v3350
      %v4088 = vunpack.c.h.b16 %v3350
      %v4089 = vunpack.c.l.b16 %v3351
      %v4090 = vunpack.c.h.b16 %v3351
      %v4091 = vunpack.c.l.b16 %v3352
      %v4092 = vunpack.c.h.b16 %v3352
      %v4093 = vunpack.c.l.b16 %v3353
      %v4094 = vunpack.c.h.b16 %v3353
      %v4095 = vunpack.c.l.b16 %v3354
      %v4096 = vunpack.c.h.b16 %v3354
      %v4097 = vunpack.c.l.b16 %v3355
      %v4098 = vunpack.c.h.b16 %v3355
      %v4099 = vunpack.c.l.b16 %v3356
      %v4100 = vunpack.c.h.b16 %v3356
      %v4101 = vunpack.c.l.b16 %v3357
      %v4102 = vunpack.c.h.b16 %v3357
      %v4103 = vunpack.c.l.b16 %v3358
      %v4104 = vunpack.c.h.b16 %v3358
      %v4105 = vunpack.c.l.b16 %v3359
      %v4106 = vunpack.c.h.b16 %v3359
      %v4107 = vunpack.c.l.b16 %v3360
      %v4108 = vunpack.c.h.b16 %v3360
      %v4109 = vunpack.c.l.b16 %v3361
      %v4110 = vunpack.c.h.b16 %v3361
      %v4111 = vunpack.c.l.b16 %v3362
      %v4112 = vunpack.c.h.b16 %v3362
      %v4113 = vunpack.c.l.b16 %v3363
      %v4114 = vunpack.c.h.b16 %v3363
      %v4115 = vunpack.c.l.b16 %v3364
      %v4116 = vunpack.c.h.b16 %v3364
      %v4117 = vunpack.c.l.b16 %v3365
      %v4118 = vunpack.c.h.b16 %v3365
      %v4119 = vunpack.c.l.b16 %v3366
      %v4120 = vunpack.c.h.b16 %v3366
      %v4121 = vunpack.c.l.b16 %v3367
      %v4122 = vunpack.c.h.b16 %v3367
      %v4123 = vunpack.c.l.b16 %v3368
      %v4124 = vunpack.c.h.b16 %v3368
      %v4125 = vunpack.c.l.b16 %v3369
      %v4126 = vunpack.c.h.b16 %v3369
      %v4127 = vunpack.c.l.b16 %v3370
      %v4128 = vunpack.c.h.b16 %v3370
      %v4129 = vunpack.c.l.b16 %v3371
      %v4130 = vunpack.c.h.b16 %v3371
      %v4131 = vunpack.c.l.b16 %v3372
      %v4132 = vunpack.c.h.b16 %v3372
      %v4133 = vunpack.c.l.b16 %v3373
      %v4134 = vunpack.c.h.b16 %v3373
      %v4135 = vunpack.c.l.b16 %v3374
      %v4136 = vunpack.c.h.b16 %v3374
      %v4137 = vunpack.c.l.b16 %v3375
      %v4138 = vunpack.c.h.b16 %v3375
      %v4139 = vunpack.c.l.b16 %v3376
      %v4140 = vunpack.c.h.b16 %v3376
      %v4141 = vunpack.c.l.b16 %v3377
      %v4142 = vunpack.c.h.b16 %v3377
      %v4143 = vunpack.c.l.b16 %v3378
      %v4144 = vunpack.c.h.b16 %v3378
      %v4145 = vunpack.c.l.b16 %v3379
      %v4146 = vunpack.c.h.b16 %v3379
      %v4147 = vunpack.c.l.b16 %v3380
      %v4148 = vunpack.c.h.b16 %v3380
      %v4149 = vpack.c.b16 %v3641, %v3637
      %v4150 = vpack.c.b16 %v3642, %v3638
      %v4151 = vpack.c.b16 %v3643, %v3639
      %v4152 = vpack.c.b16 %v3644, %v3640
      %v4153 = vpack.c.b16 %v3649, %v3645
      %v4154 = vpack.c.b16 %v3650, %v3646
      %v4155 = vpack.c.b16 %v3651, %v3647
      %v4156 = vpack.c.b16 %v3652, %v3648
      %v4157 = vpack.c.b16 %v3657, %v3653
      %v4158 = vpack.c.b16 %v3658, %v3654
      %v4159 = vpack.c.b16 %v3659, %v3655
      %v4160 = vpack.c.b16 %v3660, %v3656
      %v4161 = vpack.c.b16 %v3665, %v3661
      %v4162 = vpack.c.b16 %v3666, %v3662
      %v4163 = vpack.c.b16 %v3667, %v3663
      %v4164 = vpack.c.b16 %v3668, %v3664
      %v4165 = vpack.c.b16 %v3673, %v3669
      %v4166 = vpack.c.b16 %v3674, %v3670
      %v4167 = vpack.c.b16 %v3675, %v3671
      %v4168 = vpack.c.b16 %v3676, %v3672
      %v4169 = vpack.c.b16 %v3681, %v3677
      %v4170 = vpack.c.b16 %v3682, %v3678
      %v4171 = vpack.c.b16 %v3683, %v3679
      %v4172 = vpack.c.b16 %v3684, %v3680
      %v4173 = vpack.c.b16 %v3689, %v3685
      %v4174 = vpack.c.b16 %v3690, %v3686
      %v4175 = vpack.c.b16 %v3691, %v3687
      %v4176 = vpack.c.b16 %v3692, %v3688
      %v4177 = vpack.c.b16 %v3697, %v3693
      %v4178 = vpack.c.b16 %v3698, %v3694
      %v4179 = vpack.c.b16 %v3699, %v3695
      %v4180 = vpack.c.b16 %v3700, %v3696
      %v4181 = vpack.c.b16 %v3705, %v3701
      %v4182 = vpack.c.b16 %v3706, %v3702
      %v4183 = vpack.c.b16 %v3707, %v3703
      %v4184 = vpack.c.b16 %v3708, %v3704
      %v4185 = vpack.c.b16 %v3713, %v3709
      %v4186 = vpack.c.b16 %v3714, %v3710
      %v4187 = vpack.c.b16 %v3715, %v3711
      %v4188 = vpack.c.b16 %v3716, %v3712
      %v4189 = vpack.c.b16 %v3721, %v3717
      %v4190 = vpack.c.b16 %v3722, %v3718
      %v4191 = vpack.c.b16 %v3723, %v3719
      %v4192 = vpack.c.b16 %v3724, %v3720
      %v4193 = vpack.c.b16 %v3729, %v3725
      %v4194 = vpack.c.b16 %v3730, %v3726
      %v4195 = vpack.c.b16 %v3731, %v3727
      %v4196 = vpack.c.b16 %v3732, %v3728
      %v4197 = vpack.c.b16 %v3737, %v3733
      %v4198 = vpack.c.b16 %v3738, %v3734
      %v4199 = vpack.c.b16 %v3739, %v3735
      %v4200 = vpack.c.b16 %v3740, %v3736
      %v4201 = vpack.c.b16 %v3745, %v3741
      %v4202 = vpack.c.b16 %v3746, %v3742
      %v4203 = vpack.c.b16 %v3747, %v3743
      %v4204 = vpack.c.b16 %v3748, %v3744
      %v4205 = vpack.c.b16 %v3753, %v3749
      %v4206 = vpack.c.b16 %v3754, %v3750
      %v4207 = vpack.c.b16 %v3755, %v3751
      %v4208 = vpack.c.b16 %v3756, %v3752
      %v4209 = vpack.c.b16 %v3761, %v3757
      %v4210 = vpack.c.b16 %v3762, %v3758
      %v4211 = vpack.c.b16 %v3763, %v3759
      %v4212 = vpack.c.b16 %v3764, %v3760
      %v4213 = vpack.c.b16 %v3769, %v3765
      %v4214 = vpack.c.b16 %v3770, %v3766
      %v4215 = vpack.c.b16 %v3771, %v3767
      %v4216 = vpack.c.b16 %v3772, %v3768
      %v4217 = vpack.c.b16 %v3777, %v3773
      %v4218 = vpack.c.b16 %v3778, %v3774
      %v4219 = vpack.c.b16 %v3779, %v3775
      %v4220 = vpack.c.b16 %v3780, %v3776
      %v4221 = vpack.c.b16 %v3785, %v3781
      %v4222 = vpack.c.b16 %v3786, %v3782
      %v4223 = vpack.c.b16 %v3787, %v3783
      %v4224 = vpack.c.b16 %v3788, %v3784
      %v4225 = vpack.c.b16 %v3793, %v3789
      %v4226 = vpack.c.b16 %v3794, %v3790
      %v4227 = vpack.c.b16 %v3795, %v3791
      %v4228 = vpack.c.b16 %v3796, %v3792
      %v4229 = vpack.c.b16 %v3801, %v3797
      %v4230 = vpack.c.b16 %v3802, %v3798
      %v4231 = vpack.c.b16 %v3803, %v3799
      %v4232 = vpack.c.b16 %v3804, %v3800
      %v4233 = vpack.c.b16 %v3809, %v3805
      %v4234 = vpack.c.b16 %v3810, %v3806
      %v4235 = vpack.c.b16 %v3811, %v3807
      %v4236 = vpack.c.b16 %v3812, %v3808
      %v4237 = vpack.c.b16 %v3817, %v3813
      %v4238 = vpack.c.b16 %v3818, %v3814
      %v4239 = vpack.c.b16 %v3819, %v3815
      %v4240 = vpack.c.b16 %v3820, %v3816
      %v4241 = vpack.c.b16 %v3825, %v3821
      %v4242 = vpack.c.b16 %v3826, %v3822
      %v4243 = vpack.c.b16 %v3827, %v3823
      %v4244 = vpack.c.b16 %v3828, %v3824
      %v4245 = vpack.c.b16 %v3833, %v3829
      %v4246 = vpack.c.b16 %v3834, %v3830
      %v4247 = vpack.c.b16 %v3835, %v3831
      %v4248 = vpack.c.b16 %v3836, %v3832
      %v4249 = vpack.c.b16 %v3841, %v3837
      %v4250 = vpack.c.b16 %v3842, %v3838
      %v4251 = vpack.c.b16 %v3843, %v3839
      %v4252 = vpack.c.b16 %v3844, %v3840
      %v4253 = vpack.c.b16 %v3849, %v3845
      %v4254 = vpack.c.b16 %v3850, %v3846
      %v4255 = vpack.c.b16 %v3851, %v3847
      %v4256 = vpack.c.b16 %v3852, %v3848
      %v4257 = vpack.c.b16 %v3857, %v3853
      %v4258 = vpack.c.b16 %v3858, %v3854
      %v4259 = vpack.c.b16 %v3859, %v3855
      %v4260 = vpack.c.b16 %v3860, %v3856
      %v4261 = vpack.c.b16 %v3865, %v3861
      %v4262 = vpack.c.b16 %v3866, %v3862
      %v4263 = vpack.c.b16 %v3867, %v3863
      %v4264 = vpack.c.b16 %v3868, %v3864
      %v4265 = vpack.c.b16 %v3873, %v3869
      %v4266 = vpack.c.b16 %v3874, %v3870
      %v4267 = vpack.c.b16 %v3875, %v3871
      %v4268 = vpack.c.b16 %v3876, %v3872
      %v4269 = vpack.c.b16 %v3881, %v3877
      %v4270 = vpack.c.b16 %v3882, %v3878
      %v4271 = vpack.c.b16 %v3883, %v3879
      %v4272 = vpack.c.b16 %v3884, %v3880
      %v4273 = vpack.c.b16 %v3889, %v3885
      %v4274 = vpack.c.b16 %v3890, %v3886
      %v4275 = vpack.c.b16 %v3891, %v3887
      %v4276 = vpack.c.b16 %v3892, %v3888
      %v4277 = vpack.c.b16 %v3897, %v3893
      %v4278 = vpack.c.b16 %v3898, %v3894
      %v4279 = vpack.c.b16 %v3899, %v3895
      %v4280 = vpack.c.b16 %v3900, %v3896
      %v4281 = vpack.c.b16 %v3905, %v3901
      %v4282 = vpack.c.b16 %v3906, %v3902
      %v4283 = vpack.c.b16 %v3907, %v3903
      %v4284 = vpack.c.b16 %v3908, %v3904
      %v4285 = vpack.c.b16 %v3913, %v3909
      %v4286 = vpack.c.b16 %v3914, %v3910
      %v4287 = vpack.c.b16 %v3915, %v3911
      %v4288 = vpack.c.b16 %v3916, %v3912
      %v4289 = vpack.c.b16 %v3921, %v3917
      %v4290 = vpack.c.b16 %v3922, %v3918
      %v4291 = vpack.c.b16 %v3923, %v3919
      %v4292 = vpack.c.b16 %v3924, %v3920
      %v4293 = vpack.c.b16 %v3929, %v3925
      %v4294 = vpack.c.b16 %v3930, %v3926
      %v4295 = vpack.c.b16 %v3931, %v3927
      %v4296 = vpack.c.b16 %v3932, %v3928
      %v4297 = vpack.c.b16 %v3937, %v3933
      %v4298 = vpack.c.b16 %v3938, %v3934
      %v4299 = vpack.c.b16 %v3939, %v3935
      %v4300 = vpack.c.b16 %v3940, %v3936
      %v4301 = vpack.c.b16 %v3945, %v3941
      %v4302 = vpack.c.b16 %v3946, %v3942
      %v4303 = vpack.c.b16 %v3947, %v3943
      %v4304 = vpack.c.b16 %v3948, %v3944
      %v4305 = vpack.c.b16 %v3953, %v3949
      %v4306 = vpack.c.b16 %v3954, %v3950
      %v4307 = vpack.c.b16 %v3955, %v3951
      %v4308 = vpack.c.b16 %v3956, %v3952
      %v4309 = vpack.c.b16 %v3961, %v3957
      %v4310 = vpack.c.b16 %v3962, %v3958
      %v4311 = vpack.c.b16 %v3963, %v3959
      %v4312 = vpack.c.b16 %v3964, %v3960
      %v4313 = vpack.c.b16 %v3969, %v3965
      %v4314 = vpack.c.b16 %v3970, %v3966
      %v4315 = vpack.c.b16 %v3971, %v3967
      %v4316 = vpack.c.b16 %v3972, %v3968
      %v4317 = vpack.c.b16 %v3977, %v3973
      %v4318 = vpack.c.b16 %v3978, %v3974
      %v4319 = vpack.c.b16 %v3979, %v3975
      %v4320 = vpack.c.b16 %v3980, %v3976
      %v4321 = vpack.c.b16 %v3985, %v3981
      %v4322 = vpack.c.b16 %v3986, %v3982
      %v4323 = vpack.c.b16 %v3987, %v3983
      %v4324 = vpack.c.b16 %v3988, %v3984
      %v4325 = vpack.c.b16 %v3993, %v3989
      %v4326 = vpack.c.b16 %v3994, %v3990
      %v4327 = vpack.c.b16 %v3995, %v3991
      %v4328 = vpack.c.b16 %v3996, %v3992
      %v4329 = vpack.c.b16 %v4001, %v3997
      %v4330 = vpack.c.b16 %v4002, %v3998
      %v4331 = vpack.c.b16 %v4003, %v3999
      %v4332 = vpack.c.b16 %v4004, %v4000
      %v4333 = vpack.c.b16 %v4009, %v4005
      %v4334 = vpack.c.b16 %v4010, %v4006
      %v4335 = vpack.c.b16 %v4011, %v4007
      %v4336 = vpack.c.b16 %v4012, %v4008
      %v4337 = vpack.c.b16 %v4017, %v4013
      %v4338 = vpack.c.b16 %v4018, %v4014
      %v4339 = vpack.c.b16 %v4019, %v4015
      %v4340 = vpack.c.b16 %v4020, %v4016
      %v4341 = vpack.c.b16 %v4025, %v4021
      %v4342 = vpack.c.b16 %v4026, %v4022
      %v4343 = vpack.c.b16 %v4027, %v4023
      %v4344 = vpack.c.b16 %v4028, %v4024
      %v4345 = vpack.c.b16 %v4033, %v4029
      %v4346 = vpack.c.b16 %v4034, %v4030
      %v4347 = vpack.c.b16 %v4035, %v4031
      %v4348 = vpack.c.b16 %v4036, %v4032
      %v4349 = vpack.c.b16 %v4041, %v4037
      %v4350 = vpack.c.b16 %v4042, %v4038
      %v4351 = vpack.c.b16 %v4043, %v4039
      %v4352 = vpack.c.b16 %v4044, %v4040
      %v4353 = vpack.c.b16 %v4049, %v4045
      %v4354 = vpack.c.b16 %v4050, %v4046
      %v4355 = vpack.c.b16 %v4051, %v4047
      %v4356 = vpack.c.b16 %v4052, %v4048
      %v4357 = vpack.c.b16 %v4057, %v4053
      %v4358 = vpack.c.b16 %v4058, %v4054
      %v4359 = vpack.c.b16 %v4059, %v4055
      %v4360 = vpack.c.b16 %v4060, %v4056
      %v4361 = vpack.c.b16 %v4065, %v4061
      %v4362 = vpack.c.b16 %v4066, %v4062
      %v4363 = vpack.c.b16 %v4067, %v4063
      %v4364 = vpack.c.b16 %v4068, %v4064
      %v4365 = vpack.c.b16 %v4073, %v4069
      %v4366 = vpack.c.b16 %v4074, %v4070
      %v4367 = vpack.c.b16 %v4075, %v4071
      %v4368 = vpack.c.b16 %v4076, %v4072
      %v4369 = vpack.c.b16 %v4081, %v4077
      %v4370 = vpack.c.b16 %v4082, %v4078
      %v4371 = vpack.c.b16 %v4083, %v4079
      %v4372 = vpack.c.b16 %v4084, %v4080
      %v4373 = vpack.c.b16 %v4089, %v4085
      %v4374 = vpack.c.b16 %v4090, %v4086
      %v4375 = vpack.c.b16 %v4091, %v4087
      %v4376 = vpack.c.b16 %v4092, %v4088
      %v4377 = vpack.c.b16 %v4097, %v4093
      %v4378 = vpack.c.b16 %v4098, %v4094
      %v4379 = vpack.c.b16 %v4099, %v4095
      %v4380 = vpack.c.b16 %v4100, %v4096
      %v4381 = vpack.c.b16 %v4105, %v4101
      %v4382 = vpack.c.b16 %v4106, %v4102
      %v4383 = vpack.c.b16 %v4107, %v4103
      %v4384 = vpack.c.b16 %v4108, %v4104
      %v4385 = vpack.c.b16 %v4113, %v4109
      %v4386 = vpack.c.b16 %v4114, %v4110
      %v4387 = vpack.c.b16 %v4115, %v4111
      %v4388 = vpack.c.b16 %v4116, %v4112
      %v4389 = vpack.c.b16 %v4121, %v4117
      %v4390 = vpack.c.b16 %v4122, %v4118
      %v4391 = vpack.c.b16 %v4123, %v4119
      %v4392 = vpack.c.b16 %v4124, %v4120
      %v4393 = vpack.c.b16 %v4129, %v4125
      %v4394 = vpack.c.b16 %v4130, %v4126
      %v4395 = vpack.c.b16 %v4131, %v4127
      %v4396 = vpack.c.b16 %v4132, %v4128
      %v4397 = vpack.c.b16 %v4137, %v4133
      %v4398 = vpack.c.b16 %v4138, %v4134
      %v4399 = vpack.c.b16 %v4139, %v4135
      %v4400 = vpack.c.b16 %v4140, %v4136
      %v4401 = vpack.c.b16 %v4145, %v4141
      %v4402 = vpack.c.b16 %v4146, %v4142
      %v4403 = vpack.c.b16 %v4147, %v4143
      %v4404 = vpack.c.b16 %v4148, %v4144
      %4661 = vmatprep.subr.bf16.mxu0 %v4150
      %4662 = vmatpush1.bf16.msra.mxu0 %v4149
      %4663 = vmatprep.subr.bf16.mxu0 %v4154
      %4664 = vmatpush1.bf16.msra.mxu0 %v4153
      %4665 = vmatprep.subr.bf16.mxu0 %v4158
      %4666 = vmatpush1.bf16.msra.mxu0 %v4157
      %4667 = vmatprep.subr.bf16.mxu0 %v4162
      %4668 = vmatpush1.bf16.msra.mxu0 %v4161
      %4669 = vmatprep.subr.bf16.mxu0 %v4166
      %4670 = vmatpush1.bf16.msra.mxu0 %v4165
      %4671 = vmatprep.subr.bf16.mxu0 %v4170
      %4672 = vmatpush1.bf16.msra.mxu0 %v4169
      %4673 = vmatprep.subr.bf16.mxu0 %v4174
      %4674 = vmatpush1.bf16.msra.mxu0 %v4173
      %4675 = vmatprep.subr.bf16.mxu0 %v4178
      %4676 = vmatpush1.bf16.msra.mxu0 %v4177
      %4677 = vmatprep.subr.bf16.mxu0 %v4182
      %4678 = vmatpush1.bf16.msra.mxu0 %v4181
      %4679 = vmatprep.subr.bf16.mxu0 %v4186
      %4680 = vmatpush1.bf16.msra.mxu0 %v4185
      %4681 = vmatprep.subr.bf16.mxu0 %v4190
      %4682 = vmatpush1.bf16.msra.mxu0 %v4189
      %4683 = vmatprep.subr.bf16.mxu0 %v4194
      %4684 = vmatpush1.bf16.msra.mxu0 %v4193
      %4685 = vmatprep.subr.bf16.mxu0 %v4198
      %4686 = vmatpush1.bf16.msra.mxu0 %v4197
      %4687 = vmatprep.subr.bf16.mxu0 %v4202
      %4688 = vmatpush1.bf16.msra.mxu0 %v4201
      %4689 = vmatprep.subr.bf16.mxu0 %v4206
      %4690 = vmatpush1.bf16.msra.mxu0 %v4205
      %4691 = vmatprep.subr.bf16.mxu0 %v4210
      %4692 = vmatpush1.bf16.msra.mxu0 %v4209
      %4693 = vmatprep.mubr.bf16.mxu0 %v3118
      %4694 = vmatmul.mubr.bf16.gmra.mrb[0].mxu0 %v3117
      %v4695 = vpop.f32.mrb[0].mxu0
      %v4696 = vadd.f32 0.0, %v4695
      %v4697 = vpop.f32.mrb[0].mxu0
      %v4698 = vadd.f32 0.0, %v4697
      %v4699 = vpop.f32.mrb[0].mxu0
      %v4700 = vpop.f32.mrb[0].mxu0
      %4701 = vdwg.mxu0
      %4702 = vmatprep.subr.bf16.mxu0 %v4214
      %4703 = vmatpush1.bf16.msra.mxu0 %v4213
      %4704 = vmatprep.subr.bf16.mxu0 %v4218
      %4705 = vmatpush1.bf16.msra.mxu0 %v4217
      %4706 = vmatprep.subr.bf16.mxu0 %v4222
      %4707 = vmatpush1.bf16.msra.mxu0 %v4221
      %4708 = vmatprep.subr.bf16.mxu0 %v4226
      %4709 = vmatpush1.bf16.msra.mxu0 %v4225
      %4710 = vmatprep.subr.bf16.mxu0 %v4230
      %4711 = vmatpush1.bf16.msra.mxu0 %v4229
      %4712 = vmatprep.subr.bf16.mxu0 %v4234
      %4713 = vmatpush1.bf16.msra.mxu0 %v4233
      %4714 = vmatprep.subr.bf16.mxu0 %v4238
      %4715 = vmatpush1.bf16.msra.mxu0 %v4237
      %4716 = vmatprep.subr.bf16.mxu0 %v4242
      %4717 = vmatpush1.bf16.msra.mxu0 %v4241
      %4718 = vmatprep.subr.bf16.mxu0 %v4246
      %4719 = vmatpush1.bf16.msra.mxu0 %v4245
      %4720 = vmatprep.subr.bf16.mxu0 %v4250
      %4721 = vmatpush1.bf16.msra.mxu0 %v4249
      %4722 = vmatprep.subr.bf16.mxu0 %v4254
      %4723 = vmatpush1.bf16.msra.mxu0 %v4253
      %4724 = vmatprep.subr.bf16.mxu0 %v4258
      %4725 = vmatpush1.bf16.msra.mxu0 %v4257
      %4726 = vmatprep.subr.bf16.mxu0 %v4262
      %4727 = vmatpush1.bf16.msra.mxu0 %v4261
      %4728 = vmatprep.subr.bf16.mxu0 %v4266
      %4729 = vmatpush1.bf16.msra.mxu0 %v4265
      %4730 = vmatprep.subr.bf16.mxu0 %v4270
      %4731 = vmatpush1.bf16.msra.mxu0 %v4269
      %4732 = vmatprep.subr.bf16.mxu0 %v4274
      %4733 = vmatpush1.bf16.msra.mxu0 %v4273
      %4734 = vmatprep.mubr.bf16.mxu0 %v3120
      %4735 = vmatmul.mubr.bf16.gmra.mrb[0].mxu0 %v3119
      %v4736 = vpop.f32.mrb[0].mxu0
      %v4737 = vadd.f32 %v4696, %v4736
      %v4738 = vpop.f32.mrb[0].mxu0
      %v4739 = vadd.f32 %v4698, %v4738
      %v4740 = vpop.f32.mrb[0].mxu0
      %v4741 = vpop.f32.mrb[0].mxu0
      %4742 = vdwg.mxu0
      %4743 = vmatprep.subr.bf16.mxu0 %v4278
      %4744 = vmatpush1.bf16.msra.mxu0 %v4277
      %4745 = vmatprep.subr.bf16.mxu0 %v4282
      %4746 = vmatpush1.bf16.msra.mxu0 %v4281
      %4747 = vmatprep.subr.bf16.mxu0 %v4286
      %4748 = vmatpush1.bf16.msra.mxu0 %v4285
      %4749 = vmatprep.subr.bf16.mxu0 %v4290
      %4750 = vmatpush1.bf16.msra.mxu0 %v4289
      %4751 = vmatprep.subr.bf16.mxu0 %v4294
      %4752 = vmatpush1.bf16.msra.mxu0 %v4293
      %4753 = vmatprep.subr.bf16.mxu0 %v4298
      %4754 = vmatpush1.bf16.msra.mxu0 %v4297
      %4755 = vmatprep.subr.bf16.mxu0 %v4302
      %4756 = vmatpush1.bf16.msra.mxu0 %v4301
      %4757 = vmatprep.subr.bf16.mxu0 %v4306
      %4758 = vmatpush1.bf16.msra.mxu0 %v4305
      %4759 = vmatprep.subr.bf16.mxu0 %v4310
      %4760 = vmatpush1.bf16.msra.mxu0 %v4309
      %4761 = vmatprep.subr.bf16.mxu0 %v4314
      %4762 = vmatpush1.bf16.msra.mxu0 %v4313
      %4763 = vmatprep.subr.bf16.mxu0 %v4318
      %4764 = vmatpush1.bf16.msra.mxu0 %v4317
      %4765 = vmatprep.subr.bf16.mxu0 %v4322
      %4766 = vmatpush1.bf16.msra.mxu0 %v4321
      %4767 = vmatprep.subr.bf16.mxu0 %v4326
      %4768 = vmatpush1.bf16.msra.mxu0 %v4325
      %4769 = vmatprep.subr.bf16.mxu0 %v4330
      %4770 = vmatpush1.bf16.msra.mxu0 %v4329
      %4771 = vmatprep.subr.bf16.mxu0 %v4334
      %4772 = vmatpush1.bf16.msra.mxu0 %v4333
      %4773 = vmatprep.subr.bf16.mxu0 %v4338
      %4774 = vmatpush1.bf16.msra.mxu0 %v4337
      %4775 = vmatprep.mubr.bf16.mxu0 %v3122
      %4776 = vmatmul.mubr.bf16.gmra.mrb[0].mxu0 %v3121
      %v4777 = vpop.f32.mrb[0].mxu0
      %v4778 = vadd.f32 %v4737, %v4777
      %v4779 = vpop.f32.mrb[0].mxu0
      %v4780 = vadd.f32 %v4739, %v4779
      %v4781 = vpop.f32.mrb[0].mxu0
      %v4782 = vpop.f32.mrb[0].mxu0
      %4783 = vdwg.mxu0
      %4784 = vmatprep.subr.bf16.mxu0 %v4342
      %4785 = vmatpush1.bf16.msra.mxu0 %v4341
      %4786 = vmatprep.subr.bf16.mxu0 %v4346
      %4787 = vmatpush1.bf16.msra.mxu0 %v4345
      %4788 = vmatprep.subr.bf16.mxu0 %v4350
      %4789 = vmatpush1.bf16.msra.mxu0 %v4349
      %4790 = vmatprep.subr.bf16.mxu0 %v4354
      %4791 = vmatpush1.bf16.msra.mxu0 %v4353
      %4792 = vmatprep.subr.bf16.mxu0 %v4358
      %4793 = vmatpush1.bf16.msra.mxu0 %v4357
      %4794 = vmatprep.subr.bf16.mxu0 %v4362
      %4795 = vmatpush1.bf16.msra.mxu0 %v4361
      %4796 = vmatprep.subr.bf16.mxu0 %v4366
      %4797 = vmatpush1.bf16.msra.mxu0 %v4365
      %4798 = vmatprep.subr.bf16.mxu0 %v4370
      %4799 = vmatpush1.bf16.msra.mxu0 %v4369
      %4800 = vmatprep.subr.bf16.mxu0 %v4374
      %4801 = vmatpush1.bf16.msra.mxu0 %v4373
      %4802 = vmatprep.subr.bf16.mxu0 %v4378
      %4803 = vmatpush1.bf16.msra.mxu0 %v4377
      %4804 = vmatprep.subr.bf16.mxu0 %v4382
      %4805 = vmatpush1.bf16.msra.mxu0 %v4381
      %4806 = vmatprep.subr.bf16.mxu0 %v4386
      %4807 = vmatpush1.bf16.msra.mxu0 %v4385
      %4808 = vmatprep.subr.bf16.mxu0 %v4390
      %4809 = vmatpush1.bf16.msra.mxu0 %v4389
      %4810 = vmatprep.subr.bf16.mxu0 %v4394
      %4811 = vmatpush1.bf16.msra.mxu0 %v4393
      %4812 = vmatprep.subr.bf16.mxu0 %v4398
      %4813 = vmatpush1.bf16.msra.mxu0 %v4397
      %4814 = vmatprep.subr.bf16.mxu0 %v4402
      %4815 = vmatpush1.bf16.msra.mxu0 %v4401
      %4816 = vmatprep.mubr.bf16.mxu0 %v3124
      %4817 = vmatmul.mubr.bf16.gmra.mrb[0].mxu0 %v3123
      %v4818 = vpop.f32.mrb[0].mxu0
      %v4819 = vadd.f32 %v4778, %v4818
      %v4820 = vpop.f32.mrb[0].mxu0
      %v4821 = vadd.f32 %v4780, %v4820
      %v4822 = vpop.f32.mrb[0].mxu0
      %v4823 = vpop.f32.mrb[0].mxu0
      %4824 = vdwg.mxu0
      %4825 = vmatprep.subr.bf16.mxu0 %v4152
      %4826 = vmatpush1.bf16.msra.mxu0 %v4151
      %4827 = vmatprep.subr.bf16.mxu0 %v4156
      %4828 = vmatpush1.bf16.msra.mxu0 %v4155
      %4829 = vmatprep.subr.bf16.mxu0 %v4160
      %4830 = vmatpush1.bf16.msra.mxu0 %v4159
      %4831 = vmatprep.subr.bf16.mxu0 %v4164
      %4832 = vmatpush1.bf16.msra.mxu0 %v4163
      %4833 = vmatprep.subr.bf16.mxu0 %v4168
      %4834 = vmatpush1.bf16.msra.mxu0 %v4167
      %4835 = vmatprep.subr.bf16.mxu0 %v4172
      %4836 = vmatpush1.bf16.msra.mxu0 %v4171
      %4837 = vmatprep.subr.bf16.mxu0 %v4176
      %4838 = vmatpush1.bf16.msra.mxu0 %v4175
      %4839 = vmatprep.subr.bf16.mxu0 %v4180
      %4840 = vmatpush1.bf16.msra.mxu0 %v4179
      %4841 = vmatprep.subr.bf16.mxu0 %v4184
      %4842 = vmatpush1.bf16.msra.mxu0 %v4183
      %4843 = vmatprep.subr.bf16.mxu0 %v4188
      %4844 = vmatpush1.bf16.msra.mxu0 %v4187
      %4845 = vmatprep.subr.bf16.mxu0 %v4192
      %4846 = vmatpush1.bf16.msra.mxu0 %v4191
      %4847 = vmatprep.subr.bf16.mxu0 %v4196
      %4848 = vmatpush1.bf16.msra.mxu0 %v4195
      %4849 = vmatprep.subr.bf16.mxu0 %v4200
      %4850 = vmatpush1.bf16.msra.mxu0 %v4199
      %4851 = vmatprep.subr.bf16.mxu0 %v4204
      %4852 = vmatpush1.bf16.msra.mxu0 %v4203
      %4853 = vmatprep.subr.bf16.mxu0 %v4208
      %4854 = vmatpush1.bf16.msra.mxu0 %v4207
      %4855 = vmatprep.subr.bf16.mxu0 %v4212
      %4856 = vmatpush1.bf16.msra.mxu0 %v4211
      %4857 = vmatprep.mubr.bf16.mxu0 %v3118
      %4858 = vmatmul.mubr.bf16.gmra.mrb[0].mxu0 %v3117
      %v4859 = vpop.f32.mrb[0].mxu0
      %v4860 = vadd.f32 0.0, %v4859
      %v4861 = vpop.f32.mrb[0].mxu0
      %v4862 = vadd.f32 0.0, %v4861
      %v4863 = vpop.f32.mrb[0].mxu0
      %v4864 = vpop.f32.mrb[0].mxu0
      %4865 = vdwg.mxu0
      %4866 = vmatprep.subr.bf16.mxu0 %v4216
      %4867 = vmatpush1.bf16.msra.mxu0 %v4215
      %4868 = vmatprep.subr.bf16.mxu0 %v4220
      %4869 = vmatpush1.bf16.msra.mxu0 %v4219
      %4870 = vmatprep.subr.bf16.mxu0 %v4224
      %4871 = vmatpush1.bf16.msra.mxu0 %v4223
      %4872 = vmatprep.subr.bf16.mxu0 %v4228
      %4873 = vmatpush1.bf16.msra.mxu0 %v4227
      %4874 = vmatprep.subr.bf16.mxu0 %v4232
      %4875 = vmatpush1.bf16.msra.mxu0 %v4231
      %4876 = vmatprep.subr.bf16.mxu0 %v4236
      %4877 = vmatpush1.bf16.msra.mxu0 %v4235
      %4878 = vmatprep.subr.bf16.mxu0 %v4240
      %4879 = vmatpush1.bf16.msra.mxu0 %v4239
      %4880 = vmatprep.subr.bf16.mxu0 %v4244
      %4881 = vmatpush1.bf16.msra.mxu0 %v4243
      %4882 = vmatprep.subr.bf16.mxu0 %v4248
      %4883 = vmatpush1.bf16.msra.mxu0 %v4247
      %4884 = vmatprep.subr.bf16.mxu0 %v4252
      %4885 = vmatpush1.bf16.msra.mxu0 %v4251
      %4886 = vmatprep.subr.bf16.mxu0 %v4256
      %4887 = vmatpush1.bf16.msra.mxu0 %v4255
      %4888 = vmatprep.subr.bf16.mxu0 %v4260
      %4889 = vmatpush1.bf16.msra.mxu0 %v4259
      %4890 = vmatprep.subr.bf16.mxu0 %v4264
      %4891 = vmatpush1.bf16.msra.mxu0 %v4263
      %4892 = vmatprep.subr.bf16.mxu0 %v4268
      %4893 = vmatpush1.bf16.msra.mxu0 %v4267
      %4894 = vmatprep.subr.bf16.mxu0 %v4272
      %4895 = vmatpush1.bf16.msra.mxu0 %v4271
      %4896 = vmatprep.subr.bf16.mxu0 %v4276
      %4897 = vmatpush1.bf16.msra.mxu0 %v4275
      %4898 = vmatprep.mubr.bf16.mxu0 %v3120
      %4899 = vmatmul.mubr.bf16.gmra.mrb[0].mxu0 %v3119
      %v4900 = vpop.f32.mrb[0].mxu0
      %v4901 = vadd.f32 %v4860, %v4900
      %v4902 = vpop.f32.mrb[0].mxu0
      %v4903 = vadd.f32 %v4862, %v4902
      %v4904 = vpop.f32.mrb[0].mxu0
      %v4905 = vpop.f32.mrb[0].mxu0
      %4906 = vdwg.mxu0
      %4907 = vmatprep.subr.bf16.mxu0 %v4280
      %4908 = vmatpush1.bf16.msra.mxu0 %v4279
      %4909 = vmatprep.subr.bf16.mxu0 %v4284
      %4910 = vmatpush1.bf16.msra.mxu0 %v4283
      %4911 = vmatprep.subr.bf16.mxu0 %v4288
      %4912 = vmatpush1.bf16.msra.mxu0 %v4287
      %4913 = vmatprep.subr.bf16.mxu0 %v4292
      %4914 = vmatpush1.bf16.msra.mxu0 %v4291
      %4915 = vmatprep.subr.bf16.mxu0 %v4296
      %4916 = vmatpush1.bf16.msra.mxu0 %v4295
      %4917 = vmatprep.subr.bf16.mxu0 %v4300
      %4918 = vmatpush1.bf16.msra.mxu0 %v4299
      %4919 = vmatprep.subr.bf16.mxu0 %v4304
      %4920 = vmatpush1.bf16.msra.mxu0 %v4303
      %4921 = vmatprep.subr.bf16.mxu0 %v4308
      %4922 = vmatpush1.bf16.msra.mxu0 %v4307
      %4923 = vmatprep.subr.bf16.mxu0 %v4312
      %4924 = vmatpush1.bf16.msra.mxu0 %v4311
      %4925 = vmatprep.subr.bf16.mxu0 %v4316
      %4926 = vmatpush1.bf16.msra.mxu0 %v4315
      %4927 = vmatprep.subr.bf16.mxu0 %v4320
      %4928 = vmatpush1.bf16.msra.mxu0 %v4319
      %4929 = vmatprep.subr.bf16.mxu0 %v4324
      %4930 = vmatpush1.bf16.msra.mxu0 %v4323
      %4931 = vmatprep.subr.bf16.mxu0 %v4328
      %4932 = vmatpush1.bf16.msra.mxu0 %v4327
      %4933 = vmatprep.subr.bf16.mxu0 %v4332
      %4934 = vmatpush1.bf16.msra.mxu0 %v4331
      %4935 = vmatprep.subr.bf16.mxu0 %v4336
      %4936 = vmatpush1.bf16.msra.mxu0 %v4335
      %4937 = vmatprep.subr.bf16.mxu0 %v4340
      %4938 = vmatpush1.bf16.msra.mxu0 %v4339
      %4939 = vmatprep.mubr.bf16.mxu0 %v3122
      %4940 = vmatmul.mubr.bf16.gmra.mrb[0].mxu0 %v3121
      %v4941 = vpop.f32.mrb[0].mxu0
      %v4942 = vadd.f32 %v4901, %v4941
      %v4943 = vpop.f32.mrb[0].mxu0
      %v4944 = vadd.f32 %v4903, %v4943
      %v4945 = vpop.f32.mrb[0].mxu0
      %v4946 = vpop.f32.mrb[0].mxu0
      %4947 = vdwg.mxu0
      %4948 = vmatprep.subr.bf16.mxu0 %v4344
      %4949 = vmatpush1.bf16.msra.mxu0 %v4343
      %4950 = vmatprep.subr.bf16.mxu0 %v4348
      %4951 = vmatpush1.bf16.msra.mxu0 %v4347
      %4952 = vmatprep.subr.bf16.mxu0 %v4352
      %4953 = vmatpush1.bf16.msra.mxu0 %v4351
      %4954 = vmatprep.subr.bf16.mxu0 %v4356
      %4955 = vmatpush1.bf16.msra.mxu0 %v4355
      %4956 = vmatprep.subr.bf16.mxu0 %v4360
      %4957 = vmatpush1.bf16.msra.mxu0 %v4359
      %4958 = vmatprep.subr.bf16.mxu0 %v4364
      %4959 = vmatpush1.bf16.msra.mxu0 %v4363
      %4960 = vmatprep.subr.bf16.mxu0 %v4368
      %4961 = vmatpush1.bf16.msra.mxu0 %v4367
      %4962 = vmatprep.subr.bf16.mxu0 %v4372
      %4963 = vmatpush1.bf16.msra.mxu0 %v4371
      %4964 = vmatprep.subr.bf16.mxu0 %v4376
      %4965 = vmatpush1.bf16.msra.mxu0 %v4375
      %4966 = vmatprep.subr.bf16.mxu0 %v4380
      %4967 = vmatpush1.bf16.msra.mxu0 %v4379
      %4968 = vmatprep.subr.bf16.mxu0 %v4384
      %4969 = vmatpush1.bf16.msra.mxu0 %v4383
      %4970 = vmatprep.subr.bf16.mxu0 %v4388
      %4971 = vmatpush1.bf16.msra.mxu0 %v4387
      %4972 = vmatprep.subr.bf16.mxu0 %v4392
      %4973 = vmatpush1.bf16.msra.mxu0 %v4391
      %4974 = vmatprep.subr.bf16.mxu0 %v4396
      %4975 = vmatpush1.bf16.msra.mxu0 %v4395
      %4976 = vmatprep.subr.bf16.mxu0 %v4400
      %4977 = vmatpush1.bf16.msra.mxu0 %v4399
      %4978 = vmatprep.subr.bf16.mxu0 %v4404
      %4979 = vmatpush1.bf16.msra.mxu0 %v4403
      %4980 = vmatprep.mubr.bf16.mxu0 %v3124
      %4981 = vmatmul.mubr.bf16.gmra.mrb[0].mxu0 %v3123
      %v4982 = vpop.f32.mrb[0].mxu0
      %v4983 = vadd.f32 %v4942, %v4982
      %v4984 = vpop.f32.mrb[0].mxu0
      %v4985 = vadd.f32 %v4944, %v4984
      %v4986 = vpop.f32.mrb[0].mxu0
      %v4987 = vpop.f32.mrb[0].mxu0
      %4988 = vdwg.mxu0
      %v4989 = vld [vmem:[#allocation17] sm:$0xf]
      %v4991 = vlaneseq
      %v4992 = vshrl.u32 %v4991, 7
      %v4993 = vsub.s32 0, %v4992
      %v4994 = vrot.slane %v4989, %v4993
      %v4995 = vlaneseq
      %v4996 = vshrl.u32 %v4995, 7
      %v4997 = vsub.s32 1, %v4996
      %v4998 = vrot.slane %v4989, %v4997
      %v4999 = vlaneseq
      %v5000 = vshrl.u32 %v4999, 7
      %v5001 = vsub.s32 2, %v5000
      %v5002 = vrot.slane %v4989, %v5001
      %v5003 = vlaneseq
      %v5004 = vshrl.u32 %v5003, 7
      %v5005 = vsub.s32 3, %v5004
      %v5006 = vrot.slane %v4989, %v5005
      %v5011 = vmul.f32 %v4819, %v4994
      %v5012 = vmul.f32 %v4821, %v4998
      %v5013 = vmul.f32 %v4983, %v5002
      %v5014 = vmul.f32 %v4985, %v5006
      %v5015 = vld [vmem:[#allocation18] sm:$0xf]
      %v5017 = vlaneseq
      %v5018 = vshrl.u32 %v5017, 7
      %v5019 = vsub.s32 0, %v5018
      %v5020 = vrot.slane %v5015, %v5019
      %v5021 = vlaneseq
      %v5022 = vshrl.u32 %v5021, 7
      %v5023 = vsub.s32 1, %v5022
      %v5024 = vrot.slane %v5015, %v5023
      %v5025 = vlaneseq
      %v5026 = vshrl.u32 %v5025, 7
      %v5027 = vsub.s32 2, %v5026
      %v5028 = vrot.slane %v5015, %v5027
      %v5029 = vlaneseq
      %v5030 = vshrl.u32 %v5029, 7
      %v5031 = vsub.s32 3, %v5030
      %v5032 = vrot.slane %v5015, %v5031
      %v5037 = vadd.f32 %v5011, %v5020
      %v5038 = vadd.f32 %v5012, %v5024
      %v5039 = vadd.f32 %v5013, %v5028
      %v5040 = vadd.f32 %v5014, %v5032
      %v5041 = vpack.c.bf16 %v5037, %v5037
      %v5042 = vpack.c.bf16 %v5038, %v5038
      %v5043 = vpack.c.bf16 %v5039, %v5039
      %v5044 = vpack.c.bf16 %v5040, %v5040
      %v5045 = vld [vmem:[#allocation20] sm:$0xff]
      %v5046 = vld [vmem:[#allocation20 + $0x8] sm:$0xff]
      %v5047 = vld [vmem:[#allocation20 + $0x10] sm:$0xff]
      %v5048 = vld [vmem:[#allocation20 + $0x18] sm:$0xff]
      %v5049 = vld [vmem:[#allocation20 + $0x20] sm:$0xff]
      %v5050 = vld [vmem:[#allocation20 + $0x28] sm:$0xff]
      %v5051 = vld [vmem:[#allocation20 + $0x30] sm:$0xff]
      %v5052 = vld [vmem:[#allocation20 + $0x38] sm:$0xff]
      %v5053 = vld [vmem:[#allocation20 + $0x40] sm:$0xff]
      %v5054 = vld [vmem:[#allocation20 + $0x48] sm:$0xff]
      %v5055 = vld [vmem:[#allocation20 + $0x50] sm:$0xff]
      %v5056 = vld [vmem:[#allocation20 + $0x58] sm:$0xff]
      %v5057 = vld [vmem:[#allocation20 + $0x60] sm:$0xff]
      %v5058 = vld [vmem:[#allocation20 + $0x68] sm:$0xff]
      %v5059 = vld [vmem:[#allocation20 + $0x70] sm:$0xff]
      %v5060 = vld [vmem:[#allocation20 + $0x78] sm:$0xff]
      %v5061 = vld [vmem:[#allocation20 + $0x80] sm:$0xff]
      %v5062 = vld [vmem:[#allocation20 + $0x88] sm:$0xff]
      %v5063 = vld [vmem:[#allocation20 + $0x90] sm:$0xff]
      %v5064 = vld [vmem:[#allocation20 + $0x98] sm:$0xff]
      %v5065 = vld [vmem:[#allocation20 + $0xa0] sm:$0xff]
      %v5066 = vld [vmem:[#allocation20 + $0xa8] sm:$0xff]
      %v5067 = vld [vmem:[#allocation20 + $0xb0] sm:$0xff]
      %v5068 = vld [vmem:[#allocation20 + $0xb8] sm:$0xff]
      %v5069 = vld [vmem:[#allocation20 + $0xc0] sm:$0xff]
      %v5070 = vld [vmem:[#allocation20 + $0xc8] sm:$0xff]
      %v5071 = vld [vmem:[#allocation20 + $0xd0] sm:$0xff]
      %v5072 = vld [vmem:[#allocation20 + $0xd8] sm:$0xff]
      %v5073 = vld [vmem:[#allocation20 + $0xe0] sm:$0xff]
      %v5074 = vld [vmem:[#allocation20 + $0xe8] sm:$0xff]
      %v5075 = vld [vmem:[#allocation20 + $0xf0] sm:$0xff]
      %v5076 = vld [vmem:[#allocation20 + $0xf8] sm:$0xff]
      %v5077 = vld [vmem:[#allocation20 + $0x100] sm:$0xff]
      %v5078 = vld [vmem:[#allocation20 + $0x108] sm:$0xff]
      %v5079 = vld [vmem:[#allocation20 + $0x110] sm:$0xff]
      %v5080 = vld [vmem:[#allocation20 + $0x118] sm:$0xff]
      %v5081 = vld [vmem:[#allocation20 + $0x120] sm:$0xff]
      %v5082 = vld [vmem:[#allocation20 + $0x128] sm:$0xff]
      %v5083 = vld [vmem:[#allocation20 + $0x130] sm:$0xff]
      %v5084 = vld [vmem:[#allocation20 + $0x138] sm:$0xff]
      %v5085 = vld [vmem:[#allocation20 + $0x140] sm:$0xff]
      %v5086 = vld [vmem:[#allocation20 + $0x148] sm:$0xff]
      %v5087 = vld [vmem:[#allocation20 + $0x150] sm:$0xff]
      %v5088 = vld [vmem:[#allocation20 + $0x158] sm:$0xff]
      %v5089 = vld [vmem:[#allocation20 + $0x160] sm:$0xff]
      %v5090 = vld [vmem:[#allocation20 + $0x168] sm:$0xff]
      %v5091 = vld [vmem:[#allocation20 + $0x170] sm:$0xff]
      %v5092 = vld [vmem:[#allocation20 + $0x178] sm:$0xff]
      %v5093 = vld [vmem:[#allocation20 + $0x180] sm:$0xff]
      %v5094 = vld [vmem:[#allocation20 + $0x188] sm:$0xff]
      %v5095 = vld [vmem:[#allocation20 + $0x190] sm:$0xff]
      %v5096 = vld [vmem:[#allocation20 + $0x198] sm:$0xff]
      %v5097 = vld [vmem:[#allocation20 + $0x1a0] sm:$0xff]
      %v5098 = vld [vmem:[#allocation20 + $0x1a8] sm:$0xff]
      %v5099 = vld [vmem:[#allocation20 + $0x1b0] sm:$0xff]
      %v5100 = vld [vmem:[#allocation20 + $0x1b8] sm:$0xff]
      %v5101 = vld [vmem:[#allocation20 + $0x1c0] sm:$0xff]
      %v5102 = vld [vmem:[#allocation20 + $0x1c8] sm:$0xff]
      %v5103 = vld [vmem:[#allocation20 + $0x1d0] sm:$0xff]
      %v5104 = vld [vmem:[#allocation20 + $0x1d8] sm:$0xff]
      %v5105 = vld [vmem:[#allocation20 + $0x1e0] sm:$0xff]
      %v5106 = vld [vmem:[#allocation20 + $0x1e8] sm:$0xff]
      %v5107 = vld [vmem:[#allocation20 + $0x1f0] sm:$0xff]
      %v5108 = vld [vmem:[#allocation20 + $0x1f8] sm:$0xff]
      %v5173 = vunpack.c.l.b16 %v5045
      %v5174 = vunpack.c.h.b16 %v5045
      %v5175 = vunpack.c.l.b16 %v5046
      %v5176 = vunpack.c.h.b16 %v5046
      %v5177 = vunpack.c.l.b16 %v5047
      %v5178 = vunpack.c.h.b16 %v5047
      %v5179 = vunpack.c.l.b16 %v5048
      %v5180 = vunpack.c.h.b16 %v5048
      %v5181 = vunpack.c.l.b16 %v5049
      %v5182 = vunpack.c.h.b16 %v5049
      %v5183 = vunpack.c.l.b16 %v5050
      %v5184 = vunpack.c.h.b16 %v5050
      %v5185 = vunpack.c.l.b16 %v5051
      %v5186 = vunpack.c.h.b16 %v5051
      %v5187 = vunpack.c.l.b16 %v5052
      %v5188 = vunpack.c.h.b16 %v5052
      %v5189 = vunpack.c.l.b16 %v5053
      %v5190 = vunpack.c.h.b16 %v5053
      %v5191 = vunpack.c.l.b16 %v5054
      %v5192 = vunpack.c.h.b16 %v5054
      %v5193 = vunpack.c.l.b16 %v5055
      %v5194 = vunpack.c.h.b16 %v5055
      %v5195 = vunpack.c.l.b16 %v5056
      %v5196 = vunpack.c.h.b16 %v5056
      %v5197 = vunpack.c.l.b16 %v5057
      %v5198 = vunpack.c.h.b16 %v5057
      %v5199 = vunpack.c.l.b16 %v5058
      %v5200 = vunpack.c.h.b16 %v5058
      %v5201 = vunpack.c.l.b16 %v5059
      %v5202 = vunpack.c.h.b16 %v5059
      %v5203 = vunpack.c.l.b16 %v5060
      %v5204 = vunpack.c.h.b16 %v5060
      %v5205 = vunpack.c.l.b16 %v5061
      %v5206 = vunpack.c.h.b16 %v5061
      %v5207 = vunpack.c.l.b16 %v5062
      %v5208 = vunpack.c.h.b16 %v5062
      %v5209 = vunpack.c.l.b16 %v5063
      %v5210 = vunpack.c.h.b16 %v5063
      %v5211 = vunpack.c.l.b16 %v5064
      %v5212 = vunpack.c.h.b16 %v5064
      %v5213 = vunpack.c.l.b16 %v5065
      %v5214 = vunpack.c.h.b16 %v5065
      %v5215 = vunpack.c.l.b16 %v5066
      %v5216 = vunpack.c.h.b16 %v5066
      %v5217 = vunpack.c.l.b16 %v5067
      %v5218 = vunpack.c.h.b16 %v5067
      %v5219 = vunpack.c.l.b16 %v5068
      %v5220 = vunpack.c.h.b16 %v5068
      %v5221 = vunpack.c.l.b16 %v5069
      %v5222 = vunpack.c.h.b16 %v5069
      %v5223 = vunpack.c.l.b16 %v5070
      %v5224 = vunpack.c.h.b16 %v5070
      %v5225 = vunpack.c.l.b16 %v5071
      %v5226 = vunpack.c.h.b16 %v5071
      %v5227 = vunpack.c.l.b16 %v5072
      %v5228 = vunpack.c.h.b16 %v5072
      %v5229 = vunpack.c.l.b16 %v5073
      %v5230 = vunpack.c.h.b16 %v5073
      %v5231 = vunpack.c.l.b16 %v5074
      %v5232 = vunpack.c.h.b16 %v5074
      %v5233 = vunpack.c.l.b16 %v5075
      %v5234 = vunpack.c.h.b16 %v5075
      %v5235 = vunpack.c.l.b16 %v5076
      %v5236 = vunpack.c.h.b16 %v5076
      %v5237 = vunpack.c.l.b16 %v5077
      %v5238 = vunpack.c.h.b16 %v5077
      %v5239 = vunpack.c.l.b16 %v5078
      %v5240 = vunpack.c.h.b16 %v5078
      %v5241 = vunpack.c.l.b16 %v5079
      %v5242 = vunpack.c.h.b16 %v5079
      %v5243 = vunpack.c.l.b16 %v5080
      %v5244 = vunpack.c.h.b16 %v5080
      %v5245 = vunpack.c.l.b16 %v5081
      %v5246 = vunpack.c.h.b16 %v5081
      %v5247 = vunpack.c.l.b16 %v5082
      %v5248 = vunpack.c.h.b16 %v5082
      %v5249 = vunpack.c.l.b16 %v5083
      %v5250 = vunpack.c.h.b16 %v5083
      %v5251 = vunpack.c.l.b16 %v5084
      %v5252 = vunpack.c.h.b16 %v5084
      %v5253 = vunpack.c.l.b16 %v5085
      %v5254 = vunpack.c.h.b16 %v5085
      %v5255 = vunpack.c.l.b16 %v5086
      %v5256 = vunpack.c.h.b16 %v5086
      %v5257 = vunpack.c.l.b16 %v5087
      %v5258 = vunpack.c.h.b16 %v5087
      %v5259 = vunpack.c.l.b16 %v5088
      %v5260 = vunpack.c.h.b16 %v5088
      %v5261 = vunpack.c.l.b16 %v5089
      %v5262 = vunpack.c.h.b16 %v5089
      %v5263 = vunpack.c.l.b16 %v5090
      %v5264 = vunpack.c.h.b16 %v5090
      %v5265 = vunpack.c.l.b16 %v5091
      %v5266 = vunpack.c.h.b16 %v5091
      %v5267 = vunpack.c.l.b16 %v5092
      %v5268 = vunpack.c.h.b16 %v5092
      %v5269 = vunpack.c.l.b16 %v5093
      %v5270 = vunpack.c.h.b16 %v5093
      %v5271 = vunpack.c.l.b16 %v5094
      %v5272 = vunpack.c.h.b16 %v5094
      %v5273 = vunpack.c.l.b16 %v5095
      %v5274 = vunpack.c.h.b16 %v5095
      %v5275 = vunpack.c.l.b16 %v5096
      %v5276 = vunpack.c.h.b16 %v5096
      %v5277 = vunpack.c.l.b16 %v5097
      %v5278 = vunpack.c.h.b16 %v5097
      %v5279 = vunpack.c.l.b16 %v5098
      %v5280 = vunpack.c.h.b16 %v5098
      %v5281 = vunpack.c.l.b16 %v5099
      %v5282 = vunpack.c.h.b16 %v5099
      %v5283 = vunpack.c.l.b16 %v5100
      %v5284 = vunpack.c.h.b16 %v5100
      %v5285 = vunpack.c.l.b16 %v5101
      %v5286 = vunpack.c.h.b16 %v5101
      %v5287 = vunpack.c.l.b16 %v5102
      %v5288 = vunpack.c.h.b16 %v5102
      %v5289 = vunpack.c.l.b16 %v5103
      %v5290 = vunpack.c.h.b16 %v5103
      %v5291 = vunpack.c.l.b16 %v5104
      %v5292 = vunpack.c.h.b16 %v5104
      %v5293 = vunpack.c.l.b16 %v5105
      %v5294 = vunpack.c.h.b16 %v5105
      %v5295 = vunpack.c.l.b16 %v5106
      %v5296 = vunpack.c.h.b16 %v5106
      %v5297 = vunpack.c.l.b16 %v5107
      %v5298 = vunpack.c.h.b16 %v5107
      %v5299 = vunpack.c.l.b16 %v5108
      %v5300 = vunpack.c.h.b16 %v5108
      %v5301 = vpack.c.b16 %v5175, %v5173
      %v5302 = vpack.c.b16 %v5176, %v5174
      %v5303 = vpack.c.b16 %v5179, %v5177
      %v5304 = vpack.c.b16 %v5180, %v5178
      %v5305 = vpack.c.b16 %v5183, %v5181
      %v5306 = vpack.c.b16 %v5184, %v5182
      %v5307 = vpack.c.b16 %v5187, %v5185
      %v5308 = vpack.c.b16 %v5188, %v5186
      %v5309 = vpack.c.b16 %v5191, %v5189
      %v5310 = vpack.c.b16 %v5192, %v5190
      %v5311 = vpack.c.b16 %v5195, %v5193
      %v5312 = vpack.c.b16 %v5196, %v5194
      %v5313 = vpack.c.b16 %v5199, %v5197
      %v5314 = vpack.c.b16 %v5200, %v5198
      %v5315 = vpack.c.b16 %v5203, %v5201
      %v5316 = vpack.c.b16 %v5204, %v5202
      %v5317 = vpack.c.b16 %v5207, %v5205
      %v5318 = vpack.c.b16 %v5208, %v5206
      %v5319 = vpack.c.b16 %v5211, %v5209
      %v5320 = vpack.c.b16 %v5212, %v5210
      %v5321 = vpack.c.b16 %v5215, %v5213
      %v5322 = vpack.c.b16 %v5216, %v5214
      %v5323 = vpack.c.b16 %v5219, %v5217
      %v5324 = vpack.c.b16 %v5220, %v5218
      %v5325 = vpack.c.b16 %v5223, %v5221
      %v5326 = vpack.c.b16 %v5224, %v5222
      %v5327 = vpack.c.b16 %v5227, %v5225
      %v5328 = vpack.c.b16 %v5228, %v5226
      %v5329 = vpack.c.b16 %v5231, %v5229
      %v5330 = vpack.c.b16 %v5232, %v5230
      %v5331 = vpack.c.b16 %v5235, %v5233
      %v5332 = vpack.c.b16 %v5236, %v5234
      %v5333 = vpack.c.b16 %v5239, %v5237
      %v5334 = vpack.c.b16 %v5240, %v5238
      %v5335 = vpack.c.b16 %v5243, %v5241
      %v5336 = vpack.c.b16 %v5244, %v5242
      %v5337 = vpack.c.b16 %v5247, %v5245
      %v5338 = vpack.c.b16 %v5248, %v5246
      %v5339 = vpack.c.b16 %v5251, %v5249
      %v5340 = vpack.c.b16 %v5252, %v5250
      %v5341 = vpack.c.b16 %v5255, %v5253
      %v5342 = vpack.c.b16 %v5256, %v5254
      %v5343 = vpack.c.b16 %v5259, %v5257
      %v5344 = vpack.c.b16 %v5260, %v5258
      %v5345 = vpack.c.b16 %v5263, %v5261
      %v5346 = vpack.c.b16 %v5264, %v5262
      %v5347 = vpack.c.b16 %v5267, %v5265
      %v5348 = vpack.c.b16 %v5268, %v5266
      %v5349 = vpack.c.b16 %v5271, %v5269
      %v5350 = vpack.c.b16 %v5272, %v5270
      %v5351 = vpack.c.b16 %v5275, %v5273
      %v5352 = vpack.c.b16 %v5276, %v5274
      %v5353 = vpack.c.b16 %v5279, %v5277
      %v5354 = vpack.c.b16 %v5280, %v5278
      %v5355 = vpack.c.b16 %v5283, %v5281
      %v5356 = vpack.c.b16 %v5284, %v5282
      %v5357 = vpack.c.b16 %v5287, %v5285
      %v5358 = vpack.c.b16 %v5288, %v5286
      %v5359 = vpack.c.b16 %v5291, %v5289
      %v5360 = vpack.c.b16 %v5292, %v5290
      %v5361 = vpack.c.b16 %v5295, %v5293
      %v5362 = vpack.c.b16 %v5296, %v5294
      %v5363 = vpack.c.b16 %v5299, %v5297
      %v5364 = vpack.c.b16 %v5300, %v5298
      %5429 = vmatprep.subr.bf16.mxu0 %v5302
      %5430 = vmatpush1.bf16.msra.mxu0 %v5301
      %5431 = vmatprep.subr.bf16.mxu0 %v5304
      %5432 = vmatpush1.bf16.msra.mxu0 %v5303
      %5433 = vmatprep.subr.bf16.mxu0 %v5306
      %5434 = vmatpush1.bf16.msra.mxu0 %v5305
      %5435 = vmatprep.subr.bf16.mxu0 %v5308
      %5436 = vmatpush1.bf16.msra.mxu0 %v5307
      %5437 = vmatprep.subr.bf16.mxu0 %v5310
      %5438 = vmatpush1.bf16.msra.mxu0 %v5309
      %5439 = vmatprep.subr.bf16.mxu0 %v5312
      %5440 = vmatpush1.bf16.msra.mxu0 %v5311
      %5441 = vmatprep.subr.bf16.mxu0 %v5314
      %5442 = vmatpush1.bf16.msra.mxu0 %v5313
      %5443 = vmatprep.subr.bf16.mxu0 %v5316
      %5444 = vmatpush1.bf16.msra.mxu0 %v5315
      %5445 = vmatprep.subr.bf16.mxu0 %v5318
      %5446 = vmatpush1.bf16.msra.mxu0 %v5317
      %5447 = vmatprep.subr.bf16.mxu0 %v5320
      %5448 = vmatpush1.bf16.msra.mxu0 %v5319
      %5449 = vmatprep.subr.bf16.mxu0 %v5322
      %5450 = vmatpush1.bf16.msra.mxu0 %v5321
      %5451 = vmatprep.subr.bf16.mxu0 %v5324
      %5452 = vmatpush1.bf16.msra.mxu0 %v5323
      %5453 = vmatprep.subr.bf16.mxu0 %v5326
      %5454 = vmatpush1.bf16.msra.mxu0 %v5325
      %5455 = vmatprep.subr.bf16.mxu0 %v5328
      %5456 = vmatpush1.bf16.msra.mxu0 %v5327
      %5457 = vmatprep.subr.bf16.mxu0 %v5330
      %5458 = vmatpush1.bf16.msra.mxu0 %v5329
      %5459 = vmatprep.subr.bf16.mxu0 %v5332
      %5460 = vmatpush1.bf16.msra.mxu0 %v5331
      %5461 = vmatprep.mubr.bf16.mxu0 %v5042
      %5462 = vmatmul.mubr.bf16.gmra.mrb[0].mxu0 %v5041
      %v5463 = vpop.f32.mrb[0].mxu0
      %v5464 = vadd.f32 0.0, %v5463
      %v5465 = vpop.f32.mrb[0].mxu0
      %v5466 = vadd.f32 0.0, %v5465
      %v5467 = vpop.f32.mrb[0].mxu0
      %v5468 = vpop.f32.mrb[0].mxu0
      %5469 = vdwg.mxu0
      %5470 = vmatprep.subr.bf16.mxu0 %v5334
      %5471 = vmatpush1.bf16.msra.mxu0 %v5333
      %5472 = vmatprep.subr.bf16.mxu0 %v5336
      %5473 = vmatpush1.bf16.msra.mxu0 %v5335
      %5474 = vmatprep.subr.bf16.mxu0 %v5338
      %5475 = vmatpush1.bf16.msra.mxu0 %v5337
      %5476 = vmatprep.subr.bf16.mxu0 %v5340
      %5477 = vmatpush1.bf16.msra.mxu0 %v5339
      %5478 = vmatprep.subr.bf16.mxu0 %v5342
      %5479 = vmatpush1.bf16.msra.mxu0 %v5341
      %5480 = vmatprep.subr.bf16.mxu0 %v5344
      %5481 = vmatpush1.bf16.msra.mxu0 %v5343
      %5482 = vmatprep.subr.bf16.mxu0 %v5346
      %5483 = vmatpush1.bf16.msra.mxu0 %v5345
      %5484 = vmatprep.subr.bf16.mxu0 %v5348
      %5485 = vmatpush1.bf16.msra.mxu0 %v5347
      %5486 = vmatprep.subr.bf16.mxu0 %v5350
      %5487 = vmatpush1.bf16.msra.mxu0 %v5349
      %5488 = vmatprep.subr.bf16.mxu0 %v5352
      %5489 = vmatpush1.bf16.msra.mxu0 %v5351
      %5490 = vmatprep.subr.bf16.mxu0 %v5354
      %5491 = vmatpush1.bf16.msra.mxu0 %v5353
      %5492 = vmatprep.subr.bf16.mxu0 %v5356
      %5493 = vmatpush1.bf16.msra.mxu0 %v5355
      %5494 = vmatprep.subr.bf16.mxu0 %v5358
      %5495 = vmatpush1.bf16.msra.mxu0 %v5357
      %5496 = vmatprep.subr.bf16.mxu0 %v5360
      %5497 = vmatpush1.bf16.msra.mxu0 %v5359
      %5498 = vmatprep.subr.bf16.mxu0 %v5362
      %5499 = vmatpush1.bf16.msra.mxu0 %v5361
      %5500 = vmatprep.subr.bf16.mxu0 %v5364
      %5501 = vmatpush1.bf16.msra.mxu0 %v5363
      %5502 = vmatprep.mubr.bf16.mxu0 %v5044
      %5503 = vmatmul.mubr.bf16.gmra.mrb[0].mxu0 %v5043
      %v5504 = vpop.f32.mrb[0].mxu0
      %v5505 = vadd.f32 %v5464, %v5504
      %v5506 = vpop.f32.mrb[0].mxu0
      %v5507 = vadd.f32 %v5466, %v5506
      %v5508 = vpop.f32.mrb[0].mxu0
      %v5509 = vpop.f32.mrb[0].mxu0
      %5510 = vdwg.mxu0
      %v5511 = vld [vmem:[#allocation21] sm:$0x3]
      %v5513 = vlaneseq
      %v5514 = vshrl.u32 %v5513, 7
      %v5515 = vsub.s32 0, %v5514
      %v5516 = vrot.slane %v5511, %v5515
      %v5517 = vlaneseq
      %v5518 = vshrl.u32 %v5517, 7
      %v5519 = vsub.s32 1, %v5518
      %v5520 = vrot.slane %v5511, %v5519
      %v5523 = vmul.f32 %v5505, %v5516
      %v5524 = vmul.f32 %v5507, %v5520
      %v5525 = vld [vmem:[#allocation23] sm:$0x3]
      %v5527 = vlaneseq
      %v5528 = vshrl.u32 %v5527, 7
      %v5529 = vsub.s32 0, %v5528
      %v5530 = vrot.slane %v5525, %v5529
      %v5531 = vlaneseq
      %v5532 = vshrl.u32 %v5531, 7
      %v5533 = vsub.s32 1, %v5532
      %v5534 = vrot.slane %v5525, %v5533
      %v5537 = vadd.f32 %v5523, %v5530
      %v5538 = vadd.f32 %v5524, %v5534
      %v5539 = vpack.c.bf16 %v5537, %v5537
      %v5540 = vpack.c.bf16 %v5538, %v5538
      %v5541 = vld [vmem:[#allocation24] sm:$0xf]
      %v5542 = vld [vmem:[#allocation24 + $0x4] sm:$0xf]
      %v5543 = vld [vmem:[#allocation24 + $0x8] sm:$0xf]
      %v5544 = vld [vmem:[#allocation24 + $0xc] sm:$0xf]
      %v5545 = vld [vmem:[#allocation24 + $0x10] sm:$0xf]
      %v5546 = vld [vmem:[#allocation24 + $0x14] sm:$0xf]
      %v5547 = vld [vmem:[#allocation24 + $0x18] sm:$0xf]
      %v5548 = vld [vmem:[#allocation24 + $0x1c] sm:$0xf]
      %v5549 = vld [vmem:[#allocation24 + $0x20] sm:$0xf]
      %v5550 = vld [vmem:[#allocation24 + $0x24] sm:$0xf]
      %v5551 = vld [vmem:[#allocation24 + $0x28] sm:$0xf]
      %v5552 = vld [vmem:[#allocation24 + $0x2c] sm:$0xf]
      %v5553 = vld [vmem:[#allocation24 + $0x30] sm:$0xf]
      %v5554 = vld [vmem:[#allocation24 + $0x34] sm:$0xf]
      %v5555 = vld [vmem:[#allocation24 + $0x38] sm:$0xf]
      %v5556 = vld [vmem:[#allocation24 + $0x3c] sm:$0xf]
      %v5557 = vld [vmem:[#allocation24 + $0x40] sm:$0xf]
      %v5558 = vld [vmem:[#allocation24 + $0x44] sm:$0xf]
      %v5559 = vld [vmem:[#allocation24 + $0x48] sm:$0xf]
      %v5560 = vld [vmem:[#allocation24 + $0x4c] sm:$0xf]
      %v5561 = vld [vmem:[#allocation24 + $0x50] sm:$0xf]
      %v5562 = vld [vmem:[#allocation24 + $0x54] sm:$0xf]
      %v5563 = vld [vmem:[#allocation24 + $0x58] sm:$0xf]
      %v5564 = vld [vmem:[#allocation24 + $0x5c] sm:$0xf]
      %v5565 = vld [vmem:[#allocation24 + $0x60] sm:$0xf]
      %v5566 = vld [vmem:[#allocation24 + $0x64] sm:$0xf]
      %v5567 = vld [vmem:[#allocation24 + $0x68] sm:$0xf]
      %v5568 = vld [vmem:[#allocation24 + $0x6c] sm:$0xf]
      %v5569 = vld [vmem:[#allocation24 + $0x70] sm:$0xf]
      %v5570 = vld [vmem:[#allocation24 + $0x74] sm:$0xf]
      %v5571 = vld [vmem:[#allocation24 + $0x78] sm:$0xf]
      %v5572 = vld [vmem:[#allocation24 + $0x7c] sm:$0xf]
      %v5573 = vld [vmem:[#allocation26] sm:$0x1]
      %v5575 = vlaneseq
      %v5576 = vshrl.u32 %v5575, 7
      %v5577 = vsub.s32 0, %v5576
      %v5578 = vrot.slane %v5573, %v5577
      %v5612 = vunpack.c.l.b16 %v5541
      %v5613 = vunpack.c.l.b16 %v5542
      %v5614 = vunpack.c.l.b16 %v5543
      %v5615 = vunpack.c.l.b16 %v5544
      %v5616 = vunpack.c.l.b16 %v5545
      %v5617 = vunpack.c.l.b16 %v5546
      %v5618 = vunpack.c.l.b16 %v5547
      %v5619 = vunpack.c.l.b16 %v5548
      %v5620 = vunpack.c.l.b16 %v5549
      %v5621 = vunpack.c.l.b16 %v5550
      %v5622 = vunpack.c.l.b16 %v5551
      %v5623 = vunpack.c.l.b16 %v5552
      %v5624 = vunpack.c.l.b16 %v5553
      %v5625 = vunpack.c.l.b16 %v5554
      %v5626 = vunpack.c.l.b16 %v5555
      %v5627 = vunpack.c.l.b16 %v5556
      %v5628 = vunpack.c.l.b16 %v5557
      %v5629 = vunpack.c.l.b16 %v5558
      %v5630 = vunpack.c.l.b16 %v5559
      %v5631 = vunpack.c.l.b16 %v5560
      %v5632 = vunpack.c.l.b16 %v5561
      %v5633 = vunpack.c.l.b16 %v5562
      %v5634 = vunpack.c.l.b16 %v5563
      %v5635 = vunpack.c.l.b16 %v5564
      %v5636 = vunpack.c.l.b16 %v5565
      %v5637 = vunpack.c.l.b16 %v5566
      %v5638 = vunpack.c.l.b16 %v5567
      %v5639 = vunpack.c.l.b16 %v5568
      %v5640 = vunpack.c.l.b16 %v5569
      %v5641 = vunpack.c.l.b16 %v5570
      %v5642 = vunpack.c.l.b16 %v5571
      %v5643 = vunpack.c.l.b16 %v5572
      %v5644 = vpack.c.b16 %v5613, %v5612
      %v5645 = vpack.c.b16 %v5615, %v5614
      %v5646 = vpack.c.b16 %v5617, %v5616
      %v5647 = vpack.c.b16 %v5619, %v5618
      %v5648 = vpack.c.b16 %v5621, %v5620
      %v5649 = vpack.c.b16 %v5623, %v5622
      %v5650 = vpack.c.b16 %v5625, %v5624
      %v5651 = vpack.c.b16 %v5627, %v5626
      %v5652 = vpack.c.b16 %v5629, %v5628
      %v5653 = vpack.c.b16 %v5631, %v5630
      %v5654 = vpack.c.b16 %v5633, %v5632
      %v5655 = vpack.c.b16 %v5635, %v5634
      %v5656 = vpack.c.b16 %v5637, %v5636
      %v5657 = vpack.c.b16 %v5639, %v5638
      %v5658 = vpack.c.b16 %v5641, %v5640
      %v5659 = vpack.c.b16 %v5643, %v5642
      %5676 = vmatprep.subr.bf16.mxu0 0
      %5677 = vmatpush1.bf16.msra.mxu0 %v5644
      %5678 = vmatprep.subr.bf16.mxu0 0
      %5679 = vmatpush1.bf16.msra.mxu0 %v5645
      %5680 = vmatprep.subr.bf16.mxu0 0
      %5681 = vmatpush1.bf16.msra.mxu0 %v5646
      %5682 = vmatprep.subr.bf16.mxu0 0
      %5683 = vmatpush1.bf16.msra.mxu0 %v5647
      %5684 = vmatprep.subr.bf16.mxu0 0
      %5685 = vmatpush1.bf16.msra.mxu0 %v5648
      %5686 = vmatprep.subr.bf16.mxu0 0
      %5687 = vmatpush1.bf16.msra.mxu0 %v5649
      %5688 = vmatprep.subr.bf16.mxu0 0
      %5689 = vmatpush1.bf16.msra.mxu0 %v5650
      %5690 = vmatprep.subr.bf16.mxu0 0
      %5691 = vmatpush1.bf16.msra.mxu0 %v5651
      %5692 = vmatprep.subr.bf16.mxu0 0
      %5693 = vmatpush1.bf16.msra.mxu0 %v5652
      %5694 = vmatprep.subr.bf16.mxu0 0
      %5695 = vmatpush1.bf16.msra.mxu0 %v5653
      %5696 = vmatprep.subr.bf16.mxu0 0
      %5697 = vmatpush1.bf16.msra.mxu0 %v5654
      %5698 = vmatprep.subr.bf16.mxu0 0
      %5699 = vmatpush1.bf16.msra.mxu0 %v5655
      %5700 = vmatprep.subr.bf16.mxu0 0
      %5701 = vmatpush1.bf16.msra.mxu0 %v5656
      %5702 = vmatprep.subr.bf16.mxu0 0
      %5703 = vmatpush1.bf16.msra.mxu0 %v5657
      %5704 = vmatprep.subr.bf16.mxu0 0
      %5705 = vmatpush1.bf16.msra.mxu0 %v5658
      %5706 = vmatprep.subr.bf16.mxu0 0
      %5707 = vmatpush1.bf16.msra.mxu0 %v5659
      %5708 = vmatprep.mubr.bf16.mxu0 %v5540
      %5709 = vmatmul.mubr.bf16.gmra.mrb[0].mxu0 %v5539
      %v5710 = vpop.f32.mrb[0].mxu0
      %v5711 = vadd.f32 %v5578, %v5710
      %v5712 = vpop.f32.mrb[0].mxu0
      %v5713 = vpop.f32.mrb[0].mxu0
      %v5714 = vpop.f32.mrb[0].mxu0
      %5715 = vdwg.mxu0
      %vm5716 = vcmask 80896
      %5717 = vst.msk [vmem:[#allocation27] sm:$0xff] %vm5716, %v5711
    $region129: #{oriented_rscnn_forward.5} parent=1 // pred_fallthru
      _
    // Predicated region
    $region130: #{oriented_rscnn_forward.5} parent=1 // pred_check
      _
    $region131: #{oriented_rscnn_forward.5} parent=1 // pred_check_branch
      %5719 = sbr.rel (0) target = $region133
    $region132: #{oriented_rscnn_forward.5} parent=1 // pred_region
      %s5721 = ssub.s32 128, 128
      %5722 = vsyncadd [#allocation5], %s5721
      %s5724 = sshll.u32 [#allocation27], 4
      %s5725 = int_to_ptr.vmem [resolvable:$true] %s5724
      %5727 = dma.vmem_to_hbm [thread:$0]  %s5725, 128, %s15, [#allocation5]
    $region133: #{oriented_rscnn_forward.5} parent=1 // pred_fallthru
      _
    // Predicated region
    $region134: #{oriented_rscnn_forward.5} parent=1 // pred_check
      _
    $region135: #{oriented_rscnn_forward.5} parent=1 // pred_check_branch
      %5729 = sbr.rel (0) target = $region137
    $region136: #{oriented_rscnn_forward.5} parent=1 // pred_region
      %5730 = dma.done [#allocation5], 128
    $region137: #{oriented_rscnn_forward.5} parent=1 // pred_fallthru
      _
    %5731 = vsyncpa [#allocation4], 1
    %5732 = vsyncpa [#allocation7], 1
    %5733 = vsyncpa [#allocation10], 1
    %5734 = vsyncpa [#allocation13], 1
    %5735 = vsyncpa [#allocation16], 1
    %5736 = vsyncpa [#allocation19], 1
    %5737 = vsyncpa [#allocation22], 1
    %5738 = vsyncpa [#allocation25], 1
    %5739 = vsyncpa [#allocation5], 1

</llo_original>
